<compile_context>
chip_gen: v5e
topology: v5e:2x2
jax: 0.10.0
libtpu: 0.0.40
codegen_flags: <defaults>
</compile_context>

<pallas_src>
import numpy as np
import jax
import jax.numpy as jnp
from jax.experimental import pallas as pl
from jax.experimental.pallas import tpu as pltpu


# ------------------------------ fused kernel ------------------------------- #

def _cnn_fused_kernel(xe_ref, xo_ref, w1e_ref, w1o_ref, b1_ref,
                      w2e_ref, w2o_ref, b2_ref, s2e_ref, s2o_ref,
                      wfc_ref, bfc_ref, wh_ref, bh_ref, o_ref):
    f32, bf16 = jnp.float32, jnp.bfloat16
    n1 = xe_ref.shape[1]          # B_BLK * 20 rows (batch stacked along M)
    bblk = o_ref.shape[1]         # B_BLK

    def mm(a, b):
        return jnp.dot(a, b, preferred_element_type=f32)

    # conv1 (tap-folded K=84, split by output-row and output-col parity) + ReLU
    # + pool1.  The four matmuls are exactly the four 2x2 pool candidates, so
    # pool1 is a pure elementwise max; relu(max(.) + b) == max(relu(. + b)).
    xe = xe_ref[0].astype(bf16)                                    # (n1, 84)
    xo = xo_ref[0].astype(bf16)
    w1e, w1o = w1e_ref[...], w1o_ref[...]
    m_e = jnp.maximum(mm(xe, w1e), mm(xe, w1o))
    m_o = jnp.maximum(mm(xo, w1e), mm(xo, w1o))
    z1 = jnp.maximum(jnp.maximum(m_e, m_o) + b1_ref[...], 0.0)     # (n1, 416) f32

    # conv2: 3 row-tap-shifted matmuls per column parity.  Row pitch stays 20
    # per sample; rows 18/19 of each sample are don't-care and are dropped by
    # the pool2 selection below.  Zero-padding keeps all slabs the same height.
    zpad = jnp.concatenate([z1, jnp.zeros((8, z1.shape[1]), f32)], axis=0)
    slabs = [zpad[d:d + n1, :].astype(bf16) for d in range(3)]
    acc_e = (mm(slabs[0], w2e_ref[0]) + mm(slabs[1], w2e_ref[1])
             + mm(slabs[2], w2e_ref[2]))
    acc_o = (mm(slabs[0], w2o_ref[0]) + mm(slabs[1], w2o_ref[1])
             + mm(slabs[2], w2o_ref[2]))
    y2 = jnp.maximum(jnp.maximum(acc_e, acc_o) + b2_ref[...], 0.0)  # (n1, 320)

    # pool2 row half: two 0/1 selection matmuls whose output rows come out in
    # (pooled-row-major, sample-minor) order -- the fc row permutation is free.
    y2b = y2.astype(bf16)
    z2 = jnp.maximum(mm(s2e_ref[...], y2b), mm(s2o_ref[...], y2b))  # (B_BLK*9, 320)

    # fc (2880 -> 128): 9 matmuls with M = B_BLK, 3 independent accumulators.
    acc = [None, None, None]
    for h in range(9):
        rows = z2[h * bblk:(h + 1) * bblk, :].astype(bf16)          # (B_BLK, 320)
        p = mm(rows, wfc_ref[h])
        acc[h % 3] = p if acc[h % 3] is None else acc[h % 3] + p
    hfc = jnp.maximum(acc[0] + acc[1] + acc[2] + bfc_ref[...], 0.0)  # (B_BLK, 128)

    # Both 10-way heads packed into one (128, 128) matmul -> lane-dense store.
    o_ref[0] = mm(hfc, wh_ref[...]) + bh_ref[...]


# ------------------------------ host wrapper -------------------------------- #

def _pick_b_blk(B):
    # Largest batch block (<= 8, so fc row slices stay 8-aligned and the output
    # slab approaches a full (8, 128) tile) that still leaves >= 2 grid steps
    # when possible so both v7x TensorCores get work (on v5e/v6e the grid is a
    # serial loop and only step-overhead amortization matters).
    if B >= 16:
        return 8
    if B >= 8:
        return 4
    if B >= 4:
        return 2
    return 1


def _pool2_selectors(b_blk):
    # 0/1 row-selection matrices for the row half of pool2.  Output row
    # h*b_blk + s picks conv2 row 2h (resp. 2h+1) of sample s, so z2 comes out
    # grouped by pooled-row index h -- exactly the layout fc consumes.
    rows, cols = b_blk * 9, b_blk * 20
    se = np.zeros((rows, cols), np.float32)
    so = np.zeros((rows, cols), np.float32)
    for h in range(9):
        for s in range(b_blk):
            se[h * b_blk + s, s * 20 + 2 * h] = 1.0
            so[h * b_blk + s, s * 20 + 2 * h + 1] = 1.0
    return jnp.asarray(se, jnp.bfloat16), jnp.asarray(so, jnp.bfloat16)


def cnn_forward(prep, x_nchw):
    B = x_nchw.shape[0]
    b_blk = _pick_b_blk(B)
    nb = pl.cdiv(B, b_blk)
    Bp = nb * b_blk

    x2d = x_nchw[:, 0, :, :].astype(jnp.float32)                    # (B, 42, 28)
    if Bp != B:
        x2d = jnp.pad(x2d, ((0, Bp - B), (0, 0), (0, 0)))

    # Tap-folded conv1 input slabs, split by output-row parity (cheap XLA
    # strided slices: moves the conv1 row-window gather out of the kernel and
    # folds all 3 kh taps into the matmul K dimension, K = 84).
    def slab(off):
        taps = [x2d[:, off + d:off + d + 40:2, :] for d in range(3)]  # (Bp,20,28)
        return jnp.concatenate(taps, axis=2).reshape(nb, b_blk * 20, 84)

    xe, xo = slab(0), slab(1)
    s2e, s2o = _pool2_selectors(b_blk)

    weights = (prep["w1e"], prep["w1o"], prep["bias1"],
               prep["w2e"], prep["w2o"], prep["bias2"],
               s2e, s2o,
               prep["wfc9"], prep["bfc"], prep["whead"], prep["bhead"])

    def full(a):
        nd = a.ndim
        return pl.BlockSpec(a.shape, lambda i, _nd=nd: (0,) * _nd)

    m1 = b_blk * 20
    flops = nb * (4 * m1 * 84 * 416 * 2
                  + 6 * m1 * 416 * 320 * 2
                  + 2 * (b_blk * 9) * m1 * 320 * 2
                  + 9 * b_blk * 320 * 128 * 2
                  + b_blk * 128 * 128 * 2)
    bytes_accessed = (sum(int(w.size) * w.dtype.itemsize for w in weights)
                      + int(xe.size + xo.size) * 4 + Bp * 128 * 4)

    out = pl.pallas_call(
        _cnn_fused_kernel,
        out_shape=jax.ShapeDtypeStruct((nb, b_blk, 128), jnp.float32),
        grid=(nb,),
        in_specs=[pl.BlockSpec((1, b_blk * 20, 84), lambda i: (i, 0, 0)),
                  pl.BlockSpec((1, b_blk * 20, 84), lambda i: (i, 0, 0))]
                 + [full(w) for w in weights],
        out_specs=pl.BlockSpec((1, b_blk, 128), lambda i: (i, 0, 0)),
        compiler_params=pltpu.CompilerParams(
            dimension_semantics=("parallel",),
            vmem_limit_bytes=16 * 1024 * 1024),
        cost_estimate=pl.CostEstimate(flops=int(flops), transcendentals=0,
                                      bytes_accessed=int(bytes_accessed)),
    )(xe, xo, *weights)

    logits = out.reshape(Bp, 128)[:B]
    return logits[:, 0:10], logits[:, 10:20]


# ------------------- one-time host-side weight preparation ------------------ #

def prepare_params(params):
    w1 = np.asarray(params["w1"], np.float32)     # (32, 1, 3, 3)
    b1 = np.asarray(params["b1"], np.float32)
    w2 = np.asarray(params["w2"], np.float32)     # (64, 32, 3, 3)
    b2 = np.asarray(params["b2"], np.float32)
    wfc = np.asarray(params["wfc"], np.float32)   # (128, 2880)
    bfc = np.asarray(params["bfc"], np.float32)
    wd1 = np.asarray(params["wd1"], np.float32)
    bd1 = np.asarray(params["bd1"], np.float32)
    wd2 = np.asarray(params["wd2"], np.float32)
    bd2 = np.asarray(params["bd2"], np.float32)

    # conv1: tap-folded (K = 3*28 = 84) banded weights, W-parity split.
    # Input slab lane layout: di*28 + col; output lane layout: w*32 + co.
    w1e = np.zeros((84, 13 * 32), np.float32)
    w1o = np.zeros((84, 13 * 32), np.float32)
    for di in range(3):
        for dj in range(3):
            for w in range(13):
                w1e[di * 28 + 2 * w + dj, w * 32:(w + 1) * 32] = w1[:, 0, di, dj]
                w1o[di * 28 + 2 * w + 1 + dj, w * 32:(w + 1) * 32] = w1[:, 0, di, dj]
    bias1 = np.tile(b1, 13)[None, :]                                 # (1, 416)

    # conv2: per-kh-tap banded weights (K = 416), W-parity split
    # (output col j = 10 is dropped by pool2 and never computed).
    w2t = np.transpose(w2, (1, 0, 2, 3))                             # (ci, co, kh, kw)
    w2e = np.zeros((3, 13 * 32, 5 * 64), np.float32)
    w2o = np.zeros((3, 13 * 32, 5 * 64), np.float32)
    for di in range(3):
        for dj in range(3):
            for q in range(5):
                blk = w2t[:, :, di, dj]                              # (32, 64)
                w2e[di, (2 * q + dj) * 32:(2 * q + dj + 1) * 32,
                    q * 64:(q + 1) * 64] = blk
                w2o[di, (2 * q + 1 + dj) * 32:(2 * q + 2 + dj) * 32,
                    q * 64:(q + 1) * 64] = blk
    bias2 = np.tile(b2, 5)[None, :]                                  # (1, 320)

    # fc weight permuted to (pooled-row h, lane q*64 + c, out n);
    # torch flatten index of pooled (B, 64, 9, 5) is c*45 + h*5 + q.
    h_idx = np.arange(9)[:, None, None]
    q_idx = np.arange(5)[None, :, None]
    c_idx = np.arange(64)[None, None, :]
    flat_idx = (c_idx * 45 + h_idx * 5 + q_idx).reshape(9, 320)      # [h, q*64+c]
    wfc9 = np.transpose(wfc[:, flat_idx], (1, 2, 0)).copy()          # (9, 320, 128)

    # Both heads packed into one zero-padded lane-dense (128, 128) matrix.
    whead = np.zeros((128, 128), np.float32)
    whead[:, 0:10] = wd1.T
    whead[:, 10:20] = wd2.T
    bhead = np.zeros((1, 128), np.float32)
    bhead[0, 0:10] = bd1
    bhead[0, 10:20] = bd2

    bf = lambda a: jnp.asarray(a, jnp.bfloat16)
    fp = lambda a: jnp.asarray(a, jnp.float32)
    return dict(w1e=bf(w1e), w1o=bf(w1o), bias1=fp(bias1),
                w2e=bf(w2e), w2o=bf(w2o), bias2=fp(bias2),
                wfc9=bf(wfc9), bfc=fp(bfc[None, :]),
                whead=fp(whead), bhead=fp(bhead))


# ------------------------- params / reference / main ------------------------ #

def init_params(key):
    # Deterministic synthetic init (uniform +-1/sqrt(fan_in), like PyTorch defaults).
    def uni(k, shape, fan_in):
        bound = 1.0 / np.sqrt(fan_in)
        return jax.random.uniform(k, shape, jnp.float32, -bound, bound)
    ks = jax.random.split(key, 10)
    return {
        "w1": uni(ks[0], (32, 1, 3, 3), 9),
        "b1": uni(ks[1], (32,), 9),
        "w2": uni(ks[2], (64, 32, 3, 3), 32 * 9),
        "b2": uni(ks[3], (64,), 32 * 9),
        "wfc": uni(ks[4], (128, 2880), 2880),
        "bfc": uni(ks[5], (128,), 2880),
        "wd1": uni(ks[6], (10, 128), 128),
        "bd1": uni(ks[7], (10,), 128),
        "wd2": uni(ks[8], (10, 128), 128),
        "bd2": uni(ks[9], (10,), 128),
    }


def reference_forward(params, x_nchw):
    # Pure-JAX/XLA reference matching the PyTorch forward (eval mode).
    hp = jax.lax.Precision.HIGHEST
    y = jax.lax.conv_general_dilated(
        x_nchw, params["w1"], (1, 1), "VALID",
        dimension_numbers=("NCHW", "OIHW", "NCHW"), precision=hp)
    y = jax.nn.relu(y + params["b1"][None, :, None, None])
    y = jax.lax.reduce_window(y, -jnp.inf, jax.lax.max,
                              (1, 1, 2, 2), (1, 1, 2, 2), "VALID")
    y = jax.lax.conv_general_dilated(
        y, params["w2"], (1, 1), "VALID",
        dimension_numbers=("NCHW", "OIHW", "NCHW"), precision=hp)
    y = jax.nn.relu(y + params["b2"][None, :, None, None])
    y = jax.lax.reduce_window(y, -jnp.inf, jax.lax.max,
                              (1, 1, 2, 2), (1, 1, 2, 2), "VALID")
    flat = y.reshape(y.shape[0], -1)
    h = jax.nn.relu(jnp.dot(flat, params["wfc"].T, precision=hp) + params["bfc"])
    o1 = jnp.dot(h, params["wd1"].T, precision=hp) + params["bd1"]
    o2 = jnp.dot(h, params["wd2"].T, precision=hp) + params["bd2"]
    return o1, o2


if __name__ == "__main__":
    key = jax.random.PRNGKey(0)
    pkey, xkey = jax.random.split(key)
    params = init_params(pkey)
    prep = prepare_params(params)
    # Two-digit MNIST input implied by fc(2880): 1 channel, 42x28 (NCHW).
    # batch=8 keeps shapes small while exercising the batch-blocked grid
    # (B_BLK = 4 -> 2 grid steps, one per v7x TensorCore).
    x = jax.random.normal(xkey, (8, 1, 42, 28), jnp.float32)

    fwd = jax.jit(cnn_forward)
    o1, o2 = jax.block_until_ready(fwd(prep, x))

    r1, r2 = reference_forward(params, x)
    assert o1.shape == (8, 10) and o2.shape == (8, 10)
    # 2e-2 tolerance: banded conv / fc weights and their dot inputs are bf16
    # (per perf review) with f32 accumulation, compared against a
    # HIGHEST-precision f32 XLA reference.  Real indexing bugs produce O(0.1)
    # errors and are still caught.
    np.testing.assert_allclose(np.asarray(o1), np.asarray(r1), rtol=2e-2, atol=2e-2)
    np.testing.assert_allclose(np.asarray(o2), np.asarray(r2), rtol=2e-2, atol=2e-2)
    print("KERNEL_OK")
</pallas_src>

<mosaic_0001>
module attributes {stable_mosaic.version = 11 : i64} {
  func.func @_cnn_fused_kernel(%arg0: i32, %arg1: memref<1x80x84xf32, #tpu.memory_space<vmem>>, %arg2: memref<1x80x84xf32, #tpu.memory_space<vmem>>, %arg3: memref<84x416xbf16, #tpu.memory_space<vmem>>, %arg4: memref<84x416xbf16, #tpu.memory_space<vmem>>, %arg5: memref<1x416xf32, #tpu.memory_space<vmem>>, %arg6: memref<3x416x320xbf16, #tpu.memory_space<vmem>>, %arg7: memref<3x416x320xbf16, #tpu.memory_space<vmem>>, %arg8: memref<1x320xf32, #tpu.memory_space<vmem>>, %arg9: memref<36x80xbf16, #tpu.memory_space<vmem>>, %arg10: memref<36x80xbf16, #tpu.memory_space<vmem>>, %arg11: memref<9x320x128xbf16, #tpu.memory_space<vmem>>, %arg12: memref<1x128xf32, #tpu.memory_space<vmem>>, %arg13: memref<128x128xf32, #tpu.memory_space<vmem>>, %arg14: memref<1x128xf32, #tpu.memory_space<vmem>>, %arg15: memref<1x4x128xf32, #tpu.memory_space<vmem>>) attributes {dimension_semantics = [#tpu.dimension_semantics<parallel>], iteration_bounds = array<i64: 2>, scalar_prefetch = 0 : i64, scratch_operands = 0 : i64, tpu.core_type = #tpu.core_type<tc>, window_params = [{transform_indices = @transform_0, window_bounds = array<i64: 1, 80, 84>}, {transform_indices = @transform_1, window_bounds = array<i64: 1, 80, 84>}, {pipeline_mode = #tpu.pipeline_mode<synchronous>, transform_indices = @transform_2, window_bounds = array<i64: 84, 416>}, {pipeline_mode = #tpu.pipeline_mode<synchronous>, transform_indices = @transform_3, window_bounds = array<i64: 84, 416>}, {pipeline_mode = #tpu.pipeline_mode<synchronous>, transform_indices = @transform_4, window_bounds = array<i64: 1, 416>}, {pipeline_mode = #tpu.pipeline_mode<synchronous>, transform_indices = @transform_5, window_bounds = array<i64: 3, 416, 320>}, {pipeline_mode = #tpu.pipeline_mode<synchronous>, transform_indices = @transform_6, window_bounds = array<i64: 3, 416, 320>}, {pipeline_mode = #tpu.pipeline_mode<synchronous>, transform_indices = @transform_7, window_bounds = array<i64: 1, 320>}, {pipeline_mode = #tpu.pipeline_mode<synchronous>, transform_indices = @transform_8, window_bounds = array<i64: 36, 80>}, {pipeline_mode = #tpu.pipeline_mode<synchronous>, transform_indices = @transform_9, window_bounds = array<i64: 36, 80>}, {pipeline_mode = #tpu.pipeline_mode<synchronous>, transform_indices = @transform_10, window_bounds = array<i64: 9, 320, 128>}, {pipeline_mode = #tpu.pipeline_mode<synchronous>, transform_indices = @transform_11, window_bounds = array<i64: 1, 128>}, {pipeline_mode = #tpu.pipeline_mode<synchronous>, transform_indices = @transform_12, window_bounds = array<i64: 128, 128>}, {pipeline_mode = #tpu.pipeline_mode<synchronous>, transform_indices = @transform_13, window_bounds = array<i64: 1, 128>}, {transform_indices = @transform_14, window_bounds = array<i64: 1, 4, 128>}]} {
    %c0 = arith.constant 0 : index
    %c0_0 = arith.constant 0 : index
    %c0_1 = arith.constant 0 : index
    %0 = vector.load %arg1[%c0, %c0_0, %c0_1] : memref<1x80x84xf32, #tpu.memory_space<vmem>>, vector<1x80x84xf32>
    %1 = vector.shape_cast %0 : vector<1x80x84xf32> to vector<80x84xf32>
    %2 = arith.truncf %1 : vector<80x84xf32> to vector<80x84xbf16>
    %c0_2 = arith.constant 0 : index
    %c0_3 = arith.constant 0 : index
    %c0_4 = arith.constant 0 : index
    %3 = vector.load %arg2[%c0_2, %c0_3, %c0_4] : memref<1x80x84xf32, #tpu.memory_space<vmem>>, vector<1x80x84xf32>
    %4 = vector.shape_cast %3 : vector<1x80x84xf32> to vector<80x84xf32>
    %5 = arith.truncf %4 : vector<80x84xf32> to vector<80x84xbf16>
    %c0_5 = arith.constant 0 : index
    %c0_6 = arith.constant 0 : index
    %6 = vector.load %arg3[%c0_5, %c0_6] : memref<84x416xbf16, #tpu.memory_space<vmem>>, vector<84x416xbf16>
    %c0_7 = arith.constant 0 : index
    %c0_8 = arith.constant 0 : index
    %7 = vector.load %arg4[%c0_7, %c0_8] : memref<84x416xbf16, #tpu.memory_space<vmem>>, vector<84x416xbf16>
    %cst = arith.constant dense<0.000000e+00> : vector<80x416xf32>
    %8 = tpu.matmul %2, %6, %cst {dimension_numbers = #tpu.dot_dimension_numbers<[1], [0], [0], [1], [0, 0, 1, 1], [], []>} : vector<80x84xbf16>, vector<84x416xbf16>, vector<80x416xf32> -> vector<80x416xf32>
    %cst_9 = arith.constant dense<0.000000e+00> : vector<80x416xf32>
    %9 = tpu.matmul %2, %7, %cst_9 {dimension_numbers = #tpu.dot_dimension_numbers<[1], [0], [0], [1], [0, 0, 1, 1], [], []>} : vector<80x84xbf16>, vector<84x416xbf16>, vector<80x416xf32> -> vector<80x416xf32>
    %10 = arith.maximumf %8, %9 : vector<80x416xf32>
    %cst_10 = arith.constant dense<0.000000e+00> : vector<80x416xf32>
    %11 = tpu.matmul %5, %6, %cst_10 {dimension_numbers = #tpu.dot_dimension_numbers<[1], [0], [0], [1], [0, 0, 1, 1], [], []>} : vector<80x84xbf16>, vector<84x416xbf16>, vector<80x416xf32> -> vector<80x416xf32>
    %cst_11 = arith.constant dense<0.000000e+00> : vector<80x416xf32>
    %12 = tpu.matmul %5, %7, %cst_11 {dimension_numbers = #tpu.dot_dimension_numbers<[1], [0], [0], [1], [0, 0, 1, 1], [], []>} : vector<80x84xbf16>, vector<84x416xbf16>, vector<80x416xf32> -> vector<80x416xf32>
    %13 = arith.maximumf %11, %12 : vector<80x416xf32>
    %14 = arith.maximumf %10, %13 : vector<80x416xf32>
    %c0_12 = arith.constant 0 : index
    %c0_13 = arith.constant 0 : index
    %15 = vector.load %arg5[%c0_12, %c0_13] : memref<1x416xf32, #tpu.memory_space<vmem>>, vector<1x416xf32>
    %16 = vector.broadcast %15 : vector<1x416xf32> to vector<80x416xf32>
    %17 = arith.addf %14, %16 : vector<80x416xf32>
    %cst_14 = arith.constant 0.000000e+00 : f32
    %18 = vector.broadcast %cst_14 : f32 to vector<80x416xf32>
    %19 = arith.maximumf %17, %18 : vector<80x416xf32>
    %cst_15 = arith.constant 0.000000e+00 : f32
    %20 = vector.broadcast %cst_15 : f32 to vector<8x416xf32>
    %21 = tpu.concatenate %19, %20 in 0 : vector<80x416xf32>, vector<8x416xf32> -> vector<88x416xf32>
    %22 = vector.extract_strided_slice %21 {offsets = [0, 0], sizes = [80, 416], strides = [1, 1]} : vector<88x416xf32> to vector<80x416xf32>
    %23 = arith.truncf %22 : vector<80x416xf32> to vector<80x416xbf16>
    %24 = vector.extract_strided_slice %21 {offsets = [1, 0], sizes = [80, 416], strides = [1, 1]} : vector<88x416xf32> to vector<80x416xf32>
    %25 = arith.truncf %24 : vector<80x416xf32> to vector<80x416xbf16>
    %26 = vector.extract_strided_slice %21 {offsets = [2, 0], sizes = [80, 416], strides = [1, 1]} : vector<88x416xf32> to vector<80x416xf32>
    %27 = arith.truncf %26 : vector<80x416xf32> to vector<80x416xbf16>
    %c0_16 = arith.constant 0 : index
    %c0_17 = arith.constant 0 : index
    %c0_18 = arith.constant 0 : index
    %28 = vector.load %arg6[%c0_16, %c0_17, %c0_18] : memref<3x416x320xbf16, #tpu.memory_space<vmem>>, vector<1x416x320xbf16>
    %29 = vector.shape_cast %28 : vector<1x416x320xbf16> to vector<416x320xbf16>
    %cst_19 = arith.constant dense<0.000000e+00> : vector<80x320xf32>
    %30 = tpu.matmul %23, %29, %cst_19 {dimension_numbers = #tpu.dot_dimension_numbers<[1], [0], [0], [1], [0, 0, 1, 1], [], []>} : vector<80x416xbf16>, vector<416x320xbf16>, vector<80x320xf32> -> vector<80x320xf32>
    %c1 = arith.constant 1 : index
    %c0_20 = arith.constant 0 : index
    %c0_21 = arith.constant 0 : index
    %31 = vector.load %arg6[%c1, %c0_20, %c0_21] : memref<3x416x320xbf16, #tpu.memory_space<vmem>>, vector<1x416x320xbf16>
    %32 = vector.shape_cast %31 : vector<1x416x320xbf16> to vector<416x320xbf16>
    %cst_22 = arith.constant dense<0.000000e+00> : vector<80x320xf32>
    %33 = tpu.matmul %25, %32, %cst_22 {dimension_numbers = #tpu.dot_dimension_numbers<[1], [0], [0], [1], [0, 0, 1, 1], [], []>} : vector<80x416xbf16>, vector<416x320xbf16>, vector<80x320xf32> -> vector<80x320xf32>
    %34 = arith.addf %30, %33 : vector<80x320xf32>
    %c2 = arith.constant 2 : index
    %c0_23 = arith.constant 0 : index
    %c0_24 = arith.constant 0 : index
    %35 = vector.load %arg6[%c2, %c0_23, %c0_24] : memref<3x416x320xbf16, #tpu.memory_space<vmem>>, vector<1x416x320xbf16>
    %36 = vector.shape_cast %35 : vector<1x416x320xbf16> to vector<416x320xbf16>
    %cst_25 = arith.constant dense<0.000000e+00> : vector<80x320xf32>
    %37 = tpu.matmul %27, %36, %cst_25 {dimension_numbers = #tpu.dot_dimension_numbers<[1], [0], [0], [1], [0, 0, 1, 1], [], []>} : vector<80x416xbf16>, vector<416x320xbf16>, vector<80x320xf32> -> vector<80x320xf32>
    %38 = arith.addf %34, %37 : vector<80x320xf32>
    %c0_26 = arith.constant 0 : index
    %c0_27 = arith.constant 0 : index
    %c0_28 = arith.constant 0 : index
    %39 = vector.load %arg7[%c0_26, %c0_27, %c0_28] : memref<3x416x320xbf16, #tpu.memory_space<vmem>>, vector<1x416x320xbf16>
    %40 = vector.shape_cast %39 : vector<1x416x320xbf16> to vector<416x320xbf16>
    %cst_29 = arith.constant dense<0.000000e+00> : vector<80x320xf32>
    %41 = tpu.matmul %23, %40, %cst_29 {dimension_numbers = #tpu.dot_dimension_numbers<[1], [0], [0], [1], [0, 0, 1, 1], [], []>} : vector<80x416xbf16>, vector<416x320xbf16>, vector<80x320xf32> -> vector<80x320xf32>
    %c1_30 = arith.constant 1 : index
    %c0_31 = arith.constant 0 : index
    %c0_32 = arith.constant 0 : index
    %42 = vector.load %arg7[%c1_30, %c0_31, %c0_32] : memref<3x416x320xbf16, #tpu.memory_space<vmem>>, vector<1x416x320xbf16>
    %43 = vector.shape_cast %42 : vector<1x416x320xbf16> to vector<416x320xbf16>
    %cst_33 = arith.constant dense<0.000000e+00> : vector<80x320xf32>
    %44 = tpu.matmul %25, %43, %cst_33 {dimension_numbers = #tpu.dot_dimension_numbers<[1], [0], [0], [1], [0, 0, 1, 1], [], []>} : vector<80x416xbf16>, vector<416x320xbf16>, vector<80x320xf32> -> vector<80x320xf32>
    %45 = arith.addf %41, %44 : vector<80x320xf32>
    %c2_34 = arith.constant 2 : index
    %c0_35 = arith.constant 0 : index
    %c0_36 = arith.constant 0 : index
    %46 = vector.load %arg7[%c2_34, %c0_35, %c0_36] : memref<3x416x320xbf16, #tpu.memory_space<vmem>>, vector<1x416x320xbf16>
    %47 = vector.shape_cast %46 : vector<1x416x320xbf16> to vector<416x320xbf16>
    %cst_37 = arith.constant dense<0.000000e+00> : vector<80x320xf32>
    %48 = tpu.matmul %27, %47, %cst_37 {dimension_numbers = #tpu.dot_dimension_numbers<[1], [0], [0], [1], [0, 0, 1, 1], [], []>} : vector<80x416xbf16>, vector<416x320xbf16>, vector<80x320xf32> -> vector<80x320xf32>
    %49 = arith.addf %45, %48 : vector<80x320xf32>
    %50 = arith.maximumf %38, %49 : vector<80x320xf32>
    %c0_38 = arith.constant 0 : index
    %c0_39 = arith.constant 0 : index
    %51 = vector.load %arg8[%c0_38, %c0_39] : memref<1x320xf32, #tpu.memory_space<vmem>>, vector<1x320xf32>
    %52 = vector.broadcast %51 : vector<1x320xf32> to vector<80x320xf32>
    %53 = arith.addf %50, %52 : vector<80x320xf32>
    %cst_40 = arith.constant 0.000000e+00 : f32
    %54 = vector.broadcast %cst_40 : f32 to vector<80x320xf32>
    %55 = arith.maximumf %53, %54 : vector<80x320xf32>
    %56 = arith.truncf %55 : vector<80x320xf32> to vector<80x320xbf16>
    %c0_41 = arith.constant 0 : index
    %c0_42 = arith.constant 0 : index
    %57 = vector.load %arg9[%c0_41, %c0_42] : memref<36x80xbf16, #tpu.memory_space<vmem>>, vector<36x80xbf16>
    %cst_43 = arith.constant dense<0.000000e+00> : vector<36x320xf32>
    %58 = tpu.matmul %57, %56, %cst_43 {dimension_numbers = #tpu.dot_dimension_numbers<[1], [0], [0], [1], [0, 0, 1, 1], [], []>} : vector<36x80xbf16>, vector<80x320xbf16>, vector<36x320xf32> -> vector<36x320xf32>
    %c0_44 = arith.constant 0 : index
    %c0_45 = arith.constant 0 : index
    %59 = vector.load %arg10[%c0_44, %c0_45] : memref<36x80xbf16, #tpu.memory_space<vmem>>, vector<36x80xbf16>
    %cst_46 = arith.constant dense<0.000000e+00> : vector<36x320xf32>
    %60 = tpu.matmul %59, %56, %cst_46 {dimension_numbers = #tpu.dot_dimension_numbers<[1], [0], [0], [1], [0, 0, 1, 1], [], []>} : vector<36x80xbf16>, vector<80x320xbf16>, vector<36x320xf32> -> vector<36x320xf32>
    %61 = arith.maximumf %58, %60 : vector<36x320xf32>
    %62 = vector.extract_strided_slice %61 {offsets = [0, 0], sizes = [4, 320], strides = [1, 1]} : vector<36x320xf32> to vector<4x320xf32>
    %63 = arith.truncf %62 : vector<4x320xf32> to vector<4x320xbf16>
    %c0_47 = arith.constant 0 : index
    %c0_48 = arith.constant 0 : index
    %c0_49 = arith.constant 0 : index
    %64 = vector.load %arg11[%c0_47, %c0_48, %c0_49] : memref<9x320x128xbf16, #tpu.memory_space<vmem>>, vector<1x320x128xbf16>
    %65 = vector.shape_cast %64 : vector<1x320x128xbf16> to vector<320x128xbf16>
    %cst_50 = arith.constant dense<0.000000e+00> : vector<4x128xf32>
    %66 = tpu.matmul %63, %65, %cst_50 {dimension_numbers = #tpu.dot_dimension_numbers<[1], [0], [0], [1], [0, 0, 1, 1], [], []>} : vector<4x320xbf16>, vector<320x128xbf16>, vector<4x128xf32> -> vector<4x128xf32>
    %67 = vector.extract_strided_slice %61 {offsets = [4, 0], sizes = [4, 320], strides = [1, 1]} : vector<36x320xf32> to vector<4x320xf32>
    %68 = arith.truncf %67 : vector<4x320xf32> to vector<4x320xbf16>
    %c1_51 = arith.constant 1 : index
    %c0_52 = arith.constant 0 : index
    %c0_53 = arith.constant 0 : index
    %69 = vector.load %arg11[%c1_51, %c0_52, %c0_53] : memref<9x320x128xbf16, #tpu.memory_space<vmem>>, vector<1x320x128xbf16>
    %70 = vector.shape_cast %69 : vector<1x320x128xbf16> to vector<320x128xbf16>
    %cst_54 = arith.constant dense<0.000000e+00> : vector<4x128xf32>
    %71 = tpu.matmul %68, %70, %cst_54 {dimension_numbers = #tpu.dot_dimension_numbers<[1], [0], [0], [1], [0, 0, 1, 1], [], []>} : vector<4x320xbf16>, vector<320x128xbf16>, vector<4x128xf32> -> vector<4x128xf32>
    %72 = vector.extract_strided_slice %61 {offsets = [8, 0], sizes = [4, 320], strides = [1, 1]} : vector<36x320xf32> to vector<4x320xf32>
    %73 = arith.truncf %72 : vector<4x320xf32> to vector<4x320xbf16>
    %c2_55 = arith.constant 2 : index
    %c0_56 = arith.constant 0 : index
    %c0_57 = arith.constant 0 : index
    %74 = vector.load %arg11[%c2_55, %c0_56, %c0_57] : memref<9x320x128xbf16, #tpu.memory_space<vmem>>, vector<1x320x128xbf16>
    %75 = vector.shape_cast %74 : vector<1x320x128xbf16> to vector<320x128xbf16>
    %cst_58 = arith.constant dense<0.000000e+00> : vector<4x128xf32>
    %76 = tpu.matmul %73, %75, %cst_58 {dimension_numbers = #tpu.dot_dimension_numbers<[1], [0], [0], [1], [0, 0, 1, 1], [], []>} : vector<4x320xbf16>, vector<320x128xbf16>, vector<4x128xf32> -> vector<4x128xf32>
    %77 = vector.extract_strided_slice %61 {offsets = [12, 0], sizes = [4, 320], strides = [1, 1]} : vector<36x320xf32> to vector<4x320xf32>
    %78 = arith.truncf %77 : vector<4x320xf32> to vector<4x320xbf16>
    %c3 = arith.constant 3 : index
    %c0_59 = arith.constant 0 : index
    %c0_60 = arith.constant 0 : index
    %79 = vector.load %arg11[%c3, %c0_59, %c0_60] : memref<9x320x128xbf16, #tpu.memory_space<vmem>>, vector<1x320x128xbf16>
    %80 = vector.shape_cast %79 : vector<1x320x128xbf16> to vector<320x128xbf16>
    %cst_61 = arith.constant dense<0.000000e+00> : vector<4x128xf32>
    %81 = tpu.matmul %78, %80, %cst_61 {dimension_numbers = #tpu.dot_dimension_numbers<[1], [0], [0], [1], [0, 0, 1, 1], [], []>} : vector<4x320xbf16>, vector<320x128xbf16>, vector<4x128xf32> -> vector<4x128xf32>
    %82 = arith.addf %66, %81 : vector<4x128xf32>
    %83 = vector.extract_strided_slice %61 {offsets = [16, 0], sizes = [4, 320], strides = [1, 1]} : vector<36x320xf32> to vector<4x320xf32>
    %84 = arith.truncf %83 : vector<4x320xf32> to vector<4x320xbf16>
    %c4 = arith.constant 4 : index
    %c0_62 = arith.constant 0 : index
    %c0_63 = arith.constant 0 : index
    %85 = vector.load %arg11[%c4, %c0_62, %c0_63] : memref<9x320x128xbf16, #tpu.memory_space<vmem>>, vector<1x320x128xbf16>
    %86 = vector.shape_cast %85 : vector<1x320x128xbf16> to vector<320x128xbf16>
    %cst_64 = arith.constant dense<0.000000e+00> : vector<4x128xf32>
    %87 = tpu.matmul %84, %86, %cst_64 {dimension_numbers = #tpu.dot_dimension_numbers<[1], [0], [0], [1], [0, 0, 1, 1], [], []>} : vector<4x320xbf16>, vector<320x128xbf16>, vector<4x128xf32> -> vector<4x128xf32>
    %88 = arith.addf %71, %87 : vector<4x128xf32>
    %89 = vector.extract_strided_slice %61 {offsets = [20, 0], sizes = [4, 320], strides = [1, 1]} : vector<36x320xf32> to vector<4x320xf32>
    %90 = arith.truncf %89 : vector<4x320xf32> to vector<4x320xbf16>
    %c5 = arith.constant 5 : index
    %c0_65 = arith.constant 0 : index
    %c0_66 = arith.constant 0 : index
    %91 = vector.load %arg11[%c5, %c0_65, %c0_66] : memref<9x320x128xbf16, #tpu.memory_space<vmem>>, vector<1x320x128xbf16>
    %92 = vector.shape_cast %91 : vector<1x320x128xbf16> to vector<320x128xbf16>
    %cst_67 = arith.constant dense<0.000000e+00> : vector<4x128xf32>
    %93 = tpu.matmul %90, %92, %cst_67 {dimension_numbers = #tpu.dot_dimension_numbers<[1], [0], [0], [1], [0, 0, 1, 1], [], []>} : vector<4x320xbf16>, vector<320x128xbf16>, vector<4x128xf32> -> vector<4x128xf32>
    %94 = arith.addf %76, %93 : vector<4x128xf32>
    %95 = vector.extract_strided_slice %61 {offsets = [24, 0], sizes = [4, 320], strides = [1, 1]} : vector<36x320xf32> to vector<4x320xf32>
    %96 = arith.truncf %95 : vector<4x320xf32> to vector<4x320xbf16>
    %c6 = arith.constant 6 : index
    %c0_68 = arith.constant 0 : index
    %c0_69 = arith.constant 0 : index
    %97 = vector.load %arg11[%c6, %c0_68, %c0_69] : memref<9x320x128xbf16, #tpu.memory_space<vmem>>, vector<1x320x128xbf16>
    %98 = vector.shape_cast %97 : vector<1x320x128xbf16> to vector<320x128xbf16>
    %cst_70 = arith.constant dense<0.000000e+00> : vector<4x128xf32>
    %99 = tpu.matmul %96, %98, %cst_70 {dimension_numbers = #tpu.dot_dimension_numbers<[1], [0], [0], [1], [0, 0, 1, 1], [], []>} : vector<4x320xbf16>, vector<320x128xbf16>, vector<4x128xf32> -> vector<4x128xf32>
    %100 = arith.addf %82, %99 : vector<4x128xf32>
    %101 = vector.extract_strided_slice %61 {offsets = [28, 0], sizes = [4, 320], strides = [1, 1]} : vector<36x320xf32> to vector<4x320xf32>
    %102 = arith.truncf %101 : vector<4x320xf32> to vector<4x320xbf16>
    %c7 = arith.constant 7 : index
    %c0_71 = arith.constant 0 : index
    %c0_72 = arith.constant 0 : index
    %103 = vector.load %arg11[%c7, %c0_71, %c0_72] : memref<9x320x128xbf16, #tpu.memory_space<vmem>>, vector<1x320x128xbf16>
    %104 = vector.shape_cast %103 : vector<1x320x128xbf16> to vector<320x128xbf16>
    %cst_73 = arith.constant dense<0.000000e+00> : vector<4x128xf32>
    %105 = tpu.matmul %102, %104, %cst_73 {dimension_numbers = #tpu.dot_dimension_numbers<[1], [0], [0], [1], [0, 0, 1, 1], [], []>} : vector<4x320xbf16>, vector<320x128xbf16>, vector<4x128xf32> -> vector<4x128xf32>
    %106 = arith.addf %88, %105 : vector<4x128xf32>
    %107 = vector.extract_strided_slice %61 {offsets = [32, 0], sizes = [4, 320], strides = [1, 1]} : vector<36x320xf32> to vector<4x320xf32>
    %108 = arith.truncf %107 : vector<4x320xf32> to vector<4x320xbf16>
    %c8 = arith.constant 8 : index
    %c0_74 = arith.constant 0 : index
    %c0_75 = arith.constant 0 : index
    %109 = vector.load %arg11[%c8, %c0_74, %c0_75] : memref<9x320x128xbf16, #tpu.memory_space<vmem>>, vector<1x320x128xbf16>
    %110 = vector.shape_cast %109 : vector<1x320x128xbf16> to vector<320x128xbf16>
    %cst_76 = arith.constant dense<0.000000e+00> : vector<4x128xf32>
    %111 = tpu.matmul %108, %110, %cst_76 {dimension_numbers = #tpu.dot_dimension_numbers<[1], [0], [0], [1], [0, 0, 1, 1], [], []>} : vector<4x320xbf16>, vector<320x128xbf16>, vector<4x128xf32> -> vector<4x128xf32>
    %112 = arith.addf %94, %111 : vector<4x128xf32>
    %113 = arith.addf %100, %106 : vector<4x128xf32>
    %114 = arith.addf %113, %112 : vector<4x128xf32>
    %c0_77 = arith.constant 0 : index
    %c0_78 = arith.constant 0 : index
    %115 = vector.load %arg12[%c0_77, %c0_78] : memref<1x128xf32, #tpu.memory_space<vmem>>, vector<1x128xf32>
    %116 = vector.broadcast %115 : vector<1x128xf32> to vector<4x128xf32>
    %117 = arith.addf %114, %116 : vector<4x128xf32>
    %cst_79 = arith.constant 0.000000e+00 : f32
    %118 = vector.broadcast %cst_79 : f32 to vector<4x128xf32>
    %119 = arith.maximumf %117, %118 : vector<4x128xf32>
    %c0_80 = arith.constant 0 : index
    %c0_81 = arith.constant 0 : index
    %120 = vector.load %arg13[%c0_80, %c0_81] : memref<128x128xf32, #tpu.memory_space<vmem>>, vector<128x128xf32>
    %cst_82 = arith.constant dense<0.000000e+00> : vector<4x128xf32>
    %121 = tpu.matmul %119, %120, %cst_82 {dimension_numbers = #tpu.dot_dimension_numbers<[1], [0], [0], [1], [0, 0, 1, 1], [], []>} : vector<4x128xf32>, vector<128x128xf32>, vector<4x128xf32> -> vector<4x128xf32>
    %c0_83 = arith.constant 0 : index
    %c0_84 = arith.constant 0 : index
    %122 = vector.load %arg14[%c0_83, %c0_84] : memref<1x128xf32, #tpu.memory_space<vmem>>, vector<1x128xf32>
    %123 = vector.broadcast %122 : vector<1x128xf32> to vector<4x128xf32>
    %124 = arith.addf %121, %123 : vector<4x128xf32>
    %c0_85 = arith.constant 0 : index
    %c0_86 = arith.constant 0 : index
    %c0_87 = arith.constant 0 : index
    %125 = vector.load %arg15[%c0_85, %c0_86, %c0_87] : memref<1x4x128xf32, #tpu.memory_space<vmem>>, vector<1x4x128xf32>
    %126 = vector.shape_cast %125 : vector<1x4x128xf32> to vector<4x128xf32>
    %127 = vector.shape_cast %124 : vector<4x128xf32> to vector<1x4x128xf32>
    tpu.vector_store %arg15[%c0_85, %c0_86, %c0_87], %127 {strides = array<i32>} : memref<1x4x128xf32, #tpu.memory_space<vmem>>, vector<1x4x128xf32>,
    return
  }
  func.func @transform_0(%arg0: i32) -> (i32, i32, i32) {
    %c0_i32 = arith.constant 0 : i32
    %c0_i32_0 = arith.constant 0 : i32
    %c0_i32_1 = arith.constant 0 : i32
    return %arg0, %c0_i32, %c0_i32_0 : i32, i32, i32
  }
  func.func @transform_1(%arg0: i32) -> (i32, i32, i32) {
    %c0_i32 = arith.constant 0 : i32
    %c0_i32_0 = arith.constant 0 : i32
    %c0_i32_1 = arith.constant 0 : i32
    return %arg0, %c0_i32, %c0_i32_0 : i32, i32, i32
  }
  func.func @transform_2(%arg0: i32) -> (i32, i32) {
    %c0_i32 = arith.constant 0 : i32
    %c0_i32_0 = arith.constant 0 : i32
    %c0_i32_1 = arith.constant 0 : i32
    return %c0_i32, %c0_i32_0 : i32, i32
  }
  func.func @transform_3(%arg0: i32) -> (i32, i32) {
    %c0_i32 = arith.constant 0 : i32
    %c0_i32_0 = arith.constant 0 : i32
    %c0_i32_1 = arith.constant 0 : i32
    return %c0_i32, %c0_i32_0 : i32, i32
  }
  func.func @transform_4(%arg0: i32) -> (i32, i32) {
    %c0_i32 = arith.constant 0 : i32
    %c0_i32_0 = arith.constant 0 : i32
    %c0_i32_1 = arith.constant 0 : i32
    return %c0_i32, %c0_i32_0 : i32, i32
  }
  func.func @transform_5(%arg0: i32) -> (i32, i32, i32) {
    %c0_i32 = arith.constant 0 : i32
    %c0_i32_0 = arith.constant 0 : i32
    %c0_i32_1 = arith.constant 0 : i32
    %c0_i32_2 = arith.constant 0 : i32
    return %c0_i32, %c0_i32_0, %c0_i32_1 : i32, i32, i32
  }
  func.func @transform_6(%arg0: i32) -> (i32, i32, i32) {
    %c0_i32 = arith.constant 0 : i32
    %c0_i32_0 = arith.constant 0 : i32
    %c0_i32_1 = arith.constant 0 : i32
    %c0_i32_2 = arith.constant 0 : i32
    return %c0_i32, %c0_i32_0, %c0_i32_1 : i32, i32, i32
  }
  func.func @transform_7(%arg0: i32) -> (i32, i32) {
    %c0_i32 = arith.constant 0 : i32
    %c0_i32_0 = arith.constant 0 : i32
    %c0_i32_1 = arith.constant 0 : i32
    return %c0_i32, %c0_i32_0 : i32, i32
  }
  func.func @transform_8(%arg0: i32) -> (i32, i32) {
    %c0_i32 = arith.constant 0 : i32
    %c0_i32_0 = arith.constant 0 : i32
    %c0_i32_1 = arith.constant 0 : i32
    return %c0_i32, %c0_i32_0 : i32, i32
  }
  func.func @transform_9(%arg0: i32) -> (i32, i32) {
    %c0_i32 = arith.constant 0 : i32
    %c0_i32_0 = arith.constant 0 : i32
    %c0_i32_1 = arith.constant 0 : i32
    return %c0_i32, %c0_i32_0 : i32, i32
  }
  func.func @transform_10(%arg0: i32) -> (i32, i32, i32) {
    %c0_i32 = arith.constant 0 : i32
    %c0_i32_0 = arith.constant 0 : i32
    %c0_i32_1 = arith.constant 0 : i32
    %c0_i32_2 = arith.constant 0 : i32
    return %c0_i32, %c0_i32_0, %c0_i32_1 : i32, i32, i32
  }
  func.func @transform_11(%arg0: i32) -> (i32, i32) {
    %c0_i32 = arith.constant 0 : i32
    %c0_i32_0 = arith.constant 0 : i32
    %c0_i32_1 = arith.constant 0 : i32
    return %c0_i32, %c0_i32_0 : i32, i32
  }
  func.func @transform_12(%arg0: i32) -> (i32, i32) {
    %c0_i32 = arith.constant 0 : i32
    %c0_i32_0 = arith.constant 0 : i32
    %c0_i32_1 = arith.constant 0 : i32
    return %c0_i32, %c0_i32_0 : i32, i32
  }
  func.func @transform_13(%arg0: i32) -> (i32, i32) {
    %c0_i32 = arith.constant 0 : i32
    %c0_i32_0 = arith.constant 0 : i32
    %c0_i32_1 = arith.constant 0 : i32
    return %c0_i32, %c0_i32_0 : i32, i32
  }
  func.func @transform_14(%arg0: i32) -> (i32, i32, i32) {
    %c0_i32 = arith.constant 0 : i32
    %c0_i32_0 = arith.constant 0 : i32
    %c0_i32_1 = arith.constant 0 : i32
    return %arg0, %c0_i32, %c0_i32_0 : i32, i32, i32
  }
}

</mosaic_0001>

<llo_original>
// kernel: cnn_forward.1
$region0: #{cnn_forward.1}
  #allocation0 [shape = 'u32[]', space=smem, size = 0x4, offset = 0x4, fixed_abs, tag = 'smem constant byte address 0x4 - core index']
  #allocation1 [shape = 'u32[72,128]{1,0:T(1,128)}', space=vmem, size = 0x9000, scoped, tag = 'internal scratch']
  %s0 = inlined_call_operand.vmem [shape: f32[2,80,84], index: 0, kind: input, shape index: {}]
  %s1 = inlined_call_operand.vmem [shape: f32[2,80,84], index: 1, kind: input, shape index: {}]
  %s2 = inlined_call_operand.vmem [shape: bf16[84,416], index: 2, kind: input, shape index: {}]
  %s3 = inlined_call_operand.vmem [shape: bf16[84,416], index: 3, kind: input, shape index: {}]
  %s4 = inlined_call_operand.vmem [shape: f32[1,416], index: 4, kind: input, shape index: {}]
  %s5 = inlined_call_operand.vmem [shape: bf16[3,416,320], index: 5, kind: input, shape index: {}]
  %s6 = inlined_call_operand.vmem [shape: bf16[3,416,320], index: 6, kind: input, shape index: {}]
  %s7 = inlined_call_operand.vmem [shape: f32[1,320], index: 7, kind: input, shape index: {}]
  %s8 = inlined_call_operand.vmem [shape: bf16[36,80], index: 8, kind: input, shape index: {}]
  %s9 = inlined_call_operand.vmem [shape: bf16[36,80], index: 9, kind: input, shape index: {}]
  %s10 = inlined_call_operand.vmem [shape: bf16[9,320,128], index: 10, kind: input, shape index: {}]
  %s11 = inlined_call_operand.vmem [shape: f32[1,128], index: 11, kind: input, shape index: {}]
  %s12 = inlined_call_operand.vmem [shape: f32[128,128], index: 12, kind: input, shape index: {}]
  %s13 = inlined_call_operand.vmem [shape: f32[1,128], index: 13, kind: input, shape index: {}]
  %s14 = inlined_call_operand.vmem [shape: f32[2,4,128], index: 14, kind: output, shape index: {}]
  %s15 = sld [smem:[#allocation0]]
  $region89: #{cnn_forward.1} parent=0
    _
  %s17 = ssub.s32 1, %s15
  %s18 = scalar_select 0, %s17, %s15
  loop: start=0, step=1, limit=4
  $region2: #{cnn_forward.1} parent=0 // loop_pre_header
    _
  $region3: #{cnn_forward.1} parent=0 // loop_header
    %s20 = sphi 0, %s24
    %p21 = scmp.ge.s32.totalorder %s20, 4
    %s30 = sphi 0, %s32
    %s33 = sphi 0, %s30
    %s34 = sphi 0, %s33
    %s50 = sphi 0, %s34
    %s56 = sphi 0, %s58
    %s59 = sphi 0, %s56
    %s60 = sphi 0, %s59
    %s76 = sphi 0, %s60
    %s80 = sphi 0, %s80
    %s82 = sphi 0, %s80
    %s83 = sphi 0, %s82
    %s97 = sphi 0, %s83
    %s101 = sphi 0, %s101
    %s103 = sphi 0, %s101
    %s104 = sphi 0, %s103
    %s118 = sphi 0, %s104
    %s122 = sphi 0, %s122
    %s124 = sphi 0, %s122
    %s125 = sphi 0, %s124
    %s139 = sphi 0, %s125
    %s143 = sphi 0, %s143
    %s145 = sphi 0, %s143
    %s146 = sphi 0, %s145
    %s160 = sphi 0, %s146
    %s164 = sphi 0, %s164
    %s166 = sphi 0, %s164
    %s167 = sphi 0, %s166
    %s181 = sphi 0, %s167
    %s185 = sphi 0, %s185
    %s187 = sphi 0, %s185
    %s188 = sphi 0, %s187
    %s202 = sphi 0, %s188
    %s206 = sphi 0, %s206
    %s208 = sphi 0, %s206
    %s209 = sphi 0, %s208
    %s223 = sphi 0, %s209
    %s227 = sphi 0, %s227
    %s229 = sphi 0, %s227
    %s230 = sphi 0, %s229
    %s244 = sphi 0, %s230
    %s248 = sphi 0, %s248
    %s250 = sphi 0, %s248
    %s251 = sphi 0, %s250
    %s265 = sphi 0, %s251
    %s269 = sphi 0, %s269
    %s271 = sphi 0, %s269
    %s272 = sphi 0, %s271
    %s286 = sphi 0, %s272
    %s290 = sphi 0, %s290
    %s292 = sphi 0, %s290
    %s293 = sphi 0, %s292
    %s307 = sphi 0, %s293
    %s311 = sphi 0, %s311
    %s313 = sphi 0, %s311
    %s314 = sphi 0, %s313
    %s328 = sphi 0, %s314
    %s334 = sphi 0, %s336
    %s337 = sphi 0, %s334
    %s338 = sphi 0, %s337
    %s354 = sphi 0, %s338
  $region4: #{cnn_forward.1} parent=0 // loop_header_branch
    %23 = sbr.rel (%p21) target = $region8
  $region5: #{cnn_forward.1} parent=0 // loop_body
    %s25 = ssub.s32 %s20, 1
    %s26 = ssub.s32 %s20, 2
    %s27 = sadd.s32 %s20, 1
    %s28 = ssub.s32 %s20, %s27
    %p29 = scmp.eq.s32.totalorder %s28, 0
    %s31 = sadd.s32 %s30, 1
    %s32 = scalar_select %p29, %s30, %s31
    %p35 = pneg %p29
    %p36 = scmp.eq.s32.totalorder %s20, 1
    %p37 = por %p35, %p36
    %p38 = scmp.ne.s32.totalorder %s30, %s33
    %p39 = scmp.eq.s32.totalorder %s20, 0
    %p40 = por %p38, %p39
    %p41 = scmp.ne.s32.totalorder %s30, %s33
    %p42 = scmp.eq.s32.totalorder %s25, 1
    %p43 = por %p41, %p42
    %p44 = scmp.ne.s32.totalorder %s33, %s34
    %p45 = scmp.eq.s32.totalorder %s25, 0
    %p46 = por %p44, %p45
    %p47 = scmp.ne.s32.totalorder %s33, %s34
    %p48 = scmp.eq.s32.totalorder %s26, 1
    %p49 = por %p47, %p48
    %p51 = scmp.ne.s32.totalorder %s34, %s50
    %p52 = scmp.eq.s32.totalorder %s26, 0
    %p53 = por %p51, %p52
    %s54 = ssub.s32 %s20, %s27
    %p55 = scmp.eq.s32.totalorder %s54, 0
    %s57 = sadd.s32 %s56, 1
    %s58 = scalar_select %p55, %s56, %s57
    %p61 = pneg %p55
    %p62 = scmp.eq.s32.totalorder %s20, 1
    %p63 = por %p61, %p62
    %p64 = scmp.ne.s32.totalorder %s56, %s59
    %p65 = scmp.eq.s32.totalorder %s20, 0
    %p66 = por %p64, %p65
    %p67 = scmp.ne.s32.totalorder %s56, %s59
    %p68 = scmp.eq.s32.totalorder %s25, 1
    %p69 = por %p67, %p68
    %p70 = scmp.ne.s32.totalorder %s59, %s60
    %p71 = scmp.eq.s32.totalorder %s25, 0
    %p72 = por %p70, %p71
    %p73 = scmp.ne.s32.totalorder %s59, %s60
    %p74 = scmp.eq.s32.totalorder %s26, 1
    %p75 = por %p73, %p74
    %p77 = scmp.ne.s32.totalorder %s60, %s76
    %p78 = scmp.eq.s32.totalorder %s26, 0
    %p79 = por %p77, %p78
    %s81 = sadd.s32 %s80, 1
    %p84 = scmp.eq.s32.totalorder %s20, 1
    %p85 = scmp.ne.s32.totalorder %s80, %s82
    %p86 = scmp.eq.s32.totalorder %s20, 0
    %p87 = por %p85, %p86
    %p88 = scmp.ne.s32.totalorder %s80, %s82
    %p89 = scmp.eq.s32.totalorder %s25, 1
    %p90 = por %p88, %p89
    %p91 = scmp.ne.s32.totalorder %s82, %s83
    %p92 = scmp.eq.s32.totalorder %s25, 0
    %p93 = por %p91, %p92
    %p94 = scmp.ne.s32.totalorder %s82, %s83
    %p95 = scmp.eq.s32.totalorder %s26, 1
    %p96 = por %p94, %p95
    %p98 = scmp.ne.s32.totalorder %s83, %s97
    %p99 = scmp.eq.s32.totalorder %s26, 0
    %p100 = por %p98, %p99
    %s102 = sadd.s32 %s101, 1
    %p105 = scmp.eq.s32.totalorder %s20, 1
    %p106 = scmp.ne.s32.totalorder %s101, %s103
    %p107 = scmp.eq.s32.totalorder %s20, 0
    %p108 = por %p106, %p107
    %p109 = scmp.ne.s32.totalorder %s101, %s103
    %p110 = scmp.eq.s32.totalorder %s25, 1
    %p111 = por %p109, %p110
    %p112 = scmp.ne.s32.totalorder %s103, %s104
    %p113 = scmp.eq.s32.totalorder %s25, 0
    %p114 = por %p112, %p113
    %p115 = scmp.ne.s32.totalorder %s103, %s104
    %p116 = scmp.eq.s32.totalorder %s26, 1
    %p117 = por %p115, %p116
    %p119 = scmp.ne.s32.totalorder %s104, %s118
    %p120 = scmp.eq.s32.totalorder %s26, 0
    %p121 = por %p119, %p120
    %s123 = sadd.s32 %s122, 1
    %p126 = scmp.eq.s32.totalorder %s20, 1
    %p127 = scmp.ne.s32.totalorder %s122, %s124
    %p128 = scmp.eq.s32.totalorder %s20, 0
    %p129 = por %p127, %p128
    %p130 = scmp.ne.s32.totalorder %s122, %s124
    %p131 = scmp.eq.s32.totalorder %s25, 1
    %p132 = por %p130, %p131
    %p133 = scmp.ne.s32.totalorder %s124, %s125
    %p134 = scmp.eq.s32.totalorder %s25, 0
    %p135 = por %p133, %p134
    %p136 = scmp.ne.s32.totalorder %s124, %s125
    %p137 = scmp.eq.s32.totalorder %s26, 1
    %p138 = por %p136, %p137
    %p140 = scmp.ne.s32.totalorder %s125, %s139
    %p141 = scmp.eq.s32.totalorder %s26, 0
    %p142 = por %p140, %p141
    %s144 = sadd.s32 %s143, 1
    %p147 = scmp.eq.s32.totalorder %s20, 1
    %p148 = scmp.ne.s32.totalorder %s143, %s145
    %p149 = scmp.eq.s32.totalorder %s20, 0
    %p150 = por %p148, %p149
    %p151 = scmp.ne.s32.totalorder %s143, %s145
    %p152 = scmp.eq.s32.totalorder %s25, 1
    %p153 = por %p151, %p152
    %p154 = scmp.ne.s32.totalorder %s145, %s146
    %p155 = scmp.eq.s32.totalorder %s25, 0
    %p156 = por %p154, %p155
    %p157 = scmp.ne.s32.totalorder %s145, %s146
    %p158 = scmp.eq.s32.totalorder %s26, 1
    %p159 = por %p157, %p158
    %p161 = scmp.ne.s32.totalorder %s146, %s160
    %p162 = scmp.eq.s32.totalorder %s26, 0
    %p163 = por %p161, %p162
    %s165 = sadd.s32 %s164, 1
    %p168 = scmp.eq.s32.totalorder %s20, 1
    %p169 = scmp.ne.s32.totalorder %s164, %s166
    %p170 = scmp.eq.s32.totalorder %s20, 0
    %p171 = por %p169, %p170
    %p172 = scmp.ne.s32.totalorder %s164, %s166
    %p173 = scmp.eq.s32.totalorder %s25, 1
    %p174 = por %p172, %p173
    %p175 = scmp.ne.s32.totalorder %s166, %s167
    %p176 = scmp.eq.s32.totalorder %s25, 0
    %p177 = por %p175, %p176
    %p178 = scmp.ne.s32.totalorder %s166, %s167
    %p179 = scmp.eq.s32.totalorder %s26, 1
    %p180 = por %p178, %p179
    %p182 = scmp.ne.s32.totalorder %s167, %s181
    %p183 = scmp.eq.s32.totalorder %s26, 0
    %p184 = por %p182, %p183
    %s186 = sadd.s32 %s185, 1
    %p189 = scmp.eq.s32.totalorder %s20, 1
    %p190 = scmp.ne.s32.totalorder %s185, %s187
    %p191 = scmp.eq.s32.totalorder %s20, 0
    %p192 = por %p190, %p191
    %p193 = scmp.ne.s32.totalorder %s185, %s187
    %p194 = scmp.eq.s32.totalorder %s25, 1
    %p195 = por %p193, %p194
    %p196 = scmp.ne.s32.totalorder %s187, %s188
    %p197 = scmp.eq.s32.totalorder %s25, 0
    %p198 = por %p196, %p197
    %p199 = scmp.ne.s32.totalorder %s187, %s188
    %p200 = scmp.eq.s32.totalorder %s26, 1
    %p201 = por %p199, %p200
    %p203 = scmp.ne.s32.totalorder %s188, %s202
    %p204 = scmp.eq.s32.totalorder %s26, 0
    %p205 = por %p203, %p204
    %s207 = sadd.s32 %s206, 1
    %p210 = scmp.eq.s32.totalorder %s20, 1
    %p211 = scmp.ne.s32.totalorder %s206, %s208
    %p212 = scmp.eq.s32.totalorder %s20, 0
    %p213 = por %p211, %p212
    %p214 = scmp.ne.s32.totalorder %s206, %s208
    %p215 = scmp.eq.s32.totalorder %s25, 1
    %p216 = por %p214, %p215
    %p217 = scmp.ne.s32.totalorder %s208, %s209
    %p218 = scmp.eq.s32.totalorder %s25, 0
    %p219 = por %p217, %p218
    %p220 = scmp.ne.s32.totalorder %s208, %s209
    %p221 = scmp.eq.s32.totalorder %s26, 1
    %p222 = por %p220, %p221
    %p224 = scmp.ne.s32.totalorder %s209, %s223
    %p225 = scmp.eq.s32.totalorder %s26, 0
    %p226 = por %p224, %p225
    %s228 = sadd.s32 %s227, 1
    %p231 = scmp.eq.s32.totalorder %s20, 1
    %p232 = scmp.ne.s32.totalorder %s227, %s229
    %p233 = scmp.eq.s32.totalorder %s20, 0
    %p234 = por %p232, %p233
    %p235 = scmp.ne.s32.totalorder %s227, %s229
    %p236 = scmp.eq.s32.totalorder %s25, 1
    %p237 = por %p235, %p236
    %p238 = scmp.ne.s32.totalorder %s229, %s230
    %p239 = scmp.eq.s32.totalorder %s25, 0
    %p240 = por %p238, %p239
    %p241 = scmp.ne.s32.totalorder %s229, %s230
    %p242 = scmp.eq.s32.totalorder %s26, 1
    %p243 = por %p241, %p242
    %p245 = scmp.ne.s32.totalorder %s230, %s244
    %p246 = scmp.eq.s32.totalorder %s26, 0
    %p247 = por %p245, %p246
    %s249 = sadd.s32 %s248, 1
    %p252 = scmp.eq.s32.totalorder %s20, 1
    %p253 = scmp.ne.s32.totalorder %s248, %s250
    %p254 = scmp.eq.s32.totalorder %s20, 0
    %p255 = por %p253, %p254
    %p256 = scmp.ne.s32.totalorder %s248, %s250
    %p257 = scmp.eq.s32.totalorder %s25, 1
    %p258 = por %p256, %p257
    %p259 = scmp.ne.s32.totalorder %s250, %s251
    %p260 = scmp.eq.s32.totalorder %s25, 0
    %p261 = por %p259, %p260
    %p262 = scmp.ne.s32.totalorder %s250, %s251
    %p263 = scmp.eq.s32.totalorder %s26, 1
    %p264 = por %p262, %p263
    %p266 = scmp.ne.s32.totalorder %s251, %s265
    %p267 = scmp.eq.s32.totalorder %s26, 0
    %p268 = por %p266, %p267
    %s270 = sadd.s32 %s269, 1
    %p273 = scmp.eq.s32.totalorder %s20, 1
    %p274 = scmp.ne.s32.totalorder %s269, %s271
    %p275 = scmp.eq.s32.totalorder %s20, 0
    %p276 = por %p274, %p275
    %p277 = scmp.ne.s32.totalorder %s269, %s271
    %p278 = scmp.eq.s32.totalorder %s25, 1
    %p279 = por %p277, %p278
    %p280 = scmp.ne.s32.totalorder %s271, %s272
    %p281 = scmp.eq.s32.totalorder %s25, 0
    %p282 = por %p280, %p281
    %p283 = scmp.ne.s32.totalorder %s271, %s272
    %p284 = scmp.eq.s32.totalorder %s26, 1
    %p285 = por %p283, %p284
    %p287 = scmp.ne.s32.totalorder %s272, %s286
    %p288 = scmp.eq.s32.totalorder %s26, 0
    %p289 = por %p287, %p288
    %s291 = sadd.s32 %s290, 1
    %p294 = scmp.eq.s32.totalorder %s20, 1
    %p295 = scmp.ne.s32.totalorder %s290, %s292
    %p296 = scmp.eq.s32.totalorder %s20, 0
    %p297 = por %p295, %p296
    %p298 = scmp.ne.s32.totalorder %s290, %s292
    %p299 = scmp.eq.s32.totalorder %s25, 1
    %p300 = por %p298, %p299
    %p301 = scmp.ne.s32.totalorder %s292, %s293
    %p302 = scmp.eq.s32.totalorder %s25, 0
    %p303 = por %p301, %p302
    %p304 = scmp.ne.s32.totalorder %s292, %s293
    %p305 = scmp.eq.s32.totalorder %s26, 1
    %p306 = por %p304, %p305
    %p308 = scmp.ne.s32.totalorder %s293, %s307
    %p309 = scmp.eq.s32.totalorder %s26, 0
    %p310 = por %p308, %p309
    %s312 = sadd.s32 %s311, 1
    %p315 = scmp.eq.s32.totalorder %s20, 1
    %p316 = scmp.ne.s32.totalorder %s311, %s313
    %p317 = scmp.eq.s32.totalorder %s20, 0
    %p318 = por %p316, %p317
    %p319 = scmp.ne.s32.totalorder %s311, %s313
    %p320 = scmp.eq.s32.totalorder %s25, 1
    %p321 = por %p319, %p320
    %p322 = scmp.ne.s32.totalorder %s313, %s314
    %p323 = scmp.eq.s32.totalorder %s25, 0
    %p324 = por %p322, %p323
    %p325 = scmp.ne.s32.totalorder %s313, %s314
    %p326 = scmp.eq.s32.totalorder %s26, 1
    %p327 = por %p325, %p326
    %p329 = scmp.ne.s32.totalorder %s314, %s328
    %p330 = scmp.eq.s32.totalorder %s26, 0
    %p331 = por %p329, %p330
    %s332 = ssub.s32 %s20, %s27
    %p333 = scmp.eq.s32.totalorder %s332, 0
    %s335 = sadd.s32 %s334, 1
    %s336 = scalar_select %p333, %s334, %s335
    %p339 = pneg %p333
    %p340 = scmp.eq.s32.totalorder %s20, 1
    %p341 = por %p339, %p340
    %p342 = scmp.ne.s32.totalorder %s334, %s337
    %p343 = scmp.eq.s32.totalorder %s20, 0
    %p344 = por %p342, %p343
    %p345 = scmp.ne.s32.totalorder %s334, %s337
    %p346 = scmp.eq.s32.totalorder %s25, 1
    %p347 = por %p345, %p346
    %p348 = scmp.ne.s32.totalorder %s337, %s338
    %p349 = scmp.eq.s32.totalorder %s25, 0
    %p350 = por %p348, %p349
    %p351 = scmp.ne.s32.totalorder %s337, %s338
    %p352 = scmp.eq.s32.totalorder %s26, 1
    %p353 = por %p351, %p352
    %p355 = scmp.ne.s32.totalorder %s338, %s354
    %p356 = scmp.eq.s32.totalorder %s26, 0
    %p357 = por %p355, %p356
    %p358 = scmp.le.s32.totalorder 1, %s20
    %p359 = scmp.lt.s32.totalorder %s20, 3
    %p360 = pnand %p358, %p359
    %p361 = pneg %p360
    // Predicated region
    $region9: #{cnn_forward.1} parent=5 // pred_check
      _
    $region10: #{cnn_forward.1} parent=5 // pred_check_branch
      %363 = sbr.rel (%p360) target = $region12
    $region11: #{cnn_forward.1} parent=5 // pred_region
      %s364 = ssub.s32 %s20, 1
      // Predicated region
      $region13: #{cnn_forward.1} parent=11 // pred_check
        %p365 = pneg %p93
      $region14: #{cnn_forward.1} parent=11 // pred_check_branch
        %367 = sbr.rel (%p365) target = $region16
      $region15: #{cnn_forward.1} parent=11 // pred_region
        _
      $region16: #{cnn_forward.1} parent=11 // pred_fallthru
        _
      // Predicated region
      $region17: #{cnn_forward.1} parent=11 // pred_check
        %p368 = pneg %p114
      $region18: #{cnn_forward.1} parent=11 // pred_check_branch
        %370 = sbr.rel (%p368) target = $region20
      $region19: #{cnn_forward.1} parent=11 // pred_region
        _
      $region20: #{cnn_forward.1} parent=11 // pred_fallthru
        _
      // Predicated region
      $region21: #{cnn_forward.1} parent=11 // pred_check
        %p371 = pneg %p135
      $region22: #{cnn_forward.1} parent=11 // pred_check_branch
        %373 = sbr.rel (%p371) target = $region24
      $region23: #{cnn_forward.1} parent=11 // pred_region
        _
      $region24: #{cnn_forward.1} parent=11 // pred_fallthru
        _
      // Predicated region
      $region25: #{cnn_forward.1} parent=11 // pred_check
        %p374 = pneg %p156
      $region26: #{cnn_forward.1} parent=11 // pred_check_branch
        %376 = sbr.rel (%p374) target = $region28
      $region27: #{cnn_forward.1} parent=11 // pred_region
        _
      $region28: #{cnn_forward.1} parent=11 // pred_fallthru
        _
      // Predicated region
      $region29: #{cnn_forward.1} parent=11 // pred_check
        %p377 = pneg %p177
      $region30: #{cnn_forward.1} parent=11 // pred_check_branch
        %379 = sbr.rel (%p377) target = $region32
      $region31: #{cnn_forward.1} parent=11 // pred_region
        _
      $region32: #{cnn_forward.1} parent=11 // pred_fallthru
        _
      // Predicated region
      $region33: #{cnn_forward.1} parent=11 // pred_check
        %p380 = pneg %p198
      $region34: #{cnn_forward.1} parent=11 // pred_check_branch
        %382 = sbr.rel (%p380) target = $region36
      $region35: #{cnn_forward.1} parent=11 // pred_region
        _
      $region36: #{cnn_forward.1} parent=11 // pred_fallthru
        _
      // Predicated region
      $region37: #{cnn_forward.1} parent=11 // pred_check
        %p383 = pneg %p219
      $region38: #{cnn_forward.1} parent=11 // pred_check_branch
        %385 = sbr.rel (%p383) target = $region40
      $region39: #{cnn_forward.1} parent=11 // pred_region
        _
      $region40: #{cnn_forward.1} parent=11 // pred_fallthru
        _
      // Predicated region
      $region41: #{cnn_forward.1} parent=11 // pred_check
        %p386 = pneg %p240
      $region42: #{cnn_forward.1} parent=11 // pred_check_branch
        %388 = sbr.rel (%p386) target = $region44
      $region43: #{cnn_forward.1} parent=11 // pred_region
        _
      $region44: #{cnn_forward.1} parent=11 // pred_fallthru
        _
      // Predicated region
      $region45: #{cnn_forward.1} parent=11 // pred_check
        %p389 = pneg %p261
      $region46: #{cnn_forward.1} parent=11 // pred_check_branch
        %391 = sbr.rel (%p389) target = $region48
      $region47: #{cnn_forward.1} parent=11 // pred_region
        _
      $region48: #{cnn_forward.1} parent=11 // pred_fallthru
        _
      // Predicated region
      $region49: #{cnn_forward.1} parent=11 // pred_check
        %p392 = pneg %p282
      $region50: #{cnn_forward.1} parent=11 // pred_check_branch
        %394 = sbr.rel (%p392) target = $region52
      $region51: #{cnn_forward.1} parent=11 // pred_region
        _
      $region52: #{cnn_forward.1} parent=11 // pred_fallthru
        _
      // Predicated region
      $region53: #{cnn_forward.1} parent=11 // pred_check
        %p395 = pneg %p303
      $region54: #{cnn_forward.1} parent=11 // pred_check_branch
        %397 = sbr.rel (%p395) target = $region56
      $region55: #{cnn_forward.1} parent=11 // pred_region
        _
      $region56: #{cnn_forward.1} parent=11 // pred_fallthru
        _
      // Predicated region
      $region57: #{cnn_forward.1} parent=11 // pred_check
        %p398 = pneg %p324
      $region58: #{cnn_forward.1} parent=11 // pred_check_branch
        %400 = sbr.rel (%p398) target = $region60
      $region59: #{cnn_forward.1} parent=11 // pred_region
        _
      $region60: #{cnn_forward.1} parent=11 // pred_fallthru
        _
    $region12: #{cnn_forward.1} parent=5 // pred_fallthru
      _
    %p401 = scmp.lt.s32.totalorder %s20, 2
    // Predicated region
    $region61: #{cnn_forward.1} parent=5 // pred_check
      %p402 = pneg %p401
    $region62: #{cnn_forward.1} parent=5 // pred_check_branch
      %404 = sbr.rel (%p402) target = $region64
    $region63: #{cnn_forward.1} parent=5 // pred_region
      // Predicated region
      $region65: #{cnn_forward.1} parent=63 // pred_check
        %p405 = pneg %p40
      $region66: #{cnn_forward.1} parent=63 // pred_check_branch
        %407 = sbr.rel (%p405) target = $region68
      $region67: #{cnn_forward.1} parent=63 // pred_region
        %p408 = scmp.lt.s32.totalorder %s20, 1
        %s409 = scalar_select %p408, %s20, 1
        %s410 = smul.addr %s409, 10
        %s411 = smul.addr %s410, 8
        %s412 = scalar_lea.vmem %s0, %s411
      $region68: #{cnn_forward.1} parent=63 // pred_fallthru
        _
      // Predicated region
      $region69: #{cnn_forward.1} parent=63 // pred_check
        %p413 = pneg %p66
      $region70: #{cnn_forward.1} parent=63 // pred_check_branch
        %415 = sbr.rel (%p413) target = $region72
      $region71: #{cnn_forward.1} parent=63 // pred_region
        %p416 = scmp.lt.s32.totalorder %s20, 1
        %s417 = scalar_select %p416, %s20, 1
        %s418 = smul.addr %s417, 10
        %s419 = smul.addr %s418, 8
        %s420 = scalar_lea.vmem %s1, %s419
      $region72: #{cnn_forward.1} parent=63 // pred_fallthru
        _
    $region64: #{cnn_forward.1} parent=5 // pred_fallthru
      _
    %p421 = scmp.le.s32.totalorder 1, %s20
    %p422 = scmp.lt.s32.totalorder %s20, 3
    %p423 = pnand %p421, %p422
    %p424 = pneg %p423
    // Predicated region
    $region73: #{cnn_forward.1} parent=5 // pred_check
      _
    $region74: #{cnn_forward.1} parent=5 // pred_check_branch
      %426 = sbr.rel (%p423) target = $region76
    $region75: #{cnn_forward.1} parent=5 // pred_region
      %s427 = ssub.s32 %s20, 1
      %p428 = scmp.lt.s32.totalorder %s25, 1
      %s429 = scalar_select %p428, %s25, 1
      %s430 = smul.addr %s429, 10
      %s431 = smul.addr %s430, 8
      %s432 = scalar_lea.vmem %s0, %s431
      %p433 = pneg %p46
      %p434 = pneg %p43
      %p435 = scmp.lt.s32.totalorder %s25, 1
      %s436 = scalar_select %p435, %s25, 1
      %s437 = smul.addr %s436, 10
      %s438 = smul.addr %s437, 8
      %s439 = scalar_lea.vmem %s1, %s438
      %p440 = pneg %p72
      %p441 = pneg %p69
      %p442 = pneg %p93
      %p443 = pneg %p90
      %p444 = pneg %p114
      %p445 = pneg %p111
      %p446 = pneg %p135
      %p447 = pneg %p132
      %p448 = pneg %p156
      %p449 = pneg %p153
      %p450 = pneg %p177
      %p451 = pneg %p174
      %p452 = pneg %p198
      %p453 = pneg %p195
      %p454 = pneg %p219
      %p455 = pneg %p216
      %p456 = pneg %p240
      %p457 = pneg %p237
      %p458 = pneg %p261
      %p459 = pneg %p258
      %p460 = pneg %p282
      %p461 = pneg %p279
      %p462 = pneg %p303
      %p463 = pneg %p300
      %p464 = pneg %p324
      %p465 = pneg %p321
      %p466 = pneg %p350
      %p467 = pneg %p347
      %p468 = scmp.lt.s32.totalorder %s25, 1
      %s469 = scalar_select %p468, %s25, 1
      %s470 = smul.addr %s469, 4
      %s471 = scalar_lea.vmem %s14, %s470
      %p472 = scmp.lt.s32.totalorder %s25, 1
      %s473 = scalar_select %p472, %s25, 1
      %s474 = smul.addr %s473, 10
      %s475 = smul.addr %s474, 8
      %s476 = scalar_lea.vmem %s0, %s475
      %p477 = scmp.lt.s32.totalorder %s25, 1
      %s478 = scalar_select %p477, %s25, 1
      %s479 = smul.addr %s478, 10
      %s480 = smul.addr %s479, 8
      %s481 = scalar_lea.vmem %s1, %s480
      %p482 = scmp.lt.s32.totalorder %s25, 1
      %s483 = scalar_select %p482, %s25, 1
      %s484 = smul.addr %s483, 4
      %s485 = scalar_lea.vmem %s14, %s484
      %v487 = vld [vmem:[%s476] sm:$0xff]
      %v488 = vld [vmem:[%s476 + $0x8] sm:$0xff]
      %v489 = vld [vmem:[%s476 + $0x10] sm:$0xff]
      %v490 = vld [vmem:[%s476 + $0x18] sm:$0xff]
      %v491 = vld [vmem:[%s476 + $0x20] sm:$0xff]
      %v492 = vld [vmem:[%s476 + $0x28] sm:$0xff]
      %v493 = vld [vmem:[%s476 + $0x30] sm:$0xff]
      %v494 = vld [vmem:[%s476 + $0x38] sm:$0xff]
      %v495 = vld [vmem:[%s476 + $0x40] sm:$0xff]
      %v496 = vld [vmem:[%s476 + $0x48] sm:$0xff]
      %v497 = vpack.c.bf16 %v488, %v487
      %v498 = vpack.c.bf16 %v490, %v489
      %v499 = vpack.c.bf16 %v492, %v491
      %v500 = vpack.c.bf16 %v494, %v493
      %v501 = vpack.c.bf16 %v496, %v495
      %v502 = vld [vmem:[%s481] sm:$0xff]
      %v503 = vld [vmem:[%s481 + $0x8] sm:$0xff]
      %v504 = vld [vmem:[%s481 + $0x10] sm:$0xff]
      %v505 = vld [vmem:[%s481 + $0x18] sm:$0xff]
      %v506 = vld [vmem:[%s481 + $0x20] sm:$0xff]
      %v507 = vld [vmem:[%s481 + $0x28] sm:$0xff]
      %v508 = vld [vmem:[%s481 + $0x30] sm:$0xff]
      %v509 = vld [vmem:[%s481 + $0x38] sm:$0xff]
      %v510 = vld [vmem:[%s481 + $0x40] sm:$0xff]
      %v511 = vld [vmem:[%s481 + $0x48] sm:$0xff]
      %v512 = vpack.c.bf16 %v503, %v502
      %v513 = vpack.c.bf16 %v505, %v504
      %v514 = vpack.c.bf16 %v507, %v506
      %v515 = vpack.c.bf16 %v509, %v508
      %v516 = vpack.c.bf16 %v511, %v510
      %v517 = vld [vmem:[%s2] sm:$0xff]
      %v518 = vld [vmem:[%s2 + $0x8] sm:$0xff]
      %v519 = vld [vmem:[%s2 + $0x10] sm:$0xff]
      %v520 = vld [vmem:[%s2 + $0x18] sm:$0xff]
      %v521 = vld [vmem:[%s2 + $0x20] sm:$0xff]
      %v522 = vld [vmem:[%s2 + $0x28] sm:$0xff]
      %v523 = vld [vmem:[%s2 + $0x30] sm:$0xff]
      %v524 = vld [vmem:[%s2 + $0x38] sm:$0xff]
      %v525 = vld [vmem:[%s2 + $0x40] sm:$0xff]
      %v526 = vld [vmem:[%s2 + $0x48] sm:$0xff]
      %v527 = vld [vmem:[%s2 + $0x50] sm:$0xff]
      %v528 = vld [vmem:[%s2 + $0x58] sm:$0xff]
      %v529 = vld [vmem:[%s2 + $0x60] sm:$0xff]
      %v530 = vld [vmem:[%s2 + $0x68] sm:$0xff]
      %v531 = vld [vmem:[%s2 + $0x70] sm:$0xff]
      %v532 = vld [vmem:[%s2 + $0x78] sm:$0xff]
      %v533 = vld [vmem:[%s2 + $0x80] sm:$0xff]
      %v534 = vld [vmem:[%s2 + $0x88] sm:$0xff]
      %v535 = vld [vmem:[%s2 + $0x90] sm:$0xff]
      %v536 = vld [vmem:[%s2 + $0x98] sm:$0xff]
      %v537 = vld [vmem:[%s2 + $0xa0] sm:$0x33]
      %v538 = vld [vmem:[%s2 + $0xa8] sm:$0x33]
      %v539 = vld [vmem:[%s3] sm:$0xff]
      %v540 = vld [vmem:[%s3 + $0x8] sm:$0xff]
      %v541 = vld [vmem:[%s3 + $0x10] sm:$0xff]
      %v542 = vld [vmem:[%s3 + $0x18] sm:$0xff]
      %v543 = vld [vmem:[%s3 + $0x20] sm:$0xff]
      %v544 = vld [vmem:[%s3 + $0x28] sm:$0xff]
      %v545 = vld [vmem:[%s3 + $0x30] sm:$0xff]
      %v546 = vld [vmem:[%s3 + $0x38] sm:$0xff]
      %v547 = vld [vmem:[%s3 + $0x40] sm:$0xff]
      %v548 = vld [vmem:[%s3 + $0x48] sm:$0xff]
      %v549 = vld [vmem:[%s3 + $0x50] sm:$0xff]
      %v550 = vld [vmem:[%s3 + $0x58] sm:$0xff]
      %v551 = vld [vmem:[%s3 + $0x60] sm:$0xff]
      %v552 = vld [vmem:[%s3 + $0x68] sm:$0xff]
      %v553 = vld [vmem:[%s3 + $0x70] sm:$0xff]
      %v554 = vld [vmem:[%s3 + $0x78] sm:$0xff]
      %v555 = vld [vmem:[%s3 + $0x80] sm:$0xff]
      %v556 = vld [vmem:[%s3 + $0x88] sm:$0xff]
      %v557 = vld [vmem:[%s3 + $0x90] sm:$0xff]
      %v558 = vld [vmem:[%s3 + $0x98] sm:$0xff]
      %v559 = vld [vmem:[%s3 + $0xa0] sm:$0x33]
      %v560 = vld [vmem:[%s3 + $0xa8] sm:$0x33]
      %v583 = vunpack.c.l.b16 %v517
      %v584 = vunpack.c.h.b16 %v517
      %v585 = vunpack.c.l.b16 %v518
      %v586 = vunpack.c.h.b16 %v518
      %v587 = vunpack.c.l.b16 %v519
      %v588 = vunpack.c.h.b16 %v519
      %v589 = vunpack.c.l.b16 %v520
      %v590 = vunpack.c.h.b16 %v520
      %v591 = vunpack.c.l.b16 %v521
      %v592 = vunpack.c.h.b16 %v521
      %v593 = vunpack.c.l.b16 %v522
      %v594 = vunpack.c.h.b16 %v522
      %v595 = vunpack.c.l.b16 %v523
      %v596 = vunpack.c.h.b16 %v523
      %v597 = vunpack.c.l.b16 %v524
      %v598 = vunpack.c.h.b16 %v524
      %v599 = vunpack.c.l.b16 %v525
      %v600 = vunpack.c.h.b16 %v525
      %v601 = vunpack.c.l.b16 %v526
      %v602 = vunpack.c.h.b16 %v526
      %v603 = vunpack.c.l.b16 %v527
      %v604 = vunpack.c.h.b16 %v527
      %v605 = vunpack.c.l.b16 %v528
      %v606 = vunpack.c.h.b16 %v528
      %v607 = vunpack.c.l.b16 %v529
      %v608 = vunpack.c.h.b16 %v529
      %v609 = vunpack.c.l.b16 %v530
      %v610 = vunpack.c.h.b16 %v530
      %v611 = vunpack.c.l.b16 %v531
      %v612 = vunpack.c.h.b16 %v531
      %v613 = vunpack.c.l.b16 %v532
      %v614 = vunpack.c.h.b16 %v532
      %v615 = vunpack.c.l.b16 %v533
      %v616 = vunpack.c.h.b16 %v533
      %v617 = vunpack.c.l.b16 %v534
      %v618 = vunpack.c.h.b16 %v534
      %v619 = vunpack.c.l.b16 %v535
      %v620 = vunpack.c.h.b16 %v535
      %v621 = vunpack.c.l.b16 %v536
      %v622 = vunpack.c.h.b16 %v536
      %v623 = vunpack.c.l.b16 %v537
      %v624 = vunpack.c.h.b16 %v537
      %v625 = vunpack.c.l.b16 %v538
      %v626 = vunpack.c.h.b16 %v538
      %v627 = vpack.c.b16 %v587, %v583
      %v628 = vpack.c.b16 %v588, %v584
      %v629 = vpack.c.b16 %v589, %v585
      %v630 = vpack.c.b16 %v590, %v586
      %v631 = vpack.c.b16 %v595, %v591
      %v632 = vpack.c.b16 %v596, %v592
      %v633 = vpack.c.b16 %v597, %v593
      %v634 = vpack.c.b16 %v598, %v594
      %v635 = vpack.c.b16 %v603, %v599
      %v636 = vpack.c.b16 %v604, %v600
      %v637 = vpack.c.b16 %v605, %v601
      %v638 = vpack.c.b16 %v606, %v602
      %v639 = vpack.c.b16 %v611, %v607
      %v640 = vpack.c.b16 %v612, %v608
      %v641 = vpack.c.b16 %v613, %v609
      %v642 = vpack.c.b16 %v614, %v610
      %v643 = vpack.c.b16 %v619, %v615
      %v644 = vpack.c.b16 %v620, %v616
      %v645 = vpack.c.b16 %v621, %v617
      %v646 = vpack.c.b16 %v622, %v618
      %v647 = vpack.c.b16 %v623, %v623
      %v648 = vpack.c.b16 %v624, %v624
      %v649 = vpack.c.b16 %v625, %v625
      %v650 = vpack.c.b16 %v626, %v626
      %vm671 = vcmask 687104
      %v673 = vsel %vm671, %v497, 0
      %v676 = vsel %vm671, %v498, 0
      %v679 = vsel %vm671, %v499, 0
      %v682 = vsel %vm671, %v500, 0
      %v685 = vsel %vm671, %v501, 0
      %vm687 = vcmask 1041408
      %v689 = vsel %vm687, %v647, 0
      %v692 = vsel %vm687, %v648, 0
      %v695 = vsel %vm687, %v649, 0
      %v698 = vsel %vm687, %v650, 0
      %700 = vmatpush.bf16.msra.mxu0 0
      %701 = vmatpush.bf16.msra.mxu0 0
      %702 = vmatpush.bf16.msra.mxu0 %v689
      %703 = vmatpush.bf16.msra.mxu0 %v643
      %704 = vmatpush.bf16.msra.mxu0 %v639
      %705 = vmatpush.bf16.msra.mxu0 %v635
      %706 = vmatpush.bf16.msra.mxu0 %v631
      %707 = vmatpush.bf16.msra.mxu0 %v627
      %708 = vmatmul.bf16.gmra.mxu0 %v673
      %v709 = vpop.f32.mrf.mxu0
      %v710 = vadd.f32 0.0, %v709
      %v711 = vpop.f32.mrf.mxu0
      %v712 = vadd.f32 0.0, %v711
      %713 = vmatmul.bf16.gmra.mxu0 %v676
      %v714 = vpop.f32.mrf.mxu0
      %v715 = vadd.f32 0.0, %v714
      %v716 = vpop.f32.mrf.mxu0
      %v717 = vadd.f32 0.0, %v716
      %718 = vmatmul.bf16.gmra.mxu0 %v679
      %v719 = vpop.f32.mrf.mxu0
      %v720 = vadd.f32 0.0, %v719
      %v721 = vpop.f32.mrf.mxu0
      %v722 = vadd.f32 0.0, %v721
      %723 = vmatmul.bf16.gmra.mxu0 %v682
      %v724 = vpop.f32.mrf.mxu0
      %v725 = vadd.f32 0.0, %v724
      %v726 = vpop.f32.mrf.mxu0
      %v727 = vadd.f32 0.0, %v726
      %728 = vmatmul.bf16.gmra.mxu0 %v685
      %v729 = vpop.f32.mrf.mxu0
      %v730 = vadd.f32 0.0, %v729
      %v731 = vpop.f32.mrf.mxu0
      %v732 = vadd.f32 0.0, %v731
      %733 = vdwg.mxu0
      %734 = vmatpush.bf16.msra.mxu0 0
      %735 = vmatpush.bf16.msra.mxu0 0
      %736 = vmatpush.bf16.msra.mxu0 %v692
      %737 = vmatpush.bf16.msra.mxu0 %v644
      %738 = vmatpush.bf16.msra.mxu0 %v640
      %739 = vmatpush.bf16.msra.mxu0 %v636
      %740 = vmatpush.bf16.msra.mxu0 %v632
      %741 = vmatpush.bf16.msra.mxu0 %v628
      %742 = vmatmul.bf16.gmra.mxu0 %v673
      %v743 = vpop.f32.mrf.mxu0
      %v744 = vadd.f32 0.0, %v743
      %v745 = vpop.f32.mrf.mxu0
      %v746 = vadd.f32 0.0, %v745
      %747 = vmatmul.bf16.gmra.mxu0 %v676
      %v748 = vpop.f32.mrf.mxu0
      %v749 = vadd.f32 0.0, %v748
      %v750 = vpop.f32.mrf.mxu0
      %v751 = vadd.f32 0.0, %v750
      %752 = vmatmul.bf16.gmra.mxu0 %v679
      %v753 = vpop.f32.mrf.mxu0
      %v754 = vadd.f32 0.0, %v753
      %v755 = vpop.f32.mrf.mxu0
      %v756 = vadd.f32 0.0, %v755
      %757 = vmatmul.bf16.gmra.mxu0 %v682
      %v758 = vpop.f32.mrf.mxu0
      %v759 = vadd.f32 0.0, %v758
      %v760 = vpop.f32.mrf.mxu0
      %v761 = vadd.f32 0.0, %v760
      %762 = vmatmul.bf16.gmra.mxu0 %v685
      %v763 = vpop.f32.mrf.mxu0
      %v764 = vadd.f32 0.0, %v763
      %v765 = vpop.f32.mrf.mxu0
      %v766 = vadd.f32 0.0, %v765
      %767 = vdwg.mxu0
      %768 = vmatpush.bf16.msra.mxu0 0
      %769 = vmatpush.bf16.msra.mxu0 0
      %770 = vmatpush.bf16.msra.mxu0 %v695
      %771 = vmatpush.bf16.msra.mxu0 %v645
      %772 = vmatpush.bf16.msra.mxu0 %v641
      %773 = vmatpush.bf16.msra.mxu0 %v637
      %774 = vmatpush.bf16.msra.mxu0 %v633
      %775 = vmatpush.bf16.msra.mxu0 %v629
      %776 = vmatmul.bf16.gmra.mxu0 %v673
      %v777 = vpop.f32.mrf.mxu0
      %v778 = vadd.f32 0.0, %v777
      %v779 = vpop.f32.mrf.mxu0
      %v780 = vadd.f32 0.0, %v779
      %781 = vmatmul.bf16.gmra.mxu0 %v676
      %v782 = vpop.f32.mrf.mxu0
      %v783 = vadd.f32 0.0, %v782
      %v784 = vpop.f32.mrf.mxu0
      %v785 = vadd.f32 0.0, %v784
      %786 = vmatmul.bf16.gmra.mxu0 %v679
      %v787 = vpop.f32.mrf.mxu0
      %v788 = vadd.f32 0.0, %v787
      %v789 = vpop.f32.mrf.mxu0
      %v790 = vadd.f32 0.0, %v789
      %791 = vmatmul.bf16.gmra.mxu0 %v682
      %v792 = vpop.f32.mrf.mxu0
      %v793 = vadd.f32 0.0, %v792
      %v794 = vpop.f32.mrf.mxu0
      %v795 = vadd.f32 0.0, %v794
      %796 = vmatmul.bf16.gmra.mxu0 %v685
      %v797 = vpop.f32.mrf.mxu0
      %v798 = vadd.f32 0.0, %v797
      %v799 = vpop.f32.mrf.mxu0
      %v800 = vadd.f32 0.0, %v799
      %801 = vdwg.mxu0
      %802 = vmatpush.bf16.msra.mxu0 0
      %803 = vmatpush.bf16.msra.mxu0 0
      %804 = vmatpush.bf16.msra.mxu0 %v698
      %805 = vmatpush.bf16.msra.mxu0 %v646
      %806 = vmatpush.bf16.msra.mxu0 %v642
      %807 = vmatpush.bf16.msra.mxu0 %v638
      %808 = vmatpush.bf16.msra.mxu0 %v634
      %809 = vmatpush.bf16.msra.mxu0 %v630
      %810 = vmatmul.bf16.gmra.mxu0 %v673
      %v811 = vpop.f32.mrf.mxu0
      %v812 = vadd.f32 0.0, %v811
      %v813 = vpop.f32.mrf.mxu0
      %v814 = vadd.f32 0.0, %v813
      %815 = vmatmul.bf16.gmra.mxu0 %v676
      %v816 = vpop.f32.mrf.mxu0
      %v817 = vadd.f32 0.0, %v816
      %v818 = vpop.f32.mrf.mxu0
      %v819 = vadd.f32 0.0, %v818
      %820 = vmatmul.bf16.gmra.mxu0 %v679
      %v821 = vpop.f32.mrf.mxu0
      %v822 = vadd.f32 0.0, %v821
      %v823 = vpop.f32.mrf.mxu0
      %v824 = vadd.f32 0.0, %v823
      %825 = vmatmul.bf16.gmra.mxu0 %v682
      %v826 = vpop.f32.mrf.mxu0
      %v827 = vadd.f32 0.0, %v826
      %v828 = vpop.f32.mrf.mxu0
      %v829 = vadd.f32 0.0, %v828
      %830 = vmatmul.bf16.gmra.mxu0 %v685
      %v831 = vpop.f32.mrf.mxu0
      %v832 = vadd.f32 0.0, %v831
      %v833 = vpop.f32.mrf.mxu0
      %v834 = vadd.f32 0.0, %v833
      %835 = vdwg.mxu0
      %v858 = vunpack.c.l.b16 %v539
      %v859 = vunpack.c.h.b16 %v539
      %v860 = vunpack.c.l.b16 %v540
      %v861 = vunpack.c.h.b16 %v540
      %v862 = vunpack.c.l.b16 %v541
      %v863 = vunpack.c.h.b16 %v541
      %v864 = vunpack.c.l.b16 %v542
      %v865 = vunpack.c.h.b16 %v542
      %v866 = vunpack.c.l.b16 %v543
      %v867 = vunpack.c.h.b16 %v543
      %v868 = vunpack.c.l.b16 %v544
      %v869 = vunpack.c.h.b16 %v544
      %v870 = vunpack.c.l.b16 %v545
      %v871 = vunpack.c.h.b16 %v545
      %v872 = vunpack.c.l.b16 %v546
      %v873 = vunpack.c.h.b16 %v546
      %v874 = vunpack.c.l.b16 %v547
      %v875 = vunpack.c.h.b16 %v547
      %v876 = vunpack.c.l.b16 %v548
      %v877 = vunpack.c.h.b16 %v548
      %v878 = vunpack.c.l.b16 %v549
      %v879 = vunpack.c.h.b16 %v549
      %v880 = vunpack.c.l.b16 %v550
      %v881 = vunpack.c.h.b16 %v550
      %v882 = vunpack.c.l.b16 %v551
      %v883 = vunpack.c.h.b16 %v551
      %v884 = vunpack.c.l.b16 %v552
      %v885 = vunpack.c.h.b16 %v552
      %v886 = vunpack.c.l.b16 %v553
      %v887 = vunpack.c.h.b16 %v553
      %v888 = vunpack.c.l.b16 %v554
      %v889 = vunpack.c.h.b16 %v554
      %v890 = vunpack.c.l.b16 %v555
      %v891 = vunpack.c.h.b16 %v555
      %v892 = vunpack.c.l.b16 %v556
      %v893 = vunpack.c.h.b16 %v556
      %v894 = vunpack.c.l.b16 %v557
      %v895 = vunpack.c.h.b16 %v557
      %v896 = vunpack.c.l.b16 %v558
      %v897 = vunpack.c.h.b16 %v558
      %v898 = vunpack.c.l.b16 %v559
      %v899 = vunpack.c.h.b16 %v559
      %v900 = vunpack.c.l.b16 %v560
      %v901 = vunpack.c.h.b16 %v560
      %v902 = vpack.c.b16 %v862, %v858
      %v903 = vpack.c.b16 %v863, %v859
      %v904 = vpack.c.b16 %v864, %v860
      %v905 = vpack.c.b16 %v865, %v861
      %v906 = vpack.c.b16 %v870, %v866
      %v907 = vpack.c.b16 %v871, %v867
      %v908 = vpack.c.b16 %v872, %v868
      %v909 = vpack.c.b16 %v873, %v869
      %v910 = vpack.c.b16 %v878, %v874
      %v911 = vpack.c.b16 %v879, %v875
      %v912 = vpack.c.b16 %v880, %v876
      %v913 = vpack.c.b16 %v881, %v877
      %v914 = vpack.c.b16 %v886, %v882
      %v915 = vpack.c.b16 %v887, %v883
      %v916 = vpack.c.b16 %v888, %v884
      %v917 = vpack.c.b16 %v889, %v885
      %v918 = vpack.c.b16 %v894, %v890
      %v919 = vpack.c.b16 %v895, %v891
      %v920 = vpack.c.b16 %v896, %v892
      %v921 = vpack.c.b16 %v897, %v893
      %v922 = vpack.c.b16 %v898, %v898
      %v923 = vpack.c.b16 %v899, %v899
      %v924 = vpack.c.b16 %v900, %v900
      %v925 = vpack.c.b16 %v901, %v901
      %v947 = vsel %vm687, %v922, 0
      %v950 = vsel %vm687, %v923, 0
      %v953 = vsel %vm687, %v924, 0
      %v956 = vsel %vm687, %v925, 0
      %958 = vmatpush.bf16.msra.mxu0 0
      %959 = vmatpush.bf16.msra.mxu0 0
      %960 = vmatpush.bf16.msra.mxu0 %v947
      %961 = vmatpush.bf16.msra.mxu0 %v918
      %962 = vmatpush.bf16.msra.mxu0 %v914
      %963 = vmatpush.bf16.msra.mxu0 %v910
      %964 = vmatpush.bf16.msra.mxu0 %v906
      %965 = vmatpush.bf16.msra.mxu0 %v902
      %966 = vmatmul.bf16.gmra.mxu0 %v673
      %v967 = vpop.f32.mrf.mxu0
      %v968 = vadd.f32 0.0, %v967
      %v969 = vpop.f32.mrf.mxu0
      %v970 = vadd.f32 0.0, %v969
      %971 = vmatmul.bf16.gmra.mxu0 %v676
      %v972 = vpop.f32.mrf.mxu0
      %v973 = vadd.f32 0.0, %v972
      %v974 = vpop.f32.mrf.mxu0
      %v975 = vadd.f32 0.0, %v974
      %976 = vmatmul.bf16.gmra.mxu0 %v679
      %v977 = vpop.f32.mrf.mxu0
      %v978 = vadd.f32 0.0, %v977
      %v979 = vpop.f32.mrf.mxu0
      %v980 = vadd.f32 0.0, %v979
      %981 = vmatmul.bf16.gmra.mxu0 %v682
      %v982 = vpop.f32.mrf.mxu0
      %v983 = vadd.f32 0.0, %v982
      %v984 = vpop.f32.mrf.mxu0
      %v985 = vadd.f32 0.0, %v984
      %986 = vmatmul.bf16.gmra.mxu0 %v685
      %v987 = vpop.f32.mrf.mxu0
      %v988 = vadd.f32 0.0, %v987
      %v989 = vpop.f32.mrf.mxu0
      %v990 = vadd.f32 0.0, %v989
      %991 = vdwg.mxu0
      %992 = vmatpush.bf16.msra.mxu0 0
      %993 = vmatpush.bf16.msra.mxu0 0
      %994 = vmatpush.bf16.msra.mxu0 %v950
      %995 = vmatpush.bf16.msra.mxu0 %v919
      %996 = vmatpush.bf16.msra.mxu0 %v915
      %997 = vmatpush.bf16.msra.mxu0 %v911
      %998 = vmatpush.bf16.msra.mxu0 %v907
      %999 = vmatpush.bf16.msra.mxu0 %v903
      %1000 = vmatmul.bf16.gmra.mxu0 %v673
      %v1001 = vpop.f32.mrf.mxu0
      %v1002 = vadd.f32 0.0, %v1001
      %v1003 = vpop.f32.mrf.mxu0
      %v1004 = vadd.f32 0.0, %v1003
      %1005 = vmatmul.bf16.gmra.mxu0 %v676
      %v1006 = vpop.f32.mrf.mxu0
      %v1007 = vadd.f32 0.0, %v1006
      %v1008 = vpop.f32.mrf.mxu0
      %v1009 = vadd.f32 0.0, %v1008
      %1010 = vmatmul.bf16.gmra.mxu0 %v679
      %v1011 = vpop.f32.mrf.mxu0
      %v1012 = vadd.f32 0.0, %v1011
      %v1013 = vpop.f32.mrf.mxu0
      %v1014 = vadd.f32 0.0, %v1013
      %1015 = vmatmul.bf16.gmra.mxu0 %v682
      %v1016 = vpop.f32.mrf.mxu0
      %v1017 = vadd.f32 0.0, %v1016
      %v1018 = vpop.f32.mrf.mxu0
      %v1019 = vadd.f32 0.0, %v1018
      %1020 = vmatmul.bf16.gmra.mxu0 %v685
      %v1021 = vpop.f32.mrf.mxu0
      %v1022 = vadd.f32 0.0, %v1021
      %v1023 = vpop.f32.mrf.mxu0
      %v1024 = vadd.f32 0.0, %v1023
      %1025 = vdwg.mxu0
      %1026 = vmatpush.bf16.msra.mxu0 0
      %1027 = vmatpush.bf16.msra.mxu0 0
      %1028 = vmatpush.bf16.msra.mxu0 %v953
      %1029 = vmatpush.bf16.msra.mxu0 %v920
      %1030 = vmatpush.bf16.msra.mxu0 %v916
      %1031 = vmatpush.bf16.msra.mxu0 %v912
      %1032 = vmatpush.bf16.msra.mxu0 %v908
      %1033 = vmatpush.bf16.msra.mxu0 %v904
      %1034 = vmatmul.bf16.gmra.mxu0 %v673
      %v1035 = vpop.f32.mrf.mxu0
      %v1036 = vadd.f32 0.0, %v1035
      %v1037 = vpop.f32.mrf.mxu0
      %v1038 = vadd.f32 0.0, %v1037
      %1039 = vmatmul.bf16.gmra.mxu0 %v676
      %v1040 = vpop.f32.mrf.mxu0
      %v1041 = vadd.f32 0.0, %v1040
      %v1042 = vpop.f32.mrf.mxu0
      %v1043 = vadd.f32 0.0, %v1042
      %1044 = vmatmul.bf16.gmra.mxu0 %v679
      %v1045 = vpop.f32.mrf.mxu0
      %v1046 = vadd.f32 0.0, %v1045
      %v1047 = vpop.f32.mrf.mxu0
      %v1048 = vadd.f32 0.0, %v1047
      %1049 = vmatmul.bf16.gmra.mxu0 %v682
      %v1050 = vpop.f32.mrf.mxu0
      %v1051 = vadd.f32 0.0, %v1050
      %v1052 = vpop.f32.mrf.mxu0
      %v1053 = vadd.f32 0.0, %v1052
      %1054 = vmatmul.bf16.gmra.mxu0 %v685
      %v1055 = vpop.f32.mrf.mxu0
      %v1056 = vadd.f32 0.0, %v1055
      %v1057 = vpop.f32.mrf.mxu0
      %v1058 = vadd.f32 0.0, %v1057
      %1059 = vdwg.mxu0
      %1060 = vmatpush.bf16.msra.mxu0 0
      %1061 = vmatpush.bf16.msra.mxu0 0
      %1062 = vmatpush.bf16.msra.mxu0 %v956
      %1063 = vmatpush.bf16.msra.mxu0 %v921
      %1064 = vmatpush.bf16.msra.mxu0 %v917
      %1065 = vmatpush.bf16.msra.mxu0 %v913
      %1066 = vmatpush.bf16.msra.mxu0 %v909
      %1067 = vmatpush.bf16.msra.mxu0 %v905
      %1068 = vmatmul.bf16.gmra.mxu0 %v673
      %v1069 = vpop.f32.mrf.mxu0
      %v1070 = vadd.f32 0.0, %v1069
      %v1071 = vpop.f32.mrf.mxu0
      %v1072 = vadd.f32 0.0, %v1071
      %1073 = vmatmul.bf16.gmra.mxu0 %v676
      %v1074 = vpop.f32.mrf.mxu0
      %v1075 = vadd.f32 0.0, %v1074
      %v1076 = vpop.f32.mrf.mxu0
      %v1077 = vadd.f32 0.0, %v1076
      %1078 = vmatmul.bf16.gmra.mxu0 %v679
      %v1079 = vpop.f32.mrf.mxu0
      %v1080 = vadd.f32 0.0, %v1079
      %v1081 = vpop.f32.mrf.mxu0
      %v1082 = vadd.f32 0.0, %v1081
      %1083 = vmatmul.bf16.gmra.mxu0 %v682
      %v1084 = vpop.f32.mrf.mxu0
      %v1085 = vadd.f32 0.0, %v1084
      %v1086 = vpop.f32.mrf.mxu0
      %v1087 = vadd.f32 0.0, %v1086
      %1088 = vmatmul.bf16.gmra.mxu0 %v685
      %v1089 = vpop.f32.mrf.mxu0
      %v1090 = vadd.f32 0.0, %v1089
      %v1091 = vpop.f32.mrf.mxu0
      %v1092 = vadd.f32 0.0, %v1091
      %1093 = vdwg.mxu0
      %v1094 = vmax.f32 %v710, %v968
      %v1095 = vmax.f32 %v744, %v1002
      %v1096 = vmax.f32 %v778, %v1036
      %v1097 = vmax.f32 %v812, %v1070
      %v1098 = vmax.f32 %v712, %v970
      %v1099 = vmax.f32 %v746, %v1004
      %v1100 = vmax.f32 %v780, %v1038
      %v1101 = vmax.f32 %v814, %v1072
      %v1102 = vmax.f32 %v715, %v973
      %v1103 = vmax.f32 %v749, %v1007
      %v1104 = vmax.f32 %v783, %v1041
      %v1105 = vmax.f32 %v817, %v1075
      %v1106 = vmax.f32 %v717, %v975
      %v1107 = vmax.f32 %v751, %v1009
      %v1108 = vmax.f32 %v785, %v1043
      %v1109 = vmax.f32 %v819, %v1077
      %v1110 = vmax.f32 %v720, %v978
      %v1111 = vmax.f32 %v754, %v1012
      %v1112 = vmax.f32 %v788, %v1046
      %v1113 = vmax.f32 %v822, %v1080
      %v1114 = vmax.f32 %v722, %v980
      %v1115 = vmax.f32 %v756, %v1014
      %v1116 = vmax.f32 %v790, %v1048
      %v1117 = vmax.f32 %v824, %v1082
      %v1118 = vmax.f32 %v725, %v983
      %v1119 = vmax.f32 %v759, %v1017
      %v1120 = vmax.f32 %v793, %v1051
      %v1121 = vmax.f32 %v827, %v1085
      %v1122 = vmax.f32 %v727, %v985
      %v1123 = vmax.f32 %v761, %v1019
      %v1124 = vmax.f32 %v795, %v1053
      %v1125 = vmax.f32 %v829, %v1087
      %v1126 = vmax.f32 %v730, %v988
      %v1127 = vmax.f32 %v764, %v1022
      %v1128 = vmax.f32 %v798, %v1056
      %v1129 = vmax.f32 %v832, %v1090
      %v1130 = vmax.f32 %v732, %v990
      %v1131 = vmax.f32 %v766, %v1024
      %v1132 = vmax.f32 %v800, %v1058
      %v1133 = vmax.f32 %v834, %v1092
      %v1135 = vsel %vm671, %v512, 0
      %v1138 = vsel %vm671, %v513, 0
      %v1141 = vsel %vm671, %v514, 0
      %v1144 = vsel %vm671, %v515, 0
      %v1147 = vsel %vm671, %v516, 0
      %1149 = vmatpush.bf16.msra.mxu0 0
      %1150 = vmatpush.bf16.msra.mxu0 0
      %1151 = vmatpush.bf16.msra.mxu0 %v689
      %1152 = vmatpush.bf16.msra.mxu0 %v643
      %1153 = vmatpush.bf16.msra.mxu0 %v639
      %1154 = vmatpush.bf16.msra.mxu0 %v635
      %1155 = vmatpush.bf16.msra.mxu0 %v631
      %1156 = vmatpush.bf16.msra.mxu0 %v627
      %1157 = vmatmul.bf16.gmra.mxu0 %v1135
      %v1158 = vpop.f32.mrf.mxu0
      %v1159 = vadd.f32 0.0, %v1158
      %v1160 = vpop.f32.mrf.mxu0
      %v1161 = vadd.f32 0.0, %v1160
      %1162 = vmatmul.bf16.gmra.mxu0 %v1138
      %v1163 = vpop.f32.mrf.mxu0
      %v1164 = vadd.f32 0.0, %v1163
      %v1165 = vpop.f32.mrf.mxu0
      %v1166 = vadd.f32 0.0, %v1165
      %1167 = vmatmul.bf16.gmra.mxu0 %v1141
      %v1168 = vpop.f32.mrf.mxu0
      %v1169 = vadd.f32 0.0, %v1168
      %v1170 = vpop.f32.mrf.mxu0
      %v1171 = vadd.f32 0.0, %v1170
      %1172 = vmatmul.bf16.gmra.mxu0 %v1144
      %v1173 = vpop.f32.mrf.mxu0
      %v1174 = vadd.f32 0.0, %v1173
      %v1175 = vpop.f32.mrf.mxu0
      %v1176 = vadd.f32 0.0, %v1175
      %1177 = vmatmul.bf16.gmra.mxu0 %v1147
      %v1178 = vpop.f32.mrf.mxu0
      %v1179 = vadd.f32 0.0, %v1178
      %v1180 = vpop.f32.mrf.mxu0
      %v1181 = vadd.f32 0.0, %v1180
      %1182 = vdwg.mxu0
      %1183 = vmatpush.bf16.msra.mxu0 0
      %1184 = vmatpush.bf16.msra.mxu0 0
      %1185 = vmatpush.bf16.msra.mxu0 %v692
      %1186 = vmatpush.bf16.msra.mxu0 %v644
      %1187 = vmatpush.bf16.msra.mxu0 %v640
      %1188 = vmatpush.bf16.msra.mxu0 %v636
      %1189 = vmatpush.bf16.msra.mxu0 %v632
      %1190 = vmatpush.bf16.msra.mxu0 %v628
      %1191 = vmatmul.bf16.gmra.mxu0 %v1135
      %v1192 = vpop.f32.mrf.mxu0
      %v1193 = vadd.f32 0.0, %v1192
      %v1194 = vpop.f32.mrf.mxu0
      %v1195 = vadd.f32 0.0, %v1194
      %1196 = vmatmul.bf16.gmra.mxu0 %v1138
      %v1197 = vpop.f32.mrf.mxu0
      %v1198 = vadd.f32 0.0, %v1197
      %v1199 = vpop.f32.mrf.mxu0
      %v1200 = vadd.f32 0.0, %v1199
      %1201 = vmatmul.bf16.gmra.mxu0 %v1141
      %v1202 = vpop.f32.mrf.mxu0
      %v1203 = vadd.f32 0.0, %v1202
      %v1204 = vpop.f32.mrf.mxu0
      %v1205 = vadd.f32 0.0, %v1204
      %1206 = vmatmul.bf16.gmra.mxu0 %v1144
      %v1207 = vpop.f32.mrf.mxu0
      %v1208 = vadd.f32 0.0, %v1207
      %v1209 = vpop.f32.mrf.mxu0
      %v1210 = vadd.f32 0.0, %v1209
      %1211 = vmatmul.bf16.gmra.mxu0 %v1147
      %v1212 = vpop.f32.mrf.mxu0
      %v1213 = vadd.f32 0.0, %v1212
      %v1214 = vpop.f32.mrf.mxu0
      %v1215 = vadd.f32 0.0, %v1214
      %1216 = vdwg.mxu0
      %1217 = vmatpush.bf16.msra.mxu0 0
      %1218 = vmatpush.bf16.msra.mxu0 0
      %1219 = vmatpush.bf16.msra.mxu0 %v695
      %1220 = vmatpush.bf16.msra.mxu0 %v645
      %1221 = vmatpush.bf16.msra.mxu0 %v641
      %1222 = vmatpush.bf16.msra.mxu0 %v637
      %1223 = vmatpush.bf16.msra.mxu0 %v633
      %1224 = vmatpush.bf16.msra.mxu0 %v629
      %1225 = vmatmul.bf16.gmra.mxu0 %v1135
      %v1226 = vpop.f32.mrf.mxu0
      %v1227 = vadd.f32 0.0, %v1226
      %v1228 = vpop.f32.mrf.mxu0
      %v1229 = vadd.f32 0.0, %v1228
      %1230 = vmatmul.bf16.gmra.mxu0 %v1138
      %v1231 = vpop.f32.mrf.mxu0
      %v1232 = vadd.f32 0.0, %v1231
      %v1233 = vpop.f32.mrf.mxu0
      %v1234 = vadd.f32 0.0, %v1233
      %1235 = vmatmul.bf16.gmra.mxu0 %v1141
      %v1236 = vpop.f32.mrf.mxu0
      %v1237 = vadd.f32 0.0, %v1236
      %v1238 = vpop.f32.mrf.mxu0
      %v1239 = vadd.f32 0.0, %v1238
      %1240 = vmatmul.bf16.gmra.mxu0 %v1144
      %v1241 = vpop.f32.mrf.mxu0
      %v1242 = vadd.f32 0.0, %v1241
      %v1243 = vpop.f32.mrf.mxu0
      %v1244 = vadd.f32 0.0, %v1243
      %1245 = vmatmul.bf16.gmra.mxu0 %v1147
      %v1246 = vpop.f32.mrf.mxu0
      %v1247 = vadd.f32 0.0, %v1246
      %v1248 = vpop.f32.mrf.mxu0
      %v1249 = vadd.f32 0.0, %v1248
      %1250 = vdwg.mxu0
      %1251 = vmatpush.bf16.msra.mxu0 0
      %1252 = vmatpush.bf16.msra.mxu0 0
      %1253 = vmatpush.bf16.msra.mxu0 %v698
      %1254 = vmatpush.bf16.msra.mxu0 %v646
      %1255 = vmatpush.bf16.msra.mxu0 %v642
      %1256 = vmatpush.bf16.msra.mxu0 %v638
      %1257 = vmatpush.bf16.msra.mxu0 %v634
      %1258 = vmatpush.bf16.msra.mxu0 %v630
      %1259 = vmatmul.bf16.gmra.mxu0 %v1135
      %v1260 = vpop.f32.mrf.mxu0
      %v1261 = vadd.f32 0.0, %v1260
      %v1262 = vpop.f32.mrf.mxu0
      %v1263 = vadd.f32 0.0, %v1262
      %1264 = vmatmul.bf16.gmra.mxu0 %v1138
      %v1265 = vpop.f32.mrf.mxu0
      %v1266 = vadd.f32 0.0, %v1265
      %v1267 = vpop.f32.mrf.mxu0
      %v1268 = vadd.f32 0.0, %v1267
      %1269 = vmatmul.bf16.gmra.mxu0 %v1141
      %v1270 = vpop.f32.mrf.mxu0
      %v1271 = vadd.f32 0.0, %v1270
      %v1272 = vpop.f32.mrf.mxu0
      %v1273 = vadd.f32 0.0, %v1272
      %1274 = vmatmul.bf16.gmra.mxu0 %v1144
      %v1275 = vpop.f32.mrf.mxu0
      %v1276 = vadd.f32 0.0, %v1275
      %v1277 = vpop.f32.mrf.mxu0
      %v1278 = vadd.f32 0.0, %v1277
      %1279 = vmatmul.bf16.gmra.mxu0 %v1147
      %v1280 = vpop.f32.mrf.mxu0
      %v1281 = vadd.f32 0.0, %v1280
      %v1282 = vpop.f32.mrf.mxu0
      %v1283 = vadd.f32 0.0, %v1282
      %1284 = vdwg.mxu0
      %1285 = vmatpush.bf16.msra.mxu0 0
      %1286 = vmatpush.bf16.msra.mxu0 0
      %1287 = vmatpush.bf16.msra.mxu0 %v947
      %1288 = vmatpush.bf16.msra.mxu0 %v918
      %1289 = vmatpush.bf16.msra.mxu0 %v914
      %1290 = vmatpush.bf16.msra.mxu0 %v910
      %1291 = vmatpush.bf16.msra.mxu0 %v906
      %1292 = vmatpush.bf16.msra.mxu0 %v902
      %1293 = vmatmul.bf16.gmra.mxu0 %v1135
      %v1294 = vpop.f32.mrf.mxu0
      %v1295 = vadd.f32 0.0, %v1294
      %v1296 = vpop.f32.mrf.mxu0
      %v1297 = vadd.f32 0.0, %v1296
      %1298 = vmatmul.bf16.gmra.mxu0 %v1138
      %v1299 = vpop.f32.mrf.mxu0
      %v1300 = vadd.f32 0.0, %v1299
      %v1301 = vpop.f32.mrf.mxu0
      %v1302 = vadd.f32 0.0, %v1301
      %1303 = vmatmul.bf16.gmra.mxu0 %v1141
      %v1304 = vpop.f32.mrf.mxu0
      %v1305 = vadd.f32 0.0, %v1304
      %v1306 = vpop.f32.mrf.mxu0
      %v1307 = vadd.f32 0.0, %v1306
      %1308 = vmatmul.bf16.gmra.mxu0 %v1144
      %v1309 = vpop.f32.mrf.mxu0
      %v1310 = vadd.f32 0.0, %v1309
      %v1311 = vpop.f32.mrf.mxu0
      %v1312 = vadd.f32 0.0, %v1311
      %1313 = vmatmul.bf16.gmra.mxu0 %v1147
      %v1314 = vpop.f32.mrf.mxu0
      %v1315 = vadd.f32 0.0, %v1314
      %v1316 = vpop.f32.mrf.mxu0
      %v1317 = vadd.f32 0.0, %v1316
      %1318 = vdwg.mxu0
      %1319 = vmatpush.bf16.msra.mxu0 0
      %1320 = vmatpush.bf16.msra.mxu0 0
      %1321 = vmatpush.bf16.msra.mxu0 %v950
      %1322 = vmatpush.bf16.msra.mxu0 %v919
      %1323 = vmatpush.bf16.msra.mxu0 %v915
      %1324 = vmatpush.bf16.msra.mxu0 %v911
      %1325 = vmatpush.bf16.msra.mxu0 %v907
      %1326 = vmatpush.bf16.msra.mxu0 %v903
      %1327 = vmatmul.bf16.gmra.mxu0 %v1135
      %v1328 = vpop.f32.mrf.mxu0
      %v1329 = vadd.f32 0.0, %v1328
      %v1330 = vpop.f32.mrf.mxu0
      %v1331 = vadd.f32 0.0, %v1330
      %1332 = vmatmul.bf16.gmra.mxu0 %v1138
      %v1333 = vpop.f32.mrf.mxu0
      %v1334 = vadd.f32 0.0, %v1333
      %v1335 = vpop.f32.mrf.mxu0
      %v1336 = vadd.f32 0.0, %v1335
      %1337 = vmatmul.bf16.gmra.mxu0 %v1141
      %v1338 = vpop.f32.mrf.mxu0
      %v1339 = vadd.f32 0.0, %v1338
      %v1340 = vpop.f32.mrf.mxu0
      %v1341 = vadd.f32 0.0, %v1340
      %1342 = vmatmul.bf16.gmra.mxu0 %v1144
      %v1343 = vpop.f32.mrf.mxu0
      %v1344 = vadd.f32 0.0, %v1343
      %v1345 = vpop.f32.mrf.mxu0
      %v1346 = vadd.f32 0.0, %v1345
      %1347 = vmatmul.bf16.gmra.mxu0 %v1147
      %v1348 = vpop.f32.mrf.mxu0
      %v1349 = vadd.f32 0.0, %v1348
      %v1350 = vpop.f32.mrf.mxu0
      %v1351 = vadd.f32 0.0, %v1350
      %1352 = vdwg.mxu0
      %1353 = vmatpush.bf16.msra.mxu0 0
      %1354 = vmatpush.bf16.msra.mxu0 0
      %1355 = vmatpush.bf16.msra.mxu0 %v953
      %1356 = vmatpush.bf16.msra.mxu0 %v920
      %1357 = vmatpush.bf16.msra.mxu0 %v916
      %1358 = vmatpush.bf16.msra.mxu0 %v912
      %1359 = vmatpush.bf16.msra.mxu0 %v908
      %1360 = vmatpush.bf16.msra.mxu0 %v904
      %1361 = vmatmul.bf16.gmra.mxu0 %v1135
      %v1362 = vpop.f32.mrf.mxu0
      %v1363 = vadd.f32 0.0, %v1362
      %v1364 = vpop.f32.mrf.mxu0
      %v1365 = vadd.f32 0.0, %v1364
      %1366 = vmatmul.bf16.gmra.mxu0 %v1138
      %v1367 = vpop.f32.mrf.mxu0
      %v1368 = vadd.f32 0.0, %v1367
      %v1369 = vpop.f32.mrf.mxu0
      %v1370 = vadd.f32 0.0, %v1369
      %1371 = vmatmul.bf16.gmra.mxu0 %v1141
      %v1372 = vpop.f32.mrf.mxu0
      %v1373 = vadd.f32 0.0, %v1372
      %v1374 = vpop.f32.mrf.mxu0
      %v1375 = vadd.f32 0.0, %v1374
      %1376 = vmatmul.bf16.gmra.mxu0 %v1144
      %v1377 = vpop.f32.mrf.mxu0
      %v1378 = vadd.f32 0.0, %v1377
      %v1379 = vpop.f32.mrf.mxu0
      %v1380 = vadd.f32 0.0, %v1379
      %1381 = vmatmul.bf16.gmra.mxu0 %v1147
      %v1382 = vpop.f32.mrf.mxu0
      %v1383 = vadd.f32 0.0, %v1382
      %v1384 = vpop.f32.mrf.mxu0
      %v1385 = vadd.f32 0.0, %v1384
      %1386 = vdwg.mxu0
      %1387 = vmatpush.bf16.msra.mxu0 0
      %1388 = vmatpush.bf16.msra.mxu0 0
      %1389 = vmatpush.bf16.msra.mxu0 %v956
      %1390 = vmatpush.bf16.msra.mxu0 %v921
      %1391 = vmatpush.bf16.msra.mxu0 %v917
      %1392 = vmatpush.bf16.msra.mxu0 %v913
      %1393 = vmatpush.bf16.msra.mxu0 %v909
      %1394 = vmatpush.bf16.msra.mxu0 %v905
      %1395 = vmatmul.bf16.gmra.mxu0 %v1135
      %v1396 = vpop.f32.mrf.mxu0
      %v1397 = vadd.f32 0.0, %v1396
      %v1398 = vpop.f32.mrf.mxu0
      %v1399 = vadd.f32 0.0, %v1398
      %1400 = vmatmul.bf16.gmra.mxu0 %v1138
      %v1401 = vpop.f32.mrf.mxu0
      %v1402 = vadd.f32 0.0, %v1401
      %v1403 = vpop.f32.mrf.mxu0
      %v1404 = vadd.f32 0.0, %v1403
      %1405 = vmatmul.bf16.gmra.mxu0 %v1141
      %v1406 = vpop.f32.mrf.mxu0
      %v1407 = vadd.f32 0.0, %v1406
      %v1408 = vpop.f32.mrf.mxu0
      %v1409 = vadd.f32 0.0, %v1408
      %1410 = vmatmul.bf16.gmra.mxu0 %v1144
      %v1411 = vpop.f32.mrf.mxu0
      %v1412 = vadd.f32 0.0, %v1411
      %v1413 = vpop.f32.mrf.mxu0
      %v1414 = vadd.f32 0.0, %v1413
      %1415 = vmatmul.bf16.gmra.mxu0 %v1147
      %v1416 = vpop.f32.mrf.mxu0
      %v1417 = vadd.f32 0.0, %v1416
      %v1418 = vpop.f32.mrf.mxu0
      %v1419 = vadd.f32 0.0, %v1418
      %1420 = vdwg.mxu0
      %v1421 = vmax.f32 %v1159, %v1295
      %v1422 = vmax.f32 %v1193, %v1329
      %v1423 = vmax.f32 %v1227, %v1363
      %v1424 = vmax.f32 %v1261, %v1397
      %v1425 = vmax.f32 %v1161, %v1297
      %v1426 = vmax.f32 %v1195, %v1331
      %v1427 = vmax.f32 %v1229, %v1365
      %v1428 = vmax.f32 %v1263, %v1399
      %v1429 = vmax.f32 %v1164, %v1300
      %v1430 = vmax.f32 %v1198, %v1334
      %v1431 = vmax.f32 %v1232, %v1368
      %v1432 = vmax.f32 %v1266, %v1402
      %v1433 = vmax.f32 %v1166, %v1302
      %v1434 = vmax.f32 %v1200, %v1336
      %v1435 = vmax.f32 %v1234, %v1370
      %v1436 = vmax.f32 %v1268, %v1404
      %v1437 = vmax.f32 %v1169, %v1305
      %v1438 = vmax.f32 %v1203, %v1339
      %v1439 = vmax.f32 %v1237, %v1373
      %v1440 = vmax.f32 %v1271, %v1407
      %v1441 = vmax.f32 %v1171, %v1307
      %v1442 = vmax.f32 %v1205, %v1341
      %v1443 = vmax.f32 %v1239, %v1375
      %v1444 = vmax.f32 %v1273, %v1409
      %v1445 = vmax.f32 %v1174, %v1310
      %v1446 = vmax.f32 %v1208, %v1344
      %v1447 = vmax.f32 %v1242, %v1378
      %v1448 = vmax.f32 %v1276, %v1412
      %v1449 = vmax.f32 %v1176, %v1312
      %v1450 = vmax.f32 %v1210, %v1346
      %v1451 = vmax.f32 %v1244, %v1380
      %v1452 = vmax.f32 %v1278, %v1414
      %v1453 = vmax.f32 %v1179, %v1315
      %v1454 = vmax.f32 %v1213, %v1349
      %v1455 = vmax.f32 %v1247, %v1383
      %v1456 = vmax.f32 %v1281, %v1417
      %v1457 = vmax.f32 %v1181, %v1317
      %v1458 = vmax.f32 %v1215, %v1351
      %v1459 = vmax.f32 %v1249, %v1385
      %v1460 = vmax.f32 %v1283, %v1419
      %v1461 = vmax.f32 %v1094, %v1421
      %v1462 = vmax.f32 %v1095, %v1422
      %v1463 = vmax.f32 %v1096, %v1423
      %v1464 = vmax.f32 %v1097, %v1424
      %v1465 = vmax.f32 %v1098, %v1425
      %v1466 = vmax.f32 %v1099, %v1426
      %v1467 = vmax.f32 %v1100, %v1427
      %v1468 = vmax.f32 %v1101, %v1428
      %v1469 = vmax.f32 %v1102, %v1429
      %v1470 = vmax.f32 %v1103, %v1430
      %v1471 = vmax.f32 %v1104, %v1431
      %v1472 = vmax.f32 %v1105, %v1432
      %v1473 = vmax.f32 %v1106, %v1433
      %v1474 = vmax.f32 %v1107, %v1434
      %v1475 = vmax.f32 %v1108, %v1435
      %v1476 = vmax.f32 %v1109, %v1436
      %v1477 = vmax.f32 %v1110, %v1437
      %v1478 = vmax.f32 %v1111, %v1438
      %v1479 = vmax.f32 %v1112, %v1439
      %v1480 = vmax.f32 %v1113, %v1440
      %v1481 = vmax.f32 %v1114, %v1441
      %v1482 = vmax.f32 %v1115, %v1442
      %v1483 = vmax.f32 %v1116, %v1443
      %v1484 = vmax.f32 %v1117, %v1444
      %v1485 = vmax.f32 %v1118, %v1445
      %v1486 = vmax.f32 %v1119, %v1446
      %v1487 = vmax.f32 %v1120, %v1447
      %v1488 = vmax.f32 %v1121, %v1448
      %v1489 = vmax.f32 %v1122, %v1449
      %v1490 = vmax.f32 %v1123, %v1450
      %v1491 = vmax.f32 %v1124, %v1451
      %v1492 = vmax.f32 %v1125, %v1452
      %v1493 = vmax.f32 %v1126, %v1453
      %v1494 = vmax.f32 %v1127, %v1454
      %v1495 = vmax.f32 %v1128, %v1455
      %v1496 = vmax.f32 %v1129, %v1456
      %v1497 = vmax.f32 %v1130, %v1457
      %v1498 = vmax.f32 %v1131, %v1458
      %v1499 = vmax.f32 %v1132, %v1459
      %v1500 = vmax.f32 %v1133, %v1460
      %v1501 = vld [vmem:[%s4] sm:$0xf]
      %v1503 = vperm.slane %v1501, 0
      %v1504 = vperm.slane %v1501, 1
      %v1505 = vperm.slane %v1501, 2
      %v1506 = vperm.slane %v1501, 3
      %v1511 = vadd.f32 %v1461, %v1503
      %v1512 = vadd.f32 %v1462, %v1504
      %v1513 = vadd.f32 %v1463, %v1505
      %v1514 = vadd.f32 %v1464, %v1506
      %v1515 = vadd.f32 %v1465, %v1503
      %v1516 = vadd.f32 %v1466, %v1504
      %v1517 = vadd.f32 %v1467, %v1505
      %v1518 = vadd.f32 %v1468, %v1506
      %v1519 = vadd.f32 %v1469, %v1503
      %v1520 = vadd.f32 %v1470, %v1504
      %v1521 = vadd.f32 %v1471, %v1505
      %v1522 = vadd.f32 %v1472, %v1506
      %v1523 = vadd.f32 %v1473, %v1503
      %v1524 = vadd.f32 %v1474, %v1504
      %v1525 = vadd.f32 %v1475, %v1505
      %v1526 = vadd.f32 %v1476, %v1506
      %v1527 = vadd.f32 %v1477, %v1503
      %v1528 = vadd.f32 %v1478, %v1504
      %v1529 = vadd.f32 %v1479, %v1505
      %v1530 = vadd.f32 %v1480, %v1506
      %v1531 = vadd.f32 %v1481, %v1503
      %v1532 = vadd.f32 %v1482, %v1504
      %v1533 = vadd.f32 %v1483, %v1505
      %v1534 = vadd.f32 %v1484, %v1506
      %v1535 = vadd.f32 %v1485, %v1503
      %v1536 = vadd.f32 %v1486, %v1504
      %v1537 = vadd.f32 %v1487, %v1505
      %v1538 = vadd.f32 %v1488, %v1506
      %v1539 = vadd.f32 %v1489, %v1503
      %v1540 = vadd.f32 %v1490, %v1504
      %v1541 = vadd.f32 %v1491, %v1505
      %v1542 = vadd.f32 %v1492, %v1506
      %v1543 = vadd.f32 %v1493, %v1503
      %v1544 = vadd.f32 %v1494, %v1504
      %v1545 = vadd.f32 %v1495, %v1505
      %v1546 = vadd.f32 %v1496, %v1506
      %v1547 = vadd.f32 %v1497, %v1503
      %v1548 = vadd.f32 %v1498, %v1504
      %v1549 = vadd.f32 %v1499, %v1505
      %v1550 = vadd.f32 %v1500, %v1506
      %v1551 = vmax.f32 %v1511, 0.0
      %v1552 = vmax.f32 %v1512, 0.0
      %v1553 = vmax.f32 %v1513, 0.0
      %v1554 = vmax.f32 %v1514, 0.0
      %v1555 = vmax.f32 %v1515, 0.0
      %v1556 = vmax.f32 %v1516, 0.0
      %v1557 = vmax.f32 %v1517, 0.0
      %v1558 = vmax.f32 %v1518, 0.0
      %v1559 = vmax.f32 %v1519, 0.0
      %v1560 = vmax.f32 %v1520, 0.0
      %v1561 = vmax.f32 %v1521, 0.0
      %v1562 = vmax.f32 %v1522, 0.0
      %v1563 = vmax.f32 %v1523, 0.0
      %v1564 = vmax.f32 %v1524, 0.0
      %v1565 = vmax.f32 %v1525, 0.0
      %v1566 = vmax.f32 %v1526, 0.0
      %v1567 = vmax.f32 %v1527, 0.0
      %v1568 = vmax.f32 %v1528, 0.0
      %v1569 = vmax.f32 %v1529, 0.0
      %v1570 = vmax.f32 %v1530, 0.0
      %v1571 = vmax.f32 %v1531, 0.0
      %v1572 = vmax.f32 %v1532, 0.0
      %v1573 = vmax.f32 %v1533, 0.0
      %v1574 = vmax.f32 %v1534, 0.0
      %v1575 = vmax.f32 %v1535, 0.0
      %v1576 = vmax.f32 %v1536, 0.0
      %v1577 = vmax.f32 %v1537, 0.0
      %v1578 = vmax.f32 %v1538, 0.0
      %v1579 = vmax.f32 %v1539, 0.0
      %v1580 = vmax.f32 %v1540, 0.0
      %v1581 = vmax.f32 %v1541, 0.0
      %v1582 = vmax.f32 %v1542, 0.0
      %v1583 = vmax.f32 %v1543, 0.0
      %v1584 = vmax.f32 %v1544, 0.0
      %v1585 = vmax.f32 %v1545, 0.0
      %v1586 = vmax.f32 %v1546, 0.0
      %v1587 = vmax.f32 %v1547, 0.0
      %v1588 = vmax.f32 %v1548, 0.0
      %v1589 = vmax.f32 %v1549, 0.0
      %v1590 = vmax.f32 %v1550, 0.0
      %v1591 = vpack.c.bf16 %v1555, %v1551
      %v1592 = vpack.c.bf16 %v1556, %v1552
      %v1593 = vpack.c.bf16 %v1557, %v1553
      %v1594 = vpack.c.bf16 %v1558, %v1554
      %v1595 = vpack.c.bf16 %v1563, %v1559
      %v1596 = vpack.c.bf16 %v1564, %v1560
      %v1597 = vpack.c.bf16 %v1565, %v1561
      %v1598 = vpack.c.bf16 %v1566, %v1562
      %v1599 = vpack.c.bf16 %v1571, %v1567
      %v1600 = vpack.c.bf16 %v1572, %v1568
      %v1601 = vpack.c.bf16 %v1573, %v1569
      %v1602 = vpack.c.bf16 %v1574, %v1570
      %v1603 = vpack.c.bf16 %v1579, %v1575
      %v1604 = vpack.c.bf16 %v1580, %v1576
      %v1605 = vpack.c.bf16 %v1581, %v1577
      %v1606 = vpack.c.bf16 %v1582, %v1578
      %v1607 = vpack.c.bf16 %v1587, %v1583
      %v1608 = vpack.c.bf16 %v1588, %v1584
      %v1609 = vpack.c.bf16 %v1589, %v1585
      %v1610 = vpack.c.bf16 %v1590, %v1586
      %v1611 = vpack.c.bf16 0.0, 0.0
      %v1612 = vld [vmem:[%s5] sm:$0xff]
      %v1613 = vld [vmem:[%s5 + $0x8] sm:$0xf]
      %v1614 = vld [vmem:[%s5 + $0xc] sm:$0xff]
      %v1615 = vld [vmem:[%s5 + $0x14] sm:$0xf]
      %v1616 = vld [vmem:[%s5 + $0x18] sm:$0xff]
      %v1617 = vld [vmem:[%s5 + $0x20] sm:$0xf]
      %v1618 = vld [vmem:[%s5 + $0x24] sm:$0xff]
      %v1619 = vld [vmem:[%s5 + $0x2c] sm:$0xf]
      %v1620 = vld [vmem:[%s5 + $0x30] sm:$0xff]
      %v1621 = vld [vmem:[%s5 + $0x38] sm:$0xf]
      %v1622 = vld [vmem:[%s5 + $0x3c] sm:$0xff]
      %v1623 = vld [vmem:[%s5 + $0x44] sm:$0xf]
      %v1624 = vld [vmem:[%s5 + $0x48] sm:$0xff]
      %v1625 = vld [vmem:[%s5 + $0x50] sm:$0xf]
      %v1626 = vld [vmem:[%s5 + $0x54] sm:$0xff]
      %v1627 = vld [vmem:[%s5 + $0x5c] sm:$0xf]
      %v1628 = vld [vmem:[%s5 + $0x60] sm:$0xff]
      %v1629 = vld [vmem:[%s5 + $0x68] sm:$0xf]
      %v1630 = vld [vmem:[%s5 + $0x6c] sm:$0xff]
      %v1631 = vld [vmem:[%s5 + $0x74] sm:$0xf]
      %v1632 = vld [vmem:[%s5 + $0x78] sm:$0xff]
      %v1633 = vld [vmem:[%s5 + $0x80] sm:$0xf]
      %v1634 = vld [vmem:[%s5 + $0x84] sm:$0xff]
      %v1635 = vld [vmem:[%s5 + $0x8c] sm:$0xf]
      %v1636 = vld [vmem:[%s5 + $0x90] sm:$0xff]
      %v1637 = vld [vmem:[%s5 + $0x98] sm:$0xf]
      %v1638 = vld [vmem:[%s5 + $0x9c] sm:$0xff]
      %v1639 = vld [vmem:[%s5 + $0xa4] sm:$0xf]
      %v1640 = vld [vmem:[%s5 + $0xa8] sm:$0xff]
      %v1641 = vld [vmem:[%s5 + $0xb0] sm:$0xf]
      %v1642 = vld [vmem:[%s5 + $0xb4] sm:$0xff]
      %v1643 = vld [vmem:[%s5 + $0xbc] sm:$0xf]
      %v1644 = vld [vmem:[%s5 + $0xc0] sm:$0xff]
      %v1645 = vld [vmem:[%s5 + $0xc8] sm:$0xf]
      %v1646 = vld [vmem:[%s5 + $0xcc] sm:$0xff]
      %v1647 = vld [vmem:[%s5 + $0xd4] sm:$0xf]
      %v1648 = vld [vmem:[%s5 + $0xd8] sm:$0xff]
      %v1649 = vld [vmem:[%s5 + $0xe0] sm:$0xf]
      %v1650 = vld [vmem:[%s5 + $0xe4] sm:$0xff]
      %v1651 = vld [vmem:[%s5 + $0xec] sm:$0xf]
      %v1652 = vld [vmem:[%s5 + $0xf0] sm:$0xff]
      %v1653 = vld [vmem:[%s5 + $0xf8] sm:$0xf]
      %v1654 = vld [vmem:[%s5 + $0xfc] sm:$0xff]
      %v1655 = vld [vmem:[%s5 + $0x104] sm:$0xf]
      %v1656 = vld [vmem:[%s5 + $0x108] sm:$0xff]
      %v1657 = vld [vmem:[%s5 + $0x110] sm:$0xf]
      %v1658 = vld [vmem:[%s5 + $0x114] sm:$0xff]
      %v1659 = vld [vmem:[%s5 + $0x11c] sm:$0xf]
      %v1660 = vld [vmem:[%s5 + $0x120] sm:$0xff]
      %v1661 = vld [vmem:[%s5 + $0x128] sm:$0xf]
      %v1662 = vld [vmem:[%s5 + $0x12c] sm:$0xff]
      %v1663 = vld [vmem:[%s5 + $0x134] sm:$0xf]
      %v1664 = vld [vmem:[%s5 + $0x138] sm:$0xff]
      %v1665 = vld [vmem:[%s5 + $0x140] sm:$0xf]
      %v1666 = vld [vmem:[%s5 + $0x144] sm:$0xff]
      %v1667 = vld [vmem:[%s5 + $0x14c] sm:$0xf]
      %v1668 = vld [vmem:[%s5 + $0x150] sm:$0xff]
      %v1669 = vld [vmem:[%s5 + $0x158] sm:$0xf]
      %v1670 = vld [vmem:[%s5 + $0x15c] sm:$0xff]
      %v1671 = vld [vmem:[%s5 + $0x164] sm:$0xf]
      %v1672 = vld [vmem:[%s5 + $0x168] sm:$0xff]
      %v1673 = vld [vmem:[%s5 + $0x170] sm:$0xf]
      %v1674 = vld [vmem:[%s5 + $0x174] sm:$0xff]
      %v1675 = vld [vmem:[%s5 + $0x17c] sm:$0xf]
      %v1676 = vld [vmem:[%s5 + $0x180] sm:$0xff]
      %v1677 = vld [vmem:[%s5 + $0x188] sm:$0xf]
      %v1678 = vld [vmem:[%s5 + $0x18c] sm:$0xff]
      %v1679 = vld [vmem:[%s5 + $0x194] sm:$0xf]
      %v1680 = vld [vmem:[%s5 + $0x198] sm:$0xff]
      %v1681 = vld [vmem:[%s5 + $0x1a0] sm:$0xf]
      %v1682 = vld [vmem:[%s5 + $0x1a4] sm:$0xff]
      %v1683 = vld [vmem:[%s5 + $0x1ac] sm:$0xf]
      %v1684 = vld [vmem:[%s5 + $0x1b0] sm:$0xff]
      %v1685 = vld [vmem:[%s5 + $0x1b8] sm:$0xf]
      %v1686 = vld [vmem:[%s5 + $0x1bc] sm:$0xff]
      %v1687 = vld [vmem:[%s5 + $0x1c4] sm:$0xf]
      %v1688 = vld [vmem:[%s5 + $0x1c8] sm:$0xff]
      %v1689 = vld [vmem:[%s5 + $0x1d0] sm:$0xf]
      %v1690 = vld [vmem:[%s5 + $0x1d4] sm:$0xff]
      %v1691 = vld [vmem:[%s5 + $0x1dc] sm:$0xf]
      %v1692 = vld [vmem:[%s5 + $0x1e0] sm:$0xff]
      %v1693 = vld [vmem:[%s5 + $0x1e8] sm:$0xf]
      %v1694 = vld [vmem:[%s5 + $0x1ec] sm:$0xff]
      %v1695 = vld [vmem:[%s5 + $0x1f4] sm:$0xf]
      %v1696 = vld [vmem:[%s5 + $0x1f8] sm:$0xff]
      %v1697 = vld [vmem:[%s5 + $0x200] sm:$0xf]
      %v1698 = vld [vmem:[%s5 + $0x204] sm:$0xff]
      %v1699 = vld [vmem:[%s5 + $0x20c] sm:$0xf]
      %v1700 = vld [vmem:[%s5 + $0x210] sm:$0xff]
      %v1701 = vld [vmem:[%s5 + $0x218] sm:$0xf]
      %v1702 = vld [vmem:[%s5 + $0x21c] sm:$0xff]
      %v1703 = vld [vmem:[%s5 + $0x224] sm:$0xf]
      %v1704 = vld [vmem:[%s5 + $0x228] sm:$0xff]
      %v1705 = vld [vmem:[%s5 + $0x230] sm:$0xf]
      %v1706 = vld [vmem:[%s5 + $0x234] sm:$0xff]
      %v1707 = vld [vmem:[%s5 + $0x23c] sm:$0xf]
      %v1708 = vld [vmem:[%s5 + $0x240] sm:$0xff]
      %v1709 = vld [vmem:[%s5 + $0x248] sm:$0xf]
      %v1710 = vld [vmem:[%s5 + $0x24c] sm:$0xff]
      %v1711 = vld [vmem:[%s5 + $0x254] sm:$0xf]
      %v1712 = vld [vmem:[%s5 + $0x258] sm:$0xff]
      %v1713 = vld [vmem:[%s5 + $0x260] sm:$0xf]
      %v1714 = vld [vmem:[%s5 + $0x264] sm:$0xff]
      %v1715 = vld [vmem:[%s5 + $0x26c] sm:$0xf]
      %s1716 = scalar_lea.vmem %s5, 624
      %v1717 = vld [vmem:[%s1716] sm:$0xff]
      %v1718 = vld [vmem:[%s1716 + $0x8] sm:$0xf]
      %v1719 = vld [vmem:[%s1716 + $0xc] sm:$0xff]
      %v1720 = vld [vmem:[%s1716 + $0x14] sm:$0xf]
      %v1721 = vld [vmem:[%s1716 + $0x18] sm:$0xff]
      %v1722 = vld [vmem:[%s1716 + $0x20] sm:$0xf]
      %v1723 = vld [vmem:[%s1716 + $0x24] sm:$0xff]
      %v1724 = vld [vmem:[%s1716 + $0x2c] sm:$0xf]
      %v1725 = vld [vmem:[%s1716 + $0x30] sm:$0xff]
      %v1726 = vld [vmem:[%s1716 + $0x38] sm:$0xf]
      %v1727 = vld [vmem:[%s1716 + $0x3c] sm:$0xff]
      %v1728 = vld [vmem:[%s1716 + $0x44] sm:$0xf]
      %v1729 = vld [vmem:[%s1716 + $0x48] sm:$0xff]
      %v1730 = vld [vmem:[%s1716 + $0x50] sm:$0xf]
      %v1731 = vld [vmem:[%s1716 + $0x54] sm:$0xff]
      %v1732 = vld [vmem:[%s1716 + $0x5c] sm:$0xf]
      %v1733 = vld [vmem:[%s1716 + $0x60] sm:$0xff]
      %v1734 = vld [vmem:[%s1716 + $0x68] sm:$0xf]
      %v1735 = vld [vmem:[%s1716 + $0x6c] sm:$0xff]
      %v1736 = vld [vmem:[%s1716 + $0x74] sm:$0xf]
      %v1737 = vld [vmem:[%s1716 + $0x78] sm:$0xff]
      %v1738 = vld [vmem:[%s1716 + $0x80] sm:$0xf]
      %v1739 = vld [vmem:[%s1716 + $0x84] sm:$0xff]
      %v1740 = vld [vmem:[%s1716 + $0x8c] sm:$0xf]
      %v1741 = vld [vmem:[%s1716 + $0x90] sm:$0xff]
      %v1742 = vld [vmem:[%s1716 + $0x98] sm:$0xf]
      %v1743 = vld [vmem:[%s1716 + $0x9c] sm:$0xff]
      %v1744 = vld [vmem:[%s1716 + $0xa4] sm:$0xf]
      %v1745 = vld [vmem:[%s1716 + $0xa8] sm:$0xff]
      %v1746 = vld [vmem:[%s1716 + $0xb0] sm:$0xf]
      %v1747 = vld [vmem:[%s1716 + $0xb4] sm:$0xff]
      %v1748 = vld [vmem:[%s1716 + $0xbc] sm:$0xf]
      %v1749 = vld [vmem:[%s1716 + $0xc0] sm:$0xff]
      %v1750 = vld [vmem:[%s1716 + $0xc8] sm:$0xf]
      %v1751 = vld [vmem:[%s1716 + $0xcc] sm:$0xff]
      %v1752 = vld [vmem:[%s1716 + $0xd4] sm:$0xf]
      %v1753 = vld [vmem:[%s1716 + $0xd8] sm:$0xff]
      %v1754 = vld [vmem:[%s1716 + $0xe0] sm:$0xf]
      %v1755 = vld [vmem:[%s1716 + $0xe4] sm:$0xff]
      %v1756 = vld [vmem:[%s1716 + $0xec] sm:$0xf]
      %v1757 = vld [vmem:[%s1716 + $0xf0] sm:$0xff]
      %v1758 = vld [vmem:[%s1716 + $0xf8] sm:$0xf]
      %v1759 = vld [vmem:[%s1716 + $0xfc] sm:$0xff]
      %v1760 = vld [vmem:[%s1716 + $0x104] sm:$0xf]
      %v1761 = vld [vmem:[%s1716 + $0x108] sm:$0xff]
      %v1762 = vld [vmem:[%s1716 + $0x110] sm:$0xf]
      %v1763 = vld [vmem:[%s1716 + $0x114] sm:$0xff]
      %v1764 = vld [vmem:[%s1716 + $0x11c] sm:$0xf]
      %v1765 = vld [vmem:[%s1716 + $0x120] sm:$0xff]
      %v1766 = vld [vmem:[%s1716 + $0x128] sm:$0xf]
      %v1767 = vld [vmem:[%s1716 + $0x12c] sm:$0xff]
      %v1768 = vld [vmem:[%s1716 + $0x134] sm:$0xf]
      %v1769 = vld [vmem:[%s1716 + $0x138] sm:$0xff]
      %v1770 = vld [vmem:[%s1716 + $0x140] sm:$0xf]
      %v1771 = vld [vmem:[%s1716 + $0x144] sm:$0xff]
      %v1772 = vld [vmem:[%s1716 + $0x14c] sm:$0xf]
      %v1773 = vld [vmem:[%s1716 + $0x150] sm:$0xff]
      %v1774 = vld [vmem:[%s1716 + $0x158] sm:$0xf]
      %v1775 = vld [vmem:[%s1716 + $0x15c] sm:$0xff]
      %v1776 = vld [vmem:[%s1716 + $0x164] sm:$0xf]
      %v1777 = vld [vmem:[%s1716 + $0x168] sm:$0xff]
      %v1778 = vld [vmem:[%s1716 + $0x170] sm:$0xf]
      %v1779 = vld [vmem:[%s1716 + $0x174] sm:$0xff]
      %v1780 = vld [vmem:[%s1716 + $0x17c] sm:$0xf]
      %v1781 = vld [vmem:[%s1716 + $0x180] sm:$0xff]
      %v1782 = vld [vmem:[%s1716 + $0x188] sm:$0xf]
      %v1783 = vld [vmem:[%s1716 + $0x18c] sm:$0xff]
      %v1784 = vld [vmem:[%s1716 + $0x194] sm:$0xf]
      %v1785 = vld [vmem:[%s1716 + $0x198] sm:$0xff]
      %v1786 = vld [vmem:[%s1716 + $0x1a0] sm:$0xf]
      %v1787 = vld [vmem:[%s1716 + $0x1a4] sm:$0xff]
      %v1788 = vld [vmem:[%s1716 + $0x1ac] sm:$0xf]
      %v1789 = vld [vmem:[%s1716 + $0x1b0] sm:$0xff]
      %v1790 = vld [vmem:[%s1716 + $0x1b8] sm:$0xf]
      %v1791 = vld [vmem:[%s1716 + $0x1bc] sm:$0xff]
      %v1792 = vld [vmem:[%s1716 + $0x1c4] sm:$0xf]
      %v1793 = vld [vmem:[%s1716 + $0x1c8] sm:$0xff]
      %v1794 = vld [vmem:[%s1716 + $0x1d0] sm:$0xf]
      %v1795 = vld [vmem:[%s1716 + $0x1d4] sm:$0xff]
      %v1796 = vld [vmem:[%s1716 + $0x1dc] sm:$0xf]
      %v1797 = vld [vmem:[%s1716 + $0x1e0] sm:$0xff]
      %v1798 = vld [vmem:[%s1716 + $0x1e8] sm:$0xf]
      %v1799 = vld [vmem:[%s1716 + $0x1ec] sm:$0xff]
      %v1800 = vld [vmem:[%s1716 + $0x1f4] sm:$0xf]
      %v1801 = vld [vmem:[%s1716 + $0x1f8] sm:$0xff]
      %v1802 = vld [vmem:[%s1716 + $0x200] sm:$0xf]
      %v1803 = vld [vmem:[%s1716 + $0x204] sm:$0xff]
      %v1804 = vld [vmem:[%s1716 + $0x20c] sm:$0xf]
      %v1805 = vld [vmem:[%s1716 + $0x210] sm:$0xff]
      %v1806 = vld [vmem:[%s1716 + $0x218] sm:$0xf]
      %v1807 = vld [vmem:[%s1716 + $0x21c] sm:$0xff]
      %v1808 = vld [vmem:[%s1716 + $0x224] sm:$0xf]
      %v1809 = vld [vmem:[%s1716 + $0x228] sm:$0xff]
      %v1810 = vld [vmem:[%s1716 + $0x230] sm:$0xf]
      %v1811 = vld [vmem:[%s1716 + $0x234] sm:$0xff]
      %v1812 = vld [vmem:[%s1716 + $0x23c] sm:$0xf]
      %v1813 = vld [vmem:[%s1716 + $0x240] sm:$0xff]
      %v1814 = vld [vmem:[%s1716 + $0x248] sm:$0xf]
      %v1815 = vld [vmem:[%s1716 + $0x24c] sm:$0xff]
      %v1816 = vld [vmem:[%s1716 + $0x254] sm:$0xf]
      %v1817 = vld [vmem:[%s1716 + $0x258] sm:$0xff]
      %v1818 = vld [vmem:[%s1716 + $0x260] sm:$0xf]
      %v1819 = vld [vmem:[%s1716 + $0x264] sm:$0xff]
      %v1820 = vld [vmem:[%s1716 + $0x26c] sm:$0xf]
      %vm1821 = vsmask.f32 7424
      %v1823 = vshrl.u32 %v1591, 16
      %v1825 = vshll.u32 %v1591, 16
      %v1827 = vrot.slane %v1825, 1
      %v1828 = vor.u32 %v1823, %v1827
      %v1830 = vshll.u32 %v1595, 16
      %v1832 = vrot.slane %v1830, 1
      %v1833 = vsel %vm1821, %v1828, %v1832
      %v1835 = vshrl.u32 %v1592, 16
      %v1837 = vshll.u32 %v1592, 16
      %v1839 = vrot.slane %v1837, 1
      %v1840 = vor.u32 %v1835, %v1839
      %v1842 = vshll.u32 %v1596, 16
      %v1844 = vrot.slane %v1842, 1
      %v1845 = vsel %vm1821, %v1840, %v1844
      %v1847 = vshrl.u32 %v1593, 16
      %v1849 = vshll.u32 %v1593, 16
      %v1851 = vrot.slane %v1849, 1
      %v1852 = vor.u32 %v1847, %v1851
      %v1854 = vshll.u32 %v1597, 16
      %v1856 = vrot.slane %v1854, 1
      %v1857 = vsel %vm1821, %v1852, %v1856
      %v1859 = vshrl.u32 %v1594, 16
      %v1861 = vshll.u32 %v1594, 16
      %v1863 = vrot.slane %v1861, 1
      %v1864 = vor.u32 %v1859, %v1863
      %v1866 = vshll.u32 %v1598, 16
      %v1868 = vrot.slane %v1866, 1
      %v1869 = vsel %vm1821, %v1864, %v1868
      %v1870 = vshrl.u32 %v1595, 16
      %v1872 = vor.u32 %v1870, %v1832
      %v1874 = vshll.u32 %v1599, 16
      %v1876 = vrot.slane %v1874, 1
      %v1877 = vsel %vm1821, %v1872, %v1876
      %v1878 = vshrl.u32 %v1596, 16
      %v1880 = vor.u32 %v1878, %v1844
      %v1882 = vshll.u32 %v1600, 16
      %v1884 = vrot.slane %v1882, 1
      %v1885 = vsel %vm1821, %v1880, %v1884
      %v1886 = vshrl.u32 %v1597, 16
      %v1888 = vor.u32 %v1886, %v1856
      %v1890 = vshll.u32 %v1601, 16
      %v1892 = vrot.slane %v1890, 1
      %v1893 = vsel %vm1821, %v1888, %v1892
      %v1894 = vshrl.u32 %v1598, 16
      %v1896 = vor.u32 %v1894, %v1868
      %v1898 = vshll.u32 %v1602, 16
      %v1900 = vrot.slane %v1898, 1
      %v1901 = vsel %vm1821, %v1896, %v1900
      %v1902 = vshrl.u32 %v1599, 16
      %v1904 = vor.u32 %v1902, %v1876
      %v1906 = vshll.u32 %v1603, 16
      %v1908 = vrot.slane %v1906, 1
      %v1909 = vsel %vm1821, %v1904, %v1908
      %v1910 = vshrl.u32 %v1600, 16
      %v1912 = vor.u32 %v1910, %v1884
      %v1914 = vshll.u32 %v1604, 16
      %v1916 = vrot.slane %v1914, 1
      %v1917 = vsel %vm1821, %v1912, %v1916
      %v1918 = vshrl.u32 %v1601, 16
      %v1920 = vor.u32 %v1918, %v1892
      %v1922 = vshll.u32 %v1605, 16
      %v1924 = vrot.slane %v1922, 1
      %v1925 = vsel %vm1821, %v1920, %v1924
      %v1926 = vshrl.u32 %v1602, 16
      %v1928 = vor.u32 %v1926, %v1900
      %v1930 = vshll.u32 %v1606, 16
      %v1932 = vrot.slane %v1930, 1
      %v1933 = vsel %vm1821, %v1928, %v1932
      %v1934 = vshrl.u32 %v1603, 16
      %v1936 = vor.u32 %v1934, %v1908
      %v1938 = vshll.u32 %v1607, 16
      %v1940 = vrot.slane %v1938, 1
      %v1941 = vsel %vm1821, %v1936, %v1940
      %v1942 = vshrl.u32 %v1604, 16
      %v1944 = vor.u32 %v1942, %v1916
      %v1946 = vshll.u32 %v1608, 16
      %v1948 = vrot.slane %v1946, 1
      %v1949 = vsel %vm1821, %v1944, %v1948
      %v1950 = vshrl.u32 %v1605, 16
      %v1952 = vor.u32 %v1950, %v1924
      %v1954 = vshll.u32 %v1609, 16
      %v1956 = vrot.slane %v1954, 1
      %v1957 = vsel %vm1821, %v1952, %v1956
      %v1958 = vshrl.u32 %v1606, 16
      %v1960 = vor.u32 %v1958, %v1932
      %v1962 = vshll.u32 %v1610, 16
      %v1964 = vrot.slane %v1962, 1
      %v1965 = vsel %vm1821, %v1960, %v1964
      %v1966 = vshrl.u32 %v1607, 16
      %v1968 = vor.u32 %v1966, %v1940
      %v1970 = vshll.u32 %v1611, 16
      %v1972 = vrot.slane %v1970, 1
      %v1973 = vsel %vm1821, %v1968, %v1972
      %v1974 = vshrl.u32 %v1608, 16
      %v1976 = vor.u32 %v1974, %v1948
      %v1977 = vsel %vm1821, %v1976, %v1972
      %v1978 = vshrl.u32 %v1609, 16
      %v1980 = vor.u32 %v1978, %v1956
      %v1981 = vsel %vm1821, %v1980, %v1972
      %v1982 = vshrl.u32 %v1610, 16
      %v1984 = vor.u32 %v1982, %v1964
      %v1985 = vsel %vm1821, %v1984, %v1972
      %v2105 = vunpack.c.l.b16 %v1717
      %v2106 = vunpack.c.h.b16 %v1717
      %v2107 = vunpack.c.l.b16 %v1718
      %v2108 = vunpack.c.l.b16 %v1719
      %v2109 = vunpack.c.h.b16 %v1719
      %v2110 = vunpack.c.l.b16 %v1720
      %v2111 = vunpack.c.l.b16 %v1721
      %v2112 = vunpack.c.h.b16 %v1721
      %v2113 = vunpack.c.l.b16 %v1722
      %v2114 = vunpack.c.l.b16 %v1723
      %v2115 = vunpack.c.h.b16 %v1723
      %v2116 = vunpack.c.l.b16 %v1724
      %v2117 = vunpack.c.l.b16 %v1725
      %v2118 = vunpack.c.h.b16 %v1725
      %v2119 = vunpack.c.l.b16 %v1726
      %v2120 = vunpack.c.l.b16 %v1727
      %v2121 = vunpack.c.h.b16 %v1727
      %v2122 = vunpack.c.l.b16 %v1728
      %v2123 = vunpack.c.l.b16 %v1729
      %v2124 = vunpack.c.h.b16 %v1729
      %v2125 = vunpack.c.l.b16 %v1730
      %v2126 = vunpack.c.l.b16 %v1731
      %v2127 = vunpack.c.h.b16 %v1731
      %v2128 = vunpack.c.l.b16 %v1732
      %v2129 = vunpack.c.l.b16 %v1733
      %v2130 = vunpack.c.h.b16 %v1733
      %v2131 = vunpack.c.l.b16 %v1734
      %v2132 = vunpack.c.l.b16 %v1735
      %v2133 = vunpack.c.h.b16 %v1735
      %v2134 = vunpack.c.l.b16 %v1736
      %v2135 = vunpack.c.l.b16 %v1737
      %v2136 = vunpack.c.h.b16 %v1737
      %v2137 = vunpack.c.l.b16 %v1738
      %v2138 = vunpack.c.l.b16 %v1739
      %v2139 = vunpack.c.h.b16 %v1739
      %v2140 = vunpack.c.l.b16 %v1740
      %v2141 = vunpack.c.l.b16 %v1741
      %v2142 = vunpack.c.h.b16 %v1741
      %v2143 = vunpack.c.l.b16 %v1742
      %v2144 = vunpack.c.l.b16 %v1743
      %v2145 = vunpack.c.h.b16 %v1743
      %v2146 = vunpack.c.l.b16 %v1744
      %v2147 = vunpack.c.l.b16 %v1745
      %v2148 = vunpack.c.h.b16 %v1745
      %v2149 = vunpack.c.l.b16 %v1746
      %v2150 = vunpack.c.l.b16 %v1747
      %v2151 = vunpack.c.h.b16 %v1747
      %v2152 = vunpack.c.l.b16 %v1748
      %v2153 = vunpack.c.l.b16 %v1749
      %v2154 = vunpack.c.h.b16 %v1749
      %v2155 = vunpack.c.l.b16 %v1750
      %v2156 = vunpack.c.l.b16 %v1751
      %v2157 = vunpack.c.h.b16 %v1751
      %v2158 = vunpack.c.l.b16 %v1752
      %v2159 = vunpack.c.l.b16 %v1753
      %v2160 = vunpack.c.h.b16 %v1753
      %v2161 = vunpack.c.l.b16 %v1754
      %v2162 = vunpack.c.l.b16 %v1755
      %v2163 = vunpack.c.h.b16 %v1755
      %v2164 = vunpack.c.l.b16 %v1756
      %v2165 = vunpack.c.l.b16 %v1757
      %v2166 = vunpack.c.h.b16 %v1757
      %v2167 = vunpack.c.l.b16 %v1758
      %v2168 = vunpack.c.l.b16 %v1759
      %v2169 = vunpack.c.h.b16 %v1759
      %v2170 = vunpack.c.l.b16 %v1760
      %v2171 = vunpack.c.l.b16 %v1761
      %v2172 = vunpack.c.h.b16 %v1761
      %v2173 = vunpack.c.l.b16 %v1762
      %v2174 = vunpack.c.l.b16 %v1763
      %v2175 = vunpack.c.h.b16 %v1763
      %v2176 = vunpack.c.l.b16 %v1764
      %v2177 = vunpack.c.l.b16 %v1765
      %v2178 = vunpack.c.h.b16 %v1765
      %v2179 = vunpack.c.l.b16 %v1766
      %v2180 = vunpack.c.l.b16 %v1767
      %v2181 = vunpack.c.h.b16 %v1767
      %v2182 = vunpack.c.l.b16 %v1768
      %v2183 = vunpack.c.l.b16 %v1769
      %v2184 = vunpack.c.h.b16 %v1769
      %v2185 = vunpack.c.l.b16 %v1770
      %v2186 = vunpack.c.l.b16 %v1771
      %v2187 = vunpack.c.h.b16 %v1771
      %v2188 = vunpack.c.l.b16 %v1772
      %v2189 = vunpack.c.l.b16 %v1773
      %v2190 = vunpack.c.h.b16 %v1773
      %v2191 = vunpack.c.l.b16 %v1774
      %v2192 = vunpack.c.l.b16 %v1775
      %v2193 = vunpack.c.h.b16 %v1775
      %v2194 = vunpack.c.l.b16 %v1776
      %v2195 = vunpack.c.l.b16 %v1777
      %v2196 = vunpack.c.h.b16 %v1777
      %v2197 = vunpack.c.l.b16 %v1778
      %v2198 = vunpack.c.l.b16 %v1779
      %v2199 = vunpack.c.h.b16 %v1779
      %v2200 = vunpack.c.l.b16 %v1780
      %v2201 = vunpack.c.l.b16 %v1781
      %v2202 = vunpack.c.h.b16 %v1781
      %v2203 = vunpack.c.l.b16 %v1782
      %v2204 = vunpack.c.l.b16 %v1783
      %v2205 = vunpack.c.h.b16 %v1783
      %v2206 = vunpack.c.l.b16 %v1784
      %v2207 = vunpack.c.l.b16 %v1785
      %v2208 = vunpack.c.h.b16 %v1785
      %v2209 = vunpack.c.l.b16 %v1786
      %v2210 = vunpack.c.l.b16 %v1787
      %v2211 = vunpack.c.h.b16 %v1787
      %v2212 = vunpack.c.l.b16 %v1788
      %v2213 = vunpack.c.l.b16 %v1789
      %v2214 = vunpack.c.h.b16 %v1789
      %v2215 = vunpack.c.l.b16 %v1790
      %v2216 = vunpack.c.l.b16 %v1791
      %v2217 = vunpack.c.h.b16 %v1791
      %v2218 = vunpack.c.l.b16 %v1792
      %v2219 = vunpack.c.l.b16 %v1793
      %v2220 = vunpack.c.h.b16 %v1793
      %v2221 = vunpack.c.l.b16 %v1794
      %v2222 = vunpack.c.l.b16 %v1795
      %v2223 = vunpack.c.h.b16 %v1795
      %v2224 = vunpack.c.l.b16 %v1796
      %v2225 = vunpack.c.l.b16 %v1797
      %v2226 = vunpack.c.h.b16 %v1797
      %v2227 = vunpack.c.l.b16 %v1798
      %v2228 = vunpack.c.l.b16 %v1799
      %v2229 = vunpack.c.h.b16 %v1799
      %v2230 = vunpack.c.l.b16 %v1800
      %v2231 = vunpack.c.l.b16 %v1801
      %v2232 = vunpack.c.h.b16 %v1801
      %v2233 = vunpack.c.l.b16 %v1802
      %v2234 = vunpack.c.l.b16 %v1803
      %v2235 = vunpack.c.h.b16 %v1803
      %v2236 = vunpack.c.l.b16 %v1804
      %v2237 = vunpack.c.l.b16 %v1805
      %v2238 = vunpack.c.h.b16 %v1805
      %v2239 = vunpack.c.l.b16 %v1806
      %v2240 = vunpack.c.l.b16 %v1807
      %v2241 = vunpack.c.h.b16 %v1807
      %v2242 = vunpack.c.l.b16 %v1808
      %v2243 = vunpack.c.l.b16 %v1809
      %v2244 = vunpack.c.h.b16 %v1809
      %v2245 = vunpack.c.l.b16 %v1810
      %v2246 = vunpack.c.l.b16 %v1811
      %v2247 = vunpack.c.h.b16 %v1811
      %v2248 = vunpack.c.l.b16 %v1812
      %v2249 = vunpack.c.l.b16 %v1813
      %v2250 = vunpack.c.h.b16 %v1813
      %v2251 = vunpack.c.l.b16 %v1814
      %v2252 = vunpack.c.l.b16 %v1815
      %v2253 = vunpack.c.h.b16 %v1815
      %v2254 = vunpack.c.l.b16 %v1816
      %v2255 = vunpack.c.l.b16 %v1817
      %v2256 = vunpack.c.h.b16 %v1817
      %v2257 = vunpack.c.l.b16 %v1818
      %v2258 = vunpack.c.l.b16 %v1819
      %v2259 = vunpack.c.h.b16 %v1819
      %v2260 = vunpack.c.l.b16 %v1820
      %v2261 = vpack.c.b16 %v2108, %v2105
      %v2262 = vpack.c.b16 %v2109, %v2106
      %v2263 = vpack.c.b16 %v2110, %v2107
      %v2264 = vpack.c.b16 %v2114, %v2111
      %v2265 = vpack.c.b16 %v2115, %v2112
      %v2266 = vpack.c.b16 %v2116, %v2113
      %v2267 = vpack.c.b16 %v2120, %v2117
      %v2268 = vpack.c.b16 %v2121, %v2118
      %v2269 = vpack.c.b16 %v2122, %v2119
      %v2270 = vpack.c.b16 %v2126, %v2123
      %v2271 = vpack.c.b16 %v2127, %v2124
      %v2272 = vpack.c.b16 %v2128, %v2125
      %v2273 = vpack.c.b16 %v2132, %v2129
      %v2274 = vpack.c.b16 %v2133, %v2130
      %v2275 = vpack.c.b16 %v2134, %v2131
      %v2276 = vpack.c.b16 %v2138, %v2135
      %v2277 = vpack.c.b16 %v2139, %v2136
      %v2278 = vpack.c.b16 %v2140, %v2137
      %v2279 = vpack.c.b16 %v2144, %v2141
      %v2280 = vpack.c.b16 %v2145, %v2142
      %v2281 = vpack.c.b16 %v2146, %v2143
      %v2282 = vpack.c.b16 %v2150, %v2147
      %v2283 = vpack.c.b16 %v2151, %v2148
      %v2284 = vpack.c.b16 %v2152, %v2149
      %v2285 = vpack.c.b16 %v2156, %v2153
      %v2286 = vpack.c.b16 %v2157, %v2154
      %v2287 = vpack.c.b16 %v2158, %v2155
      %v2288 = vpack.c.b16 %v2162, %v2159
      %v2289 = vpack.c.b16 %v2163, %v2160
      %v2290 = vpack.c.b16 %v2164, %v2161
      %v2291 = vpack.c.b16 %v2168, %v2165
      %v2292 = vpack.c.b16 %v2169, %v2166
      %v2293 = vpack.c.b16 %v2170, %v2167
      %v2294 = vpack.c.b16 %v2174, %v2171
      %v2295 = vpack.c.b16 %v2175, %v2172
      %v2296 = vpack.c.b16 %v2176, %v2173
      %v2297 = vpack.c.b16 %v2180, %v2177
      %v2298 = vpack.c.b16 %v2181, %v2178
      %v2299 = vpack.c.b16 %v2182, %v2179
      %v2300 = vpack.c.b16 %v2186, %v2183
      %v2301 = vpack.c.b16 %v2187, %v2184
      %v2302 = vpack.c.b16 %v2188, %v2185
      %v2303 = vpack.c.b16 %v2192, %v2189
      %v2304 = vpack.c.b16 %v2193, %v2190
      %v2305 = vpack.c.b16 %v2194, %v2191
      %v2306 = vpack.c.b16 %v2198, %v2195
      %v2307 = vpack.c.b16 %v2199, %v2196
      %v2308 = vpack.c.b16 %v2200, %v2197
      %v2309 = vpack.c.b16 %v2204, %v2201
      %v2310 = vpack.c.b16 %v2205, %v2202
      %v2311 = vpack.c.b16 %v2206, %v2203
      %v2312 = vpack.c.b16 %v2210, %v2207
      %v2313 = vpack.c.b16 %v2211, %v2208
      %v2314 = vpack.c.b16 %v2212, %v2209
      %v2315 = vpack.c.b16 %v2216, %v2213
      %v2316 = vpack.c.b16 %v2217, %v2214
      %v2317 = vpack.c.b16 %v2218, %v2215
      %v2318 = vpack.c.b16 %v2222, %v2219
      %v2319 = vpack.c.b16 %v2223, %v2220
      %v2320 = vpack.c.b16 %v2224, %v2221
      %v2321 = vpack.c.b16 %v2228, %v2225
      %v2322 = vpack.c.b16 %v2229, %v2226
      %v2323 = vpack.c.b16 %v2230, %v2227
      %v2324 = vpack.c.b16 %v2234, %v2231
      %v2325 = vpack.c.b16 %v2235, %v2232
      %v2326 = vpack.c.b16 %v2236, %v2233
      %v2327 = vpack.c.b16 %v2240, %v2237
      %v2328 = vpack.c.b16 %v2241, %v2238
      %v2329 = vpack.c.b16 %v2242, %v2239
      %v2330 = vpack.c.b16 %v2246, %v2243
      %v2331 = vpack.c.b16 %v2247, %v2244
      %v2332 = vpack.c.b16 %v2248, %v2245
      %v2333 = vpack.c.b16 %v2252, %v2249
      %v2334 = vpack.c.b16 %v2253, %v2250
      %v2335 = vpack.c.b16 %v2254, %v2251
      %v2336 = vpack.c.b16 %v2258, %v2255
      %v2337 = vpack.c.b16 %v2259, %v2256
      %v2338 = vpack.c.b16 %v2260, %v2257
      %vm2417 = vcmask 261120
      %v2419 = vsel %vm2417, %v1869, 0
      %v2422 = vsel %vm2417, %v1901, 0
      %v2425 = vsel %vm2417, %v1933, 0
      %v2428 = vsel %vm2417, %v1965, 0
      %v2431 = vsel %vm2417, %v1985, 0
      %2433 = vmatpush.bf16.msra.mxu0 %v2282
      %2434 = vmatpush.bf16.msra.mxu0 %v2279
      %2435 = vmatpush.bf16.msra.mxu0 %v2276
      %2436 = vmatpush.bf16.msra.mxu0 %v2273
      %2437 = vmatpush.bf16.msra.mxu0 %v2270
      %2438 = vmatpush.bf16.msra.mxu0 %v2267
      %2439 = vmatpush.bf16.msra.mxu0 %v2264
      %2440 = vmatpush.bf16.msra.mxu0 %v2261
      %2441 = vmatmul.bf16.gmra.mxu0 %v1833
      %v2442 = vpop.f32.mrf.mxu0
      %v2443 = vadd.f32 0.0, %v2442
      %v2444 = vpop.f32.mrf.mxu0
      %v2445 = vadd.f32 0.0, %v2444
      %2446 = vmatmul.bf16.gmra.mxu0 %v1877
      %v2447 = vpop.f32.mrf.mxu0
      %v2448 = vadd.f32 0.0, %v2447
      %v2449 = vpop.f32.mrf.mxu0
      %v2450 = vadd.f32 0.0, %v2449
      %2451 = vmatmul.bf16.gmra.mxu0 %v1909
      %v2452 = vpop.f32.mrf.mxu0
      %v2453 = vadd.f32 0.0, %v2452
      %v2454 = vpop.f32.mrf.mxu0
      %v2455 = vadd.f32 0.0, %v2454
      %2456 = vmatmul.bf16.gmra.mxu0 %v1941
      %v2457 = vpop.f32.mrf.mxu0
      %v2458 = vadd.f32 0.0, %v2457
      %v2459 = vpop.f32.mrf.mxu0
      %v2460 = vadd.f32 0.0, %v2459
      %2461 = vmatmul.bf16.gmra.mxu0 %v1973
      %v2462 = vpop.f32.mrf.mxu0
      %v2463 = vadd.f32 0.0, %v2462
      %v2464 = vpop.f32.mrf.mxu0
      %v2465 = vadd.f32 0.0, %v2464
      %2466 = vdwg.mxu0
      %2467 = vmatpush.bf16.msra.mxu0 %v2306
      %2468 = vmatpush.bf16.msra.mxu0 %v2303
      %2469 = vmatpush.bf16.msra.mxu0 %v2300
      %2470 = vmatpush.bf16.msra.mxu0 %v2297
      %2471 = vmatpush.bf16.msra.mxu0 %v2294
      %2472 = vmatpush.bf16.msra.mxu0 %v2291
      %2473 = vmatpush.bf16.msra.mxu0 %v2288
      %2474 = vmatpush.bf16.msra.mxu0 %v2285
      %2475 = vmatmul.bf16.gmra.mxu0 %v1845
      %v2476 = vpop.f32.mrf.mxu0
      %v2477 = vadd.f32 %v2443, %v2476
      %v2478 = vpop.f32.mrf.mxu0
      %v2479 = vadd.f32 %v2445, %v2478
      %2480 = vmatmul.bf16.gmra.mxu0 %v1885
      %v2481 = vpop.f32.mrf.mxu0
      %v2482 = vadd.f32 %v2448, %v2481
      %v2483 = vpop.f32.mrf.mxu0
      %v2484 = vadd.f32 %v2450, %v2483
      %2485 = vmatmul.bf16.gmra.mxu0 %v1917
      %v2486 = vpop.f32.mrf.mxu0
      %v2487 = vadd.f32 %v2453, %v2486
      %v2488 = vpop.f32.mrf.mxu0
      %v2489 = vadd.f32 %v2455, %v2488
      %2490 = vmatmul.bf16.gmra.mxu0 %v1949
      %v2491 = vpop.f32.mrf.mxu0
      %v2492 = vadd.f32 %v2458, %v2491
      %v2493 = vpop.f32.mrf.mxu0
      %v2494 = vadd.f32 %v2460, %v2493
      %2495 = vmatmul.bf16.gmra.mxu0 %v1977
      %v2496 = vpop.f32.mrf.mxu0
      %v2497 = vadd.f32 %v2463, %v2496
      %v2498 = vpop.f32.mrf.mxu0
      %v2499 = vadd.f32 %v2465, %v2498
      %2500 = vdwg.mxu0
      %2501 = vmatpush.bf16.msra.mxu0 %v2330
      %2502 = vmatpush.bf16.msra.mxu0 %v2327
      %2503 = vmatpush.bf16.msra.mxu0 %v2324
      %2504 = vmatpush.bf16.msra.mxu0 %v2321
      %2505 = vmatpush.bf16.msra.mxu0 %v2318
      %2506 = vmatpush.bf16.msra.mxu0 %v2315
      %2507 = vmatpush.bf16.msra.mxu0 %v2312
      %2508 = vmatpush.bf16.msra.mxu0 %v2309
      %2509 = vmatmul.bf16.gmra.mxu0 %v1857
      %v2510 = vpop.f32.mrf.mxu0
      %v2511 = vadd.f32 %v2477, %v2510
      %v2512 = vpop.f32.mrf.mxu0
      %v2513 = vadd.f32 %v2479, %v2512
      %2514 = vmatmul.bf16.gmra.mxu0 %v1893
      %v2515 = vpop.f32.mrf.mxu0
      %v2516 = vadd.f32 %v2482, %v2515
      %v2517 = vpop.f32.mrf.mxu0
      %v2518 = vadd.f32 %v2484, %v2517
      %2519 = vmatmul.bf16.gmra.mxu0 %v1925
      %v2520 = vpop.f32.mrf.mxu0
      %v2521 = vadd.f32 %v2487, %v2520
      %v2522 = vpop.f32.mrf.mxu0
      %v2523 = vadd.f32 %v2489, %v2522
      %2524 = vmatmul.bf16.gmra.mxu0 %v1957
      %v2525 = vpop.f32.mrf.mxu0
      %v2526 = vadd.f32 %v2492, %v2525
      %v2527 = vpop.f32.mrf.mxu0
      %v2528 = vadd.f32 %v2494, %v2527
      %2529 = vmatmul.bf16.gmra.mxu0 %v1981
      %v2530 = vpop.f32.mrf.mxu0
      %v2531 = vadd.f32 %v2497, %v2530
      %v2532 = vpop.f32.mrf.mxu0
      %v2533 = vadd.f32 %v2499, %v2532
      %2534 = vdwg.mxu0
      %2535 = vmatpush.bf16.msra.mxu0 0
      %2536 = vmatpush.bf16.msra.mxu0 0
      %2537 = vmatpush.bf16.msra.mxu0 0
      %2538 = vmatpush.bf16.msra.mxu0 0
      %2539 = vmatpush.bf16.msra.mxu0 0
      %2540 = vmatpush.bf16.msra.mxu0 0
      %2541 = vmatpush.bf16.msra.mxu0 %v2336
      %2542 = vmatpush.bf16.msra.mxu0 %v2333
      %2543 = vmatmul.bf16.gmra.mxu0 %v2419
      %v2544 = vpop.f32.mrf.mxu0
      %v2545 = vadd.f32 %v2511, %v2544
      %v2546 = vpop.f32.mrf.mxu0
      %v2547 = vadd.f32 %v2513, %v2546
      %2548 = vmatmul.bf16.gmra.mxu0 %v2422
      %v2549 = vpop.f32.mrf.mxu0
      %v2550 = vadd.f32 %v2516, %v2549
      %v2551 = vpop.f32.mrf.mxu0
      %v2552 = vadd.f32 %v2518, %v2551
      %2553 = vmatmul.bf16.gmra.mxu0 %v2425
      %v2554 = vpop.f32.mrf.mxu0
      %v2555 = vadd.f32 %v2521, %v2554
      %v2556 = vpop.f32.mrf.mxu0
      %v2557 = vadd.f32 %v2523, %v2556
      %2558 = vmatmul.bf16.gmra.mxu0 %v2428
      %v2559 = vpop.f32.mrf.mxu0
      %v2560 = vadd.f32 %v2526, %v2559
      %v2561 = vpop.f32.mrf.mxu0
      %v2562 = vadd.f32 %v2528, %v2561
      %2563 = vmatmul.bf16.gmra.mxu0 %v2431
      %v2564 = vpop.f32.mrf.mxu0
      %v2565 = vadd.f32 %v2531, %v2564
      %v2566 = vpop.f32.mrf.mxu0
      %v2567 = vadd.f32 %v2533, %v2566
      %2568 = vdwg.mxu0
      %2569 = vmatpush.bf16.msra.mxu0 %v2283
      %2570 = vmatpush.bf16.msra.mxu0 %v2280
      %2571 = vmatpush.bf16.msra.mxu0 %v2277
      %2572 = vmatpush.bf16.msra.mxu0 %v2274
      %2573 = vmatpush.bf16.msra.mxu0 %v2271
      %2574 = vmatpush.bf16.msra.mxu0 %v2268
      %2575 = vmatpush.bf16.msra.mxu0 %v2265
      %2576 = vmatpush.bf16.msra.mxu0 %v2262
      %2577 = vmatmul.bf16.gmra.mxu0 %v1833
      %v2578 = vpop.f32.mrf.mxu0
      %v2579 = vadd.f32 0.0, %v2578
      %v2580 = vpop.f32.mrf.mxu0
      %v2581 = vadd.f32 0.0, %v2580
      %2582 = vmatmul.bf16.gmra.mxu0 %v1877
      %v2583 = vpop.f32.mrf.mxu0
      %v2584 = vadd.f32 0.0, %v2583
      %v2585 = vpop.f32.mrf.mxu0
      %v2586 = vadd.f32 0.0, %v2585
      %2587 = vmatmul.bf16.gmra.mxu0 %v1909
      %v2588 = vpop.f32.mrf.mxu0
      %v2589 = vadd.f32 0.0, %v2588
      %v2590 = vpop.f32.mrf.mxu0
      %v2591 = vadd.f32 0.0, %v2590
      %2592 = vmatmul.bf16.gmra.mxu0 %v1941
      %v2593 = vpop.f32.mrf.mxu0
      %v2594 = vadd.f32 0.0, %v2593
      %v2595 = vpop.f32.mrf.mxu0
      %v2596 = vadd.f32 0.0, %v2595
      %2597 = vmatmul.bf16.gmra.mxu0 %v1973
      %v2598 = vpop.f32.mrf.mxu0
      %v2599 = vadd.f32 0.0, %v2598
      %v2600 = vpop.f32.mrf.mxu0
      %v2601 = vadd.f32 0.0, %v2600
      %2602 = vdwg.mxu0
      %2603 = vmatpush.bf16.msra.mxu0 %v2307
      %2604 = vmatpush.bf16.msra.mxu0 %v2304
      %2605 = vmatpush.bf16.msra.mxu0 %v2301
      %2606 = vmatpush.bf16.msra.mxu0 %v2298
      %2607 = vmatpush.bf16.msra.mxu0 %v2295
      %2608 = vmatpush.bf16.msra.mxu0 %v2292
      %2609 = vmatpush.bf16.msra.mxu0 %v2289
      %2610 = vmatpush.bf16.msra.mxu0 %v2286
      %2611 = vmatmul.bf16.gmra.mxu0 %v1845
      %v2612 = vpop.f32.mrf.mxu0
      %v2613 = vadd.f32 %v2579, %v2612
      %v2614 = vpop.f32.mrf.mxu0
      %v2615 = vadd.f32 %v2581, %v2614
      %2616 = vmatmul.bf16.gmra.mxu0 %v1885
      %v2617 = vpop.f32.mrf.mxu0
      %v2618 = vadd.f32 %v2584, %v2617
      %v2619 = vpop.f32.mrf.mxu0
      %v2620 = vadd.f32 %v2586, %v2619
      %2621 = vmatmul.bf16.gmra.mxu0 %v1917
      %v2622 = vpop.f32.mrf.mxu0
      %v2623 = vadd.f32 %v2589, %v2622
      %v2624 = vpop.f32.mrf.mxu0
      %v2625 = vadd.f32 %v2591, %v2624
      %2626 = vmatmul.bf16.gmra.mxu0 %v1949
      %v2627 = vpop.f32.mrf.mxu0
      %v2628 = vadd.f32 %v2594, %v2627
      %v2629 = vpop.f32.mrf.mxu0
      %v2630 = vadd.f32 %v2596, %v2629
      %2631 = vmatmul.bf16.gmra.mxu0 %v1977
      %v2632 = vpop.f32.mrf.mxu0
      %v2633 = vadd.f32 %v2599, %v2632
      %v2634 = vpop.f32.mrf.mxu0
      %v2635 = vadd.f32 %v2601, %v2634
      %2636 = vdwg.mxu0
      %2637 = vmatpush.bf16.msra.mxu0 %v2331
      %2638 = vmatpush.bf16.msra.mxu0 %v2328
      %2639 = vmatpush.bf16.msra.mxu0 %v2325
      %2640 = vmatpush.bf16.msra.mxu0 %v2322
      %2641 = vmatpush.bf16.msra.mxu0 %v2319
      %2642 = vmatpush.bf16.msra.mxu0 %v2316
      %2643 = vmatpush.bf16.msra.mxu0 %v2313
      %2644 = vmatpush.bf16.msra.mxu0 %v2310
      %2645 = vmatmul.bf16.gmra.mxu0 %v1857
      %v2646 = vpop.f32.mrf.mxu0
      %v2647 = vadd.f32 %v2613, %v2646
      %v2648 = vpop.f32.mrf.mxu0
      %v2649 = vadd.f32 %v2615, %v2648
      %2650 = vmatmul.bf16.gmra.mxu0 %v1893
      %v2651 = vpop.f32.mrf.mxu0
      %v2652 = vadd.f32 %v2618, %v2651
      %v2653 = vpop.f32.mrf.mxu0
      %v2654 = vadd.f32 %v2620, %v2653
      %2655 = vmatmul.bf16.gmra.mxu0 %v1925
      %v2656 = vpop.f32.mrf.mxu0
      %v2657 = vadd.f32 %v2623, %v2656
      %v2658 = vpop.f32.mrf.mxu0
      %v2659 = vadd.f32 %v2625, %v2658
      %2660 = vmatmul.bf16.gmra.mxu0 %v1957
      %v2661 = vpop.f32.mrf.mxu0
      %v2662 = vadd.f32 %v2628, %v2661
      %v2663 = vpop.f32.mrf.mxu0
      %v2664 = vadd.f32 %v2630, %v2663
      %2665 = vmatmul.bf16.gmra.mxu0 %v1981
      %v2666 = vpop.f32.mrf.mxu0
      %v2667 = vadd.f32 %v2633, %v2666
      %v2668 = vpop.f32.mrf.mxu0
      %v2669 = vadd.f32 %v2635, %v2668
      %2670 = vdwg.mxu0
      %2671 = vmatpush.bf16.msra.mxu0 0
      %2672 = vmatpush.bf16.msra.mxu0 0
      %2673 = vmatpush.bf16.msra.mxu0 0
      %2674 = vmatpush.bf16.msra.mxu0 0
      %2675 = vmatpush.bf16.msra.mxu0 0
      %2676 = vmatpush.bf16.msra.mxu0 0
      %2677 = vmatpush.bf16.msra.mxu0 %v2337
      %2678 = vmatpush.bf16.msra.mxu0 %v2334
      %2679 = vmatmul.bf16.gmra.mxu0 %v2419
      %v2680 = vpop.f32.mrf.mxu0
      %v2681 = vadd.f32 %v2647, %v2680
      %v2682 = vpop.f32.mrf.mxu0
      %v2683 = vadd.f32 %v2649, %v2682
      %2684 = vmatmul.bf16.gmra.mxu0 %v2422
      %v2685 = vpop.f32.mrf.mxu0
      %v2686 = vadd.f32 %v2652, %v2685
      %v2687 = vpop.f32.mrf.mxu0
      %v2688 = vadd.f32 %v2654, %v2687
      %2689 = vmatmul.bf16.gmra.mxu0 %v2425
      %v2690 = vpop.f32.mrf.mxu0
      %v2691 = vadd.f32 %v2657, %v2690
      %v2692 = vpop.f32.mrf.mxu0
      %v2693 = vadd.f32 %v2659, %v2692
      %2694 = vmatmul.bf16.gmra.mxu0 %v2428
      %v2695 = vpop.f32.mrf.mxu0
      %v2696 = vadd.f32 %v2662, %v2695
      %v2697 = vpop.f32.mrf.mxu0
      %v2698 = vadd.f32 %v2664, %v2697
      %2699 = vmatmul.bf16.gmra.mxu0 %v2431
      %v2700 = vpop.f32.mrf.mxu0
      %v2701 = vadd.f32 %v2667, %v2700
      %v2702 = vpop.f32.mrf.mxu0
      %v2703 = vadd.f32 %v2669, %v2702
      %2704 = vdwg.mxu0
      %2705 = vmatpush.bf16.msra.mxu0 %v2284
      %2706 = vmatpush.bf16.msra.mxu0 %v2281
      %2707 = vmatpush.bf16.msra.mxu0 %v2278
      %2708 = vmatpush.bf16.msra.mxu0 %v2275
      %2709 = vmatpush.bf16.msra.mxu0 %v2272
      %2710 = vmatpush.bf16.msra.mxu0 %v2269
      %2711 = vmatpush.bf16.msra.mxu0 %v2266
      %2712 = vmatpush.bf16.msra.mxu0 %v2263
      %2713 = vmatmul.bf16.gmra.mxu0 %v1833
      %v2714 = vpop.f32.mrf.mxu0
      %v2715 = vadd.f32 0.0, %v2714
      %v2716 = vpop.f32.mrf.mxu0
      %v2717 = vadd.f32 0.0, %v2716
      %2718 = vmatmul.bf16.gmra.mxu0 %v1877
      %v2719 = vpop.f32.mrf.mxu0
      %v2720 = vadd.f32 0.0, %v2719
      %v2721 = vpop.f32.mrf.mxu0
      %v2722 = vadd.f32 0.0, %v2721
      %2723 = vmatmul.bf16.gmra.mxu0 %v1909
      %v2724 = vpop.f32.mrf.mxu0
      %v2725 = vadd.f32 0.0, %v2724
      %v2726 = vpop.f32.mrf.mxu0
      %v2727 = vadd.f32 0.0, %v2726
      %2728 = vmatmul.bf16.gmra.mxu0 %v1941
      %v2729 = vpop.f32.mrf.mxu0
      %v2730 = vadd.f32 0.0, %v2729
      %v2731 = vpop.f32.mrf.mxu0
      %v2732 = vadd.f32 0.0, %v2731
      %2733 = vmatmul.bf16.gmra.mxu0 %v1973
      %v2734 = vpop.f32.mrf.mxu0
      %v2735 = vadd.f32 0.0, %v2734
      %v2736 = vpop.f32.mrf.mxu0
      %v2737 = vadd.f32 0.0, %v2736
      %2738 = vdwg.mxu0
      %2739 = vmatpush.bf16.msra.mxu0 %v2308
      %2740 = vmatpush.bf16.msra.mxu0 %v2305
      %2741 = vmatpush.bf16.msra.mxu0 %v2302
      %2742 = vmatpush.bf16.msra.mxu0 %v2299
      %2743 = vmatpush.bf16.msra.mxu0 %v2296
      %2744 = vmatpush.bf16.msra.mxu0 %v2293
      %2745 = vmatpush.bf16.msra.mxu0 %v2290
      %2746 = vmatpush.bf16.msra.mxu0 %v2287
      %2747 = vmatmul.bf16.gmra.mxu0 %v1845
      %v2748 = vpop.f32.mrf.mxu0
      %v2749 = vadd.f32 %v2715, %v2748
      %v2750 = vpop.f32.mrf.mxu0
      %v2751 = vadd.f32 %v2717, %v2750
      %2752 = vmatmul.bf16.gmra.mxu0 %v1885
      %v2753 = vpop.f32.mrf.mxu0
      %v2754 = vadd.f32 %v2720, %v2753
      %v2755 = vpop.f32.mrf.mxu0
      %v2756 = vadd.f32 %v2722, %v2755
      %2757 = vmatmul.bf16.gmra.mxu0 %v1917
      %v2758 = vpop.f32.mrf.mxu0
      %v2759 = vadd.f32 %v2725, %v2758
      %v2760 = vpop.f32.mrf.mxu0
      %v2761 = vadd.f32 %v2727, %v2760
      %2762 = vmatmul.bf16.gmra.mxu0 %v1949
      %v2763 = vpop.f32.mrf.mxu0
      %v2764 = vadd.f32 %v2730, %v2763
      %v2765 = vpop.f32.mrf.mxu0
      %v2766 = vadd.f32 %v2732, %v2765
      %2767 = vmatmul.bf16.gmra.mxu0 %v1977
      %v2768 = vpop.f32.mrf.mxu0
      %v2769 = vadd.f32 %v2735, %v2768
      %v2770 = vpop.f32.mrf.mxu0
      %v2771 = vadd.f32 %v2737, %v2770
      %2772 = vdwg.mxu0
      %2773 = vmatpush.bf16.msra.mxu0 %v2332
      %2774 = vmatpush.bf16.msra.mxu0 %v2329
      %2775 = vmatpush.bf16.msra.mxu0 %v2326
      %2776 = vmatpush.bf16.msra.mxu0 %v2323
      %2777 = vmatpush.bf16.msra.mxu0 %v2320
      %2778 = vmatpush.bf16.msra.mxu0 %v2317
      %2779 = vmatpush.bf16.msra.mxu0 %v2314
      %2780 = vmatpush.bf16.msra.mxu0 %v2311
      %2781 = vmatmul.bf16.gmra.mxu0 %v1857
      %v2782 = vpop.f32.mrf.mxu0
      %v2783 = vadd.f32 %v2749, %v2782
      %v2784 = vpop.f32.mrf.mxu0
      %v2785 = vadd.f32 %v2751, %v2784
      %2786 = vmatmul.bf16.gmra.mxu0 %v1893
      %v2787 = vpop.f32.mrf.mxu0
      %v2788 = vadd.f32 %v2754, %v2787
      %v2789 = vpop.f32.mrf.mxu0
      %v2790 = vadd.f32 %v2756, %v2789
      %2791 = vmatmul.bf16.gmra.mxu0 %v1925
      %v2792 = vpop.f32.mrf.mxu0
      %v2793 = vadd.f32 %v2759, %v2792
      %v2794 = vpop.f32.mrf.mxu0
      %v2795 = vadd.f32 %v2761, %v2794
      %2796 = vmatmul.bf16.gmra.mxu0 %v1957
      %v2797 = vpop.f32.mrf.mxu0
      %v2798 = vadd.f32 %v2764, %v2797
      %v2799 = vpop.f32.mrf.mxu0
      %v2800 = vadd.f32 %v2766, %v2799
      %2801 = vmatmul.bf16.gmra.mxu0 %v1981
      %v2802 = vpop.f32.mrf.mxu0
      %v2803 = vadd.f32 %v2769, %v2802
      %v2804 = vpop.f32.mrf.mxu0
      %v2805 = vadd.f32 %v2771, %v2804
      %2806 = vdwg.mxu0
      %2807 = vmatpush.bf16.msra.mxu0 0
      %2808 = vmatpush.bf16.msra.mxu0 0
      %2809 = vmatpush.bf16.msra.mxu0 0
      %2810 = vmatpush.bf16.msra.mxu0 0
      %2811 = vmatpush.bf16.msra.mxu0 0
      %2812 = vmatpush.bf16.msra.mxu0 0
      %2813 = vmatpush.bf16.msra.mxu0 %v2338
      %2814 = vmatpush.bf16.msra.mxu0 %v2335
      %2815 = vmatmul.bf16.gmra.mxu0 %v2419
      %v2816 = vpop.f32.mrf.mxu0
      %v2817 = vadd.f32 %v2783, %v2816
      %v2818 = vpop.f32.mrf.mxu0
      %v2819 = vadd.f32 %v2785, %v2818
      %2820 = vmatmul.bf16.gmra.mxu0 %v2422
      %v2821 = vpop.f32.mrf.mxu0
      %v2822 = vadd.f32 %v2788, %v2821
      %v2823 = vpop.f32.mrf.mxu0
      %v2824 = vadd.f32 %v2790, %v2823
      %2825 = vmatmul.bf16.gmra.mxu0 %v2425
      %v2826 = vpop.f32.mrf.mxu0
      %v2827 = vadd.f32 %v2793, %v2826
      %v2828 = vpop.f32.mrf.mxu0
      %v2829 = vadd.f32 %v2795, %v2828
      %2830 = vmatmul.bf16.gmra.mxu0 %v2428
      %v2831 = vpop.f32.mrf.mxu0
      %v2832 = vadd.f32 %v2798, %v2831
      %v2833 = vpop.f32.mrf.mxu0
      %v2834 = vadd.f32 %v2800, %v2833
      %2835 = vmatmul.bf16.gmra.mxu0 %v2431
      %v2836 = vpop.f32.mrf.mxu0
      %v2837 = vadd.f32 %v2803, %v2836
      %v2838 = vpop.f32.mrf.mxu0
      %v2839 = vadd.f32 %v2805, %v2838
      %2840 = vdwg.mxu0
      %v2945 = vunpack.c.l.b16 %v1612
      %v2946 = vunpack.c.h.b16 %v1612
      %v2947 = vunpack.c.l.b16 %v1613
      %v2948 = vunpack.c.l.b16 %v1614
      %v2949 = vunpack.c.h.b16 %v1614
      %v2950 = vunpack.c.l.b16 %v1615
      %v2951 = vunpack.c.l.b16 %v1616
      %v2952 = vunpack.c.h.b16 %v1616
      %v2953 = vunpack.c.l.b16 %v1617
      %v2954 = vunpack.c.l.b16 %v1618
      %v2955 = vunpack.c.h.b16 %v1618
      %v2956 = vunpack.c.l.b16 %v1619
      %v2957 = vunpack.c.l.b16 %v1620
      %v2958 = vunpack.c.h.b16 %v1620
      %v2959 = vunpack.c.l.b16 %v1621
      %v2960 = vunpack.c.l.b16 %v1622
      %v2961 = vunpack.c.h.b16 %v1622
      %v2962 = vunpack.c.l.b16 %v1623
      %v2963 = vunpack.c.l.b16 %v1624
      %v2964 = vunpack.c.h.b16 %v1624
      %v2965 = vunpack.c.l.b16 %v1625
      %v2966 = vunpack.c.l.b16 %v1626
      %v2967 = vunpack.c.h.b16 %v1626
      %v2968 = vunpack.c.l.b16 %v1627
      %v2969 = vunpack.c.l.b16 %v1628
      %v2970 = vunpack.c.h.b16 %v1628
      %v2971 = vunpack.c.l.b16 %v1629
      %v2972 = vunpack.c.l.b16 %v1630
      %v2973 = vunpack.c.h.b16 %v1630
      %v2974 = vunpack.c.l.b16 %v1631
      %v2975 = vunpack.c.l.b16 %v1632
      %v2976 = vunpack.c.h.b16 %v1632
      %v2977 = vunpack.c.l.b16 %v1633
      %v2978 = vunpack.c.l.b16 %v1634
      %v2979 = vunpack.c.h.b16 %v1634
      %v2980 = vunpack.c.l.b16 %v1635
      %v2981 = vunpack.c.l.b16 %v1636
      %v2982 = vunpack.c.h.b16 %v1636
      %v2983 = vunpack.c.l.b16 %v1637
      %v2984 = vunpack.c.l.b16 %v1638
      %v2985 = vunpack.c.h.b16 %v1638
      %v2986 = vunpack.c.l.b16 %v1639
      %v2987 = vunpack.c.l.b16 %v1640
      %v2988 = vunpack.c.h.b16 %v1640
      %v2989 = vunpack.c.l.b16 %v1641
      %v2990 = vunpack.c.l.b16 %v1642
      %v2991 = vunpack.c.h.b16 %v1642
      %v2992 = vunpack.c.l.b16 %v1643
      %v2993 = vunpack.c.l.b16 %v1644
      %v2994 = vunpack.c.h.b16 %v1644
      %v2995 = vunpack.c.l.b16 %v1645
      %v2996 = vunpack.c.l.b16 %v1646
      %v2997 = vunpack.c.h.b16 %v1646
      %v2998 = vunpack.c.l.b16 %v1647
      %v2999 = vunpack.c.l.b16 %v1648
      %v3000 = vunpack.c.h.b16 %v1648
      %v3001 = vunpack.c.l.b16 %v1649
      %v3002 = vunpack.c.l.b16 %v1650
      %v3003 = vunpack.c.h.b16 %v1650
      %v3004 = vunpack.c.l.b16 %v1651
      %v3005 = vunpack.c.l.b16 %v1652
      %v3006 = vunpack.c.h.b16 %v1652
      %v3007 = vunpack.c.l.b16 %v1653
      %v3008 = vunpack.c.l.b16 %v1654
      %v3009 = vunpack.c.h.b16 %v1654
      %v3010 = vunpack.c.l.b16 %v1655
      %v3011 = vunpack.c.l.b16 %v1656
      %v3012 = vunpack.c.h.b16 %v1656
      %v3013 = vunpack.c.l.b16 %v1657
      %v3014 = vunpack.c.l.b16 %v1658
      %v3015 = vunpack.c.h.b16 %v1658
      %v3016 = vunpack.c.l.b16 %v1659
      %v3017 = vunpack.c.l.b16 %v1660
      %v3018 = vunpack.c.h.b16 %v1660
      %v3019 = vunpack.c.l.b16 %v1661
      %v3020 = vunpack.c.l.b16 %v1662
      %v3021 = vunpack.c.h.b16 %v1662
      %v3022 = vunpack.c.l.b16 %v1663
      %v3023 = vunpack.c.l.b16 %v1664
      %v3024 = vunpack.c.h.b16 %v1664
      %v3025 = vunpack.c.l.b16 %v1665
      %v3026 = vunpack.c.l.b16 %v1666
      %v3027 = vunpack.c.h.b16 %v1666
      %v3028 = vunpack.c.l.b16 %v1667
      %v3029 = vunpack.c.l.b16 %v1668
      %v3030 = vunpack.c.h.b16 %v1668
      %v3031 = vunpack.c.l.b16 %v1669
      %v3032 = vunpack.c.l.b16 %v1670
      %v3033 = vunpack.c.h.b16 %v1670
      %v3034 = vunpack.c.l.b16 %v1671
      %v3035 = vunpack.c.l.b16 %v1672
      %v3036 = vunpack.c.h.b16 %v1672
      %v3037 = vunpack.c.l.b16 %v1673
      %v3038 = vunpack.c.l.b16 %v1674
      %v3039 = vunpack.c.h.b16 %v1674
      %v3040 = vunpack.c.l.b16 %v1675
      %v3041 = vunpack.c.l.b16 %v1676
      %v3042 = vunpack.c.h.b16 %v1676
      %v3043 = vunpack.c.l.b16 %v1677
      %v3044 = vunpack.c.l.b16 %v1678
      %v3045 = vunpack.c.h.b16 %v1678
      %v3046 = vunpack.c.l.b16 %v1679
      %v3047 = vunpack.c.l.b16 %v1680
      %v3048 = vunpack.c.h.b16 %v1680
      %v3049 = vunpack.c.l.b16 %v1681
      %v3050 = vunpack.c.l.b16 %v1682
      %v3051 = vunpack.c.h.b16 %v1682
      %v3052 = vunpack.c.l.b16 %v1683
      %v3053 = vunpack.c.l.b16 %v1684
      %v3054 = vunpack.c.h.b16 %v1684
      %v3055 = vunpack.c.l.b16 %v1685
      %v3056 = vunpack.c.l.b16 %v1686
      %v3057 = vunpack.c.h.b16 %v1686
      %v3058 = vunpack.c.l.b16 %v1687
      %v3059 = vunpack.c.l.b16 %v1688
      %v3060 = vunpack.c.h.b16 %v1688
      %v3061 = vunpack.c.l.b16 %v1689
      %v3062 = vunpack.c.l.b16 %v1690
      %v3063 = vunpack.c.h.b16 %v1690
      %v3064 = vunpack.c.l.b16 %v1691
      %v3065 = vunpack.c.l.b16 %v1692
      %v3066 = vunpack.c.h.b16 %v1692
      %v3067 = vunpack.c.l.b16 %v1693
      %v3068 = vunpack.c.l.b16 %v1694
      %v3069 = vunpack.c.h.b16 %v1694
      %v3070 = vunpack.c.l.b16 %v1695
      %v3071 = vunpack.c.l.b16 %v1696
      %v3072 = vunpack.c.h.b16 %v1696
      %v3073 = vunpack.c.l.b16 %v1697
      %v3074 = vunpack.c.l.b16 %v1698
      %v3075 = vunpack.c.h.b16 %v1698
      %v3076 = vunpack.c.l.b16 %v1699
      %v3077 = vunpack.c.l.b16 %v1700
      %v3078 = vunpack.c.h.b16 %v1700
      %v3079 = vunpack.c.l.b16 %v1701
      %v3080 = vunpack.c.l.b16 %v1702
      %v3081 = vunpack.c.h.b16 %v1702
      %v3082 = vunpack.c.l.b16 %v1703
      %v3083 = vunpack.c.l.b16 %v1704
      %v3084 = vunpack.c.h.b16 %v1704
      %v3085 = vunpack.c.l.b16 %v1705
      %v3086 = vunpack.c.l.b16 %v1706
      %v3087 = vunpack.c.h.b16 %v1706
      %v3088 = vunpack.c.l.b16 %v1707
      %v3089 = vunpack.c.l.b16 %v1708
      %v3090 = vunpack.c.h.b16 %v1708
      %v3091 = vunpack.c.l.b16 %v1709
      %v3092 = vunpack.c.l.b16 %v1710
      %v3093 = vunpack.c.h.b16 %v1710
      %v3094 = vunpack.c.l.b16 %v1711
      %v3095 = vunpack.c.l.b16 %v1712
      %v3096 = vunpack.c.h.b16 %v1712
      %v3097 = vunpack.c.l.b16 %v1713
      %v3098 = vunpack.c.l.b16 %v1714
      %v3099 = vunpack.c.h.b16 %v1714
      %v3100 = vunpack.c.l.b16 %v1715
      %v3101 = vpack.c.b16 %v2948, %v2945
      %v3102 = vpack.c.b16 %v2949, %v2946
      %v3103 = vpack.c.b16 %v2950, %v2947
      %v3104 = vpack.c.b16 %v2954, %v2951
      %v3105 = vpack.c.b16 %v2955, %v2952
      %v3106 = vpack.c.b16 %v2956, %v2953
      %v3107 = vpack.c.b16 %v2960, %v2957
      %v3108 = vpack.c.b16 %v2961, %v2958
      %v3109 = vpack.c.b16 %v2962, %v2959
      %v3110 = vpack.c.b16 %v2966, %v2963
      %v3111 = vpack.c.b16 %v2967, %v2964
      %v3112 = vpack.c.b16 %v2968, %v2965
      %v3113 = vpack.c.b16 %v2972, %v2969
      %v3114 = vpack.c.b16 %v2973, %v2970
      %v3115 = vpack.c.b16 %v2974, %v2971
      %v3116 = vpack.c.b16 %v2978, %v2975
      %v3117 = vpack.c.b16 %v2979, %v2976
      %v3118 = vpack.c.b16 %v2980, %v2977
      %v3119 = vpack.c.b16 %v2984, %v2981
      %v3120 = vpack.c.b16 %v2985, %v2982
      %v3121 = vpack.c.b16 %v2986, %v2983
      %v3122 = vpack.c.b16 %v2990, %v2987
      %v3123 = vpack.c.b16 %v2991, %v2988
      %v3124 = vpack.c.b16 %v2992, %v2989
      %v3125 = vpack.c.b16 %v2996, %v2993
      %v3126 = vpack.c.b16 %v2997, %v2994
      %v3127 = vpack.c.b16 %v2998, %v2995
      %v3128 = vpack.c.b16 %v3002, %v2999
      %v3129 = vpack.c.b16 %v3003, %v3000
      %v3130 = vpack.c.b16 %v3004, %v3001
      %v3131 = vpack.c.b16 %v3008, %v3005
      %v3132 = vpack.c.b16 %v3009, %v3006
      %v3133 = vpack.c.b16 %v3010, %v3007
      %v3134 = vpack.c.b16 %v3014, %v3011
      %v3135 = vpack.c.b16 %v3015, %v3012
      %v3136 = vpack.c.b16 %v3016, %v3013
      %v3137 = vpack.c.b16 %v3020, %v3017
      %v3138 = vpack.c.b16 %v3021, %v3018
      %v3139 = vpack.c.b16 %v3022, %v3019
      %v3140 = vpack.c.b16 %v3026, %v3023
      %v3141 = vpack.c.b16 %v3027, %v3024
      %v3142 = vpack.c.b16 %v3028, %v3025
      %v3143 = vpack.c.b16 %v3032, %v3029
      %v3144 = vpack.c.b16 %v3033, %v3030
      %v3145 = vpack.c.b16 %v3034, %v3031
      %v3146 = vpack.c.b16 %v3038, %v3035
      %v3147 = vpack.c.b16 %v3039, %v3036
      %v3148 = vpack.c.b16 %v3040, %v3037
      %v3149 = vpack.c.b16 %v3044, %v3041
      %v3150 = vpack.c.b16 %v3045, %v3042
      %v3151 = vpack.c.b16 %v3046, %v3043
      %v3152 = vpack.c.b16 %v3050, %v3047
      %v3153 = vpack.c.b16 %v3051, %v3048
      %v3154 = vpack.c.b16 %v3052, %v3049
      %v3155 = vpack.c.b16 %v3056, %v3053
      %v3156 = vpack.c.b16 %v3057, %v3054
      %v3157 = vpack.c.b16 %v3058, %v3055
      %v3158 = vpack.c.b16 %v3062, %v3059
      %v3159 = vpack.c.b16 %v3063, %v3060
      %v3160 = vpack.c.b16 %v3064, %v3061
      %v3161 = vpack.c.b16 %v3068, %v3065
      %v3162 = vpack.c.b16 %v3069, %v3066
      %v3163 = vpack.c.b16 %v3070, %v3067
      %v3164 = vpack.c.b16 %v3074, %v3071
      %v3165 = vpack.c.b16 %v3075, %v3072
      %v3166 = vpack.c.b16 %v3076, %v3073
      %v3167 = vpack.c.b16 %v3080, %v3077
      %v3168 = vpack.c.b16 %v3081, %v3078
      %v3169 = vpack.c.b16 %v3082, %v3079
      %v3170 = vpack.c.b16 %v3086, %v3083
      %v3171 = vpack.c.b16 %v3087, %v3084
      %v3172 = vpack.c.b16 %v3088, %v3085
      %v3173 = vpack.c.b16 %v3092, %v3089
      %v3174 = vpack.c.b16 %v3093, %v3090
      %v3175 = vpack.c.b16 %v3094, %v3091
      %v3176 = vpack.c.b16 %v3098, %v3095
      %v3177 = vpack.c.b16 %v3099, %v3096
      %v3178 = vpack.c.b16 %v3100, %v3097
      %v3257 = vsel %vm2417, %v1594, 0
      %v3259 = vsel %vm2417, %v1598, 0
      %v3261 = vsel %vm2417, %v1602, 0
      %v3263 = vsel %vm2417, %v1606, 0
      %v3265 = vsel %vm2417, %v1610, 0
      %3267 = vmatpush.bf16.msra.mxu0 %v3122
      %3268 = vmatpush.bf16.msra.mxu0 %v3119
      %3269 = vmatpush.bf16.msra.mxu0 %v3116
      %3270 = vmatpush.bf16.msra.mxu0 %v3113
      %3271 = vmatpush.bf16.msra.mxu0 %v3110
      %3272 = vmatpush.bf16.msra.mxu0 %v3107
      %3273 = vmatpush.bf16.msra.mxu0 %v3104
      %3274 = vmatpush.bf16.msra.mxu0 %v3101
      %3275 = vmatmul.bf16.gmra.mxu0 %v1591
      %v3276 = vpop.f32.mrf.mxu0
      %v3277 = vadd.f32 %v2545, %v3276
      %v3278 = vpop.f32.mrf.mxu0
      %v3279 = vadd.f32 %v2547, %v3278
      %3280 = vmatmul.bf16.gmra.mxu0 %v1595
      %v3281 = vpop.f32.mrf.mxu0
      %v3282 = vadd.f32 %v2550, %v3281
      %v3283 = vpop.f32.mrf.mxu0
      %v3284 = vadd.f32 %v2552, %v3283
      %3285 = vmatmul.bf16.gmra.mxu0 %v1599
      %v3286 = vpop.f32.mrf.mxu0
      %v3287 = vadd.f32 %v2555, %v3286
      %v3288 = vpop.f32.mrf.mxu0
      %v3289 = vadd.f32 %v2557, %v3288
      %3290 = vmatmul.bf16.gmra.mxu0 %v1603
      %v3291 = vpop.f32.mrf.mxu0
      %v3292 = vadd.f32 %v2560, %v3291
      %v3293 = vpop.f32.mrf.mxu0
      %v3294 = vadd.f32 %v2562, %v3293
      %3295 = vmatmul.bf16.gmra.mxu0 %v1607
      %v3296 = vpop.f32.mrf.mxu0
      %v3297 = vadd.f32 %v2565, %v3296
      %v3298 = vpop.f32.mrf.mxu0
      %v3299 = vadd.f32 %v2567, %v3298
      %3300 = vdwg.mxu0
      %3301 = vmatpush.bf16.msra.mxu0 %v3146
      %3302 = vmatpush.bf16.msra.mxu0 %v3143
      %3303 = vmatpush.bf16.msra.mxu0 %v3140
      %3304 = vmatpush.bf16.msra.mxu0 %v3137
      %3305 = vmatpush.bf16.msra.mxu0 %v3134
      %3306 = vmatpush.bf16.msra.mxu0 %v3131
      %3307 = vmatpush.bf16.msra.mxu0 %v3128
      %3308 = vmatpush.bf16.msra.mxu0 %v3125
      %3309 = vmatmul.bf16.gmra.mxu0 %v1592
      %v3310 = vpop.f32.mrf.mxu0
      %v3311 = vadd.f32 %v3277, %v3310
      %v3312 = vpop.f32.mrf.mxu0
      %v3313 = vadd.f32 %v3279, %v3312
      %3314 = vmatmul.bf16.gmra.mxu0 %v1596
      %v3315 = vpop.f32.mrf.mxu0
      %v3316 = vadd.f32 %v3282, %v3315
      %v3317 = vpop.f32.mrf.mxu0
      %v3318 = vadd.f32 %v3284, %v3317
      %3319 = vmatmul.bf16.gmra.mxu0 %v1600
      %v3320 = vpop.f32.mrf.mxu0
      %v3321 = vadd.f32 %v3287, %v3320
      %v3322 = vpop.f32.mrf.mxu0
      %v3323 = vadd.f32 %v3289, %v3322
      %3324 = vmatmul.bf16.gmra.mxu0 %v1604
      %v3325 = vpop.f32.mrf.mxu0
      %v3326 = vadd.f32 %v3292, %v3325
      %v3327 = vpop.f32.mrf.mxu0
      %v3328 = vadd.f32 %v3294, %v3327
      %3329 = vmatmul.bf16.gmra.mxu0 %v1608
      %v3330 = vpop.f32.mrf.mxu0
      %v3331 = vadd.f32 %v3297, %v3330
      %v3332 = vpop.f32.mrf.mxu0
      %v3333 = vadd.f32 %v3299, %v3332
      %3334 = vdwg.mxu0
      %3335 = vmatpush.bf16.msra.mxu0 %v3170
      %3336 = vmatpush.bf16.msra.mxu0 %v3167
      %3337 = vmatpush.bf16.msra.mxu0 %v3164
      %3338 = vmatpush.bf16.msra.mxu0 %v3161
      %3339 = vmatpush.bf16.msra.mxu0 %v3158
      %3340 = vmatpush.bf16.msra.mxu0 %v3155
      %3341 = vmatpush.bf16.msra.mxu0 %v3152
      %3342 = vmatpush.bf16.msra.mxu0 %v3149
      %3343 = vmatmul.bf16.gmra.mxu0 %v1593
      %v3344 = vpop.f32.mrf.mxu0
      %v3345 = vadd.f32 %v3311, %v3344
      %v3346 = vpop.f32.mrf.mxu0
      %v3347 = vadd.f32 %v3313, %v3346
      %3348 = vmatmul.bf16.gmra.mxu0 %v1597
      %v3349 = vpop.f32.mrf.mxu0
      %v3350 = vadd.f32 %v3316, %v3349
      %v3351 = vpop.f32.mrf.mxu0
      %v3352 = vadd.f32 %v3318, %v3351
      %3353 = vmatmul.bf16.gmra.mxu0 %v1601
      %v3354 = vpop.f32.mrf.mxu0
      %v3355 = vadd.f32 %v3321, %v3354
      %v3356 = vpop.f32.mrf.mxu0
      %v3357 = vadd.f32 %v3323, %v3356
      %3358 = vmatmul.bf16.gmra.mxu0 %v1605
      %v3359 = vpop.f32.mrf.mxu0
      %v3360 = vadd.f32 %v3326, %v3359
      %v3361 = vpop.f32.mrf.mxu0
      %v3362 = vadd.f32 %v3328, %v3361
      %3363 = vmatmul.bf16.gmra.mxu0 %v1609
      %v3364 = vpop.f32.mrf.mxu0
      %v3365 = vadd.f32 %v3331, %v3364
      %v3366 = vpop.f32.mrf.mxu0
      %v3367 = vadd.f32 %v3333, %v3366
      %3368 = vdwg.mxu0
      %3369 = vmatpush.bf16.msra.mxu0 0
      %3370 = vmatpush.bf16.msra.mxu0 0
      %3371 = vmatpush.bf16.msra.mxu0 0
      %3372 = vmatpush.bf16.msra.mxu0 0
      %3373 = vmatpush.bf16.msra.mxu0 0
      %3374 = vmatpush.bf16.msra.mxu0 0
      %3375 = vmatpush.bf16.msra.mxu0 %v3176
      %3376 = vmatpush.bf16.msra.mxu0 %v3173
      %3377 = vmatmul.bf16.gmra.mxu0 %v3257
      %v3378 = vpop.f32.mrf.mxu0
      %v3379 = vadd.f32 %v3345, %v3378
      %v3380 = vpop.f32.mrf.mxu0
      %v3381 = vadd.f32 %v3347, %v3380
      %3382 = vmatmul.bf16.gmra.mxu0 %v3259
      %v3383 = vpop.f32.mrf.mxu0
      %v3384 = vadd.f32 %v3350, %v3383
      %v3385 = vpop.f32.mrf.mxu0
      %v3386 = vadd.f32 %v3352, %v3385
      %3387 = vmatmul.bf16.gmra.mxu0 %v3261
      %v3388 = vpop.f32.mrf.mxu0
      %v3389 = vadd.f32 %v3355, %v3388
      %v3390 = vpop.f32.mrf.mxu0
      %v3391 = vadd.f32 %v3357, %v3390
      %3392 = vmatmul.bf16.gmra.mxu0 %v3263
      %v3393 = vpop.f32.mrf.mxu0
      %v3394 = vadd.f32 %v3360, %v3393
      %v3395 = vpop.f32.mrf.mxu0
      %v3396 = vadd.f32 %v3362, %v3395
      %3397 = vmatmul.bf16.gmra.mxu0 %v3265
      %v3398 = vpop.f32.mrf.mxu0
      %v3399 = vadd.f32 %v3365, %v3398
      %v3400 = vpop.f32.mrf.mxu0
      %v3401 = vadd.f32 %v3367, %v3400
      %3402 = vdwg.mxu0
      %3403 = vmatpush.bf16.msra.mxu0 %v3123
      %3404 = vmatpush.bf16.msra.mxu0 %v3120
      %3405 = vmatpush.bf16.msra.mxu0 %v3117
      %3406 = vmatpush.bf16.msra.mxu0 %v3114
      %3407 = vmatpush.bf16.msra.mxu0 %v3111
      %3408 = vmatpush.bf16.msra.mxu0 %v3108
      %3409 = vmatpush.bf16.msra.mxu0 %v3105
      %3410 = vmatpush.bf16.msra.mxu0 %v3102
      %3411 = vmatmul.bf16.gmra.mxu0 %v1591
      %v3412 = vpop.f32.mrf.mxu0
      %v3413 = vadd.f32 %v2681, %v3412
      %v3414 = vpop.f32.mrf.mxu0
      %v3415 = vadd.f32 %v2683, %v3414
      %3416 = vmatmul.bf16.gmra.mxu0 %v1595
      %v3417 = vpop.f32.mrf.mxu0
      %v3418 = vadd.f32 %v2686, %v3417
      %v3419 = vpop.f32.mrf.mxu0
      %v3420 = vadd.f32 %v2688, %v3419
      %3421 = vmatmul.bf16.gmra.mxu0 %v1599
      %v3422 = vpop.f32.mrf.mxu0
      %v3423 = vadd.f32 %v2691, %v3422
      %v3424 = vpop.f32.mrf.mxu0
      %v3425 = vadd.f32 %v2693, %v3424
      %3426 = vmatmul.bf16.gmra.mxu0 %v1603
      %v3427 = vpop.f32.mrf.mxu0
      %v3428 = vadd.f32 %v2696, %v3427
      %v3429 = vpop.f32.mrf.mxu0
      %v3430 = vadd.f32 %v2698, %v3429
      %3431 = vmatmul.bf16.gmra.mxu0 %v1607
      %v3432 = vpop.f32.mrf.mxu0
      %v3433 = vadd.f32 %v2701, %v3432
      %v3434 = vpop.f32.mrf.mxu0
      %v3435 = vadd.f32 %v2703, %v3434
      %3436 = vdwg.mxu0
      %3437 = vmatpush.bf16.msra.mxu0 %v3147
      %3438 = vmatpush.bf16.msra.mxu0 %v3144
      %3439 = vmatpush.bf16.msra.mxu0 %v3141
      %3440 = vmatpush.bf16.msra.mxu0 %v3138
      %3441 = vmatpush.bf16.msra.mxu0 %v3135
      %3442 = vmatpush.bf16.msra.mxu0 %v3132
      %3443 = vmatpush.bf16.msra.mxu0 %v3129
      %3444 = vmatpush.bf16.msra.mxu0 %v3126
      %3445 = vmatmul.bf16.gmra.mxu0 %v1592
      %v3446 = vpop.f32.mrf.mxu0
      %v3447 = vadd.f32 %v3413, %v3446
      %v3448 = vpop.f32.mrf.mxu0
      %v3449 = vadd.f32 %v3415, %v3448
      %3450 = vmatmul.bf16.gmra.mxu0 %v1596
      %v3451 = vpop.f32.mrf.mxu0
      %v3452 = vadd.f32 %v3418, %v3451
      %v3453 = vpop.f32.mrf.mxu0
      %v3454 = vadd.f32 %v3420, %v3453
      %3455 = vmatmul.bf16.gmra.mxu0 %v1600
      %v3456 = vpop.f32.mrf.mxu0
      %v3457 = vadd.f32 %v3423, %v3456
      %v3458 = vpop.f32.mrf.mxu0
      %v3459 = vadd.f32 %v3425, %v3458
      %3460 = vmatmul.bf16.gmra.mxu0 %v1604
      %v3461 = vpop.f32.mrf.mxu0
      %v3462 = vadd.f32 %v3428, %v3461
      %v3463 = vpop.f32.mrf.mxu0
      %v3464 = vadd.f32 %v3430, %v3463
      %3465 = vmatmul.bf16.gmra.mxu0 %v1608
      %v3466 = vpop.f32.mrf.mxu0
      %v3467 = vadd.f32 %v3433, %v3466
      %v3468 = vpop.f32.mrf.mxu0
      %v3469 = vadd.f32 %v3435, %v3468
      %3470 = vdwg.mxu0
      %3471 = vmatpush.bf16.msra.mxu0 %v3171
      %3472 = vmatpush.bf16.msra.mxu0 %v3168
      %3473 = vmatpush.bf16.msra.mxu0 %v3165
      %3474 = vmatpush.bf16.msra.mxu0 %v3162
      %3475 = vmatpush.bf16.msra.mxu0 %v3159
      %3476 = vmatpush.bf16.msra.mxu0 %v3156
      %3477 = vmatpush.bf16.msra.mxu0 %v3153
      %3478 = vmatpush.bf16.msra.mxu0 %v3150
      %3479 = vmatmul.bf16.gmra.mxu0 %v1593
      %v3480 = vpop.f32.mrf.mxu0
      %v3481 = vadd.f32 %v3447, %v3480
      %v3482 = vpop.f32.mrf.mxu0
      %v3483 = vadd.f32 %v3449, %v3482
      %3484 = vmatmul.bf16.gmra.mxu0 %v1597
      %v3485 = vpop.f32.mrf.mxu0
      %v3486 = vadd.f32 %v3452, %v3485
      %v3487 = vpop.f32.mrf.mxu0
      %v3488 = vadd.f32 %v3454, %v3487
      %3489 = vmatmul.bf16.gmra.mxu0 %v1601
      %v3490 = vpop.f32.mrf.mxu0
      %v3491 = vadd.f32 %v3457, %v3490
      %v3492 = vpop.f32.mrf.mxu0
      %v3493 = vadd.f32 %v3459, %v3492
      %3494 = vmatmul.bf16.gmra.mxu0 %v1605
      %v3495 = vpop.f32.mrf.mxu0
      %v3496 = vadd.f32 %v3462, %v3495
      %v3497 = vpop.f32.mrf.mxu0
      %v3498 = vadd.f32 %v3464, %v3497
      %3499 = vmatmul.bf16.gmra.mxu0 %v1609
      %v3500 = vpop.f32.mrf.mxu0
      %v3501 = vadd.f32 %v3467, %v3500
      %v3502 = vpop.f32.mrf.mxu0
      %v3503 = vadd.f32 %v3469, %v3502
      %3504 = vdwg.mxu0
      %3505 = vmatpush.bf16.msra.mxu0 0
      %3506 = vmatpush.bf16.msra.mxu0 0
      %3507 = vmatpush.bf16.msra.mxu0 0
      %3508 = vmatpush.bf16.msra.mxu0 0
      %3509 = vmatpush.bf16.msra.mxu0 0
      %3510 = vmatpush.bf16.msra.mxu0 0
      %3511 = vmatpush.bf16.msra.mxu0 %v3177
      %3512 = vmatpush.bf16.msra.mxu0 %v3174
      %3513 = vmatmul.bf16.gmra.mxu0 %v3257
      %v3514 = vpop.f32.mrf.mxu0
      %v3515 = vadd.f32 %v3481, %v3514
      %v3516 = vpop.f32.mrf.mxu0
      %v3517 = vadd.f32 %v3483, %v3516
      %3518 = vmatmul.bf16.gmra.mxu0 %v3259
      %v3519 = vpop.f32.mrf.mxu0
      %v3520 = vadd.f32 %v3486, %v3519
      %v3521 = vpop.f32.mrf.mxu0
      %v3522 = vadd.f32 %v3488, %v3521
      %3523 = vmatmul.bf16.gmra.mxu0 %v3261
      %v3524 = vpop.f32.mrf.mxu0
      %v3525 = vadd.f32 %v3491, %v3524
      %v3526 = vpop.f32.mrf.mxu0
      %v3527 = vadd.f32 %v3493, %v3526
      %3528 = vmatmul.bf16.gmra.mxu0 %v3263
      %v3529 = vpop.f32.mrf.mxu0
      %v3530 = vadd.f32 %v3496, %v3529
      %v3531 = vpop.f32.mrf.mxu0
      %v3532 = vadd.f32 %v3498, %v3531
      %3533 = vmatmul.bf16.gmra.mxu0 %v3265
      %v3534 = vpop.f32.mrf.mxu0
      %v3535 = vadd.f32 %v3501, %v3534
      %v3536 = vpop.f32.mrf.mxu0
      %v3537 = vadd.f32 %v3503, %v3536
      %3538 = vdwg.mxu0
      %3539 = vmatpush.bf16.msra.mxu0 %v3124
      %3540 = vmatpush.bf16.msra.mxu0 %v3121
      %3541 = vmatpush.bf16.msra.mxu0 %v3118
      %3542 = vmatpush.bf16.msra.mxu0 %v3115
      %3543 = vmatpush.bf16.msra.mxu0 %v3112
      %3544 = vmatpush.bf16.msra.mxu0 %v3109
      %3545 = vmatpush.bf16.msra.mxu0 %v3106
      %3546 = vmatpush.bf16.msra.mxu0 %v3103
      %3547 = vmatmul.bf16.gmra.mxu0 %v1591
      %v3548 = vpop.f32.mrf.mxu0
      %v3549 = vadd.f32 %v2817, %v3548
      %v3550 = vpop.f32.mrf.mxu0
      %v3551 = vadd.f32 %v2819, %v3550
      %3552 = vmatmul.bf16.gmra.mxu0 %v1595
      %v3553 = vpop.f32.mrf.mxu0
      %v3554 = vadd.f32 %v2822, %v3553
      %v3555 = vpop.f32.mrf.mxu0
      %v3556 = vadd.f32 %v2824, %v3555
      %3557 = vmatmul.bf16.gmra.mxu0 %v1599
      %v3558 = vpop.f32.mrf.mxu0
      %v3559 = vadd.f32 %v2827, %v3558
      %v3560 = vpop.f32.mrf.mxu0
      %v3561 = vadd.f32 %v2829, %v3560
      %3562 = vmatmul.bf16.gmra.mxu0 %v1603
      %v3563 = vpop.f32.mrf.mxu0
      %v3564 = vadd.f32 %v2832, %v3563
      %v3565 = vpop.f32.mrf.mxu0
      %v3566 = vadd.f32 %v2834, %v3565
      %3567 = vmatmul.bf16.gmra.mxu0 %v1607
      %v3568 = vpop.f32.mrf.mxu0
      %v3569 = vadd.f32 %v2837, %v3568
      %v3570 = vpop.f32.mrf.mxu0
      %v3571 = vadd.f32 %v2839, %v3570
      %3572 = vdwg.mxu0
      %3573 = vmatpush.bf16.msra.mxu0 %v3148
      %3574 = vmatpush.bf16.msra.mxu0 %v3145
      %3575 = vmatpush.bf16.msra.mxu0 %v3142
      %3576 = vmatpush.bf16.msra.mxu0 %v3139
      %3577 = vmatpush.bf16.msra.mxu0 %v3136
      %3578 = vmatpush.bf16.msra.mxu0 %v3133
      %3579 = vmatpush.bf16.msra.mxu0 %v3130
      %3580 = vmatpush.bf16.msra.mxu0 %v3127
      %3581 = vmatmul.bf16.gmra.mxu0 %v1592
      %v3582 = vpop.f32.mrf.mxu0
      %v3583 = vadd.f32 %v3549, %v3582
      %v3584 = vpop.f32.mrf.mxu0
      %v3585 = vadd.f32 %v3551, %v3584
      %3586 = vmatmul.bf16.gmra.mxu0 %v1596
      %v3587 = vpop.f32.mrf.mxu0
      %v3588 = vadd.f32 %v3554, %v3587
      %v3589 = vpop.f32.mrf.mxu0
      %v3590 = vadd.f32 %v3556, %v3589
      %3591 = vmatmul.bf16.gmra.mxu0 %v1600
      %v3592 = vpop.f32.mrf.mxu0
      %v3593 = vadd.f32 %v3559, %v3592
      %v3594 = vpop.f32.mrf.mxu0
      %v3595 = vadd.f32 %v3561, %v3594
      %3596 = vmatmul.bf16.gmra.mxu0 %v1604
      %v3597 = vpop.f32.mrf.mxu0
      %v3598 = vadd.f32 %v3564, %v3597
      %v3599 = vpop.f32.mrf.mxu0
      %v3600 = vadd.f32 %v3566, %v3599
      %3601 = vmatmul.bf16.gmra.mxu0 %v1608
      %v3602 = vpop.f32.mrf.mxu0
      %v3603 = vadd.f32 %v3569, %v3602
      %v3604 = vpop.f32.mrf.mxu0
      %v3605 = vadd.f32 %v3571, %v3604
      %3606 = vdwg.mxu0
      %3607 = vmatpush.bf16.msra.mxu0 %v3172
      %3608 = vmatpush.bf16.msra.mxu0 %v3169
      %3609 = vmatpush.bf16.msra.mxu0 %v3166
      %3610 = vmatpush.bf16.msra.mxu0 %v3163
      %3611 = vmatpush.bf16.msra.mxu0 %v3160
      %3612 = vmatpush.bf16.msra.mxu0 %v3157
      %3613 = vmatpush.bf16.msra.mxu0 %v3154
      %3614 = vmatpush.bf16.msra.mxu0 %v3151
      %3615 = vmatmul.bf16.gmra.mxu0 %v1593
      %v3616 = vpop.f32.mrf.mxu0
      %v3617 = vadd.f32 %v3583, %v3616
      %v3618 = vpop.f32.mrf.mxu0
      %v3619 = vadd.f32 %v3585, %v3618
      %3620 = vmatmul.bf16.gmra.mxu0 %v1597
      %v3621 = vpop.f32.mrf.mxu0
      %v3622 = vadd.f32 %v3588, %v3621
      %v3623 = vpop.f32.mrf.mxu0
      %v3624 = vadd.f32 %v3590, %v3623
      %3625 = vmatmul.bf16.gmra.mxu0 %v1601
      %v3626 = vpop.f32.mrf.mxu0
      %v3627 = vadd.f32 %v3593, %v3626
      %v3628 = vpop.f32.mrf.mxu0
      %v3629 = vadd.f32 %v3595, %v3628
      %3630 = vmatmul.bf16.gmra.mxu0 %v1605
      %v3631 = vpop.f32.mrf.mxu0
      %v3632 = vadd.f32 %v3598, %v3631
      %v3633 = vpop.f32.mrf.mxu0
      %v3634 = vadd.f32 %v3600, %v3633
      %3635 = vmatmul.bf16.gmra.mxu0 %v1609
      %v3636 = vpop.f32.mrf.mxu0
      %v3637 = vadd.f32 %v3603, %v3636
      %v3638 = vpop.f32.mrf.mxu0
      %v3639 = vadd.f32 %v3605, %v3638
      %3640 = vdwg.mxu0
      %3641 = vmatpush.bf16.msra.mxu0 0
      %3642 = vmatpush.bf16.msra.mxu0 0
      %3643 = vmatpush.bf16.msra.mxu0 0
      %3644 = vmatpush.bf16.msra.mxu0 0
      %3645 = vmatpush.bf16.msra.mxu0 0
      %3646 = vmatpush.bf16.msra.mxu0 0
      %3647 = vmatpush.bf16.msra.mxu0 %v3178
      %3648 = vmatpush.bf16.msra.mxu0 %v3175
      %3649 = vmatmul.bf16.gmra.mxu0 %v3257
      %v3650 = vpop.f32.mrf.mxu0
      %v3651 = vadd.f32 %v3617, %v3650
      %v3652 = vpop.f32.mrf.mxu0
      %v3653 = vadd.f32 %v3619, %v3652
      %3654 = vmatmul.bf16.gmra.mxu0 %v3259
      %v3655 = vpop.f32.mrf.mxu0
      %v3656 = vadd.f32 %v3622, %v3655
      %v3657 = vpop.f32.mrf.mxu0
      %v3658 = vadd.f32 %v3624, %v3657
      %3659 = vmatmul.bf16.gmra.mxu0 %v3261
      %v3660 = vpop.f32.mrf.mxu0
      %v3661 = vadd.f32 %v3627, %v3660
      %v3662 = vpop.f32.mrf.mxu0
      %v3663 = vadd.f32 %v3629, %v3662
      %3664 = vmatmul.bf16.gmra.mxu0 %v3263
      %v3665 = vpop.f32.mrf.mxu0
      %v3666 = vadd.f32 %v3632, %v3665
      %v3667 = vpop.f32.mrf.mxu0
      %v3668 = vadd.f32 %v3634, %v3667
      %3669 = vmatmul.bf16.gmra.mxu0 %v3265
      %v3670 = vpop.f32.mrf.mxu0
      %v3671 = vadd.f32 %v3637, %v3670
      %v3672 = vpop.f32.mrf.mxu0
      %v3673 = vadd.f32 %v3639, %v3672
      %3674 = vdwg.mxu0
      %s3675 = scalar_lea.vmem %s5, 1248
      %v3676 = vld [vmem:[%s3675] sm:$0xff]
      %v3677 = vld [vmem:[%s3675 + $0x8] sm:$0xf]
      %v3678 = vld [vmem:[%s3675 + $0xc] sm:$0xff]
      %v3679 = vld [vmem:[%s3675 + $0x14] sm:$0xf]
      %v3680 = vld [vmem:[%s3675 + $0x18] sm:$0xff]
      %v3681 = vld [vmem:[%s3675 + $0x20] sm:$0xf]
      %v3682 = vld [vmem:[%s3675 + $0x24] sm:$0xff]
      %v3683 = vld [vmem:[%s3675 + $0x2c] sm:$0xf]
      %v3684 = vld [vmem:[%s3675 + $0x30] sm:$0xff]
      %v3685 = vld [vmem:[%s3675 + $0x38] sm:$0xf]
      %v3686 = vld [vmem:[%s3675 + $0x3c] sm:$0xff]
      %v3687 = vld [vmem:[%s3675 + $0x44] sm:$0xf]
      %v3688 = vld [vmem:[%s3675 + $0x48] sm:$0xff]
      %v3689 = vld [vmem:[%s3675 + $0x50] sm:$0xf]
      %v3690 = vld [vmem:[%s3675 + $0x54] sm:$0xff]
      %v3691 = vld [vmem:[%s3675 + $0x5c] sm:$0xf]
      %v3692 = vld [vmem:[%s3675 + $0x60] sm:$0xff]
      %v3693 = vld [vmem:[%s3675 + $0x68] sm:$0xf]
      %v3694 = vld [vmem:[%s3675 + $0x6c] sm:$0xff]
      %v3695 = vld [vmem:[%s3675 + $0x74] sm:$0xf]
      %v3696 = vld [vmem:[%s3675 + $0x78] sm:$0xff]
      %v3697 = vld [vmem:[%s3675 + $0x80] sm:$0xf]
      %v3698 = vld [vmem:[%s3675 + $0x84] sm:$0xff]
      %v3699 = vld [vmem:[%s3675 + $0x8c] sm:$0xf]
      %v3700 = vld [vmem:[%s3675 + $0x90] sm:$0xff]
      %v3701 = vld [vmem:[%s3675 + $0x98] sm:$0xf]
      %v3702 = vld [vmem:[%s3675 + $0x9c] sm:$0xff]
      %v3703 = vld [vmem:[%s3675 + $0xa4] sm:$0xf]
      %v3704 = vld [vmem:[%s3675 + $0xa8] sm:$0xff]
      %v3705 = vld [vmem:[%s3675 + $0xb0] sm:$0xf]
      %v3706 = vld [vmem:[%s3675 + $0xb4] sm:$0xff]
      %v3707 = vld [vmem:[%s3675 + $0xbc] sm:$0xf]
      %v3708 = vld [vmem:[%s3675 + $0xc0] sm:$0xff]
      %v3709 = vld [vmem:[%s3675 + $0xc8] sm:$0xf]
      %v3710 = vld [vmem:[%s3675 + $0xcc] sm:$0xff]
      %v3711 = vld [vmem:[%s3675 + $0xd4] sm:$0xf]
      %v3712 = vld [vmem:[%s3675 + $0xd8] sm:$0xff]
      %v3713 = vld [vmem:[%s3675 + $0xe0] sm:$0xf]
      %v3714 = vld [vmem:[%s3675 + $0xe4] sm:$0xff]
      %v3715 = vld [vmem:[%s3675 + $0xec] sm:$0xf]
      %v3716 = vld [vmem:[%s3675 + $0xf0] sm:$0xff]
      %v3717 = vld [vmem:[%s3675 + $0xf8] sm:$0xf]
      %v3718 = vld [vmem:[%s3675 + $0xfc] sm:$0xff]
      %v3719 = vld [vmem:[%s3675 + $0x104] sm:$0xf]
      %v3720 = vld [vmem:[%s3675 + $0x108] sm:$0xff]
      %v3721 = vld [vmem:[%s3675 + $0x110] sm:$0xf]
      %v3722 = vld [vmem:[%s3675 + $0x114] sm:$0xff]
      %v3723 = vld [vmem:[%s3675 + $0x11c] sm:$0xf]
      %v3724 = vld [vmem:[%s3675 + $0x120] sm:$0xff]
      %v3725 = vld [vmem:[%s3675 + $0x128] sm:$0xf]
      %v3726 = vld [vmem:[%s3675 + $0x12c] sm:$0xff]
      %v3727 = vld [vmem:[%s3675 + $0x134] sm:$0xf]
      %v3728 = vld [vmem:[%s3675 + $0x138] sm:$0xff]
      %v3729 = vld [vmem:[%s3675 + $0x140] sm:$0xf]
      %v3730 = vld [vmem:[%s3675 + $0x144] sm:$0xff]
      %v3731 = vld [vmem:[%s3675 + $0x14c] sm:$0xf]
      %v3732 = vld [vmem:[%s3675 + $0x150] sm:$0xff]
      %v3733 = vld [vmem:[%s3675 + $0x158] sm:$0xf]
      %v3734 = vld [vmem:[%s3675 + $0x15c] sm:$0xff]
      %v3735 = vld [vmem:[%s3675 + $0x164] sm:$0xf]
      %v3736 = vld [vmem:[%s3675 + $0x168] sm:$0xff]
      %v3737 = vld [vmem:[%s3675 + $0x170] sm:$0xf]
      %v3738 = vld [vmem:[%s3675 + $0x174] sm:$0xff]
      %v3739 = vld [vmem:[%s3675 + $0x17c] sm:$0xf]
      %v3740 = vld [vmem:[%s3675 + $0x180] sm:$0xff]
      %v3741 = vld [vmem:[%s3675 + $0x188] sm:$0xf]
      %v3742 = vld [vmem:[%s3675 + $0x18c] sm:$0xff]
      %v3743 = vld [vmem:[%s3675 + $0x194] sm:$0xf]
      %v3744 = vld [vmem:[%s3675 + $0x198] sm:$0xff]
      %v3745 = vld [vmem:[%s3675 + $0x1a0] sm:$0xf]
      %v3746 = vld [vmem:[%s3675 + $0x1a4] sm:$0xff]
      %v3747 = vld [vmem:[%s3675 + $0x1ac] sm:$0xf]
      %v3748 = vld [vmem:[%s3675 + $0x1b0] sm:$0xff]
      %v3749 = vld [vmem:[%s3675 + $0x1b8] sm:$0xf]
      %v3750 = vld [vmem:[%s3675 + $0x1bc] sm:$0xff]
      %v3751 = vld [vmem:[%s3675 + $0x1c4] sm:$0xf]
      %v3752 = vld [vmem:[%s3675 + $0x1c8] sm:$0xff]
      %v3753 = vld [vmem:[%s3675 + $0x1d0] sm:$0xf]
      %v3754 = vld [vmem:[%s3675 + $0x1d4] sm:$0xff]
      %v3755 = vld [vmem:[%s3675 + $0x1dc] sm:$0xf]
      %v3756 = vld [vmem:[%s3675 + $0x1e0] sm:$0xff]
      %v3757 = vld [vmem:[%s3675 + $0x1e8] sm:$0xf]
      %v3758 = vld [vmem:[%s3675 + $0x1ec] sm:$0xff]
      %v3759 = vld [vmem:[%s3675 + $0x1f4] sm:$0xf]
      %v3760 = vld [vmem:[%s3675 + $0x1f8] sm:$0xff]
      %v3761 = vld [vmem:[%s3675 + $0x200] sm:$0xf]
      %v3762 = vld [vmem:[%s3675 + $0x204] sm:$0xff]
      %v3763 = vld [vmem:[%s3675 + $0x20c] sm:$0xf]
      %v3764 = vld [vmem:[%s3675 + $0x210] sm:$0xff]
      %v3765 = vld [vmem:[%s3675 + $0x218] sm:$0xf]
      %v3766 = vld [vmem:[%s3675 + $0x21c] sm:$0xff]
      %v3767 = vld [vmem:[%s3675 + $0x224] sm:$0xf]
      %v3768 = vld [vmem:[%s3675 + $0x228] sm:$0xff]
      %v3769 = vld [vmem:[%s3675 + $0x230] sm:$0xf]
      %v3770 = vld [vmem:[%s3675 + $0x234] sm:$0xff]
      %v3771 = vld [vmem:[%s3675 + $0x23c] sm:$0xf]
      %v3772 = vld [vmem:[%s3675 + $0x240] sm:$0xff]
      %v3773 = vld [vmem:[%s3675 + $0x248] sm:$0xf]
      %v3774 = vld [vmem:[%s3675 + $0x24c] sm:$0xff]
      %v3775 = vld [vmem:[%s3675 + $0x254] sm:$0xf]
      %v3776 = vld [vmem:[%s3675 + $0x258] sm:$0xff]
      %v3777 = vld [vmem:[%s3675 + $0x260] sm:$0xf]
      %v3778 = vld [vmem:[%s3675 + $0x264] sm:$0xff]
      %v3779 = vld [vmem:[%s3675 + $0x26c] sm:$0xf]
      %vm3801 = vcmask 1046528
      %v3802 = vrot.slane %v1591, 1
      %v3803 = vrot.slane %v1595, 1
      %v3804 = vsel %vm3801, %v3802, %v3803
      %v3805 = vrot.slane %v1592, 1
      %v3806 = vrot.slane %v1596, 1
      %v3807 = vsel %vm3801, %v3805, %v3806
      %v3808 = vrot.slane %v1593, 1
      %v3809 = vrot.slane %v1597, 1
      %v3810 = vsel %vm3801, %v3808, %v3809
      %v3811 = vrot.slane %v1594, 1
      %v3812 = vrot.slane %v1598, 1
      %v3813 = vsel %vm3801, %v3811, %v3812
      %v3814 = vrot.slane %v1599, 1
      %v3815 = vsel %vm3801, %v3803, %v3814
      %v3816 = vrot.slane %v1600, 1
      %v3817 = vsel %vm3801, %v3806, %v3816
      %v3818 = vrot.slane %v1601, 1
      %v3819 = vsel %vm3801, %v3809, %v3818
      %v3820 = vrot.slane %v1602, 1
      %v3821 = vsel %vm3801, %v3812, %v3820
      %v3822 = vrot.slane %v1603, 1
      %v3823 = vsel %vm3801, %v3814, %v3822
      %v3824 = vrot.slane %v1604, 1
      %v3825 = vsel %vm3801, %v3816, %v3824
      %v3826 = vrot.slane %v1605, 1
      %v3827 = vsel %vm3801, %v3818, %v3826
      %v3828 = vrot.slane %v1606, 1
      %v3829 = vsel %vm3801, %v3820, %v3828
      %v3830 = vrot.slane %v1607, 1
      %v3831 = vsel %vm3801, %v3822, %v3830
      %v3832 = vrot.slane %v1608, 1
      %v3833 = vsel %vm3801, %v3824, %v3832
      %v3834 = vrot.slane %v1609, 1
      %v3835 = vsel %vm3801, %v3826, %v3834
      %v3836 = vrot.slane %v1610, 1
      %v3837 = vsel %vm3801, %v3828, %v3836
      %v3838 = vrot.slane %v1611, 1
      %v3839 = vsel %vm3801, %v3830, %v3838
      %v3840 = vsel %vm3801, %v3832, %v3838
      %v3841 = vsel %vm3801, %v3834, %v3838
      %v3842 = vsel %vm3801, %v3836, %v3838
      %v3962 = vunpack.c.l.b16 %v3676
      %v3963 = vunpack.c.h.b16 %v3676
      %v3964 = vunpack.c.l.b16 %v3677
      %v3965 = vunpack.c.l.b16 %v3678
      %v3966 = vunpack.c.h.b16 %v3678
      %v3967 = vunpack.c.l.b16 %v3679
      %v3968 = vunpack.c.l.b16 %v3680
      %v3969 = vunpack.c.h.b16 %v3680
      %v3970 = vunpack.c.l.b16 %v3681
      %v3971 = vunpack.c.l.b16 %v3682
      %v3972 = vunpack.c.h.b16 %v3682
      %v3973 = vunpack.c.l.b16 %v3683
      %v3974 = vunpack.c.l.b16 %v3684
      %v3975 = vunpack.c.h.b16 %v3684
      %v3976 = vunpack.c.l.b16 %v3685
      %v3977 = vunpack.c.l.b16 %v3686
      %v3978 = vunpack.c.h.b16 %v3686
      %v3979 = vunpack.c.l.b16 %v3687
      %v3980 = vunpack.c.l.b16 %v3688
      %v3981 = vunpack.c.h.b16 %v3688
      %v3982 = vunpack.c.l.b16 %v3689
      %v3983 = vunpack.c.l.b16 %v3690
      %v3984 = vunpack.c.h.b16 %v3690
      %v3985 = vunpack.c.l.b16 %v3691
      %v3986 = vunpack.c.l.b16 %v3692
      %v3987 = vunpack.c.h.b16 %v3692
      %v3988 = vunpack.c.l.b16 %v3693
      %v3989 = vunpack.c.l.b16 %v3694
      %v3990 = vunpack.c.h.b16 %v3694
      %v3991 = vunpack.c.l.b16 %v3695
      %v3992 = vunpack.c.l.b16 %v3696
      %v3993 = vunpack.c.h.b16 %v3696
      %v3994 = vunpack.c.l.b16 %v3697
      %v3995 = vunpack.c.l.b16 %v3698
      %v3996 = vunpack.c.h.b16 %v3698
      %v3997 = vunpack.c.l.b16 %v3699
      %v3998 = vunpack.c.l.b16 %v3700
      %v3999 = vunpack.c.h.b16 %v3700
      %v4000 = vunpack.c.l.b16 %v3701
      %v4001 = vunpack.c.l.b16 %v3702
      %v4002 = vunpack.c.h.b16 %v3702
      %v4003 = vunpack.c.l.b16 %v3703
      %v4004 = vunpack.c.l.b16 %v3704
      %v4005 = vunpack.c.h.b16 %v3704
      %v4006 = vunpack.c.l.b16 %v3705
      %v4007 = vunpack.c.l.b16 %v3706
      %v4008 = vunpack.c.h.b16 %v3706
      %v4009 = vunpack.c.l.b16 %v3707
      %v4010 = vunpack.c.l.b16 %v3708
      %v4011 = vunpack.c.h.b16 %v3708
      %v4012 = vunpack.c.l.b16 %v3709
      %v4013 = vunpack.c.l.b16 %v3710
      %v4014 = vunpack.c.h.b16 %v3710
      %v4015 = vunpack.c.l.b16 %v3711
      %v4016 = vunpack.c.l.b16 %v3712
      %v4017 = vunpack.c.h.b16 %v3712
      %v4018 = vunpack.c.l.b16 %v3713
      %v4019 = vunpack.c.l.b16 %v3714
      %v4020 = vunpack.c.h.b16 %v3714
      %v4021 = vunpack.c.l.b16 %v3715
      %v4022 = vunpack.c.l.b16 %v3716
      %v4023 = vunpack.c.h.b16 %v3716
      %v4024 = vunpack.c.l.b16 %v3717
      %v4025 = vunpack.c.l.b16 %v3718
      %v4026 = vunpack.c.h.b16 %v3718
      %v4027 = vunpack.c.l.b16 %v3719
      %v4028 = vunpack.c.l.b16 %v3720
      %v4029 = vunpack.c.h.b16 %v3720
      %v4030 = vunpack.c.l.b16 %v3721
      %v4031 = vunpack.c.l.b16 %v3722
      %v4032 = vunpack.c.h.b16 %v3722
      %v4033 = vunpack.c.l.b16 %v3723
      %v4034 = vunpack.c.l.b16 %v3724
      %v4035 = vunpack.c.h.b16 %v3724
      %v4036 = vunpack.c.l.b16 %v3725
      %v4037 = vunpack.c.l.b16 %v3726
      %v4038 = vunpack.c.h.b16 %v3726
      %v4039 = vunpack.c.l.b16 %v3727
      %v4040 = vunpack.c.l.b16 %v3728
      %v4041 = vunpack.c.h.b16 %v3728
      %v4042 = vunpack.c.l.b16 %v3729
      %v4043 = vunpack.c.l.b16 %v3730
      %v4044 = vunpack.c.h.b16 %v3730
      %v4045 = vunpack.c.l.b16 %v3731
      %v4046 = vunpack.c.l.b16 %v3732
      %v4047 = vunpack.c.h.b16 %v3732
      %v4048 = vunpack.c.l.b16 %v3733
      %v4049 = vunpack.c.l.b16 %v3734
      %v4050 = vunpack.c.h.b16 %v3734
      %v4051 = vunpack.c.l.b16 %v3735
      %v4052 = vunpack.c.l.b16 %v3736
      %v4053 = vunpack.c.h.b16 %v3736
      %v4054 = vunpack.c.l.b16 %v3737
      %v4055 = vunpack.c.l.b16 %v3738
      %v4056 = vunpack.c.h.b16 %v3738
      %v4057 = vunpack.c.l.b16 %v3739
      %v4058 = vunpack.c.l.b16 %v3740
      %v4059 = vunpack.c.h.b16 %v3740
      %v4060 = vunpack.c.l.b16 %v3741
      %v4061 = vunpack.c.l.b16 %v3742
      %v4062 = vunpack.c.h.b16 %v3742
      %v4063 = vunpack.c.l.b16 %v3743
      %v4064 = vunpack.c.l.b16 %v3744
      %v4065 = vunpack.c.h.b16 %v3744
      %v4066 = vunpack.c.l.b16 %v3745
      %v4067 = vunpack.c.l.b16 %v3746
      %v4068 = vunpack.c.h.b16 %v3746
      %v4069 = vunpack.c.l.b16 %v3747
      %v4070 = vunpack.c.l.b16 %v3748
      %v4071 = vunpack.c.h.b16 %v3748
      %v4072 = vunpack.c.l.b16 %v3749
      %v4073 = vunpack.c.l.b16 %v3750
      %v4074 = vunpack.c.h.b16 %v3750
      %v4075 = vunpack.c.l.b16 %v3751
      %v4076 = vunpack.c.l.b16 %v3752
      %v4077 = vunpack.c.h.b16 %v3752
      %v4078 = vunpack.c.l.b16 %v3753
      %v4079 = vunpack.c.l.b16 %v3754
      %v4080 = vunpack.c.h.b16 %v3754
      %v4081 = vunpack.c.l.b16 %v3755
      %v4082 = vunpack.c.l.b16 %v3756
      %v4083 = vunpack.c.h.b16 %v3756
      %v4084 = vunpack.c.l.b16 %v3757
      %v4085 = vunpack.c.l.b16 %v3758
      %v4086 = vunpack.c.h.b16 %v3758
      %v4087 = vunpack.c.l.b16 %v3759
      %v4088 = vunpack.c.l.b16 %v3760
      %v4089 = vunpack.c.h.b16 %v3760
      %v4090 = vunpack.c.l.b16 %v3761
      %v4091 = vunpack.c.l.b16 %v3762
      %v4092 = vunpack.c.h.b16 %v3762
      %v4093 = vunpack.c.l.b16 %v3763
      %v4094 = vunpack.c.l.b16 %v3764
      %v4095 = vunpack.c.h.b16 %v3764
      %v4096 = vunpack.c.l.b16 %v3765
      %v4097 = vunpack.c.l.b16 %v3766
      %v4098 = vunpack.c.h.b16 %v3766
      %v4099 = vunpack.c.l.b16 %v3767
      %v4100 = vunpack.c.l.b16 %v3768
      %v4101 = vunpack.c.h.b16 %v3768
      %v4102 = vunpack.c.l.b16 %v3769
      %v4103 = vunpack.c.l.b16 %v3770
      %v4104 = vunpack.c.h.b16 %v3770
      %v4105 = vunpack.c.l.b16 %v3771
      %v4106 = vunpack.c.l.b16 %v3772
      %v4107 = vunpack.c.h.b16 %v3772
      %v4108 = vunpack.c.l.b16 %v3773
      %v4109 = vunpack.c.l.b16 %v3774
      %v4110 = vunpack.c.h.b16 %v3774
      %v4111 = vunpack.c.l.b16 %v3775
      %v4112 = vunpack.c.l.b16 %v3776
      %v4113 = vunpack.c.h.b16 %v3776
      %v4114 = vunpack.c.l.b16 %v3777
      %v4115 = vunpack.c.l.b16 %v3778
      %v4116 = vunpack.c.h.b16 %v3778
      %v4117 = vunpack.c.l.b16 %v3779
      %v4118 = vpack.c.b16 %v3965, %v3962
      %v4119 = vpack.c.b16 %v3966, %v3963
      %v4120 = vpack.c.b16 %v3967, %v3964
      %v4121 = vpack.c.b16 %v3971, %v3968
      %v4122 = vpack.c.b16 %v3972, %v3969
      %v4123 = vpack.c.b16 %v3973, %v3970
      %v4124 = vpack.c.b16 %v3977, %v3974
      %v4125 = vpack.c.b16 %v3978, %v3975
      %v4126 = vpack.c.b16 %v3979, %v3976
      %v4127 = vpack.c.b16 %v3983, %v3980
      %v4128 = vpack.c.b16 %v3984, %v3981
      %v4129 = vpack.c.b16 %v3985, %v3982
      %v4130 = vpack.c.b16 %v3989, %v3986
      %v4131 = vpack.c.b16 %v3990, %v3987
      %v4132 = vpack.c.b16 %v3991, %v3988
      %v4133 = vpack.c.b16 %v3995, %v3992
      %v4134 = vpack.c.b16 %v3996, %v3993
      %v4135 = vpack.c.b16 %v3997, %v3994
      %v4136 = vpack.c.b16 %v4001, %v3998
      %v4137 = vpack.c.b16 %v4002, %v3999
      %v4138 = vpack.c.b16 %v4003, %v4000
      %v4139 = vpack.c.b16 %v4007, %v4004
      %v4140 = vpack.c.b16 %v4008, %v4005
      %v4141 = vpack.c.b16 %v4009, %v4006
      %v4142 = vpack.c.b16 %v4013, %v4010
      %v4143 = vpack.c.b16 %v4014, %v4011
      %v4144 = vpack.c.b16 %v4015, %v4012
      %v4145 = vpack.c.b16 %v4019, %v4016
      %v4146 = vpack.c.b16 %v4020, %v4017
      %v4147 = vpack.c.b16 %v4021, %v4018
      %v4148 = vpack.c.b16 %v4025, %v4022
      %v4149 = vpack.c.b16 %v4026, %v4023
      %v4150 = vpack.c.b16 %v4027, %v4024
      %v4151 = vpack.c.b16 %v4031, %v4028
      %v4152 = vpack.c.b16 %v4032, %v4029
      %v4153 = vpack.c.b16 %v4033, %v4030
      %v4154 = vpack.c.b16 %v4037, %v4034
      %v4155 = vpack.c.b16 %v4038, %v4035
      %v4156 = vpack.c.b16 %v4039, %v4036
      %v4157 = vpack.c.b16 %v4043, %v4040
      %v4158 = vpack.c.b16 %v4044, %v4041
      %v4159 = vpack.c.b16 %v4045, %v4042
      %v4160 = vpack.c.b16 %v4049, %v4046
      %v4161 = vpack.c.b16 %v4050, %v4047
      %v4162 = vpack.c.b16 %v4051, %v4048
      %v4163 = vpack.c.b16 %v4055, %v4052
      %v4164 = vpack.c.b16 %v4056, %v4053
      %v4165 = vpack.c.b16 %v4057, %v4054
      %v4166 = vpack.c.b16 %v4061, %v4058
      %v4167 = vpack.c.b16 %v4062, %v4059
      %v4168 = vpack.c.b16 %v4063, %v4060
      %v4169 = vpack.c.b16 %v4067, %v4064
      %v4170 = vpack.c.b16 %v4068, %v4065
      %v4171 = vpack.c.b16 %v4069, %v4066
      %v4172 = vpack.c.b16 %v4073, %v4070
      %v4173 = vpack.c.b16 %v4074, %v4071
      %v4174 = vpack.c.b16 %v4075, %v4072
      %v4175 = vpack.c.b16 %v4079, %v4076
      %v4176 = vpack.c.b16 %v4080, %v4077
      %v4177 = vpack.c.b16 %v4081, %v4078
      %v4178 = vpack.c.b16 %v4085, %v4082
      %v4179 = vpack.c.b16 %v4086, %v4083
      %v4180 = vpack.c.b16 %v4087, %v4084
      %v4181 = vpack.c.b16 %v4091, %v4088
      %v4182 = vpack.c.b16 %v4092, %v4089
      %v4183 = vpack.c.b16 %v4093, %v4090
      %v4184 = vpack.c.b16 %v4097, %v4094
      %v4185 = vpack.c.b16 %v4098, %v4095
      %v4186 = vpack.c.b16 %v4099, %v4096
      %v4187 = vpack.c.b16 %v4103, %v4100
      %v4188 = vpack.c.b16 %v4104, %v4101
      %v4189 = vpack.c.b16 %v4105, %v4102
      %v4190 = vpack.c.b16 %v4109, %v4106
      %v4191 = vpack.c.b16 %v4110, %v4107
      %v4192 = vpack.c.b16 %v4111, %v4108
      %v4193 = vpack.c.b16 %v4115, %v4112
      %v4194 = vpack.c.b16 %v4116, %v4113
      %v4195 = vpack.c.b16 %v4117, %v4114
      %v4275 = vsel %vm2417, %v3813, 0
      %v4278 = vsel %vm2417, %v3821, 0
      %v4281 = vsel %vm2417, %v3829, 0
      %v4284 = vsel %vm2417, %v3837, 0
      %v4287 = vsel %vm2417, %v3842, 0
      %4289 = vmatpush.bf16.msra.mxu0 %v4139
      %4290 = vmatpush.bf16.msra.mxu0 %v4136
      %4291 = vmatpush.bf16.msra.mxu0 %v4133
      %4292 = vmatpush.bf16.msra.mxu0 %v4130
      %4293 = vmatpush.bf16.msra.mxu0 %v4127
      %4294 = vmatpush.bf16.msra.mxu0 %v4124
      %4295 = vmatpush.bf16.msra.mxu0 %v4121
      %4296 = vmatpush.bf16.msra.mxu0 %v4118
      %4297 = vmatmul.bf16.gmra.mxu0 %v3804
      %v4298 = vpop.f32.mrf.mxu0
      %v4299 = vadd.f32 0.0, %v4298
      %v4300 = vpop.f32.mrf.mxu0
      %v4301 = vadd.f32 0.0, %v4300
      %4302 = vmatmul.bf16.gmra.mxu0 %v3815
      %v4303 = vpop.f32.mrf.mxu0
      %v4304 = vadd.f32 0.0, %v4303
      %v4305 = vpop.f32.mrf.mxu0
      %v4306 = vadd.f32 0.0, %v4305
      %4307 = vmatmul.bf16.gmra.mxu0 %v3823
      %v4308 = vpop.f32.mrf.mxu0
      %v4309 = vadd.f32 0.0, %v4308
      %v4310 = vpop.f32.mrf.mxu0
      %v4311 = vadd.f32 0.0, %v4310
      %4312 = vmatmul.bf16.gmra.mxu0 %v3831
      %v4313 = vpop.f32.mrf.mxu0
      %v4314 = vadd.f32 0.0, %v4313
      %v4315 = vpop.f32.mrf.mxu0
      %v4316 = vadd.f32 0.0, %v4315
      %4317 = vmatmul.bf16.gmra.mxu0 %v3839
      %v4318 = vpop.f32.mrf.mxu0
      %v4319 = vadd.f32 0.0, %v4318
      %v4320 = vpop.f32.mrf.mxu0
      %v4321 = vadd.f32 0.0, %v4320
      %4322 = vdwg.mxu0
      %4323 = vmatpush.bf16.msra.mxu0 %v4163
      %4324 = vmatpush.bf16.msra.mxu0 %v4160
      %4325 = vmatpush.bf16.msra.mxu0 %v4157
      %4326 = vmatpush.bf16.msra.mxu0 %v4154
      %4327 = vmatpush.bf16.msra.mxu0 %v4151
      %4328 = vmatpush.bf16.msra.mxu0 %v4148
      %4329 = vmatpush.bf16.msra.mxu0 %v4145
      %4330 = vmatpush.bf16.msra.mxu0 %v4142
      %4331 = vmatmul.bf16.gmra.mxu0 %v3807
      %v4332 = vpop.f32.mrf.mxu0
      %v4333 = vadd.f32 %v4299, %v4332
      %v4334 = vpop.f32.mrf.mxu0
      %v4335 = vadd.f32 %v4301, %v4334
      %4336 = vmatmul.bf16.gmra.mxu0 %v3817
      %v4337 = vpop.f32.mrf.mxu0
      %v4338 = vadd.f32 %v4304, %v4337
      %v4339 = vpop.f32.mrf.mxu0
      %v4340 = vadd.f32 %v4306, %v4339
      %4341 = vmatmul.bf16.gmra.mxu0 %v3825
      %v4342 = vpop.f32.mrf.mxu0
      %v4343 = vadd.f32 %v4309, %v4342
      %v4344 = vpop.f32.mrf.mxu0
      %v4345 = vadd.f32 %v4311, %v4344
      %4346 = vmatmul.bf16.gmra.mxu0 %v3833
      %v4347 = vpop.f32.mrf.mxu0
      %v4348 = vadd.f32 %v4314, %v4347
      %v4349 = vpop.f32.mrf.mxu0
      %v4350 = vadd.f32 %v4316, %v4349
      %4351 = vmatmul.bf16.gmra.mxu0 %v3840
      %v4352 = vpop.f32.mrf.mxu0
      %v4353 = vadd.f32 %v4319, %v4352
      %v4354 = vpop.f32.mrf.mxu0
      %v4355 = vadd.f32 %v4321, %v4354
      %4356 = vdwg.mxu0
      %4357 = vmatpush.bf16.msra.mxu0 %v4187
      %4358 = vmatpush.bf16.msra.mxu0 %v4184
      %4359 = vmatpush.bf16.msra.mxu0 %v4181
      %4360 = vmatpush.bf16.msra.mxu0 %v4178
      %4361 = vmatpush.bf16.msra.mxu0 %v4175
      %4362 = vmatpush.bf16.msra.mxu0 %v4172
      %4363 = vmatpush.bf16.msra.mxu0 %v4169
      %4364 = vmatpush.bf16.msra.mxu0 %v4166
      %4365 = vmatmul.bf16.gmra.mxu0 %v3810
      %v4366 = vpop.f32.mrf.mxu0
      %v4367 = vadd.f32 %v4333, %v4366
      %v4368 = vpop.f32.mrf.mxu0
      %v4369 = vadd.f32 %v4335, %v4368
      %4370 = vmatmul.bf16.gmra.mxu0 %v3819
      %v4371 = vpop.f32.mrf.mxu0
      %v4372 = vadd.f32 %v4338, %v4371
      %v4373 = vpop.f32.mrf.mxu0
      %v4374 = vadd.f32 %v4340, %v4373
      %4375 = vmatmul.bf16.gmra.mxu0 %v3827
      %v4376 = vpop.f32.mrf.mxu0
      %v4377 = vadd.f32 %v4343, %v4376
      %v4378 = vpop.f32.mrf.mxu0
      %v4379 = vadd.f32 %v4345, %v4378
      %4380 = vmatmul.bf16.gmra.mxu0 %v3835
      %v4381 = vpop.f32.mrf.mxu0
      %v4382 = vadd.f32 %v4348, %v4381
      %v4383 = vpop.f32.mrf.mxu0
      %v4384 = vadd.f32 %v4350, %v4383
      %4385 = vmatmul.bf16.gmra.mxu0 %v3841
      %v4386 = vpop.f32.mrf.mxu0
      %v4387 = vadd.f32 %v4353, %v4386
      %v4388 = vpop.f32.mrf.mxu0
      %v4389 = vadd.f32 %v4355, %v4388
      %4390 = vdwg.mxu0
      %4391 = vmatpush.bf16.msra.mxu0 0
      %4392 = vmatpush.bf16.msra.mxu0 0
      %4393 = vmatpush.bf16.msra.mxu0 0
      %4394 = vmatpush.bf16.msra.mxu0 0
      %4395 = vmatpush.bf16.msra.mxu0 0
      %4396 = vmatpush.bf16.msra.mxu0 0
      %4397 = vmatpush.bf16.msra.mxu0 %v4193
      %4398 = vmatpush.bf16.msra.mxu0 %v4190
      %4399 = vmatmul.bf16.gmra.mxu0 %v4275
      %v4400 = vpop.f32.mrf.mxu0
      %v4401 = vadd.f32 %v4367, %v4400
      %v4402 = vpop.f32.mrf.mxu0
      %v4403 = vadd.f32 %v4369, %v4402
      %4404 = vmatmul.bf16.gmra.mxu0 %v4278
      %v4405 = vpop.f32.mrf.mxu0
      %v4406 = vadd.f32 %v4372, %v4405
      %v4407 = vpop.f32.mrf.mxu0
      %v4408 = vadd.f32 %v4374, %v4407
      %4409 = vmatmul.bf16.gmra.mxu0 %v4281
      %v4410 = vpop.f32.mrf.mxu0
      %v4411 = vadd.f32 %v4377, %v4410
      %v4412 = vpop.f32.mrf.mxu0
      %v4413 = vadd.f32 %v4379, %v4412
      %4414 = vmatmul.bf16.gmra.mxu0 %v4284
      %v4415 = vpop.f32.mrf.mxu0
      %v4416 = vadd.f32 %v4382, %v4415
      %v4417 = vpop.f32.mrf.mxu0
      %v4418 = vadd.f32 %v4384, %v4417
      %4419 = vmatmul.bf16.gmra.mxu0 %v4287
      %v4420 = vpop.f32.mrf.mxu0
      %v4421 = vadd.f32 %v4387, %v4420
      %v4422 = vpop.f32.mrf.mxu0
      %v4423 = vadd.f32 %v4389, %v4422
      %4424 = vdwg.mxu0
      %4425 = vmatpush.bf16.msra.mxu0 %v4140
      %4426 = vmatpush.bf16.msra.mxu0 %v4137
      %4427 = vmatpush.bf16.msra.mxu0 %v4134
      %4428 = vmatpush.bf16.msra.mxu0 %v4131
      %4429 = vmatpush.bf16.msra.mxu0 %v4128
      %4430 = vmatpush.bf16.msra.mxu0 %v4125
      %4431 = vmatpush.bf16.msra.mxu0 %v4122
      %4432 = vmatpush.bf16.msra.mxu0 %v4119
      %4433 = vmatmul.bf16.gmra.mxu0 %v3804
      %v4434 = vpop.f32.mrf.mxu0
      %v4435 = vadd.f32 0.0, %v4434
      %v4436 = vpop.f32.mrf.mxu0
      %v4437 = vadd.f32 0.0, %v4436
      %4438 = vmatmul.bf16.gmra.mxu0 %v3815
      %v4439 = vpop.f32.mrf.mxu0
      %v4440 = vadd.f32 0.0, %v4439
      %v4441 = vpop.f32.mrf.mxu0
      %v4442 = vadd.f32 0.0, %v4441
      %4443 = vmatmul.bf16.gmra.mxu0 %v3823
      %v4444 = vpop.f32.mrf.mxu0
      %v4445 = vadd.f32 0.0, %v4444
      %v4446 = vpop.f32.mrf.mxu0
      %v4447 = vadd.f32 0.0, %v4446
      %4448 = vmatmul.bf16.gmra.mxu0 %v3831
      %v4449 = vpop.f32.mrf.mxu0
      %v4450 = vadd.f32 0.0, %v4449
      %v4451 = vpop.f32.mrf.mxu0
      %v4452 = vadd.f32 0.0, %v4451
      %4453 = vmatmul.bf16.gmra.mxu0 %v3839
      %v4454 = vpop.f32.mrf.mxu0
      %v4455 = vadd.f32 0.0, %v4454
      %v4456 = vpop.f32.mrf.mxu0
      %v4457 = vadd.f32 0.0, %v4456
      %4458 = vdwg.mxu0
      %4459 = vmatpush.bf16.msra.mxu0 %v4164
      %4460 = vmatpush.bf16.msra.mxu0 %v4161
      %4461 = vmatpush.bf16.msra.mxu0 %v4158
      %4462 = vmatpush.bf16.msra.mxu0 %v4155
      %4463 = vmatpush.bf16.msra.mxu0 %v4152
      %4464 = vmatpush.bf16.msra.mxu0 %v4149
      %4465 = vmatpush.bf16.msra.mxu0 %v4146
      %4466 = vmatpush.bf16.msra.mxu0 %v4143
      %4467 = vmatmul.bf16.gmra.mxu0 %v3807
      %v4468 = vpop.f32.mrf.mxu0
      %v4469 = vadd.f32 %v4435, %v4468
      %v4470 = vpop.f32.mrf.mxu0
      %v4471 = vadd.f32 %v4437, %v4470
      %4472 = vmatmul.bf16.gmra.mxu0 %v3817
      %v4473 = vpop.f32.mrf.mxu0
      %v4474 = vadd.f32 %v4440, %v4473
      %v4475 = vpop.f32.mrf.mxu0
      %v4476 = vadd.f32 %v4442, %v4475
      %4477 = vmatmul.bf16.gmra.mxu0 %v3825
      %v4478 = vpop.f32.mrf.mxu0
      %v4479 = vadd.f32 %v4445, %v4478
      %v4480 = vpop.f32.mrf.mxu0
      %v4481 = vadd.f32 %v4447, %v4480
      %4482 = vmatmul.bf16.gmra.mxu0 %v3833
      %v4483 = vpop.f32.mrf.mxu0
      %v4484 = vadd.f32 %v4450, %v4483
      %v4485 = vpop.f32.mrf.mxu0
      %v4486 = vadd.f32 %v4452, %v4485
      %4487 = vmatmul.bf16.gmra.mxu0 %v3840
      %v4488 = vpop.f32.mrf.mxu0
      %v4489 = vadd.f32 %v4455, %v4488
      %v4490 = vpop.f32.mrf.mxu0
      %v4491 = vadd.f32 %v4457, %v4490
      %4492 = vdwg.mxu0
      %4493 = vmatpush.bf16.msra.mxu0 %v4188
      %4494 = vmatpush.bf16.msra.mxu0 %v4185
      %4495 = vmatpush.bf16.msra.mxu0 %v4182
      %4496 = vmatpush.bf16.msra.mxu0 %v4179
      %4497 = vmatpush.bf16.msra.mxu0 %v4176
      %4498 = vmatpush.bf16.msra.mxu0 %v4173
      %4499 = vmatpush.bf16.msra.mxu0 %v4170
      %4500 = vmatpush.bf16.msra.mxu0 %v4167
      %4501 = vmatmul.bf16.gmra.mxu0 %v3810
      %v4502 = vpop.f32.mrf.mxu0
      %v4503 = vadd.f32 %v4469, %v4502
      %v4504 = vpop.f32.mrf.mxu0
      %v4505 = vadd.f32 %v4471, %v4504
      %4506 = vmatmul.bf16.gmra.mxu0 %v3819
      %v4507 = vpop.f32.mrf.mxu0
      %v4508 = vadd.f32 %v4474, %v4507
      %v4509 = vpop.f32.mrf.mxu0
      %v4510 = vadd.f32 %v4476, %v4509
      %4511 = vmatmul.bf16.gmra.mxu0 %v3827
      %v4512 = vpop.f32.mrf.mxu0
      %v4513 = vadd.f32 %v4479, %v4512
      %v4514 = vpop.f32.mrf.mxu0
      %v4515 = vadd.f32 %v4481, %v4514
      %4516 = vmatmul.bf16.gmra.mxu0 %v3835
      %v4517 = vpop.f32.mrf.mxu0
      %v4518 = vadd.f32 %v4484, %v4517
      %v4519 = vpop.f32.mrf.mxu0
      %v4520 = vadd.f32 %v4486, %v4519
      %4521 = vmatmul.bf16.gmra.mxu0 %v3841
      %v4522 = vpop.f32.mrf.mxu0
      %v4523 = vadd.f32 %v4489, %v4522
      %v4524 = vpop.f32.mrf.mxu0
      %v4525 = vadd.f32 %v4491, %v4524
      %4526 = vdwg.mxu0
      %4527 = vmatpush.bf16.msra.mxu0 0
      %4528 = vmatpush.bf16.msra.mxu0 0
      %4529 = vmatpush.bf16.msra.mxu0 0
      %4530 = vmatpush.bf16.msra.mxu0 0
      %4531 = vmatpush.bf16.msra.mxu0 0
      %4532 = vmatpush.bf16.msra.mxu0 0
      %4533 = vmatpush.bf16.msra.mxu0 %v4194
      %4534 = vmatpush.bf16.msra.mxu0 %v4191
      %4535 = vmatmul.bf16.gmra.mxu0 %v4275
      %v4536 = vpop.f32.mrf.mxu0
      %v4537 = vadd.f32 %v4503, %v4536
      %v4538 = vpop.f32.mrf.mxu0
      %v4539 = vadd.f32 %v4505, %v4538
      %4540 = vmatmul.bf16.gmra.mxu0 %v4278
      %v4541 = vpop.f32.mrf.mxu0
      %v4542 = vadd.f32 %v4508, %v4541
      %v4543 = vpop.f32.mrf.mxu0
      %v4544 = vadd.f32 %v4510, %v4543
      %4545 = vmatmul.bf16.gmra.mxu0 %v4281
      %v4546 = vpop.f32.mrf.mxu0
      %v4547 = vadd.f32 %v4513, %v4546
      %v4548 = vpop.f32.mrf.mxu0
      %v4549 = vadd.f32 %v4515, %v4548
      %4550 = vmatmul.bf16.gmra.mxu0 %v4284
      %v4551 = vpop.f32.mrf.mxu0
      %v4552 = vadd.f32 %v4518, %v4551
      %v4553 = vpop.f32.mrf.mxu0
      %v4554 = vadd.f32 %v4520, %v4553
      %4555 = vmatmul.bf16.gmra.mxu0 %v4287
      %v4556 = vpop.f32.mrf.mxu0
      %v4557 = vadd.f32 %v4523, %v4556
      %v4558 = vpop.f32.mrf.mxu0
      %v4559 = vadd.f32 %v4525, %v4558
      %4560 = vdwg.mxu0
      %4561 = vmatpush.bf16.msra.mxu0 %v4141
      %4562 = vmatpush.bf16.msra.mxu0 %v4138
      %4563 = vmatpush.bf16.msra.mxu0 %v4135
      %4564 = vmatpush.bf16.msra.mxu0 %v4132
      %4565 = vmatpush.bf16.msra.mxu0 %v4129
      %4566 = vmatpush.bf16.msra.mxu0 %v4126
      %4567 = vmatpush.bf16.msra.mxu0 %v4123
      %4568 = vmatpush.bf16.msra.mxu0 %v4120
      %4569 = vmatmul.bf16.gmra.mxu0 %v3804
      %v4570 = vpop.f32.mrf.mxu0
      %v4571 = vadd.f32 0.0, %v4570
      %v4572 = vpop.f32.mrf.mxu0
      %v4573 = vadd.f32 0.0, %v4572
      %4574 = vmatmul.bf16.gmra.mxu0 %v3815
      %v4575 = vpop.f32.mrf.mxu0
      %v4576 = vadd.f32 0.0, %v4575
      %v4577 = vpop.f32.mrf.mxu0
      %v4578 = vadd.f32 0.0, %v4577
      %4579 = vmatmul.bf16.gmra.mxu0 %v3823
      %v4580 = vpop.f32.mrf.mxu0
      %v4581 = vadd.f32 0.0, %v4580
      %v4582 = vpop.f32.mrf.mxu0
      %v4583 = vadd.f32 0.0, %v4582
      %4584 = vmatmul.bf16.gmra.mxu0 %v3831
      %v4585 = vpop.f32.mrf.mxu0
      %v4586 = vadd.f32 0.0, %v4585
      %v4587 = vpop.f32.mrf.mxu0
      %v4588 = vadd.f32 0.0, %v4587
      %4589 = vmatmul.bf16.gmra.mxu0 %v3839
      %v4590 = vpop.f32.mrf.mxu0
      %v4591 = vadd.f32 0.0, %v4590
      %v4592 = vpop.f32.mrf.mxu0
      %v4593 = vadd.f32 0.0, %v4592
      %4594 = vdwg.mxu0
      %4595 = vmatpush.bf16.msra.mxu0 %v4165
      %4596 = vmatpush.bf16.msra.mxu0 %v4162
      %4597 = vmatpush.bf16.msra.mxu0 %v4159
      %4598 = vmatpush.bf16.msra.mxu0 %v4156
      %4599 = vmatpush.bf16.msra.mxu0 %v4153
      %4600 = vmatpush.bf16.msra.mxu0 %v4150
      %4601 = vmatpush.bf16.msra.mxu0 %v4147
      %4602 = vmatpush.bf16.msra.mxu0 %v4144
      %4603 = vmatmul.bf16.gmra.mxu0 %v3807
      %v4604 = vpop.f32.mrf.mxu0
      %v4605 = vadd.f32 %v4571, %v4604
      %v4606 = vpop.f32.mrf.mxu0
      %v4607 = vadd.f32 %v4573, %v4606
      %4608 = vmatmul.bf16.gmra.mxu0 %v3817
      %v4609 = vpop.f32.mrf.mxu0
      %v4610 = vadd.f32 %v4576, %v4609
      %v4611 = vpop.f32.mrf.mxu0
      %v4612 = vadd.f32 %v4578, %v4611
      %4613 = vmatmul.bf16.gmra.mxu0 %v3825
      %v4614 = vpop.f32.mrf.mxu0
      %v4615 = vadd.f32 %v4581, %v4614
      %v4616 = vpop.f32.mrf.mxu0
      %v4617 = vadd.f32 %v4583, %v4616
      %4618 = vmatmul.bf16.gmra.mxu0 %v3833
      %v4619 = vpop.f32.mrf.mxu0
      %v4620 = vadd.f32 %v4586, %v4619
      %v4621 = vpop.f32.mrf.mxu0
      %v4622 = vadd.f32 %v4588, %v4621
      %4623 = vmatmul.bf16.gmra.mxu0 %v3840
      %v4624 = vpop.f32.mrf.mxu0
      %v4625 = vadd.f32 %v4591, %v4624
      %v4626 = vpop.f32.mrf.mxu0
      %v4627 = vadd.f32 %v4593, %v4626
      %4628 = vdwg.mxu0
      %4629 = vmatpush.bf16.msra.mxu0 %v4189
      %4630 = vmatpush.bf16.msra.mxu0 %v4186
      %4631 = vmatpush.bf16.msra.mxu0 %v4183
      %4632 = vmatpush.bf16.msra.mxu0 %v4180
      %4633 = vmatpush.bf16.msra.mxu0 %v4177
      %4634 = vmatpush.bf16.msra.mxu0 %v4174
      %4635 = vmatpush.bf16.msra.mxu0 %v4171
      %4636 = vmatpush.bf16.msra.mxu0 %v4168
      %4637 = vmatmul.bf16.gmra.mxu0 %v3810
      %v4638 = vpop.f32.mrf.mxu0
      %v4639 = vadd.f32 %v4605, %v4638
      %v4640 = vpop.f32.mrf.mxu0
      %v4641 = vadd.f32 %v4607, %v4640
      %4642 = vmatmul.bf16.gmra.mxu0 %v3819
      %v4643 = vpop.f32.mrf.mxu0
      %v4644 = vadd.f32 %v4610, %v4643
      %v4645 = vpop.f32.mrf.mxu0
      %v4646 = vadd.f32 %v4612, %v4645
      %4647 = vmatmul.bf16.gmra.mxu0 %v3827
      %v4648 = vpop.f32.mrf.mxu0
      %v4649 = vadd.f32 %v4615, %v4648
      %v4650 = vpop.f32.mrf.mxu0
      %v4651 = vadd.f32 %v4617, %v4650
      %4652 = vmatmul.bf16.gmra.mxu0 %v3835
      %v4653 = vpop.f32.mrf.mxu0
      %v4654 = vadd.f32 %v4620, %v4653
      %v4655 = vpop.f32.mrf.mxu0
      %v4656 = vadd.f32 %v4622, %v4655
      %4657 = vmatmul.bf16.gmra.mxu0 %v3841
      %v4658 = vpop.f32.mrf.mxu0
      %v4659 = vadd.f32 %v4625, %v4658
      %v4660 = vpop.f32.mrf.mxu0
      %v4661 = vadd.f32 %v4627, %v4660
      %4662 = vdwg.mxu0
      %4663 = vmatpush.bf16.msra.mxu0 0
      %4664 = vmatpush.bf16.msra.mxu0 0
      %4665 = vmatpush.bf16.msra.mxu0 0
      %4666 = vmatpush.bf16.msra.mxu0 0
      %4667 = vmatpush.bf16.msra.mxu0 0
      %4668 = vmatpush.bf16.msra.mxu0 0
      %4669 = vmatpush.bf16.msra.mxu0 %v4195
      %4670 = vmatpush.bf16.msra.mxu0 %v4192
      %4671 = vmatmul.bf16.gmra.mxu0 %v4275
      %v4672 = vpop.f32.mrf.mxu0
      %v4673 = vadd.f32 %v4639, %v4672
      %v4674 = vpop.f32.mrf.mxu0
      %v4675 = vadd.f32 %v4641, %v4674
      %4676 = vmatmul.bf16.gmra.mxu0 %v4278
      %v4677 = vpop.f32.mrf.mxu0
      %v4678 = vadd.f32 %v4644, %v4677
      %v4679 = vpop.f32.mrf.mxu0
      %v4680 = vadd.f32 %v4646, %v4679
      %4681 = vmatmul.bf16.gmra.mxu0 %v4281
      %v4682 = vpop.f32.mrf.mxu0
      %v4683 = vadd.f32 %v4649, %v4682
      %v4684 = vpop.f32.mrf.mxu0
      %v4685 = vadd.f32 %v4651, %v4684
      %4686 = vmatmul.bf16.gmra.mxu0 %v4284
      %v4687 = vpop.f32.mrf.mxu0
      %v4688 = vadd.f32 %v4654, %v4687
      %v4689 = vpop.f32.mrf.mxu0
      %v4690 = vadd.f32 %v4656, %v4689
      %4691 = vmatmul.bf16.gmra.mxu0 %v4287
      %v4692 = vpop.f32.mrf.mxu0
      %v4693 = vadd.f32 %v4659, %v4692
      %v4694 = vpop.f32.mrf.mxu0
      %v4695 = vadd.f32 %v4661, %v4694
      %4696 = vdwg.mxu0
      %v4697 = vadd.f32 %v3379, %v4401
      %v4698 = vadd.f32 %v3515, %v4537
      %v4699 = vadd.f32 %v3651, %v4673
      %v4700 = vadd.f32 %v3381, %v4403
      %v4701 = vadd.f32 %v3517, %v4539
      %v4702 = vadd.f32 %v3653, %v4675
      %v4703 = vadd.f32 %v3384, %v4406
      %v4704 = vadd.f32 %v3520, %v4542
      %v4705 = vadd.f32 %v3656, %v4678
      %v4706 = vadd.f32 %v3386, %v4408
      %v4707 = vadd.f32 %v3522, %v4544
      %v4708 = vadd.f32 %v3658, %v4680
      %v4709 = vadd.f32 %v3389, %v4411
      %v4710 = vadd.f32 %v3525, %v4547
      %v4711 = vadd.f32 %v3661, %v4683
      %v4712 = vadd.f32 %v3391, %v4413
      %v4713 = vadd.f32 %v3527, %v4549
      %v4714 = vadd.f32 %v3663, %v4685
      %v4715 = vadd.f32 %v3394, %v4416
      %v4716 = vadd.f32 %v3530, %v4552
      %v4717 = vadd.f32 %v3666, %v4688
      %v4718 = vadd.f32 %v3396, %v4418
      %v4719 = vadd.f32 %v3532, %v4554
      %v4720 = vadd.f32 %v3668, %v4690
      %v4721 = vadd.f32 %v3399, %v4421
      %v4722 = vadd.f32 %v3535, %v4557
      %v4723 = vadd.f32 %v3671, %v4693
      %v4724 = vadd.f32 %v3401, %v4423
      %v4725 = vadd.f32 %v3537, %v4559
      %v4726 = vadd.f32 %v3673, %v4695
      %v4727 = vld [vmem:[%s6] sm:$0xff]
      %v4728 = vld [vmem:[%s6 + $0x8] sm:$0xf]
      %v4729 = vld [vmem:[%s6 + $0xc] sm:$0xff]
      %v4730 = vld [vmem:[%s6 + $0x14] sm:$0xf]
      %v4731 = vld [vmem:[%s6 + $0x18] sm:$0xff]
      %v4732 = vld [vmem:[%s6 + $0x20] sm:$0xf]
      %v4733 = vld [vmem:[%s6 + $0x24] sm:$0xff]
      %v4734 = vld [vmem:[%s6 + $0x2c] sm:$0xf]
      %v4735 = vld [vmem:[%s6 + $0x30] sm:$0xff]
      %v4736 = vld [vmem:[%s6 + $0x38] sm:$0xf]
      %v4737 = vld [vmem:[%s6 + $0x3c] sm:$0xff]
      %v4738 = vld [vmem:[%s6 + $0x44] sm:$0xf]
      %v4739 = vld [vmem:[%s6 + $0x48] sm:$0xff]
      %v4740 = vld [vmem:[%s6 + $0x50] sm:$0xf]
      %v4741 = vld [vmem:[%s6 + $0x54] sm:$0xff]
      %v4742 = vld [vmem:[%s6 + $0x5c] sm:$0xf]
      %v4743 = vld [vmem:[%s6 + $0x60] sm:$0xff]
      %v4744 = vld [vmem:[%s6 + $0x68] sm:$0xf]
      %v4745 = vld [vmem:[%s6 + $0x6c] sm:$0xff]
      %v4746 = vld [vmem:[%s6 + $0x74] sm:$0xf]
      %v4747 = vld [vmem:[%s6 + $0x78] sm:$0xff]
      %v4748 = vld [vmem:[%s6 + $0x80] sm:$0xf]
      %v4749 = vld [vmem:[%s6 + $0x84] sm:$0xff]
      %v4750 = vld [vmem:[%s6 + $0x8c] sm:$0xf]
      %v4751 = vld [vmem:[%s6 + $0x90] sm:$0xff]
      %v4752 = vld [vmem:[%s6 + $0x98] sm:$0xf]
      %v4753 = vld [vmem:[%s6 + $0x9c] sm:$0xff]
      %v4754 = vld [vmem:[%s6 + $0xa4] sm:$0xf]
      %v4755 = vld [vmem:[%s6 + $0xa8] sm:$0xff]
      %v4756 = vld [vmem:[%s6 + $0xb0] sm:$0xf]
      %v4757 = vld [vmem:[%s6 + $0xb4] sm:$0xff]
      %v4758 = vld [vmem:[%s6 + $0xbc] sm:$0xf]
      %v4759 = vld [vmem:[%s6 + $0xc0] sm:$0xff]
      %v4760 = vld [vmem:[%s6 + $0xc8] sm:$0xf]
      %v4761 = vld [vmem:[%s6 + $0xcc] sm:$0xff]
      %v4762 = vld [vmem:[%s6 + $0xd4] sm:$0xf]
      %v4763 = vld [vmem:[%s6 + $0xd8] sm:$0xff]
      %v4764 = vld [vmem:[%s6 + $0xe0] sm:$0xf]
      %v4765 = vld [vmem:[%s6 + $0xe4] sm:$0xff]
      %v4766 = vld [vmem:[%s6 + $0xec] sm:$0xf]
      %v4767 = vld [vmem:[%s6 + $0xf0] sm:$0xff]
      %v4768 = vld [vmem:[%s6 + $0xf8] sm:$0xf]
      %v4769 = vld [vmem:[%s6 + $0xfc] sm:$0xff]
      %v4770 = vld [vmem:[%s6 + $0x104] sm:$0xf]
      %v4771 = vld [vmem:[%s6 + $0x108] sm:$0xff]
      %v4772 = vld [vmem:[%s6 + $0x110] sm:$0xf]
      %v4773 = vld [vmem:[%s6 + $0x114] sm:$0xff]
      %v4774 = vld [vmem:[%s6 + $0x11c] sm:$0xf]
      %v4775 = vld [vmem:[%s6 + $0x120] sm:$0xff]
      %v4776 = vld [vmem:[%s6 + $0x128] sm:$0xf]
      %v4777 = vld [vmem:[%s6 + $0x12c] sm:$0xff]
      %v4778 = vld [vmem:[%s6 + $0x134] sm:$0xf]
      %v4779 = vld [vmem:[%s6 + $0x138] sm:$0xff]
      %v4780 = vld [vmem:[%s6 + $0x140] sm:$0xf]
      %v4781 = vld [vmem:[%s6 + $0x144] sm:$0xff]
      %v4782 = vld [vmem:[%s6 + $0x14c] sm:$0xf]
      %v4783 = vld [vmem:[%s6 + $0x150] sm:$0xff]
      %v4784 = vld [vmem:[%s6 + $0x158] sm:$0xf]
      %v4785 = vld [vmem:[%s6 + $0x15c] sm:$0xff]
      %v4786 = vld [vmem:[%s6 + $0x164] sm:$0xf]
      %v4787 = vld [vmem:[%s6 + $0x168] sm:$0xff]
      %v4788 = vld [vmem:[%s6 + $0x170] sm:$0xf]
      %v4789 = vld [vmem:[%s6 + $0x174] sm:$0xff]
      %v4790 = vld [vmem:[%s6 + $0x17c] sm:$0xf]
      %v4791 = vld [vmem:[%s6 + $0x180] sm:$0xff]
      %v4792 = vld [vmem:[%s6 + $0x188] sm:$0xf]
      %v4793 = vld [vmem:[%s6 + $0x18c] sm:$0xff]
      %v4794 = vld [vmem:[%s6 + $0x194] sm:$0xf]
      %v4795 = vld [vmem:[%s6 + $0x198] sm:$0xff]
      %v4796 = vld [vmem:[%s6 + $0x1a0] sm:$0xf]
      %v4797 = vld [vmem:[%s6 + $0x1a4] sm:$0xff]
      %v4798 = vld [vmem:[%s6 + $0x1ac] sm:$0xf]
      %v4799 = vld [vmem:[%s6 + $0x1b0] sm:$0xff]
      %v4800 = vld [vmem:[%s6 + $0x1b8] sm:$0xf]
      %v4801 = vld [vmem:[%s6 + $0x1bc] sm:$0xff]
      %v4802 = vld [vmem:[%s6 + $0x1c4] sm:$0xf]
      %v4803 = vld [vmem:[%s6 + $0x1c8] sm:$0xff]
      %v4804 = vld [vmem:[%s6 + $0x1d0] sm:$0xf]
      %v4805 = vld [vmem:[%s6 + $0x1d4] sm:$0xff]
      %v4806 = vld [vmem:[%s6 + $0x1dc] sm:$0xf]
      %v4807 = vld [vmem:[%s6 + $0x1e0] sm:$0xff]
      %v4808 = vld [vmem:[%s6 + $0x1e8] sm:$0xf]
      %v4809 = vld [vmem:[%s6 + $0x1ec] sm:$0xff]
      %v4810 = vld [vmem:[%s6 + $0x1f4] sm:$0xf]
      %v4811 = vld [vmem:[%s6 + $0x1f8] sm:$0xff]
      %v4812 = vld [vmem:[%s6 + $0x200] sm:$0xf]
      %v4813 = vld [vmem:[%s6 + $0x204] sm:$0xff]
      %v4814 = vld [vmem:[%s6 + $0x20c] sm:$0xf]
      %v4815 = vld [vmem:[%s6 + $0x210] sm:$0xff]
      %v4816 = vld [vmem:[%s6 + $0x218] sm:$0xf]
      %v4817 = vld [vmem:[%s6 + $0x21c] sm:$0xff]
      %v4818 = vld [vmem:[%s6 + $0x224] sm:$0xf]
      %v4819 = vld [vmem:[%s6 + $0x228] sm:$0xff]
      %v4820 = vld [vmem:[%s6 + $0x230] sm:$0xf]
      %v4821 = vld [vmem:[%s6 + $0x234] sm:$0xff]
      %v4822 = vld [vmem:[%s6 + $0x23c] sm:$0xf]
      %v4823 = vld [vmem:[%s6 + $0x240] sm:$0xff]
      %v4824 = vld [vmem:[%s6 + $0x248] sm:$0xf]
      %v4825 = vld [vmem:[%s6 + $0x24c] sm:$0xff]
      %v4826 = vld [vmem:[%s6 + $0x254] sm:$0xf]
      %v4827 = vld [vmem:[%s6 + $0x258] sm:$0xff]
      %v4828 = vld [vmem:[%s6 + $0x260] sm:$0xf]
      %v4829 = vld [vmem:[%s6 + $0x264] sm:$0xff]
      %v4830 = vld [vmem:[%s6 + $0x26c] sm:$0xf]
      %s4831 = scalar_lea.vmem %s6, 624
      %v4832 = vld [vmem:[%s4831] sm:$0xff]
      %v4833 = vld [vmem:[%s4831 + $0x8] sm:$0xf]
      %v4834 = vld [vmem:[%s4831 + $0xc] sm:$0xff]
      %v4835 = vld [vmem:[%s4831 + $0x14] sm:$0xf]
      %v4836 = vld [vmem:[%s4831 + $0x18] sm:$0xff]
      %v4837 = vld [vmem:[%s4831 + $0x20] sm:$0xf]
      %v4838 = vld [vmem:[%s4831 + $0x24] sm:$0xff]
      %v4839 = vld [vmem:[%s4831 + $0x2c] sm:$0xf]
      %v4840 = vld [vmem:[%s4831 + $0x30] sm:$0xff]
      %v4841 = vld [vmem:[%s4831 + $0x38] sm:$0xf]
      %v4842 = vld [vmem:[%s4831 + $0x3c] sm:$0xff]
      %v4843 = vld [vmem:[%s4831 + $0x44] sm:$0xf]
      %v4844 = vld [vmem:[%s4831 + $0x48] sm:$0xff]
      %v4845 = vld [vmem:[%s4831 + $0x50] sm:$0xf]
      %v4846 = vld [vmem:[%s4831 + $0x54] sm:$0xff]
      %v4847 = vld [vmem:[%s4831 + $0x5c] sm:$0xf]
      %v4848 = vld [vmem:[%s4831 + $0x60] sm:$0xff]
      %v4849 = vld [vmem:[%s4831 + $0x68] sm:$0xf]
      %v4850 = vld [vmem:[%s4831 + $0x6c] sm:$0xff]
      %v4851 = vld [vmem:[%s4831 + $0x74] sm:$0xf]
      %v4852 = vld [vmem:[%s4831 + $0x78] sm:$0xff]
      %v4853 = vld [vmem:[%s4831 + $0x80] sm:$0xf]
      %v4854 = vld [vmem:[%s4831 + $0x84] sm:$0xff]
      %v4855 = vld [vmem:[%s4831 + $0x8c] sm:$0xf]
      %v4856 = vld [vmem:[%s4831 + $0x90] sm:$0xff]
      %v4857 = vld [vmem:[%s4831 + $0x98] sm:$0xf]
      %v4858 = vld [vmem:[%s4831 + $0x9c] sm:$0xff]
      %v4859 = vld [vmem:[%s4831 + $0xa4] sm:$0xf]
      %v4860 = vld [vmem:[%s4831 + $0xa8] sm:$0xff]
      %v4861 = vld [vmem:[%s4831 + $0xb0] sm:$0xf]
      %v4862 = vld [vmem:[%s4831 + $0xb4] sm:$0xff]
      %v4863 = vld [vmem:[%s4831 + $0xbc] sm:$0xf]
      %v4864 = vld [vmem:[%s4831 + $0xc0] sm:$0xff]
      %v4865 = vld [vmem:[%s4831 + $0xc8] sm:$0xf]
      %v4866 = vld [vmem:[%s4831 + $0xcc] sm:$0xff]
      %v4867 = vld [vmem:[%s4831 + $0xd4] sm:$0xf]
      %v4868 = vld [vmem:[%s4831 + $0xd8] sm:$0xff]
      %v4869 = vld [vmem:[%s4831 + $0xe0] sm:$0xf]
      %v4870 = vld [vmem:[%s4831 + $0xe4] sm:$0xff]
      %v4871 = vld [vmem:[%s4831 + $0xec] sm:$0xf]
      %v4872 = vld [vmem:[%s4831 + $0xf0] sm:$0xff]
      %v4873 = vld [vmem:[%s4831 + $0xf8] sm:$0xf]
      %v4874 = vld [vmem:[%s4831 + $0xfc] sm:$0xff]
      %v4875 = vld [vmem:[%s4831 + $0x104] sm:$0xf]
      %v4876 = vld [vmem:[%s4831 + $0x108] sm:$0xff]
      %v4877 = vld [vmem:[%s4831 + $0x110] sm:$0xf]
      %v4878 = vld [vmem:[%s4831 + $0x114] sm:$0xff]
      %v4879 = vld [vmem:[%s4831 + $0x11c] sm:$0xf]
      %v4880 = vld [vmem:[%s4831 + $0x120] sm:$0xff]
      %v4881 = vld [vmem:[%s4831 + $0x128] sm:$0xf]
      %v4882 = vld [vmem:[%s4831 + $0x12c] sm:$0xff]
      %v4883 = vld [vmem:[%s4831 + $0x134] sm:$0xf]
      %v4884 = vld [vmem:[%s4831 + $0x138] sm:$0xff]
      %v4885 = vld [vmem:[%s4831 + $0x140] sm:$0xf]
      %v4886 = vld [vmem:[%s4831 + $0x144] sm:$0xff]
      %v4887 = vld [vmem:[%s4831 + $0x14c] sm:$0xf]
      %v4888 = vld [vmem:[%s4831 + $0x150] sm:$0xff]
      %v4889 = vld [vmem:[%s4831 + $0x158] sm:$0xf]
      %v4890 = vld [vmem:[%s4831 + $0x15c] sm:$0xff]
      %v4891 = vld [vmem:[%s4831 + $0x164] sm:$0xf]
      %v4892 = vld [vmem:[%s4831 + $0x168] sm:$0xff]
      %v4893 = vld [vmem:[%s4831 + $0x170] sm:$0xf]
      %v4894 = vld [vmem:[%s4831 + $0x174] sm:$0xff]
      %v4895 = vld [vmem:[%s4831 + $0x17c] sm:$0xf]
      %v4896 = vld [vmem:[%s4831 + $0x180] sm:$0xff]
      %v4897 = vld [vmem:[%s4831 + $0x188] sm:$0xf]
      %v4898 = vld [vmem:[%s4831 + $0x18c] sm:$0xff]
      %v4899 = vld [vmem:[%s4831 + $0x194] sm:$0xf]
      %v4900 = vld [vmem:[%s4831 + $0x198] sm:$0xff]
      %v4901 = vld [vmem:[%s4831 + $0x1a0] sm:$0xf]
      %v4902 = vld [vmem:[%s4831 + $0x1a4] sm:$0xff]
      %v4903 = vld [vmem:[%s4831 + $0x1ac] sm:$0xf]
      %v4904 = vld [vmem:[%s4831 + $0x1b0] sm:$0xff]
      %v4905 = vld [vmem:[%s4831 + $0x1b8] sm:$0xf]
      %v4906 = vld [vmem:[%s4831 + $0x1bc] sm:$0xff]
      %v4907 = vld [vmem:[%s4831 + $0x1c4] sm:$0xf]
      %v4908 = vld [vmem:[%s4831 + $0x1c8] sm:$0xff]
      %v4909 = vld [vmem:[%s4831 + $0x1d0] sm:$0xf]
      %v4910 = vld [vmem:[%s4831 + $0x1d4] sm:$0xff]
      %v4911 = vld [vmem:[%s4831 + $0x1dc] sm:$0xf]
      %v4912 = vld [vmem:[%s4831 + $0x1e0] sm:$0xff]
      %v4913 = vld [vmem:[%s4831 + $0x1e8] sm:$0xf]
      %v4914 = vld [vmem:[%s4831 + $0x1ec] sm:$0xff]
      %v4915 = vld [vmem:[%s4831 + $0x1f4] sm:$0xf]
      %v4916 = vld [vmem:[%s4831 + $0x1f8] sm:$0xff]
      %v4917 = vld [vmem:[%s4831 + $0x200] sm:$0xf]
      %v4918 = vld [vmem:[%s4831 + $0x204] sm:$0xff]
      %v4919 = vld [vmem:[%s4831 + $0x20c] sm:$0xf]
      %v4920 = vld [vmem:[%s4831 + $0x210] sm:$0xff]
      %v4921 = vld [vmem:[%s4831 + $0x218] sm:$0xf]
      %v4922 = vld [vmem:[%s4831 + $0x21c] sm:$0xff]
      %v4923 = vld [vmem:[%s4831 + $0x224] sm:$0xf]
      %v4924 = vld [vmem:[%s4831 + $0x228] sm:$0xff]
      %v4925 = vld [vmem:[%s4831 + $0x230] sm:$0xf]
      %v4926 = vld [vmem:[%s4831 + $0x234] sm:$0xff]
      %v4927 = vld [vmem:[%s4831 + $0x23c] sm:$0xf]
      %v4928 = vld [vmem:[%s4831 + $0x240] sm:$0xff]
      %v4929 = vld [vmem:[%s4831 + $0x248] sm:$0xf]
      %v4930 = vld [vmem:[%s4831 + $0x24c] sm:$0xff]
      %v4931 = vld [vmem:[%s4831 + $0x254] sm:$0xf]
      %v4932 = vld [vmem:[%s4831 + $0x258] sm:$0xff]
      %v4933 = vld [vmem:[%s4831 + $0x260] sm:$0xf]
      %v4934 = vld [vmem:[%s4831 + $0x264] sm:$0xff]
      %v4935 = vld [vmem:[%s4831 + $0x26c] sm:$0xf]
      %v5040 = vunpack.c.l.b16 %v4832
      %v5041 = vunpack.c.h.b16 %v4832
      %v5042 = vunpack.c.l.b16 %v4833
      %v5043 = vunpack.c.l.b16 %v4834
      %v5044 = vunpack.c.h.b16 %v4834
      %v5045 = vunpack.c.l.b16 %v4835
      %v5046 = vunpack.c.l.b16 %v4836
      %v5047 = vunpack.c.h.b16 %v4836
      %v5048 = vunpack.c.l.b16 %v4837
      %v5049 = vunpack.c.l.b16 %v4838
      %v5050 = vunpack.c.h.b16 %v4838
      %v5051 = vunpack.c.l.b16 %v4839
      %v5052 = vunpack.c.l.b16 %v4840
      %v5053 = vunpack.c.h.b16 %v4840
      %v5054 = vunpack.c.l.b16 %v4841
      %v5055 = vunpack.c.l.b16 %v4842
      %v5056 = vunpack.c.h.b16 %v4842
      %v5057 = vunpack.c.l.b16 %v4843
      %v5058 = vunpack.c.l.b16 %v4844
      %v5059 = vunpack.c.h.b16 %v4844
      %v5060 = vunpack.c.l.b16 %v4845
      %v5061 = vunpack.c.l.b16 %v4846
      %v5062 = vunpack.c.h.b16 %v4846
      %v5063 = vunpack.c.l.b16 %v4847
      %v5064 = vunpack.c.l.b16 %v4848
      %v5065 = vunpack.c.h.b16 %v4848
      %v5066 = vunpack.c.l.b16 %v4849
      %v5067 = vunpack.c.l.b16 %v4850
      %v5068 = vunpack.c.h.b16 %v4850
      %v5069 = vunpack.c.l.b16 %v4851
      %v5070 = vunpack.c.l.b16 %v4852
      %v5071 = vunpack.c.h.b16 %v4852
      %v5072 = vunpack.c.l.b16 %v4853
      %v5073 = vunpack.c.l.b16 %v4854
      %v5074 = vunpack.c.h.b16 %v4854
      %v5075 = vunpack.c.l.b16 %v4855
      %v5076 = vunpack.c.l.b16 %v4856
      %v5077 = vunpack.c.h.b16 %v4856
      %v5078 = vunpack.c.l.b16 %v4857
      %v5079 = vunpack.c.l.b16 %v4858
      %v5080 = vunpack.c.h.b16 %v4858
      %v5081 = vunpack.c.l.b16 %v4859
      %v5082 = vunpack.c.l.b16 %v4860
      %v5083 = vunpack.c.h.b16 %v4860
      %v5084 = vunpack.c.l.b16 %v4861
      %v5085 = vunpack.c.l.b16 %v4862
      %v5086 = vunpack.c.h.b16 %v4862
      %v5087 = vunpack.c.l.b16 %v4863
      %v5088 = vunpack.c.l.b16 %v4864
      %v5089 = vunpack.c.h.b16 %v4864
      %v5090 = vunpack.c.l.b16 %v4865
      %v5091 = vunpack.c.l.b16 %v4866
      %v5092 = vunpack.c.h.b16 %v4866
      %v5093 = vunpack.c.l.b16 %v4867
      %v5094 = vunpack.c.l.b16 %v4868
      %v5095 = vunpack.c.h.b16 %v4868
      %v5096 = vunpack.c.l.b16 %v4869
      %v5097 = vunpack.c.l.b16 %v4870
      %v5098 = vunpack.c.h.b16 %v4870
      %v5099 = vunpack.c.l.b16 %v4871
      %v5100 = vunpack.c.l.b16 %v4872
      %v5101 = vunpack.c.h.b16 %v4872
      %v5102 = vunpack.c.l.b16 %v4873
      %v5103 = vunpack.c.l.b16 %v4874
      %v5104 = vunpack.c.h.b16 %v4874
      %v5105 = vunpack.c.l.b16 %v4875
      %v5106 = vunpack.c.l.b16 %v4876
      %v5107 = vunpack.c.h.b16 %v4876
      %v5108 = vunpack.c.l.b16 %v4877
      %v5109 = vunpack.c.l.b16 %v4878
      %v5110 = vunpack.c.h.b16 %v4878
      %v5111 = vunpack.c.l.b16 %v4879
      %v5112 = vunpack.c.l.b16 %v4880
      %v5113 = vunpack.c.h.b16 %v4880
      %v5114 = vunpack.c.l.b16 %v4881
      %v5115 = vunpack.c.l.b16 %v4882
      %v5116 = vunpack.c.h.b16 %v4882
      %v5117 = vunpack.c.l.b16 %v4883
      %v5118 = vunpack.c.l.b16 %v4884
      %v5119 = vunpack.c.h.b16 %v4884
      %v5120 = vunpack.c.l.b16 %v4885
      %v5121 = vunpack.c.l.b16 %v4886
      %v5122 = vunpack.c.h.b16 %v4886
      %v5123 = vunpack.c.l.b16 %v4887
      %v5124 = vunpack.c.l.b16 %v4888
      %v5125 = vunpack.c.h.b16 %v4888
      %v5126 = vunpack.c.l.b16 %v4889
      %v5127 = vunpack.c.l.b16 %v4890
      %v5128 = vunpack.c.h.b16 %v4890
      %v5129 = vunpack.c.l.b16 %v4891
      %v5130 = vunpack.c.l.b16 %v4892
      %v5131 = vunpack.c.h.b16 %v4892
      %v5132 = vunpack.c.l.b16 %v4893
      %v5133 = vunpack.c.l.b16 %v4894
      %v5134 = vunpack.c.h.b16 %v4894
      %v5135 = vunpack.c.l.b16 %v4895
      %v5136 = vunpack.c.l.b16 %v4896
      %v5137 = vunpack.c.h.b16 %v4896
      %v5138 = vunpack.c.l.b16 %v4897
      %v5139 = vunpack.c.l.b16 %v4898
      %v5140 = vunpack.c.h.b16 %v4898
      %v5141 = vunpack.c.l.b16 %v4899
      %v5142 = vunpack.c.l.b16 %v4900
      %v5143 = vunpack.c.h.b16 %v4900
      %v5144 = vunpack.c.l.b16 %v4901
      %v5145 = vunpack.c.l.b16 %v4902
      %v5146 = vunpack.c.h.b16 %v4902
      %v5147 = vunpack.c.l.b16 %v4903
      %v5148 = vunpack.c.l.b16 %v4904
      %v5149 = vunpack.c.h.b16 %v4904
      %v5150 = vunpack.c.l.b16 %v4905
      %v5151 = vunpack.c.l.b16 %v4906
      %v5152 = vunpack.c.h.b16 %v4906
      %v5153 = vunpack.c.l.b16 %v4907
      %v5154 = vunpack.c.l.b16 %v4908
      %v5155 = vunpack.c.h.b16 %v4908
      %v5156 = vunpack.c.l.b16 %v4909
      %v5157 = vunpack.c.l.b16 %v4910
      %v5158 = vunpack.c.h.b16 %v4910
      %v5159 = vunpack.c.l.b16 %v4911
      %v5160 = vunpack.c.l.b16 %v4912
      %v5161 = vunpack.c.h.b16 %v4912
      %v5162 = vunpack.c.l.b16 %v4913
      %v5163 = vunpack.c.l.b16 %v4914
      %v5164 = vunpack.c.h.b16 %v4914
      %v5165 = vunpack.c.l.b16 %v4915
      %v5166 = vunpack.c.l.b16 %v4916
      %v5167 = vunpack.c.h.b16 %v4916
      %v5168 = vunpack.c.l.b16 %v4917
      %v5169 = vunpack.c.l.b16 %v4918
      %v5170 = vunpack.c.h.b16 %v4918
      %v5171 = vunpack.c.l.b16 %v4919
      %v5172 = vunpack.c.l.b16 %v4920
      %v5173 = vunpack.c.h.b16 %v4920
      %v5174 = vunpack.c.l.b16 %v4921
      %v5175 = vunpack.c.l.b16 %v4922
      %v5176 = vunpack.c.h.b16 %v4922
      %v5177 = vunpack.c.l.b16 %v4923
      %v5178 = vunpack.c.l.b16 %v4924
      %v5179 = vunpack.c.h.b16 %v4924
      %v5180 = vunpack.c.l.b16 %v4925
      %v5181 = vunpack.c.l.b16 %v4926
      %v5182 = vunpack.c.h.b16 %v4926
      %v5183 = vunpack.c.l.b16 %v4927
      %v5184 = vunpack.c.l.b16 %v4928
      %v5185 = vunpack.c.h.b16 %v4928
      %v5186 = vunpack.c.l.b16 %v4929
      %v5187 = vunpack.c.l.b16 %v4930
      %v5188 = vunpack.c.h.b16 %v4930
      %v5189 = vunpack.c.l.b16 %v4931
      %v5190 = vunpack.c.l.b16 %v4932
      %v5191 = vunpack.c.h.b16 %v4932
      %v5192 = vunpack.c.l.b16 %v4933
      %v5193 = vunpack.c.l.b16 %v4934
      %v5194 = vunpack.c.h.b16 %v4934
      %v5195 = vunpack.c.l.b16 %v4935
      %v5196 = vpack.c.b16 %v5043, %v5040
      %v5197 = vpack.c.b16 %v5044, %v5041
      %v5198 = vpack.c.b16 %v5045, %v5042
      %v5199 = vpack.c.b16 %v5049, %v5046
      %v5200 = vpack.c.b16 %v5050, %v5047
      %v5201 = vpack.c.b16 %v5051, %v5048
      %v5202 = vpack.c.b16 %v5055, %v5052
      %v5203 = vpack.c.b16 %v5056, %v5053
      %v5204 = vpack.c.b16 %v5057, %v5054
      %v5205 = vpack.c.b16 %v5061, %v5058
      %v5206 = vpack.c.b16 %v5062, %v5059
      %v5207 = vpack.c.b16 %v5063, %v5060
      %v5208 = vpack.c.b16 %v5067, %v5064
      %v5209 = vpack.c.b16 %v5068, %v5065
      %v5210 = vpack.c.b16 %v5069, %v5066
      %v5211 = vpack.c.b16 %v5073, %v5070
      %v5212 = vpack.c.b16 %v5074, %v5071
      %v5213 = vpack.c.b16 %v5075, %v5072
      %v5214 = vpack.c.b16 %v5079, %v5076
      %v5215 = vpack.c.b16 %v5080, %v5077
      %v5216 = vpack.c.b16 %v5081, %v5078
      %v5217 = vpack.c.b16 %v5085, %v5082
      %v5218 = vpack.c.b16 %v5086, %v5083
      %v5219 = vpack.c.b16 %v5087, %v5084
      %v5220 = vpack.c.b16 %v5091, %v5088
      %v5221 = vpack.c.b16 %v5092, %v5089
      %v5222 = vpack.c.b16 %v5093, %v5090
      %v5223 = vpack.c.b16 %v5097, %v5094
      %v5224 = vpack.c.b16 %v5098, %v5095
      %v5225 = vpack.c.b16 %v5099, %v5096
      %v5226 = vpack.c.b16 %v5103, %v5100
      %v5227 = vpack.c.b16 %v5104, %v5101
      %v5228 = vpack.c.b16 %v5105, %v5102
      %v5229 = vpack.c.b16 %v5109, %v5106
      %v5230 = vpack.c.b16 %v5110, %v5107
      %v5231 = vpack.c.b16 %v5111, %v5108
      %v5232 = vpack.c.b16 %v5115, %v5112
      %v5233 = vpack.c.b16 %v5116, %v5113
      %v5234 = vpack.c.b16 %v5117, %v5114
      %v5235 = vpack.c.b16 %v5121, %v5118
      %v5236 = vpack.c.b16 %v5122, %v5119
      %v5237 = vpack.c.b16 %v5123, %v5120
      %v5238 = vpack.c.b16 %v5127, %v5124
      %v5239 = vpack.c.b16 %v5128, %v5125
      %v5240 = vpack.c.b16 %v5129, %v5126
      %v5241 = vpack.c.b16 %v5133, %v5130
      %v5242 = vpack.c.b16 %v5134, %v5131
      %v5243 = vpack.c.b16 %v5135, %v5132
      %v5244 = vpack.c.b16 %v5139, %v5136
      %v5245 = vpack.c.b16 %v5140, %v5137
      %v5246 = vpack.c.b16 %v5141, %v5138
      %v5247 = vpack.c.b16 %v5145, %v5142
      %v5248 = vpack.c.b16 %v5146, %v5143
      %v5249 = vpack.c.b16 %v5147, %v5144
      %v5250 = vpack.c.b16 %v5151, %v5148
      %v5251 = vpack.c.b16 %v5152, %v5149
      %v5252 = vpack.c.b16 %v5153, %v5150
      %v5253 = vpack.c.b16 %v5157, %v5154
      %v5254 = vpack.c.b16 %v5158, %v5155
      %v5255 = vpack.c.b16 %v5159, %v5156
      %v5256 = vpack.c.b16 %v5163, %v5160
      %v5257 = vpack.c.b16 %v5164, %v5161
      %v5258 = vpack.c.b16 %v5165, %v5162
      %v5259 = vpack.c.b16 %v5169, %v5166
      %v5260 = vpack.c.b16 %v5170, %v5167
      %v5261 = vpack.c.b16 %v5171, %v5168
      %v5262 = vpack.c.b16 %v5175, %v5172
      %v5263 = vpack.c.b16 %v5176, %v5173
      %v5264 = vpack.c.b16 %v5177, %v5174
      %v5265 = vpack.c.b16 %v5181, %v5178
      %v5266 = vpack.c.b16 %v5182, %v5179
      %v5267 = vpack.c.b16 %v5183, %v5180
      %v5268 = vpack.c.b16 %v5187, %v5184
      %v5269 = vpack.c.b16 %v5188, %v5185
      %v5270 = vpack.c.b16 %v5189, %v5186
      %v5271 = vpack.c.b16 %v5193, %v5190
      %v5272 = vpack.c.b16 %v5194, %v5191
      %v5273 = vpack.c.b16 %v5195, %v5192
      %5352 = vmatpush.bf16.msra.mxu0 %v5217
      %5353 = vmatpush.bf16.msra.mxu0 %v5214
      %5354 = vmatpush.bf16.msra.mxu0 %v5211
      %5355 = vmatpush.bf16.msra.mxu0 %v5208
      %5356 = vmatpush.bf16.msra.mxu0 %v5205
      %5357 = vmatpush.bf16.msra.mxu0 %v5202
      %5358 = vmatpush.bf16.msra.mxu0 %v5199
      %5359 = vmatpush.bf16.msra.mxu0 %v5196
      %5360 = vmatmul.bf16.gmra.mxu0 %v1833
      %v5361 = vpop.f32.mrf.mxu0
      %v5362 = vadd.f32 0.0, %v5361
      %v5363 = vpop.f32.mrf.mxu0
      %v5364 = vadd.f32 0.0, %v5363
      %5365 = vmatmul.bf16.gmra.mxu0 %v1877
      %v5366 = vpop.f32.mrf.mxu0
      %v5367 = vadd.f32 0.0, %v5366
      %v5368 = vpop.f32.mrf.mxu0
      %v5369 = vadd.f32 0.0, %v5368
      %5370 = vmatmul.bf16.gmra.mxu0 %v1909
      %v5371 = vpop.f32.mrf.mxu0
      %v5372 = vadd.f32 0.0, %v5371
      %v5373 = vpop.f32.mrf.mxu0
      %v5374 = vadd.f32 0.0, %v5373
      %5375 = vmatmul.bf16.gmra.mxu0 %v1941
      %v5376 = vpop.f32.mrf.mxu0
      %v5377 = vadd.f32 0.0, %v5376
      %v5378 = vpop.f32.mrf.mxu0
      %v5379 = vadd.f32 0.0, %v5378
      %5380 = vmatmul.bf16.gmra.mxu0 %v1973
      %v5381 = vpop.f32.mrf.mxu0
      %v5382 = vadd.f32 0.0, %v5381
      %v5383 = vpop.f32.mrf.mxu0
      %v5384 = vadd.f32 0.0, %v5383
      %5385 = vdwg.mxu0
      %5386 = vmatpush.bf16.msra.mxu0 %v5241
      %5387 = vmatpush.bf16.msra.mxu0 %v5238
      %5388 = vmatpush.bf16.msra.mxu0 %v5235
      %5389 = vmatpush.bf16.msra.mxu0 %v5232
      %5390 = vmatpush.bf16.msra.mxu0 %v5229
      %5391 = vmatpush.bf16.msra.mxu0 %v5226
      %5392 = vmatpush.bf16.msra.mxu0 %v5223
      %5393 = vmatpush.bf16.msra.mxu0 %v5220
      %5394 = vmatmul.bf16.gmra.mxu0 %v1845
      %v5395 = vpop.f32.mrf.mxu0
      %v5396 = vadd.f32 %v5362, %v5395
      %v5397 = vpop.f32.mrf.mxu0
      %v5398 = vadd.f32 %v5364, %v5397
      %5399 = vmatmul.bf16.gmra.mxu0 %v1885
      %v5400 = vpop.f32.mrf.mxu0
      %v5401 = vadd.f32 %v5367, %v5400
      %v5402 = vpop.f32.mrf.mxu0
      %v5403 = vadd.f32 %v5369, %v5402
      %5404 = vmatmul.bf16.gmra.mxu0 %v1917
      %v5405 = vpop.f32.mrf.mxu0
      %v5406 = vadd.f32 %v5372, %v5405
      %v5407 = vpop.f32.mrf.mxu0
      %v5408 = vadd.f32 %v5374, %v5407
      %5409 = vmatmul.bf16.gmra.mxu0 %v1949
      %v5410 = vpop.f32.mrf.mxu0
      %v5411 = vadd.f32 %v5377, %v5410
      %v5412 = vpop.f32.mrf.mxu0
      %v5413 = vadd.f32 %v5379, %v5412
      %5414 = vmatmul.bf16.gmra.mxu0 %v1977
      %v5415 = vpop.f32.mrf.mxu0
      %v5416 = vadd.f32 %v5382, %v5415
      %v5417 = vpop.f32.mrf.mxu0
      %v5418 = vadd.f32 %v5384, %v5417
      %5419 = vdwg.mxu0
      %5420 = vmatpush.bf16.msra.mxu0 %v5265
      %5421 = vmatpush.bf16.msra.mxu0 %v5262
      %5422 = vmatpush.bf16.msra.mxu0 %v5259
      %5423 = vmatpush.bf16.msra.mxu0 %v5256
      %5424 = vmatpush.bf16.msra.mxu0 %v5253
      %5425 = vmatpush.bf16.msra.mxu0 %v5250
      %5426 = vmatpush.bf16.msra.mxu0 %v5247
      %5427 = vmatpush.bf16.msra.mxu0 %v5244
      %5428 = vmatmul.bf16.gmra.mxu0 %v1857
      %v5429 = vpop.f32.mrf.mxu0
      %v5430 = vadd.f32 %v5396, %v5429
      %v5431 = vpop.f32.mrf.mxu0
      %v5432 = vadd.f32 %v5398, %v5431
      %5433 = vmatmul.bf16.gmra.mxu0 %v1893
      %v5434 = vpop.f32.mrf.mxu0
      %v5435 = vadd.f32 %v5401, %v5434
      %v5436 = vpop.f32.mrf.mxu0
      %v5437 = vadd.f32 %v5403, %v5436
      %5438 = vmatmul.bf16.gmra.mxu0 %v1925
      %v5439 = vpop.f32.mrf.mxu0
      %v5440 = vadd.f32 %v5406, %v5439
      %v5441 = vpop.f32.mrf.mxu0
      %v5442 = vadd.f32 %v5408, %v5441
      %5443 = vmatmul.bf16.gmra.mxu0 %v1957
      %v5444 = vpop.f32.mrf.mxu0
      %v5445 = vadd.f32 %v5411, %v5444
      %v5446 = vpop.f32.mrf.mxu0
      %v5447 = vadd.f32 %v5413, %v5446
      %5448 = vmatmul.bf16.gmra.mxu0 %v1981
      %v5449 = vpop.f32.mrf.mxu0
      %v5450 = vadd.f32 %v5416, %v5449
      %v5451 = vpop.f32.mrf.mxu0
      %v5452 = vadd.f32 %v5418, %v5451
      %5453 = vdwg.mxu0
      %5454 = vmatpush.bf16.msra.mxu0 0
      %5455 = vmatpush.bf16.msra.mxu0 0
      %5456 = vmatpush.bf16.msra.mxu0 0
      %5457 = vmatpush.bf16.msra.mxu0 0
      %5458 = vmatpush.bf16.msra.mxu0 0
      %5459 = vmatpush.bf16.msra.mxu0 0
      %5460 = vmatpush.bf16.msra.mxu0 %v5271
      %5461 = vmatpush.bf16.msra.mxu0 %v5268
      %5462 = vmatmul.bf16.gmra.mxu0 %v2419
      %v5463 = vpop.f32.mrf.mxu0
      %v5464 = vadd.f32 %v5430, %v5463
      %v5465 = vpop.f32.mrf.mxu0
      %v5466 = vadd.f32 %v5432, %v5465
      %5467 = vmatmul.bf16.gmra.mxu0 %v2422
      %v5468 = vpop.f32.mrf.mxu0
      %v5469 = vadd.f32 %v5435, %v5468
      %v5470 = vpop.f32.mrf.mxu0
      %v5471 = vadd.f32 %v5437, %v5470
      %5472 = vmatmul.bf16.gmra.mxu0 %v2425
      %v5473 = vpop.f32.mrf.mxu0
      %v5474 = vadd.f32 %v5440, %v5473
      %v5475 = vpop.f32.mrf.mxu0
      %v5476 = vadd.f32 %v5442, %v5475
      %5477 = vmatmul.bf16.gmra.mxu0 %v2428
      %v5478 = vpop.f32.mrf.mxu0
      %v5479 = vadd.f32 %v5445, %v5478
      %v5480 = vpop.f32.mrf.mxu0
      %v5481 = vadd.f32 %v5447, %v5480
      %5482 = vmatmul.bf16.gmra.mxu0 %v2431
      %v5483 = vpop.f32.mrf.mxu0
      %v5484 = vadd.f32 %v5450, %v5483
      %v5485 = vpop.f32.mrf.mxu0
      %v5486 = vadd.f32 %v5452, %v5485
      %5487 = vdwg.mxu0
      %5488 = vmatpush.bf16.msra.mxu0 %v5218
      %5489 = vmatpush.bf16.msra.mxu0 %v5215
      %5490 = vmatpush.bf16.msra.mxu0 %v5212
      %5491 = vmatpush.bf16.msra.mxu0 %v5209
      %5492 = vmatpush.bf16.msra.mxu0 %v5206
      %5493 = vmatpush.bf16.msra.mxu0 %v5203
      %5494 = vmatpush.bf16.msra.mxu0 %v5200
      %5495 = vmatpush.bf16.msra.mxu0 %v5197
      %5496 = vmatmul.bf16.gmra.mxu0 %v1833
      %v5497 = vpop.f32.mrf.mxu0
      %v5498 = vadd.f32 0.0, %v5497
      %v5499 = vpop.f32.mrf.mxu0
      %v5500 = vadd.f32 0.0, %v5499
      %5501 = vmatmul.bf16.gmra.mxu0 %v1877
      %v5502 = vpop.f32.mrf.mxu0
      %v5503 = vadd.f32 0.0, %v5502
      %v5504 = vpop.f32.mrf.mxu0
      %v5505 = vadd.f32 0.0, %v5504
      %5506 = vmatmul.bf16.gmra.mxu0 %v1909
      %v5507 = vpop.f32.mrf.mxu0
      %v5508 = vadd.f32 0.0, %v5507
      %v5509 = vpop.f32.mrf.mxu0
      %v5510 = vadd.f32 0.0, %v5509
      %5511 = vmatmul.bf16.gmra.mxu0 %v1941
      %v5512 = vpop.f32.mrf.mxu0
      %v5513 = vadd.f32 0.0, %v5512
      %v5514 = vpop.f32.mrf.mxu0
      %v5515 = vadd.f32 0.0, %v5514
      %5516 = vmatmul.bf16.gmra.mxu0 %v1973
      %v5517 = vpop.f32.mrf.mxu0
      %v5518 = vadd.f32 0.0, %v5517
      %v5519 = vpop.f32.mrf.mxu0
      %v5520 = vadd.f32 0.0, %v5519
      %5521 = vdwg.mxu0
      %5522 = vmatpush.bf16.msra.mxu0 %v5242
      %5523 = vmatpush.bf16.msra.mxu0 %v5239
      %5524 = vmatpush.bf16.msra.mxu0 %v5236
      %5525 = vmatpush.bf16.msra.mxu0 %v5233
      %5526 = vmatpush.bf16.msra.mxu0 %v5230
      %5527 = vmatpush.bf16.msra.mxu0 %v5227
      %5528 = vmatpush.bf16.msra.mxu0 %v5224
      %5529 = vmatpush.bf16.msra.mxu0 %v5221
      %5530 = vmatmul.bf16.gmra.mxu0 %v1845
      %v5531 = vpop.f32.mrf.mxu0
      %v5532 = vadd.f32 %v5498, %v5531
      %v5533 = vpop.f32.mrf.mxu0
      %v5534 = vadd.f32 %v5500, %v5533
      %5535 = vmatmul.bf16.gmra.mxu0 %v1885
      %v5536 = vpop.f32.mrf.mxu0
      %v5537 = vadd.f32 %v5503, %v5536
      %v5538 = vpop.f32.mrf.mxu0
      %v5539 = vadd.f32 %v5505, %v5538
      %5540 = vmatmul.bf16.gmra.mxu0 %v1917
      %v5541 = vpop.f32.mrf.mxu0
      %v5542 = vadd.f32 %v5508, %v5541
      %v5543 = vpop.f32.mrf.mxu0
      %v5544 = vadd.f32 %v5510, %v5543
      %5545 = vmatmul.bf16.gmra.mxu0 %v1949
      %v5546 = vpop.f32.mrf.mxu0
      %v5547 = vadd.f32 %v5513, %v5546
      %v5548 = vpop.f32.mrf.mxu0
      %v5549 = vadd.f32 %v5515, %v5548
      %5550 = vmatmul.bf16.gmra.mxu0 %v1977
      %v5551 = vpop.f32.mrf.mxu0
      %v5552 = vadd.f32 %v5518, %v5551
      %v5553 = vpop.f32.mrf.mxu0
      %v5554 = vadd.f32 %v5520, %v5553
      %5555 = vdwg.mxu0
      %5556 = vmatpush.bf16.msra.mxu0 %v5266
      %5557 = vmatpush.bf16.msra.mxu0 %v5263
      %5558 = vmatpush.bf16.msra.mxu0 %v5260
      %5559 = vmatpush.bf16.msra.mxu0 %v5257
      %5560 = vmatpush.bf16.msra.mxu0 %v5254
      %5561 = vmatpush.bf16.msra.mxu0 %v5251
      %5562 = vmatpush.bf16.msra.mxu0 %v5248
      %5563 = vmatpush.bf16.msra.mxu0 %v5245
      %5564 = vmatmul.bf16.gmra.mxu0 %v1857
      %v5565 = vpop.f32.mrf.mxu0
      %v5566 = vadd.f32 %v5532, %v5565
      %v5567 = vpop.f32.mrf.mxu0
      %v5568 = vadd.f32 %v5534, %v5567
      %5569 = vmatmul.bf16.gmra.mxu0 %v1893
      %v5570 = vpop.f32.mrf.mxu0
      %v5571 = vadd.f32 %v5537, %v5570
      %v5572 = vpop.f32.mrf.mxu0
      %v5573 = vadd.f32 %v5539, %v5572
      %5574 = vmatmul.bf16.gmra.mxu0 %v1925
      %v5575 = vpop.f32.mrf.mxu0
      %v5576 = vadd.f32 %v5542, %v5575
      %v5577 = vpop.f32.mrf.mxu0
      %v5578 = vadd.f32 %v5544, %v5577
      %5579 = vmatmul.bf16.gmra.mxu0 %v1957
      %v5580 = vpop.f32.mrf.mxu0
      %v5581 = vadd.f32 %v5547, %v5580
      %v5582 = vpop.f32.mrf.mxu0
      %v5583 = vadd.f32 %v5549, %v5582
      %5584 = vmatmul.bf16.gmra.mxu0 %v1981
      %v5585 = vpop.f32.mrf.mxu0
      %v5586 = vadd.f32 %v5552, %v5585
      %v5587 = vpop.f32.mrf.mxu0
      %v5588 = vadd.f32 %v5554, %v5587
      %5589 = vdwg.mxu0
      %5590 = vmatpush.bf16.msra.mxu0 0
      %5591 = vmatpush.bf16.msra.mxu0 0
      %5592 = vmatpush.bf16.msra.mxu0 0
      %5593 = vmatpush.bf16.msra.mxu0 0
      %5594 = vmatpush.bf16.msra.mxu0 0
      %5595 = vmatpush.bf16.msra.mxu0 0
      %5596 = vmatpush.bf16.msra.mxu0 %v5272
      %5597 = vmatpush.bf16.msra.mxu0 %v5269
      %5598 = vmatmul.bf16.gmra.mxu0 %v2419
      %v5599 = vpop.f32.mrf.mxu0
      %v5600 = vadd.f32 %v5566, %v5599
      %v5601 = vpop.f32.mrf.mxu0
      %v5602 = vadd.f32 %v5568, %v5601
      %5603 = vmatmul.bf16.gmra.mxu0 %v2422
      %v5604 = vpop.f32.mrf.mxu0
      %v5605 = vadd.f32 %v5571, %v5604
      %v5606 = vpop.f32.mrf.mxu0
      %v5607 = vadd.f32 %v5573, %v5606
      %5608 = vmatmul.bf16.gmra.mxu0 %v2425
      %v5609 = vpop.f32.mrf.mxu0
      %v5610 = vadd.f32 %v5576, %v5609
      %v5611 = vpop.f32.mrf.mxu0
      %v5612 = vadd.f32 %v5578, %v5611
      %5613 = vmatmul.bf16.gmra.mxu0 %v2428
      %v5614 = vpop.f32.mrf.mxu0
      %v5615 = vadd.f32 %v5581, %v5614
      %v5616 = vpop.f32.mrf.mxu0
      %v5617 = vadd.f32 %v5583, %v5616
      %5618 = vmatmul.bf16.gmra.mxu0 %v2431
      %v5619 = vpop.f32.mrf.mxu0
      %v5620 = vadd.f32 %v5586, %v5619
      %v5621 = vpop.f32.mrf.mxu0
      %v5622 = vadd.f32 %v5588, %v5621
      %5623 = vdwg.mxu0
      %5624 = vmatpush.bf16.msra.mxu0 %v5219
      %5625 = vmatpush.bf16.msra.mxu0 %v5216
      %5626 = vmatpush.bf16.msra.mxu0 %v5213
      %5627 = vmatpush.bf16.msra.mxu0 %v5210
      %5628 = vmatpush.bf16.msra.mxu0 %v5207
      %5629 = vmatpush.bf16.msra.mxu0 %v5204
      %5630 = vmatpush.bf16.msra.mxu0 %v5201
      %5631 = vmatpush.bf16.msra.mxu0 %v5198
      %5632 = vmatmul.bf16.gmra.mxu0 %v1833
      %v5633 = vpop.f32.mrf.mxu0
      %v5634 = vadd.f32 0.0, %v5633
      %v5635 = vpop.f32.mrf.mxu0
      %v5636 = vadd.f32 0.0, %v5635
      %5637 = vmatmul.bf16.gmra.mxu0 %v1877
      %v5638 = vpop.f32.mrf.mxu0
      %v5639 = vadd.f32 0.0, %v5638
      %v5640 = vpop.f32.mrf.mxu0
      %v5641 = vadd.f32 0.0, %v5640
      %5642 = vmatmul.bf16.gmra.mxu0 %v1909
      %v5643 = vpop.f32.mrf.mxu0
      %v5644 = vadd.f32 0.0, %v5643
      %v5645 = vpop.f32.mrf.mxu0
      %v5646 = vadd.f32 0.0, %v5645
      %5647 = vmatmul.bf16.gmra.mxu0 %v1941
      %v5648 = vpop.f32.mrf.mxu0
      %v5649 = vadd.f32 0.0, %v5648
      %v5650 = vpop.f32.mrf.mxu0
      %v5651 = vadd.f32 0.0, %v5650
      %5652 = vmatmul.bf16.gmra.mxu0 %v1973
      %v5653 = vpop.f32.mrf.mxu0
      %v5654 = vadd.f32 0.0, %v5653
      %v5655 = vpop.f32.mrf.mxu0
      %v5656 = vadd.f32 0.0, %v5655
      %5657 = vdwg.mxu0
      %5658 = vmatpush.bf16.msra.mxu0 %v5243
      %5659 = vmatpush.bf16.msra.mxu0 %v5240
      %5660 = vmatpush.bf16.msra.mxu0 %v5237
      %5661 = vmatpush.bf16.msra.mxu0 %v5234
      %5662 = vmatpush.bf16.msra.mxu0 %v5231
      %5663 = vmatpush.bf16.msra.mxu0 %v5228
      %5664 = vmatpush.bf16.msra.mxu0 %v5225
      %5665 = vmatpush.bf16.msra.mxu0 %v5222
      %5666 = vmatmul.bf16.gmra.mxu0 %v1845
      %v5667 = vpop.f32.mrf.mxu0
      %v5668 = vadd.f32 %v5634, %v5667
      %v5669 = vpop.f32.mrf.mxu0
      %v5670 = vadd.f32 %v5636, %v5669
      %5671 = vmatmul.bf16.gmra.mxu0 %v1885
      %v5672 = vpop.f32.mrf.mxu0
      %v5673 = vadd.f32 %v5639, %v5672
      %v5674 = vpop.f32.mrf.mxu0
      %v5675 = vadd.f32 %v5641, %v5674
      %5676 = vmatmul.bf16.gmra.mxu0 %v1917
      %v5677 = vpop.f32.mrf.mxu0
      %v5678 = vadd.f32 %v5644, %v5677
      %v5679 = vpop.f32.mrf.mxu0
      %v5680 = vadd.f32 %v5646, %v5679
      %5681 = vmatmul.bf16.gmra.mxu0 %v1949
      %v5682 = vpop.f32.mrf.mxu0
      %v5683 = vadd.f32 %v5649, %v5682
      %v5684 = vpop.f32.mrf.mxu0
      %v5685 = vadd.f32 %v5651, %v5684
      %5686 = vmatmul.bf16.gmra.mxu0 %v1977
      %v5687 = vpop.f32.mrf.mxu0
      %v5688 = vadd.f32 %v5654, %v5687
      %v5689 = vpop.f32.mrf.mxu0
      %v5690 = vadd.f32 %v5656, %v5689
      %5691 = vdwg.mxu0
      %5692 = vmatpush.bf16.msra.mxu0 %v5267
      %5693 = vmatpush.bf16.msra.mxu0 %v5264
      %5694 = vmatpush.bf16.msra.mxu0 %v5261
      %5695 = vmatpush.bf16.msra.mxu0 %v5258
      %5696 = vmatpush.bf16.msra.mxu0 %v5255
      %5697 = vmatpush.bf16.msra.mxu0 %v5252
      %5698 = vmatpush.bf16.msra.mxu0 %v5249
      %5699 = vmatpush.bf16.msra.mxu0 %v5246
      %5700 = vmatmul.bf16.gmra.mxu0 %v1857
      %v5701 = vpop.f32.mrf.mxu0
      %v5702 = vadd.f32 %v5668, %v5701
      %v5703 = vpop.f32.mrf.mxu0
      %v5704 = vadd.f32 %v5670, %v5703
      %5705 = vmatmul.bf16.gmra.mxu0 %v1893
      %v5706 = vpop.f32.mrf.mxu0
      %v5707 = vadd.f32 %v5673, %v5706
      %v5708 = vpop.f32.mrf.mxu0
      %v5709 = vadd.f32 %v5675, %v5708
      %5710 = vmatmul.bf16.gmra.mxu0 %v1925
      %v5711 = vpop.f32.mrf.mxu0
      %v5712 = vadd.f32 %v5678, %v5711
      %v5713 = vpop.f32.mrf.mxu0
      %v5714 = vadd.f32 %v5680, %v5713
      %5715 = vmatmul.bf16.gmra.mxu0 %v1957
      %v5716 = vpop.f32.mrf.mxu0
      %v5717 = vadd.f32 %v5683, %v5716
      %v5718 = vpop.f32.mrf.mxu0
      %v5719 = vadd.f32 %v5685, %v5718
      %5720 = vmatmul.bf16.gmra.mxu0 %v1981
      %v5721 = vpop.f32.mrf.mxu0
      %v5722 = vadd.f32 %v5688, %v5721
      %v5723 = vpop.f32.mrf.mxu0
      %v5724 = vadd.f32 %v5690, %v5723
      %5725 = vdwg.mxu0
      %5726 = vmatpush.bf16.msra.mxu0 0
      %5727 = vmatpush.bf16.msra.mxu0 0
      %5728 = vmatpush.bf16.msra.mxu0 0
      %5729 = vmatpush.bf16.msra.mxu0 0
      %5730 = vmatpush.bf16.msra.mxu0 0
      %5731 = vmatpush.bf16.msra.mxu0 0
      %5732 = vmatpush.bf16.msra.mxu0 %v5273
      %5733 = vmatpush.bf16.msra.mxu0 %v5270
      %5734 = vmatmul.bf16.gmra.mxu0 %v2419
      %v5735 = vpop.f32.mrf.mxu0
      %v5736 = vadd.f32 %v5702, %v5735
      %v5737 = vpop.f32.mrf.mxu0
      %v5738 = vadd.f32 %v5704, %v5737
      %5739 = vmatmul.bf16.gmra.mxu0 %v2422
      %v5740 = vpop.f32.mrf.mxu0
      %v5741 = vadd.f32 %v5707, %v5740
      %v5742 = vpop.f32.mrf.mxu0
      %v5743 = vadd.f32 %v5709, %v5742
      %5744 = vmatmul.bf16.gmra.mxu0 %v2425
      %v5745 = vpop.f32.mrf.mxu0
      %v5746 = vadd.f32 %v5712, %v5745
      %v5747 = vpop.f32.mrf.mxu0
      %v5748 = vadd.f32 %v5714, %v5747
      %5749 = vmatmul.bf16.gmra.mxu0 %v2428
      %v5750 = vpop.f32.mrf.mxu0
      %v5751 = vadd.f32 %v5717, %v5750
      %v5752 = vpop.f32.mrf.mxu0
      %v5753 = vadd.f32 %v5719, %v5752
      %5754 = vmatmul.bf16.gmra.mxu0 %v2431
      %v5755 = vpop.f32.mrf.mxu0
      %v5756 = vadd.f32 %v5722, %v5755
      %v5757 = vpop.f32.mrf.mxu0
      %v5758 = vadd.f32 %v5724, %v5757
      %5759 = vdwg.mxu0
      %v5864 = vunpack.c.l.b16 %v4727
      %v5865 = vunpack.c.h.b16 %v4727
      %v5866 = vunpack.c.l.b16 %v4728
      %v5867 = vunpack.c.l.b16 %v4729
      %v5868 = vunpack.c.h.b16 %v4729
      %v5869 = vunpack.c.l.b16 %v4730
      %v5870 = vunpack.c.l.b16 %v4731
      %v5871 = vunpack.c.h.b16 %v4731
      %v5872 = vunpack.c.l.b16 %v4732
      %v5873 = vunpack.c.l.b16 %v4733
      %v5874 = vunpack.c.h.b16 %v4733
      %v5875 = vunpack.c.l.b16 %v4734
      %v5876 = vunpack.c.l.b16 %v4735
      %v5877 = vunpack.c.h.b16 %v4735
      %v5878 = vunpack.c.l.b16 %v4736
      %v5879 = vunpack.c.l.b16 %v4737
      %v5880 = vunpack.c.h.b16 %v4737
      %v5881 = vunpack.c.l.b16 %v4738
      %v5882 = vunpack.c.l.b16 %v4739
      %v5883 = vunpack.c.h.b16 %v4739
      %v5884 = vunpack.c.l.b16 %v4740
      %v5885 = vunpack.c.l.b16 %v4741
      %v5886 = vunpack.c.h.b16 %v4741
      %v5887 = vunpack.c.l.b16 %v4742
      %v5888 = vunpack.c.l.b16 %v4743
      %v5889 = vunpack.c.h.b16 %v4743
      %v5890 = vunpack.c.l.b16 %v4744
      %v5891 = vunpack.c.l.b16 %v4745
      %v5892 = vunpack.c.h.b16 %v4745
      %v5893 = vunpack.c.l.b16 %v4746
      %v5894 = vunpack.c.l.b16 %v4747
      %v5895 = vunpack.c.h.b16 %v4747
      %v5896 = vunpack.c.l.b16 %v4748
      %v5897 = vunpack.c.l.b16 %v4749
      %v5898 = vunpack.c.h.b16 %v4749
      %v5899 = vunpack.c.l.b16 %v4750
      %v5900 = vunpack.c.l.b16 %v4751
      %v5901 = vunpack.c.h.b16 %v4751
      %v5902 = vunpack.c.l.b16 %v4752
      %v5903 = vunpack.c.l.b16 %v4753
      %v5904 = vunpack.c.h.b16 %v4753
      %v5905 = vunpack.c.l.b16 %v4754
      %v5906 = vunpack.c.l.b16 %v4755
      %v5907 = vunpack.c.h.b16 %v4755
      %v5908 = vunpack.c.l.b16 %v4756
      %v5909 = vunpack.c.l.b16 %v4757
      %v5910 = vunpack.c.h.b16 %v4757
      %v5911 = vunpack.c.l.b16 %v4758
      %v5912 = vunpack.c.l.b16 %v4759
      %v5913 = vunpack.c.h.b16 %v4759
      %v5914 = vunpack.c.l.b16 %v4760
      %v5915 = vunpack.c.l.b16 %v4761
      %v5916 = vunpack.c.h.b16 %v4761
      %v5917 = vunpack.c.l.b16 %v4762
      %v5918 = vunpack.c.l.b16 %v4763
      %v5919 = vunpack.c.h.b16 %v4763
      %v5920 = vunpack.c.l.b16 %v4764
      %v5921 = vunpack.c.l.b16 %v4765
      %v5922 = vunpack.c.h.b16 %v4765
      %v5923 = vunpack.c.l.b16 %v4766
      %v5924 = vunpack.c.l.b16 %v4767
      %v5925 = vunpack.c.h.b16 %v4767
      %v5926 = vunpack.c.l.b16 %v4768
      %v5927 = vunpack.c.l.b16 %v4769
      %v5928 = vunpack.c.h.b16 %v4769
      %v5929 = vunpack.c.l.b16 %v4770
      %v5930 = vunpack.c.l.b16 %v4771
      %v5931 = vunpack.c.h.b16 %v4771
      %v5932 = vunpack.c.l.b16 %v4772
      %v5933 = vunpack.c.l.b16 %v4773
      %v5934 = vunpack.c.h.b16 %v4773
      %v5935 = vunpack.c.l.b16 %v4774
      %v5936 = vunpack.c.l.b16 %v4775
      %v5937 = vunpack.c.h.b16 %v4775
      %v5938 = vunpack.c.l.b16 %v4776
      %v5939 = vunpack.c.l.b16 %v4777
      %v5940 = vunpack.c.h.b16 %v4777
      %v5941 = vunpack.c.l.b16 %v4778
      %v5942 = vunpack.c.l.b16 %v4779
      %v5943 = vunpack.c.h.b16 %v4779
      %v5944 = vunpack.c.l.b16 %v4780
      %v5945 = vunpack.c.l.b16 %v4781
      %v5946 = vunpack.c.h.b16 %v4781
      %v5947 = vunpack.c.l.b16 %v4782
      %v5948 = vunpack.c.l.b16 %v4783
      %v5949 = vunpack.c.h.b16 %v4783
      %v5950 = vunpack.c.l.b16 %v4784
      %v5951 = vunpack.c.l.b16 %v4785
      %v5952 = vunpack.c.h.b16 %v4785
      %v5953 = vunpack.c.l.b16 %v4786
      %v5954 = vunpack.c.l.b16 %v4787
      %v5955 = vunpack.c.h.b16 %v4787
      %v5956 = vunpack.c.l.b16 %v4788
      %v5957 = vunpack.c.l.b16 %v4789
      %v5958 = vunpack.c.h.b16 %v4789
      %v5959 = vunpack.c.l.b16 %v4790
      %v5960 = vunpack.c.l.b16 %v4791
      %v5961 = vunpack.c.h.b16 %v4791
      %v5962 = vunpack.c.l.b16 %v4792
      %v5963 = vunpack.c.l.b16 %v4793
      %v5964 = vunpack.c.h.b16 %v4793
      %v5965 = vunpack.c.l.b16 %v4794
      %v5966 = vunpack.c.l.b16 %v4795
      %v5967 = vunpack.c.h.b16 %v4795
      %v5968 = vunpack.c.l.b16 %v4796
      %v5969 = vunpack.c.l.b16 %v4797
      %v5970 = vunpack.c.h.b16 %v4797
      %v5971 = vunpack.c.l.b16 %v4798
      %v5972 = vunpack.c.l.b16 %v4799
      %v5973 = vunpack.c.h.b16 %v4799
      %v5974 = vunpack.c.l.b16 %v4800
      %v5975 = vunpack.c.l.b16 %v4801
      %v5976 = vunpack.c.h.b16 %v4801
      %v5977 = vunpack.c.l.b16 %v4802
      %v5978 = vunpack.c.l.b16 %v4803
      %v5979 = vunpack.c.h.b16 %v4803
      %v5980 = vunpack.c.l.b16 %v4804
      %v5981 = vunpack.c.l.b16 %v4805
      %v5982 = vunpack.c.h.b16 %v4805
      %v5983 = vunpack.c.l.b16 %v4806
      %v5984 = vunpack.c.l.b16 %v4807
      %v5985 = vunpack.c.h.b16 %v4807
      %v5986 = vunpack.c.l.b16 %v4808
      %v5987 = vunpack.c.l.b16 %v4809
      %v5988 = vunpack.c.h.b16 %v4809
      %v5989 = vunpack.c.l.b16 %v4810
      %v5990 = vunpack.c.l.b16 %v4811
      %v5991 = vunpack.c.h.b16 %v4811
      %v5992 = vunpack.c.l.b16 %v4812
      %v5993 = vunpack.c.l.b16 %v4813
      %v5994 = vunpack.c.h.b16 %v4813
      %v5995 = vunpack.c.l.b16 %v4814
      %v5996 = vunpack.c.l.b16 %v4815
      %v5997 = vunpack.c.h.b16 %v4815
      %v5998 = vunpack.c.l.b16 %v4816
      %v5999 = vunpack.c.l.b16 %v4817
      %v6000 = vunpack.c.h.b16 %v4817
      %v6001 = vunpack.c.l.b16 %v4818
      %v6002 = vunpack.c.l.b16 %v4819
      %v6003 = vunpack.c.h.b16 %v4819
      %v6004 = vunpack.c.l.b16 %v4820
      %v6005 = vunpack.c.l.b16 %v4821
      %v6006 = vunpack.c.h.b16 %v4821
      %v6007 = vunpack.c.l.b16 %v4822
      %v6008 = vunpack.c.l.b16 %v4823
      %v6009 = vunpack.c.h.b16 %v4823
      %v6010 = vunpack.c.l.b16 %v4824
      %v6011 = vunpack.c.l.b16 %v4825
      %v6012 = vunpack.c.h.b16 %v4825
      %v6013 = vunpack.c.l.b16 %v4826
      %v6014 = vunpack.c.l.b16 %v4827
      %v6015 = vunpack.c.h.b16 %v4827
      %v6016 = vunpack.c.l.b16 %v4828
      %v6017 = vunpack.c.l.b16 %v4829
      %v6018 = vunpack.c.h.b16 %v4829
      %v6019 = vunpack.c.l.b16 %v4830
      %v6020 = vpack.c.b16 %v5867, %v5864
      %v6021 = vpack.c.b16 %v5868, %v5865
      %v6022 = vpack.c.b16 %v5869, %v5866
      %v6023 = vpack.c.b16 %v5873, %v5870
      %v6024 = vpack.c.b16 %v5874, %v5871
      %v6025 = vpack.c.b16 %v5875, %v5872
      %v6026 = vpack.c.b16 %v5879, %v5876
      %v6027 = vpack.c.b16 %v5880, %v5877
      %v6028 = vpack.c.b16 %v5881, %v5878
      %v6029 = vpack.c.b16 %v5885, %v5882
      %v6030 = vpack.c.b16 %v5886, %v5883
      %v6031 = vpack.c.b16 %v5887, %v5884
      %v6032 = vpack.c.b16 %v5891, %v5888
      %v6033 = vpack.c.b16 %v5892, %v5889
      %v6034 = vpack.c.b16 %v5893, %v5890
      %v6035 = vpack.c.b16 %v5897, %v5894
      %v6036 = vpack.c.b16 %v5898, %v5895
      %v6037 = vpack.c.b16 %v5899, %v5896
      %v6038 = vpack.c.b16 %v5903, %v5900
      %v6039 = vpack.c.b16 %v5904, %v5901
      %v6040 = vpack.c.b16 %v5905, %v5902
      %v6041 = vpack.c.b16 %v5909, %v5906
      %v6042 = vpack.c.b16 %v5910, %v5907
      %v6043 = vpack.c.b16 %v5911, %v5908
      %v6044 = vpack.c.b16 %v5915, %v5912
      %v6045 = vpack.c.b16 %v5916, %v5913
      %v6046 = vpack.c.b16 %v5917, %v5914
      %v6047 = vpack.c.b16 %v5921, %v5918
      %v6048 = vpack.c.b16 %v5922, %v5919
      %v6049 = vpack.c.b16 %v5923, %v5920
      %v6050 = vpack.c.b16 %v5927, %v5924
      %v6051 = vpack.c.b16 %v5928, %v5925
      %v6052 = vpack.c.b16 %v5929, %v5926
      %v6053 = vpack.c.b16 %v5933, %v5930
      %v6054 = vpack.c.b16 %v5934, %v5931
      %v6055 = vpack.c.b16 %v5935, %v5932
      %v6056 = vpack.c.b16 %v5939, %v5936
      %v6057 = vpack.c.b16 %v5940, %v5937
      %v6058 = vpack.c.b16 %v5941, %v5938
      %v6059 = vpack.c.b16 %v5945, %v5942
      %v6060 = vpack.c.b16 %v5946, %v5943
      %v6061 = vpack.c.b16 %v5947, %v5944
      %v6062 = vpack.c.b16 %v5951, %v5948
      %v6063 = vpack.c.b16 %v5952, %v5949
      %v6064 = vpack.c.b16 %v5953, %v5950
      %v6065 = vpack.c.b16 %v5957, %v5954
      %v6066 = vpack.c.b16 %v5958, %v5955
      %v6067 = vpack.c.b16 %v5959, %v5956
      %v6068 = vpack.c.b16 %v5963, %v5960
      %v6069 = vpack.c.b16 %v5964, %v5961
      %v6070 = vpack.c.b16 %v5965, %v5962
      %v6071 = vpack.c.b16 %v5969, %v5966
      %v6072 = vpack.c.b16 %v5970, %v5967
      %v6073 = vpack.c.b16 %v5971, %v5968
      %v6074 = vpack.c.b16 %v5975, %v5972
      %v6075 = vpack.c.b16 %v5976, %v5973
      %v6076 = vpack.c.b16 %v5977, %v5974
      %v6077 = vpack.c.b16 %v5981, %v5978
      %v6078 = vpack.c.b16 %v5982, %v5979
      %v6079 = vpack.c.b16 %v5983, %v5980
      %v6080 = vpack.c.b16 %v5987, %v5984
      %v6081 = vpack.c.b16 %v5988, %v5985
      %v6082 = vpack.c.b16 %v5989, %v5986
      %v6083 = vpack.c.b16 %v5993, %v5990
      %v6084 = vpack.c.b16 %v5994, %v5991
      %v6085 = vpack.c.b16 %v5995, %v5992
      %v6086 = vpack.c.b16 %v5999, %v5996
      %v6087 = vpack.c.b16 %v6000, %v5997
      %v6088 = vpack.c.b16 %v6001, %v5998
      %v6089 = vpack.c.b16 %v6005, %v6002
      %v6090 = vpack.c.b16 %v6006, %v6003
      %v6091 = vpack.c.b16 %v6007, %v6004
      %v6092 = vpack.c.b16 %v6011, %v6008
      %v6093 = vpack.c.b16 %v6012, %v6009
      %v6094 = vpack.c.b16 %v6013, %v6010
      %v6095 = vpack.c.b16 %v6017, %v6014
      %v6096 = vpack.c.b16 %v6018, %v6015
      %v6097 = vpack.c.b16 %v6019, %v6016
      %6176 = vmatpush.bf16.msra.mxu0 %v6041
      %6177 = vmatpush.bf16.msra.mxu0 %v6038
      %6178 = vmatpush.bf16.msra.mxu0 %v6035
      %6179 = vmatpush.bf16.msra.mxu0 %v6032
      %6180 = vmatpush.bf16.msra.mxu0 %v6029
      %6181 = vmatpush.bf16.msra.mxu0 %v6026
      %6182 = vmatpush.bf16.msra.mxu0 %v6023
      %6183 = vmatpush.bf16.msra.mxu0 %v6020
      %6184 = vmatmul.bf16.gmra.mxu0 %v1591
      %v6185 = vpop.f32.mrf.mxu0
      %v6186 = vadd.f32 %v5464, %v6185
      %v6187 = vpop.f32.mrf.mxu0
      %v6188 = vadd.f32 %v5466, %v6187
      %6189 = vmatmul.bf16.gmra.mxu0 %v1595
      %v6190 = vpop.f32.mrf.mxu0
      %v6191 = vadd.f32 %v5469, %v6190
      %v6192 = vpop.f32.mrf.mxu0
      %v6193 = vadd.f32 %v5471, %v6192
      %6194 = vmatmul.bf16.gmra.mxu0 %v1599
      %v6195 = vpop.f32.mrf.mxu0
      %v6196 = vadd.f32 %v5474, %v6195
      %v6197 = vpop.f32.mrf.mxu0
      %v6198 = vadd.f32 %v5476, %v6197
      %6199 = vmatmul.bf16.gmra.mxu0 %v1603
      %v6200 = vpop.f32.mrf.mxu0
      %v6201 = vadd.f32 %v5479, %v6200
      %v6202 = vpop.f32.mrf.mxu0
      %v6203 = vadd.f32 %v5481, %v6202
      %6204 = vmatmul.bf16.gmra.mxu0 %v1607
      %v6205 = vpop.f32.mrf.mxu0
      %v6206 = vadd.f32 %v5484, %v6205
      %v6207 = vpop.f32.mrf.mxu0
      %v6208 = vadd.f32 %v5486, %v6207
      %6209 = vdwg.mxu0
      %6210 = vmatpush.bf16.msra.mxu0 %v6065
      %6211 = vmatpush.bf16.msra.mxu0 %v6062
      %6212 = vmatpush.bf16.msra.mxu0 %v6059
      %6213 = vmatpush.bf16.msra.mxu0 %v6056
      %6214 = vmatpush.bf16.msra.mxu0 %v6053
      %6215 = vmatpush.bf16.msra.mxu0 %v6050
      %6216 = vmatpush.bf16.msra.mxu0 %v6047
      %6217 = vmatpush.bf16.msra.mxu0 %v6044
      %6218 = vmatmul.bf16.gmra.mxu0 %v1592
      %v6219 = vpop.f32.mrf.mxu0
      %v6220 = vadd.f32 %v6186, %v6219
      %v6221 = vpop.f32.mrf.mxu0
      %v6222 = vadd.f32 %v6188, %v6221
      %6223 = vmatmul.bf16.gmra.mxu0 %v1596
      %v6224 = vpop.f32.mrf.mxu0
      %v6225 = vadd.f32 %v6191, %v6224
      %v6226 = vpop.f32.mrf.mxu0
      %v6227 = vadd.f32 %v6193, %v6226
      %6228 = vmatmul.bf16.gmra.mxu0 %v1600
      %v6229 = vpop.f32.mrf.mxu0
      %v6230 = vadd.f32 %v6196, %v6229
      %v6231 = vpop.f32.mrf.mxu0
      %v6232 = vadd.f32 %v6198, %v6231
      %6233 = vmatmul.bf16.gmra.mxu0 %v1604
      %v6234 = vpop.f32.mrf.mxu0
      %v6235 = vadd.f32 %v6201, %v6234
      %v6236 = vpop.f32.mrf.mxu0
      %v6237 = vadd.f32 %v6203, %v6236
      %6238 = vmatmul.bf16.gmra.mxu0 %v1608
      %v6239 = vpop.f32.mrf.mxu0
      %v6240 = vadd.f32 %v6206, %v6239
      %v6241 = vpop.f32.mrf.mxu0
      %v6242 = vadd.f32 %v6208, %v6241
      %6243 = vdwg.mxu0
      %6244 = vmatpush.bf16.msra.mxu0 %v6089
      %6245 = vmatpush.bf16.msra.mxu0 %v6086
      %6246 = vmatpush.bf16.msra.mxu0 %v6083
      %6247 = vmatpush.bf16.msra.mxu0 %v6080
      %6248 = vmatpush.bf16.msra.mxu0 %v6077
      %6249 = vmatpush.bf16.msra.mxu0 %v6074
      %6250 = vmatpush.bf16.msra.mxu0 %v6071
      %6251 = vmatpush.bf16.msra.mxu0 %v6068
      %6252 = vmatmul.bf16.gmra.mxu0 %v1593
      %v6253 = vpop.f32.mrf.mxu0
      %v6254 = vadd.f32 %v6220, %v6253
      %v6255 = vpop.f32.mrf.mxu0
      %v6256 = vadd.f32 %v6222, %v6255
      %6257 = vmatmul.bf16.gmra.mxu0 %v1597
      %v6258 = vpop.f32.mrf.mxu0
      %v6259 = vadd.f32 %v6225, %v6258
      %v6260 = vpop.f32.mrf.mxu0
      %v6261 = vadd.f32 %v6227, %v6260
      %6262 = vmatmul.bf16.gmra.mxu0 %v1601
      %v6263 = vpop.f32.mrf.mxu0
      %v6264 = vadd.f32 %v6230, %v6263
      %v6265 = vpop.f32.mrf.mxu0
      %v6266 = vadd.f32 %v6232, %v6265
      %6267 = vmatmul.bf16.gmra.mxu0 %v1605
      %v6268 = vpop.f32.mrf.mxu0
      %v6269 = vadd.f32 %v6235, %v6268
      %v6270 = vpop.f32.mrf.mxu0
      %v6271 = vadd.f32 %v6237, %v6270
      %6272 = vmatmul.bf16.gmra.mxu0 %v1609
      %v6273 = vpop.f32.mrf.mxu0
      %v6274 = vadd.f32 %v6240, %v6273
      %v6275 = vpop.f32.mrf.mxu0
      %v6276 = vadd.f32 %v6242, %v6275
      %6277 = vdwg.mxu0
      %6278 = vmatpush.bf16.msra.mxu0 0
      %6279 = vmatpush.bf16.msra.mxu0 0
      %6280 = vmatpush.bf16.msra.mxu0 0
      %6281 = vmatpush.bf16.msra.mxu0 0
      %6282 = vmatpush.bf16.msra.mxu0 0
      %6283 = vmatpush.bf16.msra.mxu0 0
      %6284 = vmatpush.bf16.msra.mxu0 %v6095
      %6285 = vmatpush.bf16.msra.mxu0 %v6092
      %6286 = vmatmul.bf16.gmra.mxu0 %v3257
      %v6287 = vpop.f32.mrf.mxu0
      %v6288 = vadd.f32 %v6254, %v6287
      %v6289 = vpop.f32.mrf.mxu0
      %v6290 = vadd.f32 %v6256, %v6289
      %6291 = vmatmul.bf16.gmra.mxu0 %v3259
      %v6292 = vpop.f32.mrf.mxu0
      %v6293 = vadd.f32 %v6259, %v6292
      %v6294 = vpop.f32.mrf.mxu0
      %v6295 = vadd.f32 %v6261, %v6294
      %6296 = vmatmul.bf16.gmra.mxu0 %v3261
      %v6297 = vpop.f32.mrf.mxu0
      %v6298 = vadd.f32 %v6264, %v6297
      %v6299 = vpop.f32.mrf.mxu0
      %v6300 = vadd.f32 %v6266, %v6299
      %6301 = vmatmul.bf16.gmra.mxu0 %v3263
      %v6302 = vpop.f32.mrf.mxu0
      %v6303 = vadd.f32 %v6269, %v6302
      %v6304 = vpop.f32.mrf.mxu0
      %v6305 = vadd.f32 %v6271, %v6304
      %6306 = vmatmul.bf16.gmra.mxu0 %v3265
      %v6307 = vpop.f32.mrf.mxu0
      %v6308 = vadd.f32 %v6274, %v6307
      %v6309 = vpop.f32.mrf.mxu0
      %v6310 = vadd.f32 %v6276, %v6309
      %6311 = vdwg.mxu0
      %6312 = vmatpush.bf16.msra.mxu0 %v6042
      %6313 = vmatpush.bf16.msra.mxu0 %v6039
      %6314 = vmatpush.bf16.msra.mxu0 %v6036
      %6315 = vmatpush.bf16.msra.mxu0 %v6033
      %6316 = vmatpush.bf16.msra.mxu0 %v6030
      %6317 = vmatpush.bf16.msra.mxu0 %v6027
      %6318 = vmatpush.bf16.msra.mxu0 %v6024
      %6319 = vmatpush.bf16.msra.mxu0 %v6021
      %6320 = vmatmul.bf16.gmra.mxu0 %v1591
      %v6321 = vpop.f32.mrf.mxu0
      %v6322 = vadd.f32 %v5600, %v6321
      %v6323 = vpop.f32.mrf.mxu0
      %v6324 = vadd.f32 %v5602, %v6323
      %6325 = vmatmul.bf16.gmra.mxu0 %v1595
      %v6326 = vpop.f32.mrf.mxu0
      %v6327 = vadd.f32 %v5605, %v6326
      %v6328 = vpop.f32.mrf.mxu0
      %v6329 = vadd.f32 %v5607, %v6328
      %6330 = vmatmul.bf16.gmra.mxu0 %v1599
      %v6331 = vpop.f32.mrf.mxu0
      %v6332 = vadd.f32 %v5610, %v6331
      %v6333 = vpop.f32.mrf.mxu0
      %v6334 = vadd.f32 %v5612, %v6333
      %6335 = vmatmul.bf16.gmra.mxu0 %v1603
      %v6336 = vpop.f32.mrf.mxu0
      %v6337 = vadd.f32 %v5615, %v6336
      %v6338 = vpop.f32.mrf.mxu0
      %v6339 = vadd.f32 %v5617, %v6338
      %6340 = vmatmul.bf16.gmra.mxu0 %v1607
      %v6341 = vpop.f32.mrf.mxu0
      %v6342 = vadd.f32 %v5620, %v6341
      %v6343 = vpop.f32.mrf.mxu0
      %v6344 = vadd.f32 %v5622, %v6343
      %6345 = vdwg.mxu0
      %6346 = vmatpush.bf16.msra.mxu0 %v6066
      %6347 = vmatpush.bf16.msra.mxu0 %v6063
      %6348 = vmatpush.bf16.msra.mxu0 %v6060
      %6349 = vmatpush.bf16.msra.mxu0 %v6057
      %6350 = vmatpush.bf16.msra.mxu0 %v6054
      %6351 = vmatpush.bf16.msra.mxu0 %v6051
      %6352 = vmatpush.bf16.msra.mxu0 %v6048
      %6353 = vmatpush.bf16.msra.mxu0 %v6045
      %6354 = vmatmul.bf16.gmra.mxu0 %v1592
      %v6355 = vpop.f32.mrf.mxu0
      %v6356 = vadd.f32 %v6322, %v6355
      %v6357 = vpop.f32.mrf.mxu0
      %v6358 = vadd.f32 %v6324, %v6357
      %6359 = vmatmul.bf16.gmra.mxu0 %v1596
      %v6360 = vpop.f32.mrf.mxu0
      %v6361 = vadd.f32 %v6327, %v6360
      %v6362 = vpop.f32.mrf.mxu0
      %v6363 = vadd.f32 %v6329, %v6362
      %6364 = vmatmul.bf16.gmra.mxu0 %v1600
      %v6365 = vpop.f32.mrf.mxu0
      %v6366 = vadd.f32 %v6332, %v6365
      %v6367 = vpop.f32.mrf.mxu0
      %v6368 = vadd.f32 %v6334, %v6367
      %6369 = vmatmul.bf16.gmra.mxu0 %v1604
      %v6370 = vpop.f32.mrf.mxu0
      %v6371 = vadd.f32 %v6337, %v6370
      %v6372 = vpop.f32.mrf.mxu0
      %v6373 = vadd.f32 %v6339, %v6372
      %6374 = vmatmul.bf16.gmra.mxu0 %v1608
      %v6375 = vpop.f32.mrf.mxu0
      %v6376 = vadd.f32 %v6342, %v6375
      %v6377 = vpop.f32.mrf.mxu0
      %v6378 = vadd.f32 %v6344, %v6377
      %6379 = vdwg.mxu0
      %6380 = vmatpush.bf16.msra.mxu0 %v6090
      %6381 = vmatpush.bf16.msra.mxu0 %v6087
      %6382 = vmatpush.bf16.msra.mxu0 %v6084
      %6383 = vmatpush.bf16.msra.mxu0 %v6081
      %6384 = vmatpush.bf16.msra.mxu0 %v6078
      %6385 = vmatpush.bf16.msra.mxu0 %v6075
      %6386 = vmatpush.bf16.msra.mxu0 %v6072
      %6387 = vmatpush.bf16.msra.mxu0 %v6069
      %6388 = vmatmul.bf16.gmra.mxu0 %v1593
      %v6389 = vpop.f32.mrf.mxu0
      %v6390 = vadd.f32 %v6356, %v6389
      %v6391 = vpop.f32.mrf.mxu0
      %v6392 = vadd.f32 %v6358, %v6391
      %6393 = vmatmul.bf16.gmra.mxu0 %v1597
      %v6394 = vpop.f32.mrf.mxu0
      %v6395 = vadd.f32 %v6361, %v6394
      %v6396 = vpop.f32.mrf.mxu0
      %v6397 = vadd.f32 %v6363, %v6396
      %6398 = vmatmul.bf16.gmra.mxu0 %v1601
      %v6399 = vpop.f32.mrf.mxu0
      %v6400 = vadd.f32 %v6366, %v6399
      %v6401 = vpop.f32.mrf.mxu0
      %v6402 = vadd.f32 %v6368, %v6401
      %6403 = vmatmul.bf16.gmra.mxu0 %v1605
      %v6404 = vpop.f32.mrf.mxu0
      %v6405 = vadd.f32 %v6371, %v6404
      %v6406 = vpop.f32.mrf.mxu0
      %v6407 = vadd.f32 %v6373, %v6406
      %6408 = vmatmul.bf16.gmra.mxu0 %v1609
      %v6409 = vpop.f32.mrf.mxu0
      %v6410 = vadd.f32 %v6376, %v6409
      %v6411 = vpop.f32.mrf.mxu0
      %v6412 = vadd.f32 %v6378, %v6411
      %6413 = vdwg.mxu0
      %6414 = vmatpush.bf16.msra.mxu0 0
      %6415 = vmatpush.bf16.msra.mxu0 0
      %6416 = vmatpush.bf16.msra.mxu0 0
      %6417 = vmatpush.bf16.msra.mxu0 0
      %6418 = vmatpush.bf16.msra.mxu0 0
      %6419 = vmatpush.bf16.msra.mxu0 0
      %6420 = vmatpush.bf16.msra.mxu0 %v6096
      %6421 = vmatpush.bf16.msra.mxu0 %v6093
      %6422 = vmatmul.bf16.gmra.mxu0 %v3257
      %v6423 = vpop.f32.mrf.mxu0
      %v6424 = vadd.f32 %v6390, %v6423
      %v6425 = vpop.f32.mrf.mxu0
      %v6426 = vadd.f32 %v6392, %v6425
      %6427 = vmatmul.bf16.gmra.mxu0 %v3259
      %v6428 = vpop.f32.mrf.mxu0
      %v6429 = vadd.f32 %v6395, %v6428
      %v6430 = vpop.f32.mrf.mxu0
      %v6431 = vadd.f32 %v6397, %v6430
      %6432 = vmatmul.bf16.gmra.mxu0 %v3261
      %v6433 = vpop.f32.mrf.mxu0
      %v6434 = vadd.f32 %v6400, %v6433
      %v6435 = vpop.f32.mrf.mxu0
      %v6436 = vadd.f32 %v6402, %v6435
      %6437 = vmatmul.bf16.gmra.mxu0 %v3263
      %v6438 = vpop.f32.mrf.mxu0
      %v6439 = vadd.f32 %v6405, %v6438
      %v6440 = vpop.f32.mrf.mxu0
      %v6441 = vadd.f32 %v6407, %v6440
      %6442 = vmatmul.bf16.gmra.mxu0 %v3265
      %v6443 = vpop.f32.mrf.mxu0
      %v6444 = vadd.f32 %v6410, %v6443
      %v6445 = vpop.f32.mrf.mxu0
      %v6446 = vadd.f32 %v6412, %v6445
      %6447 = vdwg.mxu0
      %6448 = vmatpush.bf16.msra.mxu0 %v6043
      %6449 = vmatpush.bf16.msra.mxu0 %v6040
      %6450 = vmatpush.bf16.msra.mxu0 %v6037
      %6451 = vmatpush.bf16.msra.mxu0 %v6034
      %6452 = vmatpush.bf16.msra.mxu0 %v6031
      %6453 = vmatpush.bf16.msra.mxu0 %v6028
      %6454 = vmatpush.bf16.msra.mxu0 %v6025
      %6455 = vmatpush.bf16.msra.mxu0 %v6022
      %6456 = vmatmul.bf16.gmra.mxu0 %v1591
      %v6457 = vpop.f32.mrf.mxu0
      %v6458 = vadd.f32 %v5736, %v6457
      %v6459 = vpop.f32.mrf.mxu0
      %v6460 = vadd.f32 %v5738, %v6459
      %6461 = vmatmul.bf16.gmra.mxu0 %v1595
      %v6462 = vpop.f32.mrf.mxu0
      %v6463 = vadd.f32 %v5741, %v6462
      %v6464 = vpop.f32.mrf.mxu0
      %v6465 = vadd.f32 %v5743, %v6464
      %6466 = vmatmul.bf16.gmra.mxu0 %v1599
      %v6467 = vpop.f32.mrf.mxu0
      %v6468 = vadd.f32 %v5746, %v6467
      %v6469 = vpop.f32.mrf.mxu0
      %v6470 = vadd.f32 %v5748, %v6469
      %6471 = vmatmul.bf16.gmra.mxu0 %v1603
      %v6472 = vpop.f32.mrf.mxu0
      %v6473 = vadd.f32 %v5751, %v6472
      %v6474 = vpop.f32.mrf.mxu0
      %v6475 = vadd.f32 %v5753, %v6474
      %6476 = vmatmul.bf16.gmra.mxu0 %v1607
      %v6477 = vpop.f32.mrf.mxu0
      %v6478 = vadd.f32 %v5756, %v6477
      %v6479 = vpop.f32.mrf.mxu0
      %v6480 = vadd.f32 %v5758, %v6479
      %6481 = vdwg.mxu0
      %6482 = vmatpush.bf16.msra.mxu0 %v6067
      %6483 = vmatpush.bf16.msra.mxu0 %v6064
      %6484 = vmatpush.bf16.msra.mxu0 %v6061
      %6485 = vmatpush.bf16.msra.mxu0 %v6058
      %6486 = vmatpush.bf16.msra.mxu0 %v6055
      %6487 = vmatpush.bf16.msra.mxu0 %v6052
      %6488 = vmatpush.bf16.msra.mxu0 %v6049
      %6489 = vmatpush.bf16.msra.mxu0 %v6046
      %6490 = vmatmul.bf16.gmra.mxu0 %v1592
      %v6491 = vpop.f32.mrf.mxu0
      %v6492 = vadd.f32 %v6458, %v6491
      %v6493 = vpop.f32.mrf.mxu0
      %v6494 = vadd.f32 %v6460, %v6493
      %6495 = vmatmul.bf16.gmra.mxu0 %v1596
      %v6496 = vpop.f32.mrf.mxu0
      %v6497 = vadd.f32 %v6463, %v6496
      %v6498 = vpop.f32.mrf.mxu0
      %v6499 = vadd.f32 %v6465, %v6498
      %6500 = vmatmul.bf16.gmra.mxu0 %v1600
      %v6501 = vpop.f32.mrf.mxu0
      %v6502 = vadd.f32 %v6468, %v6501
      %v6503 = vpop.f32.mrf.mxu0
      %v6504 = vadd.f32 %v6470, %v6503
      %6505 = vmatmul.bf16.gmra.mxu0 %v1604
      %v6506 = vpop.f32.mrf.mxu0
      %v6507 = vadd.f32 %v6473, %v6506
      %v6508 = vpop.f32.mrf.mxu0
      %v6509 = vadd.f32 %v6475, %v6508
      %6510 = vmatmul.bf16.gmra.mxu0 %v1608
      %v6511 = vpop.f32.mrf.mxu0
      %v6512 = vadd.f32 %v6478, %v6511
      %v6513 = vpop.f32.mrf.mxu0
      %v6514 = vadd.f32 %v6480, %v6513
      %6515 = vdwg.mxu0
      %6516 = vmatpush.bf16.msra.mxu0 %v6091
      %6517 = vmatpush.bf16.msra.mxu0 %v6088
      %6518 = vmatpush.bf16.msra.mxu0 %v6085
      %6519 = vmatpush.bf16.msra.mxu0 %v6082
      %6520 = vmatpush.bf16.msra.mxu0 %v6079
      %6521 = vmatpush.bf16.msra.mxu0 %v6076
      %6522 = vmatpush.bf16.msra.mxu0 %v6073
      %6523 = vmatpush.bf16.msra.mxu0 %v6070
      %6524 = vmatmul.bf16.gmra.mxu0 %v1593
      %v6525 = vpop.f32.mrf.mxu0
      %v6526 = vadd.f32 %v6492, %v6525
      %v6527 = vpop.f32.mrf.mxu0
      %v6528 = vadd.f32 %v6494, %v6527
      %6529 = vmatmul.bf16.gmra.mxu0 %v1597
      %v6530 = vpop.f32.mrf.mxu0
      %v6531 = vadd.f32 %v6497, %v6530
      %v6532 = vpop.f32.mrf.mxu0
      %v6533 = vadd.f32 %v6499, %v6532
      %6534 = vmatmul.bf16.gmra.mxu0 %v1601
      %v6535 = vpop.f32.mrf.mxu0
      %v6536 = vadd.f32 %v6502, %v6535
      %v6537 = vpop.f32.mrf.mxu0
      %v6538 = vadd.f32 %v6504, %v6537
      %6539 = vmatmul.bf16.gmra.mxu0 %v1605
      %v6540 = vpop.f32.mrf.mxu0
      %v6541 = vadd.f32 %v6507, %v6540
      %v6542 = vpop.f32.mrf.mxu0
      %v6543 = vadd.f32 %v6509, %v6542
      %6544 = vmatmul.bf16.gmra.mxu0 %v1609
      %v6545 = vpop.f32.mrf.mxu0
      %v6546 = vadd.f32 %v6512, %v6545
      %v6547 = vpop.f32.mrf.mxu0
      %v6548 = vadd.f32 %v6514, %v6547
      %6549 = vdwg.mxu0
      %6550 = vmatpush.bf16.msra.mxu0 0
      %6551 = vmatpush.bf16.msra.mxu0 0
      %6552 = vmatpush.bf16.msra.mxu0 0
      %6553 = vmatpush.bf16.msra.mxu0 0
      %6554 = vmatpush.bf16.msra.mxu0 0
      %6555 = vmatpush.bf16.msra.mxu0 0
      %6556 = vmatpush.bf16.msra.mxu0 %v6097
      %6557 = vmatpush.bf16.msra.mxu0 %v6094
      %6558 = vmatmul.bf16.gmra.mxu0 %v3257
      %v6559 = vpop.f32.mrf.mxu0
      %v6560 = vadd.f32 %v6526, %v6559
      %v6561 = vpop.f32.mrf.mxu0
      %v6562 = vadd.f32 %v6528, %v6561
      %6563 = vmatmul.bf16.gmra.mxu0 %v3259
      %v6564 = vpop.f32.mrf.mxu0
      %v6565 = vadd.f32 %v6531, %v6564
      %v6566 = vpop.f32.mrf.mxu0
      %v6567 = vadd.f32 %v6533, %v6566
      %6568 = vmatmul.bf16.gmra.mxu0 %v3261
      %v6569 = vpop.f32.mrf.mxu0
      %v6570 = vadd.f32 %v6536, %v6569
      %v6571 = vpop.f32.mrf.mxu0
      %v6572 = vadd.f32 %v6538, %v6571
      %6573 = vmatmul.bf16.gmra.mxu0 %v3263
      %v6574 = vpop.f32.mrf.mxu0
      %v6575 = vadd.f32 %v6541, %v6574
      %v6576 = vpop.f32.mrf.mxu0
      %v6577 = vadd.f32 %v6543, %v6576
      %6578 = vmatmul.bf16.gmra.mxu0 %v3265
      %v6579 = vpop.f32.mrf.mxu0
      %v6580 = vadd.f32 %v6546, %v6579
      %v6581 = vpop.f32.mrf.mxu0
      %v6582 = vadd.f32 %v6548, %v6581
      %6583 = vdwg.mxu0
      %s6584 = scalar_lea.vmem %s6, 1248
      %v6585 = vld [vmem:[%s6584] sm:$0xff]
      %v6586 = vld [vmem:[%s6584 + $0x8] sm:$0xf]
      %v6587 = vld [vmem:[%s6584 + $0xc] sm:$0xff]
      %v6588 = vld [vmem:[%s6584 + $0x14] sm:$0xf]
      %v6589 = vld [vmem:[%s6584 + $0x18] sm:$0xff]
      %v6590 = vld [vmem:[%s6584 + $0x20] sm:$0xf]
      %v6591 = vld [vmem:[%s6584 + $0x24] sm:$0xff]
      %v6592 = vld [vmem:[%s6584 + $0x2c] sm:$0xf]
      %v6593 = vld [vmem:[%s6584 + $0x30] sm:$0xff]
      %v6594 = vld [vmem:[%s6584 + $0x38] sm:$0xf]
      %v6595 = vld [vmem:[%s6584 + $0x3c] sm:$0xff]
      %v6596 = vld [vmem:[%s6584 + $0x44] sm:$0xf]
      %v6597 = vld [vmem:[%s6584 + $0x48] sm:$0xff]
      %v6598 = vld [vmem:[%s6584 + $0x50] sm:$0xf]
      %v6599 = vld [vmem:[%s6584 + $0x54] sm:$0xff]
      %v6600 = vld [vmem:[%s6584 + $0x5c] sm:$0xf]
      %v6601 = vld [vmem:[%s6584 + $0x60] sm:$0xff]
      %v6602 = vld [vmem:[%s6584 + $0x68] sm:$0xf]
      %v6603 = vld [vmem:[%s6584 + $0x6c] sm:$0xff]
      %v6604 = vld [vmem:[%s6584 + $0x74] sm:$0xf]
      %v6605 = vld [vmem:[%s6584 + $0x78] sm:$0xff]
      %v6606 = vld [vmem:[%s6584 + $0x80] sm:$0xf]
      %v6607 = vld [vmem:[%s6584 + $0x84] sm:$0xff]
      %v6608 = vld [vmem:[%s6584 + $0x8c] sm:$0xf]
      %v6609 = vld [vmem:[%s6584 + $0x90] sm:$0xff]
      %v6610 = vld [vmem:[%s6584 + $0x98] sm:$0xf]
      %v6611 = vld [vmem:[%s6584 + $0x9c] sm:$0xff]
      %v6612 = vld [vmem:[%s6584 + $0xa4] sm:$0xf]
      %v6613 = vld [vmem:[%s6584 + $0xa8] sm:$0xff]
      %v6614 = vld [vmem:[%s6584 + $0xb0] sm:$0xf]
      %v6615 = vld [vmem:[%s6584 + $0xb4] sm:$0xff]
      %v6616 = vld [vmem:[%s6584 + $0xbc] sm:$0xf]
      %v6617 = vld [vmem:[%s6584 + $0xc0] sm:$0xff]
      %v6618 = vld [vmem:[%s6584 + $0xc8] sm:$0xf]
      %v6619 = vld [vmem:[%s6584 + $0xcc] sm:$0xff]
      %v6620 = vld [vmem:[%s6584 + $0xd4] sm:$0xf]
      %v6621 = vld [vmem:[%s6584 + $0xd8] sm:$0xff]
      %v6622 = vld [vmem:[%s6584 + $0xe0] sm:$0xf]
      %v6623 = vld [vmem:[%s6584 + $0xe4] sm:$0xff]
      %v6624 = vld [vmem:[%s6584 + $0xec] sm:$0xf]
      %v6625 = vld [vmem:[%s6584 + $0xf0] sm:$0xff]
      %v6626 = vld [vmem:[%s6584 + $0xf8] sm:$0xf]
      %v6627 = vld [vmem:[%s6584 + $0xfc] sm:$0xff]
      %v6628 = vld [vmem:[%s6584 + $0x104] sm:$0xf]
      %v6629 = vld [vmem:[%s6584 + $0x108] sm:$0xff]
      %v6630 = vld [vmem:[%s6584 + $0x110] sm:$0xf]
      %v6631 = vld [vmem:[%s6584 + $0x114] sm:$0xff]
      %v6632 = vld [vmem:[%s6584 + $0x11c] sm:$0xf]
      %v6633 = vld [vmem:[%s6584 + $0x120] sm:$0xff]
      %v6634 = vld [vmem:[%s6584 + $0x128] sm:$0xf]
      %v6635 = vld [vmem:[%s6584 + $0x12c] sm:$0xff]
      %v6636 = vld [vmem:[%s6584 + $0x134] sm:$0xf]
      %v6637 = vld [vmem:[%s6584 + $0x138] sm:$0xff]
      %v6638 = vld [vmem:[%s6584 + $0x140] sm:$0xf]
      %v6639 = vld [vmem:[%s6584 + $0x144] sm:$0xff]
      %v6640 = vld [vmem:[%s6584 + $0x14c] sm:$0xf]
      %v6641 = vld [vmem:[%s6584 + $0x150] sm:$0xff]
      %v6642 = vld [vmem:[%s6584 + $0x158] sm:$0xf]
      %v6643 = vld [vmem:[%s6584 + $0x15c] sm:$0xff]
      %v6644 = vld [vmem:[%s6584 + $0x164] sm:$0xf]
      %v6645 = vld [vmem:[%s6584 + $0x168] sm:$0xff]
      %v6646 = vld [vmem:[%s6584 + $0x170] sm:$0xf]
      %v6647 = vld [vmem:[%s6584 + $0x174] sm:$0xff]
      %v6648 = vld [vmem:[%s6584 + $0x17c] sm:$0xf]
      %v6649 = vld [vmem:[%s6584 + $0x180] sm:$0xff]
      %v6650 = vld [vmem:[%s6584 + $0x188] sm:$0xf]
      %v6651 = vld [vmem:[%s6584 + $0x18c] sm:$0xff]
      %v6652 = vld [vmem:[%s6584 + $0x194] sm:$0xf]
      %v6653 = vld [vmem:[%s6584 + $0x198] sm:$0xff]
      %v6654 = vld [vmem:[%s6584 + $0x1a0] sm:$0xf]
      %v6655 = vld [vmem:[%s6584 + $0x1a4] sm:$0xff]
      %v6656 = vld [vmem:[%s6584 + $0x1ac] sm:$0xf]
      %v6657 = vld [vmem:[%s6584 + $0x1b0] sm:$0xff]
      %v6658 = vld [vmem:[%s6584 + $0x1b8] sm:$0xf]
      %v6659 = vld [vmem:[%s6584 + $0x1bc] sm:$0xff]
      %v6660 = vld [vmem:[%s6584 + $0x1c4] sm:$0xf]
      %v6661 = vld [vmem:[%s6584 + $0x1c8] sm:$0xff]
      %v6662 = vld [vmem:[%s6584 + $0x1d0] sm:$0xf]
      %v6663 = vld [vmem:[%s6584 + $0x1d4] sm:$0xff]
      %v6664 = vld [vmem:[%s6584 + $0x1dc] sm:$0xf]
      %v6665 = vld [vmem:[%s6584 + $0x1e0] sm:$0xff]
      %v6666 = vld [vmem:[%s6584 + $0x1e8] sm:$0xf]
      %v6667 = vld [vmem:[%s6584 + $0x1ec] sm:$0xff]
      %v6668 = vld [vmem:[%s6584 + $0x1f4] sm:$0xf]
      %v6669 = vld [vmem:[%s6584 + $0x1f8] sm:$0xff]
      %v6670 = vld [vmem:[%s6584 + $0x200] sm:$0xf]
      %v6671 = vld [vmem:[%s6584 + $0x204] sm:$0xff]
      %v6672 = vld [vmem:[%s6584 + $0x20c] sm:$0xf]
      %v6673 = vld [vmem:[%s6584 + $0x210] sm:$0xff]
      %v6674 = vld [vmem:[%s6584 + $0x218] sm:$0xf]
      %v6675 = vld [vmem:[%s6584 + $0x21c] sm:$0xff]
      %v6676 = vld [vmem:[%s6584 + $0x224] sm:$0xf]
      %v6677 = vld [vmem:[%s6584 + $0x228] sm:$0xff]
      %v6678 = vld [vmem:[%s6584 + $0x230] sm:$0xf]
      %v6679 = vld [vmem:[%s6584 + $0x234] sm:$0xff]
      %v6680 = vld [vmem:[%s6584 + $0x23c] sm:$0xf]
      %v6681 = vld [vmem:[%s6584 + $0x240] sm:$0xff]
      %v6682 = vld [vmem:[%s6584 + $0x248] sm:$0xf]
      %v6683 = vld [vmem:[%s6584 + $0x24c] sm:$0xff]
      %v6684 = vld [vmem:[%s6584 + $0x254] sm:$0xf]
      %v6685 = vld [vmem:[%s6584 + $0x258] sm:$0xff]
      %v6686 = vld [vmem:[%s6584 + $0x260] sm:$0xf]
      %v6687 = vld [vmem:[%s6584 + $0x264] sm:$0xff]
      %v6688 = vld [vmem:[%s6584 + $0x26c] sm:$0xf]
      %v6793 = vunpack.c.l.b16 %v6585
      %v6794 = vunpack.c.h.b16 %v6585
      %v6795 = vunpack.c.l.b16 %v6586
      %v6796 = vunpack.c.l.b16 %v6587
      %v6797 = vunpack.c.h.b16 %v6587
      %v6798 = vunpack.c.l.b16 %v6588
      %v6799 = vunpack.c.l.b16 %v6589
      %v6800 = vunpack.c.h.b16 %v6589
      %v6801 = vunpack.c.l.b16 %v6590
      %v6802 = vunpack.c.l.b16 %v6591
      %v6803 = vunpack.c.h.b16 %v6591
      %v6804 = vunpack.c.l.b16 %v6592
      %v6805 = vunpack.c.l.b16 %v6593
      %v6806 = vunpack.c.h.b16 %v6593
      %v6807 = vunpack.c.l.b16 %v6594
      %v6808 = vunpack.c.l.b16 %v6595
      %v6809 = vunpack.c.h.b16 %v6595
      %v6810 = vunpack.c.l.b16 %v6596
      %v6811 = vunpack.c.l.b16 %v6597
      %v6812 = vunpack.c.h.b16 %v6597
      %v6813 = vunpack.c.l.b16 %v6598
      %v6814 = vunpack.c.l.b16 %v6599
      %v6815 = vunpack.c.h.b16 %v6599
      %v6816 = vunpack.c.l.b16 %v6600
      %v6817 = vunpack.c.l.b16 %v6601
      %v6818 = vunpack.c.h.b16 %v6601
      %v6819 = vunpack.c.l.b16 %v6602
      %v6820 = vunpack.c.l.b16 %v6603
      %v6821 = vunpack.c.h.b16 %v6603
      %v6822 = vunpack.c.l.b16 %v6604
      %v6823 = vunpack.c.l.b16 %v6605
      %v6824 = vunpack.c.h.b16 %v6605
      %v6825 = vunpack.c.l.b16 %v6606
      %v6826 = vunpack.c.l.b16 %v6607
      %v6827 = vunpack.c.h.b16 %v6607
      %v6828 = vunpack.c.l.b16 %v6608
      %v6829 = vunpack.c.l.b16 %v6609
      %v6830 = vunpack.c.h.b16 %v6609
      %v6831 = vunpack.c.l.b16 %v6610
      %v6832 = vunpack.c.l.b16 %v6611
      %v6833 = vunpack.c.h.b16 %v6611
      %v6834 = vunpack.c.l.b16 %v6612
      %v6835 = vunpack.c.l.b16 %v6613
      %v6836 = vunpack.c.h.b16 %v6613
      %v6837 = vunpack.c.l.b16 %v6614
      %v6838 = vunpack.c.l.b16 %v6615
      %v6839 = vunpack.c.h.b16 %v6615
      %v6840 = vunpack.c.l.b16 %v6616
      %v6841 = vunpack.c.l.b16 %v6617
      %v6842 = vunpack.c.h.b16 %v6617
      %v6843 = vunpack.c.l.b16 %v6618
      %v6844 = vunpack.c.l.b16 %v6619
      %v6845 = vunpack.c.h.b16 %v6619
      %v6846 = vunpack.c.l.b16 %v6620
      %v6847 = vunpack.c.l.b16 %v6621
      %v6848 = vunpack.c.h.b16 %v6621
      %v6849 = vunpack.c.l.b16 %v6622
      %v6850 = vunpack.c.l.b16 %v6623
      %v6851 = vunpack.c.h.b16 %v6623
      %v6852 = vunpack.c.l.b16 %v6624
      %v6853 = vunpack.c.l.b16 %v6625
      %v6854 = vunpack.c.h.b16 %v6625
      %v6855 = vunpack.c.l.b16 %v6626
      %v6856 = vunpack.c.l.b16 %v6627
      %v6857 = vunpack.c.h.b16 %v6627
      %v6858 = vunpack.c.l.b16 %v6628
      %v6859 = vunpack.c.l.b16 %v6629
      %v6860 = vunpack.c.h.b16 %v6629
      %v6861 = vunpack.c.l.b16 %v6630
      %v6862 = vunpack.c.l.b16 %v6631
      %v6863 = vunpack.c.h.b16 %v6631
      %v6864 = vunpack.c.l.b16 %v6632
      %v6865 = vunpack.c.l.b16 %v6633
      %v6866 = vunpack.c.h.b16 %v6633
      %v6867 = vunpack.c.l.b16 %v6634
      %v6868 = vunpack.c.l.b16 %v6635
      %v6869 = vunpack.c.h.b16 %v6635
      %v6870 = vunpack.c.l.b16 %v6636
      %v6871 = vunpack.c.l.b16 %v6637
      %v6872 = vunpack.c.h.b16 %v6637
      %v6873 = vunpack.c.l.b16 %v6638
      %v6874 = vunpack.c.l.b16 %v6639
      %v6875 = vunpack.c.h.b16 %v6639
      %v6876 = vunpack.c.l.b16 %v6640
      %v6877 = vunpack.c.l.b16 %v6641
      %v6878 = vunpack.c.h.b16 %v6641
      %v6879 = vunpack.c.l.b16 %v6642
      %v6880 = vunpack.c.l.b16 %v6643
      %v6881 = vunpack.c.h.b16 %v6643
      %v6882 = vunpack.c.l.b16 %v6644
      %v6883 = vunpack.c.l.b16 %v6645
      %v6884 = vunpack.c.h.b16 %v6645
      %v6885 = vunpack.c.l.b16 %v6646
      %v6886 = vunpack.c.l.b16 %v6647
      %v6887 = vunpack.c.h.b16 %v6647
      %v6888 = vunpack.c.l.b16 %v6648
      %v6889 = vunpack.c.l.b16 %v6649
      %v6890 = vunpack.c.h.b16 %v6649
      %v6891 = vunpack.c.l.b16 %v6650
      %v6892 = vunpack.c.l.b16 %v6651
      %v6893 = vunpack.c.h.b16 %v6651
      %v6894 = vunpack.c.l.b16 %v6652
      %v6895 = vunpack.c.l.b16 %v6653
      %v6896 = vunpack.c.h.b16 %v6653
      %v6897 = vunpack.c.l.b16 %v6654
      %v6898 = vunpack.c.l.b16 %v6655
      %v6899 = vunpack.c.h.b16 %v6655
      %v6900 = vunpack.c.l.b16 %v6656
      %v6901 = vunpack.c.l.b16 %v6657
      %v6902 = vunpack.c.h.b16 %v6657
      %v6903 = vunpack.c.l.b16 %v6658
      %v6904 = vunpack.c.l.b16 %v6659
      %v6905 = vunpack.c.h.b16 %v6659
      %v6906 = vunpack.c.l.b16 %v6660
      %v6907 = vunpack.c.l.b16 %v6661
      %v6908 = vunpack.c.h.b16 %v6661
      %v6909 = vunpack.c.l.b16 %v6662
      %v6910 = vunpack.c.l.b16 %v6663
      %v6911 = vunpack.c.h.b16 %v6663
      %v6912 = vunpack.c.l.b16 %v6664
      %v6913 = vunpack.c.l.b16 %v6665
      %v6914 = vunpack.c.h.b16 %v6665
      %v6915 = vunpack.c.l.b16 %v6666
      %v6916 = vunpack.c.l.b16 %v6667
      %v6917 = vunpack.c.h.b16 %v6667
      %v6918 = vunpack.c.l.b16 %v6668
      %v6919 = vunpack.c.l.b16 %v6669
      %v6920 = vunpack.c.h.b16 %v6669
      %v6921 = vunpack.c.l.b16 %v6670
      %v6922 = vunpack.c.l.b16 %v6671
      %v6923 = vunpack.c.h.b16 %v6671
      %v6924 = vunpack.c.l.b16 %v6672
      %v6925 = vunpack.c.l.b16 %v6673
      %v6926 = vunpack.c.h.b16 %v6673
      %v6927 = vunpack.c.l.b16 %v6674
      %v6928 = vunpack.c.l.b16 %v6675
      %v6929 = vunpack.c.h.b16 %v6675
      %v6930 = vunpack.c.l.b16 %v6676
      %v6931 = vunpack.c.l.b16 %v6677
      %v6932 = vunpack.c.h.b16 %v6677
      %v6933 = vunpack.c.l.b16 %v6678
      %v6934 = vunpack.c.l.b16 %v6679
      %v6935 = vunpack.c.h.b16 %v6679
      %v6936 = vunpack.c.l.b16 %v6680
      %v6937 = vunpack.c.l.b16 %v6681
      %v6938 = vunpack.c.h.b16 %v6681
      %v6939 = vunpack.c.l.b16 %v6682
      %v6940 = vunpack.c.l.b16 %v6683
      %v6941 = vunpack.c.h.b16 %v6683
      %v6942 = vunpack.c.l.b16 %v6684
      %v6943 = vunpack.c.l.b16 %v6685
      %v6944 = vunpack.c.h.b16 %v6685
      %v6945 = vunpack.c.l.b16 %v6686
      %v6946 = vunpack.c.l.b16 %v6687
      %v6947 = vunpack.c.h.b16 %v6687
      %v6948 = vunpack.c.l.b16 %v6688
      %v6949 = vpack.c.b16 %v6796, %v6793
      %v6950 = vpack.c.b16 %v6797, %v6794
      %v6951 = vpack.c.b16 %v6798, %v6795
      %v6952 = vpack.c.b16 %v6802, %v6799
      %v6953 = vpack.c.b16 %v6803, %v6800
      %v6954 = vpack.c.b16 %v6804, %v6801
      %v6955 = vpack.c.b16 %v6808, %v6805
      %v6956 = vpack.c.b16 %v6809, %v6806
      %v6957 = vpack.c.b16 %v6810, %v6807
      %v6958 = vpack.c.b16 %v6814, %v6811
      %v6959 = vpack.c.b16 %v6815, %v6812
      %v6960 = vpack.c.b16 %v6816, %v6813
      %v6961 = vpack.c.b16 %v6820, %v6817
      %v6962 = vpack.c.b16 %v6821, %v6818
      %v6963 = vpack.c.b16 %v6822, %v6819
      %v6964 = vpack.c.b16 %v6826, %v6823
      %v6965 = vpack.c.b16 %v6827, %v6824
      %v6966 = vpack.c.b16 %v6828, %v6825
      %v6967 = vpack.c.b16 %v6832, %v6829
      %v6968 = vpack.c.b16 %v6833, %v6830
      %v6969 = vpack.c.b16 %v6834, %v6831
      %v6970 = vpack.c.b16 %v6838, %v6835
      %v6971 = vpack.c.b16 %v6839, %v6836
      %v6972 = vpack.c.b16 %v6840, %v6837
      %v6973 = vpack.c.b16 %v6844, %v6841
      %v6974 = vpack.c.b16 %v6845, %v6842
      %v6975 = vpack.c.b16 %v6846, %v6843
      %v6976 = vpack.c.b16 %v6850, %v6847
      %v6977 = vpack.c.b16 %v6851, %v6848
      %v6978 = vpack.c.b16 %v6852, %v6849
      %v6979 = vpack.c.b16 %v6856, %v6853
      %v6980 = vpack.c.b16 %v6857, %v6854
      %v6981 = vpack.c.b16 %v6858, %v6855
      %v6982 = vpack.c.b16 %v6862, %v6859
      %v6983 = vpack.c.b16 %v6863, %v6860
      %v6984 = vpack.c.b16 %v6864, %v6861
      %v6985 = vpack.c.b16 %v6868, %v6865
      %v6986 = vpack.c.b16 %v6869, %v6866
      %v6987 = vpack.c.b16 %v6870, %v6867
      %v6988 = vpack.c.b16 %v6874, %v6871
      %v6989 = vpack.c.b16 %v6875, %v6872
      %v6990 = vpack.c.b16 %v6876, %v6873
      %v6991 = vpack.c.b16 %v6880, %v6877
      %v6992 = vpack.c.b16 %v6881, %v6878
      %v6993 = vpack.c.b16 %v6882, %v6879
      %v6994 = vpack.c.b16 %v6886, %v6883
      %v6995 = vpack.c.b16 %v6887, %v6884
      %v6996 = vpack.c.b16 %v6888, %v6885
      %v6997 = vpack.c.b16 %v6892, %v6889
      %v6998 = vpack.c.b16 %v6893, %v6890
      %v6999 = vpack.c.b16 %v6894, %v6891
      %v7000 = vpack.c.b16 %v6898, %v6895
      %v7001 = vpack.c.b16 %v6899, %v6896
      %v7002 = vpack.c.b16 %v6900, %v6897
      %v7003 = vpack.c.b16 %v6904, %v6901
      %v7004 = vpack.c.b16 %v6905, %v6902
      %v7005 = vpack.c.b16 %v6906, %v6903
      %v7006 = vpack.c.b16 %v6910, %v6907
      %v7007 = vpack.c.b16 %v6911, %v6908
      %v7008 = vpack.c.b16 %v6912, %v6909
      %v7009 = vpack.c.b16 %v6916, %v6913
      %v7010 = vpack.c.b16 %v6917, %v6914
      %v7011 = vpack.c.b16 %v6918, %v6915
      %v7012 = vpack.c.b16 %v6922, %v6919
      %v7013 = vpack.c.b16 %v6923, %v6920
      %v7014 = vpack.c.b16 %v6924, %v6921
      %v7015 = vpack.c.b16 %v6928, %v6925
      %v7016 = vpack.c.b16 %v6929, %v6926
      %v7017 = vpack.c.b16 %v6930, %v6927
      %v7018 = vpack.c.b16 %v6934, %v6931
      %v7019 = vpack.c.b16 %v6935, %v6932
      %v7020 = vpack.c.b16 %v6936, %v6933
      %v7021 = vpack.c.b16 %v6940, %v6937
      %v7022 = vpack.c.b16 %v6941, %v6938
      %v7023 = vpack.c.b16 %v6942, %v6939
      %v7024 = vpack.c.b16 %v6946, %v6943
      %v7025 = vpack.c.b16 %v6947, %v6944
      %v7026 = vpack.c.b16 %v6948, %v6945
      %7105 = vmatpush.bf16.msra.mxu0 %v6970
      %7106 = vmatpush.bf16.msra.mxu0 %v6967
      %7107 = vmatpush.bf16.msra.mxu0 %v6964
      %7108 = vmatpush.bf16.msra.mxu0 %v6961
      %7109 = vmatpush.bf16.msra.mxu0 %v6958
      %7110 = vmatpush.bf16.msra.mxu0 %v6955
      %7111 = vmatpush.bf16.msra.mxu0 %v6952
      %7112 = vmatpush.bf16.msra.mxu0 %v6949
      %7113 = vmatmul.bf16.gmra.mxu0 %v3804
      %v7114 = vpop.f32.mrf.mxu0
      %v7115 = vadd.f32 0.0, %v7114
      %v7116 = vpop.f32.mrf.mxu0
      %v7117 = vadd.f32 0.0, %v7116
      %7118 = vmatmul.bf16.gmra.mxu0 %v3815
      %v7119 = vpop.f32.mrf.mxu0
      %v7120 = vadd.f32 0.0, %v7119
      %v7121 = vpop.f32.mrf.mxu0
      %v7122 = vadd.f32 0.0, %v7121
      %7123 = vmatmul.bf16.gmra.mxu0 %v3823
      %v7124 = vpop.f32.mrf.mxu0
      %v7125 = vadd.f32 0.0, %v7124
      %v7126 = vpop.f32.mrf.mxu0
      %v7127 = vadd.f32 0.0, %v7126
      %7128 = vmatmul.bf16.gmra.mxu0 %v3831
      %v7129 = vpop.f32.mrf.mxu0
      %v7130 = vadd.f32 0.0, %v7129
      %v7131 = vpop.f32.mrf.mxu0
      %v7132 = vadd.f32 0.0, %v7131
      %7133 = vmatmul.bf16.gmra.mxu0 %v3839
      %v7134 = vpop.f32.mrf.mxu0
      %v7135 = vadd.f32 0.0, %v7134
      %v7136 = vpop.f32.mrf.mxu0
      %v7137 = vadd.f32 0.0, %v7136
      %7138 = vdwg.mxu0
      %7139 = vmatpush.bf16.msra.mxu0 %v6994
      %7140 = vmatpush.bf16.msra.mxu0 %v6991
      %7141 = vmatpush.bf16.msra.mxu0 %v6988
      %7142 = vmatpush.bf16.msra.mxu0 %v6985
      %7143 = vmatpush.bf16.msra.mxu0 %v6982
      %7144 = vmatpush.bf16.msra.mxu0 %v6979
      %7145 = vmatpush.bf16.msra.mxu0 %v6976
      %7146 = vmatpush.bf16.msra.mxu0 %v6973
      %7147 = vmatmul.bf16.gmra.mxu0 %v3807
      %v7148 = vpop.f32.mrf.mxu0
      %v7149 = vadd.f32 %v7115, %v7148
      %v7150 = vpop.f32.mrf.mxu0
      %v7151 = vadd.f32 %v7117, %v7150
      %7152 = vmatmul.bf16.gmra.mxu0 %v3817
      %v7153 = vpop.f32.mrf.mxu0
      %v7154 = vadd.f32 %v7120, %v7153
      %v7155 = vpop.f32.mrf.mxu0
      %v7156 = vadd.f32 %v7122, %v7155
      %7157 = vmatmul.bf16.gmra.mxu0 %v3825
      %v7158 = vpop.f32.mrf.mxu0
      %v7159 = vadd.f32 %v7125, %v7158
      %v7160 = vpop.f32.mrf.mxu0
      %v7161 = vadd.f32 %v7127, %v7160
      %7162 = vmatmul.bf16.gmra.mxu0 %v3833
      %v7163 = vpop.f32.mrf.mxu0
      %v7164 = vadd.f32 %v7130, %v7163
      %v7165 = vpop.f32.mrf.mxu0
      %v7166 = vadd.f32 %v7132, %v7165
      %7167 = vmatmul.bf16.gmra.mxu0 %v3840
      %v7168 = vpop.f32.mrf.mxu0
      %v7169 = vadd.f32 %v7135, %v7168
      %v7170 = vpop.f32.mrf.mxu0
      %v7171 = vadd.f32 %v7137, %v7170
      %7172 = vdwg.mxu0
      %7173 = vmatpush.bf16.msra.mxu0 %v7018
      %7174 = vmatpush.bf16.msra.mxu0 %v7015
      %7175 = vmatpush.bf16.msra.mxu0 %v7012
      %7176 = vmatpush.bf16.msra.mxu0 %v7009
      %7177 = vmatpush.bf16.msra.mxu0 %v7006
      %7178 = vmatpush.bf16.msra.mxu0 %v7003
      %7179 = vmatpush.bf16.msra.mxu0 %v7000
      %7180 = vmatpush.bf16.msra.mxu0 %v6997
      %7181 = vmatmul.bf16.gmra.mxu0 %v3810
      %v7182 = vpop.f32.mrf.mxu0
      %v7183 = vadd.f32 %v7149, %v7182
      %v7184 = vpop.f32.mrf.mxu0
      %v7185 = vadd.f32 %v7151, %v7184
      %7186 = vmatmul.bf16.gmra.mxu0 %v3819
      %v7187 = vpop.f32.mrf.mxu0
      %v7188 = vadd.f32 %v7154, %v7187
      %v7189 = vpop.f32.mrf.mxu0
      %v7190 = vadd.f32 %v7156, %v7189
      %7191 = vmatmul.bf16.gmra.mxu0 %v3827
      %v7192 = vpop.f32.mrf.mxu0
      %v7193 = vadd.f32 %v7159, %v7192
      %v7194 = vpop.f32.mrf.mxu0
      %v7195 = vadd.f32 %v7161, %v7194
      %7196 = vmatmul.bf16.gmra.mxu0 %v3835
      %v7197 = vpop.f32.mrf.mxu0
      %v7198 = vadd.f32 %v7164, %v7197
      %v7199 = vpop.f32.mrf.mxu0
      %v7200 = vadd.f32 %v7166, %v7199
      %7201 = vmatmul.bf16.gmra.mxu0 %v3841
      %v7202 = vpop.f32.mrf.mxu0
      %v7203 = vadd.f32 %v7169, %v7202
      %v7204 = vpop.f32.mrf.mxu0
      %v7205 = vadd.f32 %v7171, %v7204
      %7206 = vdwg.mxu0
      %7207 = vmatpush.bf16.msra.mxu0 0
      %7208 = vmatpush.bf16.msra.mxu0 0
      %7209 = vmatpush.bf16.msra.mxu0 0
      %7210 = vmatpush.bf16.msra.mxu0 0
      %7211 = vmatpush.bf16.msra.mxu0 0
      %7212 = vmatpush.bf16.msra.mxu0 0
      %7213 = vmatpush.bf16.msra.mxu0 %v7024
      %7214 = vmatpush.bf16.msra.mxu0 %v7021
      %7215 = vmatmul.bf16.gmra.mxu0 %v4275
      %v7216 = vpop.f32.mrf.mxu0
      %v7217 = vadd.f32 %v7183, %v7216
      %v7218 = vpop.f32.mrf.mxu0
      %v7219 = vadd.f32 %v7185, %v7218
      %7220 = vmatmul.bf16.gmra.mxu0 %v4278
      %v7221 = vpop.f32.mrf.mxu0
      %v7222 = vadd.f32 %v7188, %v7221
      %v7223 = vpop.f32.mrf.mxu0
      %v7224 = vadd.f32 %v7190, %v7223
      %7225 = vmatmul.bf16.gmra.mxu0 %v4281
      %v7226 = vpop.f32.mrf.mxu0
      %v7227 = vadd.f32 %v7193, %v7226
      %v7228 = vpop.f32.mrf.mxu0
      %v7229 = vadd.f32 %v7195, %v7228
      %7230 = vmatmul.bf16.gmra.mxu0 %v4284
      %v7231 = vpop.f32.mrf.mxu0
      %v7232 = vadd.f32 %v7198, %v7231
      %v7233 = vpop.f32.mrf.mxu0
      %v7234 = vadd.f32 %v7200, %v7233
      %7235 = vmatmul.bf16.gmra.mxu0 %v4287
      %v7236 = vpop.f32.mrf.mxu0
      %v7237 = vadd.f32 %v7203, %v7236
      %v7238 = vpop.f32.mrf.mxu0
      %v7239 = vadd.f32 %v7205, %v7238
      %7240 = vdwg.mxu0
      %7241 = vmatpush.bf16.msra.mxu0 %v6971
      %7242 = vmatpush.bf16.msra.mxu0 %v6968
      %7243 = vmatpush.bf16.msra.mxu0 %v6965
      %7244 = vmatpush.bf16.msra.mxu0 %v6962
      %7245 = vmatpush.bf16.msra.mxu0 %v6959
      %7246 = vmatpush.bf16.msra.mxu0 %v6956
      %7247 = vmatpush.bf16.msra.mxu0 %v6953
      %7248 = vmatpush.bf16.msra.mxu0 %v6950
      %7249 = vmatmul.bf16.gmra.mxu0 %v3804
      %v7250 = vpop.f32.mrf.mxu0
      %v7251 = vadd.f32 0.0, %v7250
      %v7252 = vpop.f32.mrf.mxu0
      %v7253 = vadd.f32 0.0, %v7252
      %7254 = vmatmul.bf16.gmra.mxu0 %v3815
      %v7255 = vpop.f32.mrf.mxu0
      %v7256 = vadd.f32 0.0, %v7255
      %v7257 = vpop.f32.mrf.mxu0
      %v7258 = vadd.f32 0.0, %v7257
      %7259 = vmatmul.bf16.gmra.mxu0 %v3823
      %v7260 = vpop.f32.mrf.mxu0
      %v7261 = vadd.f32 0.0, %v7260
      %v7262 = vpop.f32.mrf.mxu0
      %v7263 = vadd.f32 0.0, %v7262
      %7264 = vmatmul.bf16.gmra.mxu0 %v3831
      %v7265 = vpop.f32.mrf.mxu0
      %v7266 = vadd.f32 0.0, %v7265
      %v7267 = vpop.f32.mrf.mxu0
      %v7268 = vadd.f32 0.0, %v7267
      %7269 = vmatmul.bf16.gmra.mxu0 %v3839
      %v7270 = vpop.f32.mrf.mxu0
      %v7271 = vadd.f32 0.0, %v7270
      %v7272 = vpop.f32.mrf.mxu0
      %v7273 = vadd.f32 0.0, %v7272
      %7274 = vdwg.mxu0
      %7275 = vmatpush.bf16.msra.mxu0 %v6995
      %7276 = vmatpush.bf16.msra.mxu0 %v6992
      %7277 = vmatpush.bf16.msra.mxu0 %v6989
      %7278 = vmatpush.bf16.msra.mxu0 %v6986
      %7279 = vmatpush.bf16.msra.mxu0 %v6983
      %7280 = vmatpush.bf16.msra.mxu0 %v6980
      %7281 = vmatpush.bf16.msra.mxu0 %v6977
      %7282 = vmatpush.bf16.msra.mxu0 %v6974
      %7283 = vmatmul.bf16.gmra.mxu0 %v3807
      %v7284 = vpop.f32.mrf.mxu0
      %v7285 = vadd.f32 %v7251, %v7284
      %v7286 = vpop.f32.mrf.mxu0
      %v7287 = vadd.f32 %v7253, %v7286
      %7288 = vmatmul.bf16.gmra.mxu0 %v3817
      %v7289 = vpop.f32.mrf.mxu0
      %v7290 = vadd.f32 %v7256, %v7289
      %v7291 = vpop.f32.mrf.mxu0
      %v7292 = vadd.f32 %v7258, %v7291
      %7293 = vmatmul.bf16.gmra.mxu0 %v3825
      %v7294 = vpop.f32.mrf.mxu0
      %v7295 = vadd.f32 %v7261, %v7294
      %v7296 = vpop.f32.mrf.mxu0
      %v7297 = vadd.f32 %v7263, %v7296
      %7298 = vmatmul.bf16.gmra.mxu0 %v3833
      %v7299 = vpop.f32.mrf.mxu0
      %v7300 = vadd.f32 %v7266, %v7299
      %v7301 = vpop.f32.mrf.mxu0
      %v7302 = vadd.f32 %v7268, %v7301
      %7303 = vmatmul.bf16.gmra.mxu0 %v3840
      %v7304 = vpop.f32.mrf.mxu0
      %v7305 = vadd.f32 %v7271, %v7304
      %v7306 = vpop.f32.mrf.mxu0
      %v7307 = vadd.f32 %v7273, %v7306
      %7308 = vdwg.mxu0
      %7309 = vmatpush.bf16.msra.mxu0 %v7019
      %7310 = vmatpush.bf16.msra.mxu0 %v7016
      %7311 = vmatpush.bf16.msra.mxu0 %v7013
      %7312 = vmatpush.bf16.msra.mxu0 %v7010
      %7313 = vmatpush.bf16.msra.mxu0 %v7007
      %7314 = vmatpush.bf16.msra.mxu0 %v7004
      %7315 = vmatpush.bf16.msra.mxu0 %v7001
      %7316 = vmatpush.bf16.msra.mxu0 %v6998
      %7317 = vmatmul.bf16.gmra.mxu0 %v3810
      %v7318 = vpop.f32.mrf.mxu0
      %v7319 = vadd.f32 %v7285, %v7318
      %v7320 = vpop.f32.mrf.mxu0
      %v7321 = vadd.f32 %v7287, %v7320
      %7322 = vmatmul.bf16.gmra.mxu0 %v3819
      %v7323 = vpop.f32.mrf.mxu0
      %v7324 = vadd.f32 %v7290, %v7323
      %v7325 = vpop.f32.mrf.mxu0
      %v7326 = vadd.f32 %v7292, %v7325
      %7327 = vmatmul.bf16.gmra.mxu0 %v3827
      %v7328 = vpop.f32.mrf.mxu0
      %v7329 = vadd.f32 %v7295, %v7328
      %v7330 = vpop.f32.mrf.mxu0
      %v7331 = vadd.f32 %v7297, %v7330
      %7332 = vmatmul.bf16.gmra.mxu0 %v3835
      %v7333 = vpop.f32.mrf.mxu0
      %v7334 = vadd.f32 %v7300, %v7333
      %v7335 = vpop.f32.mrf.mxu0
      %v7336 = vadd.f32 %v7302, %v7335
      %7337 = vmatmul.bf16.gmra.mxu0 %v3841
      %v7338 = vpop.f32.mrf.mxu0
      %v7339 = vadd.f32 %v7305, %v7338
      %v7340 = vpop.f32.mrf.mxu0
      %v7341 = vadd.f32 %v7307, %v7340
      %7342 = vdwg.mxu0
      %7343 = vmatpush.bf16.msra.mxu0 0
      %7344 = vmatpush.bf16.msra.mxu0 0
      %7345 = vmatpush.bf16.msra.mxu0 0
      %7346 = vmatpush.bf16.msra.mxu0 0
      %7347 = vmatpush.bf16.msra.mxu0 0
      %7348 = vmatpush.bf16.msra.mxu0 0
      %7349 = vmatpush.bf16.msra.mxu0 %v7025
      %7350 = vmatpush.bf16.msra.mxu0 %v7022
      %7351 = vmatmul.bf16.gmra.mxu0 %v4275
      %v7352 = vpop.f32.mrf.mxu0
      %v7353 = vadd.f32 %v7319, %v7352
      %v7354 = vpop.f32.mrf.mxu0
      %v7355 = vadd.f32 %v7321, %v7354
      %7356 = vmatmul.bf16.gmra.mxu0 %v4278
      %v7357 = vpop.f32.mrf.mxu0
      %v7358 = vadd.f32 %v7324, %v7357
      %v7359 = vpop.f32.mrf.mxu0
      %v7360 = vadd.f32 %v7326, %v7359
      %7361 = vmatmul.bf16.gmra.mxu0 %v4281
      %v7362 = vpop.f32.mrf.mxu0
      %v7363 = vadd.f32 %v7329, %v7362
      %v7364 = vpop.f32.mrf.mxu0
      %v7365 = vadd.f32 %v7331, %v7364
      %7366 = vmatmul.bf16.gmra.mxu0 %v4284
      %v7367 = vpop.f32.mrf.mxu0
      %v7368 = vadd.f32 %v7334, %v7367
      %v7369 = vpop.f32.mrf.mxu0
      %v7370 = vadd.f32 %v7336, %v7369
      %7371 = vmatmul.bf16.gmra.mxu0 %v4287
      %v7372 = vpop.f32.mrf.mxu0
      %v7373 = vadd.f32 %v7339, %v7372
      %v7374 = vpop.f32.mrf.mxu0
      %v7375 = vadd.f32 %v7341, %v7374
      %7376 = vdwg.mxu0
      %7377 = vmatpush.bf16.msra.mxu0 %v6972
      %7378 = vmatpush.bf16.msra.mxu0 %v6969
      %7379 = vmatpush.bf16.msra.mxu0 %v6966
      %7380 = vmatpush.bf16.msra.mxu0 %v6963
      %7381 = vmatpush.bf16.msra.mxu0 %v6960
      %7382 = vmatpush.bf16.msra.mxu0 %v6957
      %7383 = vmatpush.bf16.msra.mxu0 %v6954
      %7384 = vmatpush.bf16.msra.mxu0 %v6951
      %7385 = vmatmul.bf16.gmra.mxu0 %v3804
      %v7386 = vpop.f32.mrf.mxu0
      %v7387 = vadd.f32 0.0, %v7386
      %v7388 = vpop.f32.mrf.mxu0
      %v7389 = vadd.f32 0.0, %v7388
      %7390 = vmatmul.bf16.gmra.mxu0 %v3815
      %v7391 = vpop.f32.mrf.mxu0
      %v7392 = vadd.f32 0.0, %v7391
      %v7393 = vpop.f32.mrf.mxu0
      %v7394 = vadd.f32 0.0, %v7393
      %7395 = vmatmul.bf16.gmra.mxu0 %v3823
      %v7396 = vpop.f32.mrf.mxu0
      %v7397 = vadd.f32 0.0, %v7396
      %v7398 = vpop.f32.mrf.mxu0
      %v7399 = vadd.f32 0.0, %v7398
      %7400 = vmatmul.bf16.gmra.mxu0 %v3831
      %v7401 = vpop.f32.mrf.mxu0
      %v7402 = vadd.f32 0.0, %v7401
      %v7403 = vpop.f32.mrf.mxu0
      %v7404 = vadd.f32 0.0, %v7403
      %7405 = vmatmul.bf16.gmra.mxu0 %v3839
      %v7406 = vpop.f32.mrf.mxu0
      %v7407 = vadd.f32 0.0, %v7406
      %v7408 = vpop.f32.mrf.mxu0
      %v7409 = vadd.f32 0.0, %v7408
      %7410 = vdwg.mxu0
      %7411 = vmatpush.bf16.msra.mxu0 %v6996
      %7412 = vmatpush.bf16.msra.mxu0 %v6993
      %7413 = vmatpush.bf16.msra.mxu0 %v6990
      %7414 = vmatpush.bf16.msra.mxu0 %v6987
      %7415 = vmatpush.bf16.msra.mxu0 %v6984
      %7416 = vmatpush.bf16.msra.mxu0 %v6981
      %7417 = vmatpush.bf16.msra.mxu0 %v6978
      %7418 = vmatpush.bf16.msra.mxu0 %v6975
      %7419 = vmatmul.bf16.gmra.mxu0 %v3807
      %v7420 = vpop.f32.mrf.mxu0
      %v7421 = vadd.f32 %v7387, %v7420
      %v7422 = vpop.f32.mrf.mxu0
      %v7423 = vadd.f32 %v7389, %v7422
      %7424 = vmatmul.bf16.gmra.mxu0 %v3817
      %v7425 = vpop.f32.mrf.mxu0
      %v7426 = vadd.f32 %v7392, %v7425
      %v7427 = vpop.f32.mrf.mxu0
      %v7428 = vadd.f32 %v7394, %v7427
      %7429 = vmatmul.bf16.gmra.mxu0 %v3825
      %v7430 = vpop.f32.mrf.mxu0
      %v7431 = vadd.f32 %v7397, %v7430
      %v7432 = vpop.f32.mrf.mxu0
      %v7433 = vadd.f32 %v7399, %v7432
      %7434 = vmatmul.bf16.gmra.mxu0 %v3833
      %v7435 = vpop.f32.mrf.mxu0
      %v7436 = vadd.f32 %v7402, %v7435
      %v7437 = vpop.f32.mrf.mxu0
      %v7438 = vadd.f32 %v7404, %v7437
      %7439 = vmatmul.bf16.gmra.mxu0 %v3840
      %v7440 = vpop.f32.mrf.mxu0
      %v7441 = vadd.f32 %v7407, %v7440
      %v7442 = vpop.f32.mrf.mxu0
      %v7443 = vadd.f32 %v7409, %v7442
      %7444 = vdwg.mxu0
      %7445 = vmatpush.bf16.msra.mxu0 %v7020
      %7446 = vmatpush.bf16.msra.mxu0 %v7017
      %7447 = vmatpush.bf16.msra.mxu0 %v7014
      %7448 = vmatpush.bf16.msra.mxu0 %v7011
      %7449 = vmatpush.bf16.msra.mxu0 %v7008
      %7450 = vmatpush.bf16.msra.mxu0 %v7005
      %7451 = vmatpush.bf16.msra.mxu0 %v7002
      %7452 = vmatpush.bf16.msra.mxu0 %v6999
      %7453 = vmatmul.bf16.gmra.mxu0 %v3810
      %v7454 = vpop.f32.mrf.mxu0
      %v7455 = vadd.f32 %v7421, %v7454
      %v7456 = vpop.f32.mrf.mxu0
      %v7457 = vadd.f32 %v7423, %v7456
      %7458 = vmatmul.bf16.gmra.mxu0 %v3819
      %v7459 = vpop.f32.mrf.mxu0
      %v7460 = vadd.f32 %v7426, %v7459
      %v7461 = vpop.f32.mrf.mxu0
      %v7462 = vadd.f32 %v7428, %v7461
      %7463 = vmatmul.bf16.gmra.mxu0 %v3827
      %v7464 = vpop.f32.mrf.mxu0
      %v7465 = vadd.f32 %v7431, %v7464
      %v7466 = vpop.f32.mrf.mxu0
      %v7467 = vadd.f32 %v7433, %v7466
      %7468 = vmatmul.bf16.gmra.mxu0 %v3835
      %v7469 = vpop.f32.mrf.mxu0
      %v7470 = vadd.f32 %v7436, %v7469
      %v7471 = vpop.f32.mrf.mxu0
      %v7472 = vadd.f32 %v7438, %v7471
      %7473 = vmatmul.bf16.gmra.mxu0 %v3841
      %v7474 = vpop.f32.mrf.mxu0
      %v7475 = vadd.f32 %v7441, %v7474
      %v7476 = vpop.f32.mrf.mxu0
      %v7477 = vadd.f32 %v7443, %v7476
      %7478 = vdwg.mxu0
      %7479 = vmatpush.bf16.msra.mxu0 0
      %7480 = vmatpush.bf16.msra.mxu0 0
      %7481 = vmatpush.bf16.msra.mxu0 0
      %7482 = vmatpush.bf16.msra.mxu0 0
      %7483 = vmatpush.bf16.msra.mxu0 0
      %7484 = vmatpush.bf16.msra.mxu0 0
      %7485 = vmatpush.bf16.msra.mxu0 %v7026
      %7486 = vmatpush.bf16.msra.mxu0 %v7023
      %7487 = vmatmul.bf16.gmra.mxu0 %v4275
      %v7488 = vpop.f32.mrf.mxu0
      %v7489 = vadd.f32 %v7455, %v7488
      %v7490 = vpop.f32.mrf.mxu0
      %v7491 = vadd.f32 %v7457, %v7490
      %7492 = vmatmul.bf16.gmra.mxu0 %v4278
      %v7493 = vpop.f32.mrf.mxu0
      %v7494 = vadd.f32 %v7460, %v7493
      %v7495 = vpop.f32.mrf.mxu0
      %v7496 = vadd.f32 %v7462, %v7495
      %7497 = vmatmul.bf16.gmra.mxu0 %v4281
      %v7498 = vpop.f32.mrf.mxu0
      %v7499 = vadd.f32 %v7465, %v7498
      %v7500 = vpop.f32.mrf.mxu0
      %v7501 = vadd.f32 %v7467, %v7500
      %7502 = vmatmul.bf16.gmra.mxu0 %v4284
      %v7503 = vpop.f32.mrf.mxu0
      %v7504 = vadd.f32 %v7470, %v7503
      %v7505 = vpop.f32.mrf.mxu0
      %v7506 = vadd.f32 %v7472, %v7505
      %7507 = vmatmul.bf16.gmra.mxu0 %v4287
      %v7508 = vpop.f32.mrf.mxu0
      %v7509 = vadd.f32 %v7475, %v7508
      %v7510 = vpop.f32.mrf.mxu0
      %v7511 = vadd.f32 %v7477, %v7510
      %7512 = vdwg.mxu0
      %v7513 = vadd.f32 %v6288, %v7217
      %v7514 = vadd.f32 %v6424, %v7353
      %v7515 = vadd.f32 %v6560, %v7489
      %v7516 = vadd.f32 %v6290, %v7219
      %v7517 = vadd.f32 %v6426, %v7355
      %v7518 = vadd.f32 %v6562, %v7491
      %v7519 = vadd.f32 %v6293, %v7222
      %v7520 = vadd.f32 %v6429, %v7358
      %v7521 = vadd.f32 %v6565, %v7494
      %v7522 = vadd.f32 %v6295, %v7224
      %v7523 = vadd.f32 %v6431, %v7360
      %v7524 = vadd.f32 %v6567, %v7496
      %v7525 = vadd.f32 %v6298, %v7227
      %v7526 = vadd.f32 %v6434, %v7363
      %v7527 = vadd.f32 %v6570, %v7499
      %v7528 = vadd.f32 %v6300, %v7229
      %v7529 = vadd.f32 %v6436, %v7365
      %v7530 = vadd.f32 %v6572, %v7501
      %v7531 = vadd.f32 %v6303, %v7232
      %v7532 = vadd.f32 %v6439, %v7368
      %v7533 = vadd.f32 %v6575, %v7504
      %v7534 = vadd.f32 %v6305, %v7234
      %v7535 = vadd.f32 %v6441, %v7370
      %v7536 = vadd.f32 %v6577, %v7506
      %v7537 = vadd.f32 %v6308, %v7237
      %v7538 = vadd.f32 %v6444, %v7373
      %v7539 = vadd.f32 %v6580, %v7509
      %v7540 = vadd.f32 %v6310, %v7239
      %v7541 = vadd.f32 %v6446, %v7375
      %v7542 = vadd.f32 %v6582, %v7511
      %v7543 = vmax.f32 %v4697, %v7513
      %v7544 = vmax.f32 %v4698, %v7514
      %v7545 = vmax.f32 %v4699, %v7515
      %v7546 = vmax.f32 %v4700, %v7516
      %v7547 = vmax.f32 %v4701, %v7517
      %v7548 = vmax.f32 %v4702, %v7518
      %v7549 = vmax.f32 %v4703, %v7519
      %v7550 = vmax.f32 %v4704, %v7520
      %v7551 = vmax.f32 %v4705, %v7521
      %v7552 = vmax.f32 %v4706, %v7522
      %v7553 = vmax.f32 %v4707, %v7523
      %v7554 = vmax.f32 %v4708, %v7524
      %v7555 = vmax.f32 %v4709, %v7525
      %v7556 = vmax.f32 %v4710, %v7526
      %v7557 = vmax.f32 %v4711, %v7527
      %v7558 = vmax.f32 %v4712, %v7528
      %v7559 = vmax.f32 %v4713, %v7529
      %v7560 = vmax.f32 %v4714, %v7530
      %v7561 = vmax.f32 %v4715, %v7531
      %v7562 = vmax.f32 %v4716, %v7532
      %v7563 = vmax.f32 %v4717, %v7533
      %v7564 = vmax.f32 %v4718, %v7534
      %v7565 = vmax.f32 %v4719, %v7535
      %v7566 = vmax.f32 %v4720, %v7536
      %v7567 = vmax.f32 %v4721, %v7537
      %v7568 = vmax.f32 %v4722, %v7538
      %v7569 = vmax.f32 %v4723, %v7539
      %v7570 = vmax.f32 %v4724, %v7540
      %v7571 = vmax.f32 %v4725, %v7541
      %v7572 = vmax.f32 %v4726, %v7542
      %v7573 = vld [vmem:[%s7] sm:$0x7]
      %v7575 = vperm.slane %v7573, 0
      %v7576 = vperm.slane %v7573, 1
      %v7577 = vperm.slane %v7573, 2
      %v7581 = vadd.f32 %v7543, %v7575
      %v7582 = vadd.f32 %v7544, %v7576
      %v7583 = vadd.f32 %v7545, %v7577
      %v7584 = vadd.f32 %v7546, %v7575
      %v7585 = vadd.f32 %v7547, %v7576
      %v7586 = vadd.f32 %v7548, %v7577
      %v7587 = vadd.f32 %v7549, %v7575
      %v7588 = vadd.f32 %v7550, %v7576
      %v7589 = vadd.f32 %v7551, %v7577
      %v7590 = vadd.f32 %v7552, %v7575
      %v7591 = vadd.f32 %v7553, %v7576
      %v7592 = vadd.f32 %v7554, %v7577
      %v7593 = vadd.f32 %v7555, %v7575
      %v7594 = vadd.f32 %v7556, %v7576
      %v7595 = vadd.f32 %v7557, %v7577
      %v7596 = vadd.f32 %v7558, %v7575
      %v7597 = vadd.f32 %v7559, %v7576
      %v7598 = vadd.f32 %v7560, %v7577
      %v7599 = vadd.f32 %v7561, %v7575
      %v7600 = vadd.f32 %v7562, %v7576
      %v7601 = vadd.f32 %v7563, %v7577
      %v7602 = vadd.f32 %v7564, %v7575
      %v7603 = vadd.f32 %v7565, %v7576
      %v7604 = vadd.f32 %v7566, %v7577
      %v7605 = vadd.f32 %v7567, %v7575
      %v7606 = vadd.f32 %v7568, %v7576
      %v7607 = vadd.f32 %v7569, %v7577
      %v7608 = vadd.f32 %v7570, %v7575
      %v7609 = vadd.f32 %v7571, %v7576
      %v7610 = vadd.f32 %v7572, %v7577
      %v7611 = vmax.f32 %v7581, 0.0
      %v7612 = vmax.f32 %v7582, 0.0
      %v7613 = vmax.f32 %v7583, 0.0
      %v7614 = vmax.f32 %v7584, 0.0
      %v7615 = vmax.f32 %v7585, 0.0
      %v7616 = vmax.f32 %v7586, 0.0
      %v7617 = vmax.f32 %v7587, 0.0
      %v7618 = vmax.f32 %v7588, 0.0
      %v7619 = vmax.f32 %v7589, 0.0
      %v7620 = vmax.f32 %v7590, 0.0
      %v7621 = vmax.f32 %v7591, 0.0
      %v7622 = vmax.f32 %v7592, 0.0
      %v7623 = vmax.f32 %v7593, 0.0
      %v7624 = vmax.f32 %v7594, 0.0
      %v7625 = vmax.f32 %v7595, 0.0
      %v7626 = vmax.f32 %v7596, 0.0
      %v7627 = vmax.f32 %v7597, 0.0
      %v7628 = vmax.f32 %v7598, 0.0
      %v7629 = vmax.f32 %v7599, 0.0
      %v7630 = vmax.f32 %v7600, 0.0
      %v7631 = vmax.f32 %v7601, 0.0
      %v7632 = vmax.f32 %v7602, 0.0
      %v7633 = vmax.f32 %v7603, 0.0
      %v7634 = vmax.f32 %v7604, 0.0
      %v7635 = vmax.f32 %v7605, 0.0
      %v7636 = vmax.f32 %v7606, 0.0
      %v7637 = vmax.f32 %v7607, 0.0
      %v7638 = vmax.f32 %v7608, 0.0
      %v7639 = vmax.f32 %v7609, 0.0
      %v7640 = vmax.f32 %v7610, 0.0
      %v7641 = vpack.c.bf16 %v7614, %v7611
      %v7642 = vpack.c.bf16 %v7615, %v7612
      %v7643 = vpack.c.bf16 %v7616, %v7613
      %v7644 = vpack.c.bf16 %v7620, %v7617
      %v7645 = vpack.c.bf16 %v7621, %v7618
      %v7646 = vpack.c.bf16 %v7622, %v7619
      %v7647 = vpack.c.bf16 %v7626, %v7623
      %v7648 = vpack.c.bf16 %v7627, %v7624
      %v7649 = vpack.c.bf16 %v7628, %v7625
      %v7650 = vpack.c.bf16 %v7632, %v7629
      %v7651 = vpack.c.bf16 %v7633, %v7630
      %v7652 = vpack.c.bf16 %v7634, %v7631
      %v7653 = vpack.c.bf16 %v7638, %v7635
      %v7654 = vpack.c.bf16 %v7639, %v7636
      %v7655 = vpack.c.bf16 %v7640, %v7637
      %v7656 = vld [vmem:[%s8] sm:$0xf]
      %v7657 = vld [vmem:[%s8 + $0x4] sm:$0xf]
      %v7658 = vld [vmem:[%s8 + $0x8] sm:$0xf]
      %v7659 = vld [vmem:[%s8 + $0xc] sm:$0xf]
      %v7660 = vld [vmem:[%s8 + $0x10] sm:$0x3]
      %v7666 = vunpack.c.l.b16 %v7656
      %v7667 = vunpack.c.l.b16 %v7657
      %v7668 = vunpack.c.l.b16 %v7658
      %v7669 = vunpack.c.l.b16 %v7659
      %v7670 = vunpack.c.l.b16 %v7660
      %v7671 = vpack.c.b16 %v7667, %v7666
      %v7672 = vpack.c.b16 %v7669, %v7668
      %v7673 = vpack.c.b16 %v7670, %v7670
      %vm7674 = vcmask 654336
      %v7676 = vsel %vm7674, %v7671, 0
      %v7679 = vsel %vm7674, %v7672, 0
      %v7682 = vsel %vm7674, %v7673, 0
      %7684 = vmatpush.bf16.msra.mxu0 0
      %7685 = vmatpush.bf16.msra.mxu0 0
      %7686 = vmatpush.bf16.msra.mxu0 0
      %7687 = vmatpush.bf16.msra.mxu0 %v7653
      %7688 = vmatpush.bf16.msra.mxu0 %v7650
      %7689 = vmatpush.bf16.msra.mxu0 %v7647
      %7690 = vmatpush.bf16.msra.mxu0 %v7644
      %7691 = vmatpush.bf16.msra.mxu0 %v7641
      %7692 = vmatmul.bf16.gmra.mxu0 %v7676
      %v7693 = vpop.f32.mrf.mxu0
      %v7694 = vadd.f32 0.0, %v7693
      %v7695 = vpop.f32.mrf.mxu0
      %v7696 = vadd.f32 0.0, %v7695
      %7697 = vmatmul.bf16.gmra.mxu0 %v7679
      %v7698 = vpop.f32.mrf.mxu0
      %v7699 = vadd.f32 0.0, %v7698
      %v7700 = vpop.f32.mrf.mxu0
      %v7701 = vadd.f32 0.0, %v7700
      %7702 = vmatmul.bf16.gmra.mxu0 %v7682
      %v7703 = vpop.f32.mrf.mxu0
      %v7704 = vadd.f32 0.0, %v7703
      %v7705 = vpop.f32.mrf.mxu0
      %7706 = vdwg.mxu0
      %7707 = vmatpush.bf16.msra.mxu0 0
      %7708 = vmatpush.bf16.msra.mxu0 0
      %7709 = vmatpush.bf16.msra.mxu0 0
      %7710 = vmatpush.bf16.msra.mxu0 %v7654
      %7711 = vmatpush.bf16.msra.mxu0 %v7651
      %7712 = vmatpush.bf16.msra.mxu0 %v7648
      %7713 = vmatpush.bf16.msra.mxu0 %v7645
      %7714 = vmatpush.bf16.msra.mxu0 %v7642
      %7715 = vmatmul.bf16.gmra.mxu0 %v7676
      %v7716 = vpop.f32.mrf.mxu0
      %v7717 = vadd.f32 0.0, %v7716
      %v7718 = vpop.f32.mrf.mxu0
      %v7719 = vadd.f32 0.0, %v7718
      %7720 = vmatmul.bf16.gmra.mxu0 %v7679
      %v7721 = vpop.f32.mrf.mxu0
      %v7722 = vadd.f32 0.0, %v7721
      %v7723 = vpop.f32.mrf.mxu0
      %v7724 = vadd.f32 0.0, %v7723
      %7725 = vmatmul.bf16.gmra.mxu0 %v7682
      %v7726 = vpop.f32.mrf.mxu0
      %v7727 = vadd.f32 0.0, %v7726
      %v7728 = vpop.f32.mrf.mxu0
      %7729 = vdwg.mxu0
      %7730 = vmatpush.bf16.msra.mxu0 0
      %7731 = vmatpush.bf16.msra.mxu0 0
      %7732 = vmatpush.bf16.msra.mxu0 0
      %7733 = vmatpush.bf16.msra.mxu0 %v7655
      %7734 = vmatpush.bf16.msra.mxu0 %v7652
      %7735 = vmatpush.bf16.msra.mxu0 %v7649
      %7736 = vmatpush.bf16.msra.mxu0 %v7646
      %7737 = vmatpush.bf16.msra.mxu0 %v7643
      %7738 = vmatmul.bf16.gmra.mxu0 %v7676
      %v7739 = vpop.f32.mrf.mxu0
      %v7740 = vadd.f32 0.0, %v7739
      %v7741 = vpop.f32.mrf.mxu0
      %v7742 = vadd.f32 0.0, %v7741
      %7743 = vmatmul.bf16.gmra.mxu0 %v7679
      %v7744 = vpop.f32.mrf.mxu0
      %v7745 = vadd.f32 0.0, %v7744
      %v7746 = vpop.f32.mrf.mxu0
      %v7747 = vadd.f32 0.0, %v7746
      %7748 = vmatmul.bf16.gmra.mxu0 %v7682
      %v7749 = vpop.f32.mrf.mxu0
      %v7750 = vadd.f32 0.0, %v7749
      %v7751 = vpop.f32.mrf.mxu0
      %7752 = vdwg.mxu0
      %v7753 = vld [vmem:[%s9] sm:$0xf]
      %v7754 = vld [vmem:[%s9 + $0x4] sm:$0xf]
      %v7755 = vld [vmem:[%s9 + $0x8] sm:$0xf]
      %v7756 = vld [vmem:[%s9 + $0xc] sm:$0xf]
      %v7757 = vld [vmem:[%s9 + $0x10] sm:$0x3]
      %v7763 = vunpack.c.l.b16 %v7753
      %v7764 = vunpack.c.l.b16 %v7754
      %v7765 = vunpack.c.l.b16 %v7755
      %v7766 = vunpack.c.l.b16 %v7756
      %v7767 = vunpack.c.l.b16 %v7757
      %v7768 = vpack.c.b16 %v7764, %v7763
      %v7769 = vpack.c.b16 %v7766, %v7765
      %v7770 = vpack.c.b16 %v7767, %v7767
      %v7772 = vsel %vm7674, %v7768, 0
      %v7775 = vsel %vm7674, %v7769, 0
      %v7778 = vsel %vm7674, %v7770, 0
      %7780 = vmatpush.bf16.msra.mxu0 0
      %7781 = vmatpush.bf16.msra.mxu0 0
      %7782 = vmatpush.bf16.msra.mxu0 0
      %7783 = vmatpush.bf16.msra.mxu0 %v7653
      %7784 = vmatpush.bf16.msra.mxu0 %v7650
      %7785 = vmatpush.bf16.msra.mxu0 %v7647
      %7786 = vmatpush.bf16.msra.mxu0 %v7644
      %7787 = vmatpush.bf16.msra.mxu0 %v7641
      %7788 = vmatmul.bf16.gmra.mxu0 %v7772
      %v7789 = vpop.f32.mrf.mxu0
      %v7790 = vadd.f32 0.0, %v7789
      %v7791 = vpop.f32.mrf.mxu0
      %v7792 = vadd.f32 0.0, %v7791
      %7793 = vmatmul.bf16.gmra.mxu0 %v7775
      %v7794 = vpop.f32.mrf.mxu0
      %v7795 = vadd.f32 0.0, %v7794
      %v7796 = vpop.f32.mrf.mxu0
      %v7797 = vadd.f32 0.0, %v7796
      %7798 = vmatmul.bf16.gmra.mxu0 %v7778
      %v7799 = vpop.f32.mrf.mxu0
      %v7800 = vadd.f32 0.0, %v7799
      %v7801 = vpop.f32.mrf.mxu0
      %7802 = vdwg.mxu0
      %7803 = vmatpush.bf16.msra.mxu0 0
      %7804 = vmatpush.bf16.msra.mxu0 0
      %7805 = vmatpush.bf16.msra.mxu0 0
      %7806 = vmatpush.bf16.msra.mxu0 %v7654
      %7807 = vmatpush.bf16.msra.mxu0 %v7651
      %7808 = vmatpush.bf16.msra.mxu0 %v7648
      %7809 = vmatpush.bf16.msra.mxu0 %v7645
      %7810 = vmatpush.bf16.msra.mxu0 %v7642
      %7811 = vmatmul.bf16.gmra.mxu0 %v7772
      %v7812 = vpop.f32.mrf.mxu0
      %v7813 = vadd.f32 0.0, %v7812
      %v7814 = vpop.f32.mrf.mxu0
      %v7815 = vadd.f32 0.0, %v7814
      %7816 = vmatmul.bf16.gmra.mxu0 %v7775
      %v7817 = vpop.f32.mrf.mxu0
      %v7818 = vadd.f32 0.0, %v7817
      %v7819 = vpop.f32.mrf.mxu0
      %v7820 = vadd.f32 0.0, %v7819
      %7821 = vmatmul.bf16.gmra.mxu0 %v7778
      %v7822 = vpop.f32.mrf.mxu0
      %v7823 = vadd.f32 0.0, %v7822
      %v7824 = vpop.f32.mrf.mxu0
      %7825 = vdwg.mxu0
      %7826 = vmatpush.bf16.msra.mxu0 0
      %7827 = vmatpush.bf16.msra.mxu0 0
      %7828 = vmatpush.bf16.msra.mxu0 0
      %7829 = vmatpush.bf16.msra.mxu0 %v7655
      %7830 = vmatpush.bf16.msra.mxu0 %v7652
      %7831 = vmatpush.bf16.msra.mxu0 %v7649
      %7832 = vmatpush.bf16.msra.mxu0 %v7646
      %7833 = vmatpush.bf16.msra.mxu0 %v7643
      %7834 = vmatmul.bf16.gmra.mxu0 %v7772
      %v7835 = vpop.f32.mrf.mxu0
      %v7836 = vadd.f32 0.0, %v7835
      %v7837 = vpop.f32.mrf.mxu0
      %v7838 = vadd.f32 0.0, %v7837
      %7839 = vmatmul.bf16.gmra.mxu0 %v7775
      %v7840 = vpop.f32.mrf.mxu0
      %v7841 = vadd.f32 0.0, %v7840
      %v7842 = vpop.f32.mrf.mxu0
      %v7843 = vadd.f32 0.0, %v7842
      %7844 = vmatmul.bf16.gmra.mxu0 %v7778
      %v7845 = vpop.f32.mrf.mxu0
      %v7846 = vadd.f32 0.0, %v7845
      %v7847 = vpop.f32.mrf.mxu0
      %7848 = vdwg.mxu0
      %v7849 = vmax.f32 %v7694, %v7790
      %v7850 = vmax.f32 %v7717, %v7813
      %v7851 = vmax.f32 %v7740, %v7836
      %v7852 = vmax.f32 %v7696, %v7792
      %v7853 = vmax.f32 %v7719, %v7815
      %v7854 = vmax.f32 %v7742, %v7838
      %v7855 = vmax.f32 %v7699, %v7795
      %v7856 = vmax.f32 %v7722, %v7818
      %v7857 = vmax.f32 %v7745, %v7841
      %v7858 = vmax.f32 %v7701, %v7797
      %v7859 = vmax.f32 %v7724, %v7820
      %v7860 = vmax.f32 %v7747, %v7843
      %v7861 = vmax.f32 %v7704, %v7800
      %v7862 = vmax.f32 %v7727, %v7823
      %v7863 = vmax.f32 %v7750, %v7846
      %v7864 = vpack.c.bf16 %v7849, %v7849
      %v7865 = vpack.c.bf16 %v7850, %v7850
      %v7866 = vpack.c.bf16 %v7851, %v7851
      %v7867 = vld [vmem:[%s10] sm:$0xf]
      %v7868 = vld [vmem:[%s10 + $0x4] sm:$0xf]
      %v7869 = vld [vmem:[%s10 + $0x8] sm:$0xf]
      %v7870 = vld [vmem:[%s10 + $0xc] sm:$0xf]
      %v7871 = vld [vmem:[%s10 + $0x10] sm:$0xf]
      %v7872 = vld [vmem:[%s10 + $0x14] sm:$0xf]
      %v7873 = vld [vmem:[%s10 + $0x18] sm:$0xf]
      %v7874 = vld [vmem:[%s10 + $0x1c] sm:$0xf]
      %v7875 = vld [vmem:[%s10 + $0x20] sm:$0xf]
      %v7876 = vld [vmem:[%s10 + $0x24] sm:$0xf]
      %v7877 = vld [vmem:[%s10 + $0x28] sm:$0xf]
      %v7878 = vld [vmem:[%s10 + $0x2c] sm:$0xf]
      %v7879 = vld [vmem:[%s10 + $0x30] sm:$0xf]
      %v7880 = vld [vmem:[%s10 + $0x34] sm:$0xf]
      %v7881 = vld [vmem:[%s10 + $0x38] sm:$0xf]
      %v7882 = vld [vmem:[%s10 + $0x3c] sm:$0xf]
      %v7883 = vld [vmem:[%s10 + $0x40] sm:$0xf]
      %v7884 = vld [vmem:[%s10 + $0x44] sm:$0xf]
      %v7885 = vld [vmem:[%s10 + $0x48] sm:$0xf]
      %v7886 = vld [vmem:[%s10 + $0x4c] sm:$0xf]
      %v7887 = vld [vmem:[%s10 + $0x50] sm:$0xf]
      %v7888 = vld [vmem:[%s10 + $0x54] sm:$0xf]
      %v7889 = vld [vmem:[%s10 + $0x58] sm:$0xf]
      %v7890 = vld [vmem:[%s10 + $0x5c] sm:$0xf]
      %v7891 = vld [vmem:[%s10 + $0x60] sm:$0xf]
      %v7892 = vld [vmem:[%s10 + $0x64] sm:$0xf]
      %v7893 = vld [vmem:[%s10 + $0x68] sm:$0xf]
      %v7894 = vld [vmem:[%s10 + $0x6c] sm:$0xf]
      %v7895 = vld [vmem:[%s10 + $0x70] sm:$0xf]
      %v7896 = vld [vmem:[%s10 + $0x74] sm:$0xf]
      %v7897 = vld [vmem:[%s10 + $0x78] sm:$0xf]
      %v7898 = vld [vmem:[%s10 + $0x7c] sm:$0xf]
      %v7899 = vld [vmem:[%s10 + $0x80] sm:$0xf]
      %v7900 = vld [vmem:[%s10 + $0x84] sm:$0xf]
      %v7901 = vld [vmem:[%s10 + $0x88] sm:$0xf]
      %v7902 = vld [vmem:[%s10 + $0x8c] sm:$0xf]
      %v7903 = vld [vmem:[%s10 + $0x90] sm:$0xf]
      %v7904 = vld [vmem:[%s10 + $0x94] sm:$0xf]
      %v7905 = vld [vmem:[%s10 + $0x98] sm:$0xf]
      %v7906 = vld [vmem:[%s10 + $0x9c] sm:$0xf]
      %s7907 = scalar_lea.vmem %s10, 160
      %v7908 = vld [vmem:[%s7907] sm:$0xf]
      %v7909 = vld [vmem:[%s7907 + $0x4] sm:$0xf]
      %v7910 = vld [vmem:[%s7907 + $0x8] sm:$0xf]
      %v7911 = vld [vmem:[%s7907 + $0xc] sm:$0xf]
      %v7912 = vld [vmem:[%s7907 + $0x10] sm:$0xf]
      %v7913 = vld [vmem:[%s7907 + $0x14] sm:$0xf]
      %v7914 = vld [vmem:[%s7907 + $0x18] sm:$0xf]
      %v7915 = vld [vmem:[%s7907 + $0x1c] sm:$0xf]
      %v7916 = vld [vmem:[%s7907 + $0x20] sm:$0xf]
      %v7917 = vld [vmem:[%s7907 + $0x24] sm:$0xf]
      %v7918 = vld [vmem:[%s7907 + $0x28] sm:$0xf]
      %v7919 = vld [vmem:[%s7907 + $0x2c] sm:$0xf]
      %v7920 = vld [vmem:[%s7907 + $0x30] sm:$0xf]
      %v7921 = vld [vmem:[%s7907 + $0x34] sm:$0xf]
      %v7922 = vld [vmem:[%s7907 + $0x38] sm:$0xf]
      %v7923 = vld [vmem:[%s7907 + $0x3c] sm:$0xf]
      %v7924 = vld [vmem:[%s7907 + $0x40] sm:$0xf]
      %v7925 = vld [vmem:[%s7907 + $0x44] sm:$0xf]
      %v7926 = vld [vmem:[%s7907 + $0x48] sm:$0xf]
      %v7927 = vld [vmem:[%s7907 + $0x4c] sm:$0xf]
      %v7928 = vld [vmem:[%s7907 + $0x50] sm:$0xf]
      %v7929 = vld [vmem:[%s7907 + $0x54] sm:$0xf]
      %v7930 = vld [vmem:[%s7907 + $0x58] sm:$0xf]
      %v7931 = vld [vmem:[%s7907 + $0x5c] sm:$0xf]
      %v7932 = vld [vmem:[%s7907 + $0x60] sm:$0xf]
      %v7933 = vld [vmem:[%s7907 + $0x64] sm:$0xf]
      %v7934 = vld [vmem:[%s7907 + $0x68] sm:$0xf]
      %v7935 = vld [vmem:[%s7907 + $0x6c] sm:$0xf]
      %v7936 = vld [vmem:[%s7907 + $0x70] sm:$0xf]
      %v7937 = vld [vmem:[%s7907 + $0x74] sm:$0xf]
      %v7938 = vld [vmem:[%s7907 + $0x78] sm:$0xf]
      %v7939 = vld [vmem:[%s7907 + $0x7c] sm:$0xf]
      %v7940 = vld [vmem:[%s7907 + $0x80] sm:$0xf]
      %v7941 = vld [vmem:[%s7907 + $0x84] sm:$0xf]
      %v7942 = vld [vmem:[%s7907 + $0x88] sm:$0xf]
      %v7943 = vld [vmem:[%s7907 + $0x8c] sm:$0xf]
      %v7944 = vld [vmem:[%s7907 + $0x90] sm:$0xf]
      %v7945 = vld [vmem:[%s7907 + $0x94] sm:$0xf]
      %v7946 = vld [vmem:[%s7907 + $0x98] sm:$0xf]
      %v7947 = vld [vmem:[%s7907 + $0x9c] sm:$0xf]
      %v7948 = vpack.c.bf16 %v7852, %v7852
      %v7949 = vpack.c.bf16 %v7853, %v7853
      %v7950 = vpack.c.bf16 %v7854, %v7854
      %s7951 = scalar_lea.vmem %s10, 320
      %v7952 = vld [vmem:[%s7951] sm:$0xf]
      %v7953 = vld [vmem:[%s7951 + $0x4] sm:$0xf]
      %v7954 = vld [vmem:[%s7951 + $0x8] sm:$0xf]
      %v7955 = vld [vmem:[%s7951 + $0xc] sm:$0xf]
      %v7956 = vld [vmem:[%s7951 + $0x10] sm:$0xf]
      %v7957 = vld [vmem:[%s7951 + $0x14] sm:$0xf]
      %v7958 = vld [vmem:[%s7951 + $0x18] sm:$0xf]
      %v7959 = vld [vmem:[%s7951 + $0x1c] sm:$0xf]
      %v7960 = vld [vmem:[%s7951 + $0x20] sm:$0xf]
      %v7961 = vld [vmem:[%s7951 + $0x24] sm:$0xf]
      %v7962 = vld [vmem:[%s7951 + $0x28] sm:$0xf]
      %v7963 = vld [vmem:[%s7951 + $0x2c] sm:$0xf]
      %v7964 = vld [vmem:[%s7951 + $0x30] sm:$0xf]
      %v7965 = vld [vmem:[%s7951 + $0x34] sm:$0xf]
      %v7966 = vld [vmem:[%s7951 + $0x38] sm:$0xf]
      %v7967 = vld [vmem:[%s7951 + $0x3c] sm:$0xf]
      %v7968 = vld [vmem:[%s7951 + $0x40] sm:$0xf]
      %v7969 = vld [vmem:[%s7951 + $0x44] sm:$0xf]
      %v7970 = vld [vmem:[%s7951 + $0x48] sm:$0xf]
      %v7971 = vld [vmem:[%s7951 + $0x4c] sm:$0xf]
      %v7972 = vld [vmem:[%s7951 + $0x50] sm:$0xf]
      %v7973 = vld [vmem:[%s7951 + $0x54] sm:$0xf]
      %v7974 = vld [vmem:[%s7951 + $0x58] sm:$0xf]
      %v7975 = vld [vmem:[%s7951 + $0x5c] sm:$0xf]
      %v7976 = vld [vmem:[%s7951 + $0x60] sm:$0xf]
      %v7977 = vld [vmem:[%s7951 + $0x64] sm:$0xf]
      %v7978 = vld [vmem:[%s7951 + $0x68] sm:$0xf]
      %v7979 = vld [vmem:[%s7951 + $0x6c] sm:$0xf]
      %v7980 = vld [vmem:[%s7951 + $0x70] sm:$0xf]
      %v7981 = vld [vmem:[%s7951 + $0x74] sm:$0xf]
      %v7982 = vld [vmem:[%s7951 + $0x78] sm:$0xf]
      %v7983 = vld [vmem:[%s7951 + $0x7c] sm:$0xf]
      %v7984 = vld [vmem:[%s7951 + $0x80] sm:$0xf]
      %v7985 = vld [vmem:[%s7951 + $0x84] sm:$0xf]
      %v7986 = vld [vmem:[%s7951 + $0x88] sm:$0xf]
      %v7987 = vld [vmem:[%s7951 + $0x8c] sm:$0xf]
      %v7988 = vld [vmem:[%s7951 + $0x90] sm:$0xf]
      %v7989 = vld [vmem:[%s7951 + $0x94] sm:$0xf]
      %v7990 = vld [vmem:[%s7951 + $0x98] sm:$0xf]
      %v7991 = vld [vmem:[%s7951 + $0x9c] sm:$0xf]
      %s7992 = scalar_lea.vmem %s10, 480
      %v7993 = vld [vmem:[%s7992] sm:$0xf]
      %v7994 = vld [vmem:[%s7992 + $0x4] sm:$0xf]
      %v7995 = vld [vmem:[%s7992 + $0x8] sm:$0xf]
      %v7996 = vld [vmem:[%s7992 + $0xc] sm:$0xf]
      %v7997 = vld [vmem:[%s7992 + $0x10] sm:$0xf]
      %v7998 = vld [vmem:[%s7992 + $0x14] sm:$0xf]
      %v7999 = vld [vmem:[%s7992 + $0x18] sm:$0xf]
      %v8000 = vld [vmem:[%s7992 + $0x1c] sm:$0xf]
      %v8001 = vld [vmem:[%s7992 + $0x20] sm:$0xf]
      %v8002 = vld [vmem:[%s7992 + $0x24] sm:$0xf]
      %v8003 = vld [vmem:[%s7992 + $0x28] sm:$0xf]
      %v8004 = vld [vmem:[%s7992 + $0x2c] sm:$0xf]
      %v8005 = vld [vmem:[%s7992 + $0x30] sm:$0xf]
      %v8006 = vld [vmem:[%s7992 + $0x34] sm:$0xf]
      %v8007 = vld [vmem:[%s7992 + $0x38] sm:$0xf]
      %v8008 = vld [vmem:[%s7992 + $0x3c] sm:$0xf]
      %v8009 = vld [vmem:[%s7992 + $0x40] sm:$0xf]
      %v8010 = vld [vmem:[%s7992 + $0x44] sm:$0xf]
      %v8011 = vld [vmem:[%s7992 + $0x48] sm:$0xf]
      %v8012 = vld [vmem:[%s7992 + $0x4c] sm:$0xf]
      %v8013 = vld [vmem:[%s7992 + $0x50] sm:$0xf]
      %v8014 = vld [vmem:[%s7992 + $0x54] sm:$0xf]
      %v8015 = vld [vmem:[%s7992 + $0x58] sm:$0xf]
      %v8016 = vld [vmem:[%s7992 + $0x5c] sm:$0xf]
      %v8017 = vld [vmem:[%s7992 + $0x60] sm:$0xf]
      %v8018 = vld [vmem:[%s7992 + $0x64] sm:$0xf]
      %v8019 = vld [vmem:[%s7992 + $0x68] sm:$0xf]
      %v8020 = vld [vmem:[%s7992 + $0x6c] sm:$0xf]
      %v8021 = vld [vmem:[%s7992 + $0x70] sm:$0xf]
      %v8022 = vld [vmem:[%s7992 + $0x74] sm:$0xf]
      %v8023 = vld [vmem:[%s7992 + $0x78] sm:$0xf]
      %v8024 = vld [vmem:[%s7992 + $0x7c] sm:$0xf]
      %v8025 = vld [vmem:[%s7992 + $0x80] sm:$0xf]
      %v8026 = vld [vmem:[%s7992 + $0x84] sm:$0xf]
      %v8027 = vld [vmem:[%s7992 + $0x88] sm:$0xf]
      %v8028 = vld [vmem:[%s7992 + $0x8c] sm:$0xf]
      %v8029 = vld [vmem:[%s7992 + $0x90] sm:$0xf]
      %v8030 = vld [vmem:[%s7992 + $0x94] sm:$0xf]
      %v8031 = vld [vmem:[%s7992 + $0x98] sm:$0xf]
      %v8032 = vld [vmem:[%s7992 + $0x9c] sm:$0xf]
      %v8036 = vrot.slane %v7948, 2
      %v8037 = vrot.slane %v7949, 2
      %v8038 = vrot.slane %v7950, 2
      %v8081 = vunpack.c.l.b16 %v7993
      %v8082 = vunpack.c.l.b16 %v7994
      %v8083 = vunpack.c.l.b16 %v7995
      %v8084 = vunpack.c.l.b16 %v7996
      %v8085 = vunpack.c.l.b16 %v7997
      %v8086 = vunpack.c.l.b16 %v7998
      %v8087 = vunpack.c.l.b16 %v7999
      %v8088 = vunpack.c.l.b16 %v8000
      %v8089 = vunpack.c.l.b16 %v8001
      %v8090 = vunpack.c.l.b16 %v8002
      %v8091 = vunpack.c.l.b16 %v8003
      %v8092 = vunpack.c.l.b16 %v8004
      %v8093 = vunpack.c.l.b16 %v8005
      %v8094 = vunpack.c.l.b16 %v8006
      %v8095 = vunpack.c.l.b16 %v8007
      %v8096 = vunpack.c.l.b16 %v8008
      %v8097 = vunpack.c.l.b16 %v8009
      %v8098 = vunpack.c.l.b16 %v8010
      %v8099 = vunpack.c.l.b16 %v8011
      %v8100 = vunpack.c.l.b16 %v8012
      %v8101 = vunpack.c.l.b16 %v8013
      %v8102 = vunpack.c.l.b16 %v8014
      %v8103 = vunpack.c.l.b16 %v8015
      %v8104 = vunpack.c.l.b16 %v8016
      %v8105 = vunpack.c.l.b16 %v8017
      %v8106 = vunpack.c.l.b16 %v8018
      %v8107 = vunpack.c.l.b16 %v8019
      %v8108 = vunpack.c.l.b16 %v8020
      %v8109 = vunpack.c.l.b16 %v8021
      %v8110 = vunpack.c.l.b16 %v8022
      %v8111 = vunpack.c.l.b16 %v8023
      %v8112 = vunpack.c.l.b16 %v8024
      %v8113 = vunpack.c.l.b16 %v8025
      %v8114 = vunpack.c.l.b16 %v8026
      %v8115 = vunpack.c.l.b16 %v8027
      %v8116 = vunpack.c.l.b16 %v8028
      %v8117 = vunpack.c.l.b16 %v8029
      %v8118 = vunpack.c.l.b16 %v8030
      %v8119 = vunpack.c.l.b16 %v8031
      %v8120 = vunpack.c.l.b16 %v8032
      %v8121 = vpack.c.b16 %v8082, %v8081
      %v8122 = vpack.c.b16 %v8084, %v8083
      %v8123 = vpack.c.b16 %v8086, %v8085
      %v8124 = vpack.c.b16 %v8088, %v8087
      %v8125 = vpack.c.b16 %v8090, %v8089
      %v8126 = vpack.c.b16 %v8092, %v8091
      %v8127 = vpack.c.b16 %v8094, %v8093
      %v8128 = vpack.c.b16 %v8096, %v8095
      %v8129 = vpack.c.b16 %v8098, %v8097
      %v8130 = vpack.c.b16 %v8100, %v8099
      %v8131 = vpack.c.b16 %v8102, %v8101
      %v8132 = vpack.c.b16 %v8104, %v8103
      %v8133 = vpack.c.b16 %v8106, %v8105
      %v8134 = vpack.c.b16 %v8108, %v8107
      %v8135 = vpack.c.b16 %v8110, %v8109
      %v8136 = vpack.c.b16 %v8112, %v8111
      %v8137 = vpack.c.b16 %v8114, %v8113
      %v8138 = vpack.c.b16 %v8116, %v8115
      %v8139 = vpack.c.b16 %v8118, %v8117
      %v8140 = vpack.c.b16 %v8120, %v8119
      %vm8161 = vcmask 523264
      %v8163 = vsel %vm8161, %v8038, 0
      %8165 = vmatpush.bf16.msra.mxu0 %v8128
      %8166 = vmatpush.bf16.msra.mxu0 %v8127
      %8167 = vmatpush.bf16.msra.mxu0 %v8126
      %8168 = vmatpush.bf16.msra.mxu0 %v8125
      %8169 = vmatpush.bf16.msra.mxu0 %v8124
      %8170 = vmatpush.bf16.msra.mxu0 %v8123
      %8171 = vmatpush.bf16.msra.mxu0 %v8122
      %8172 = vmatpush.bf16.msra.mxu0 %v8121
      %8173 = vmatmul.bf16.gmra.mxu0 %v8036
      %v8174 = vpop.f32.mrf.mxu0
      %v8175 = vadd.f32 0.0, %v8174
      %v8176 = vpop.f32.mrf.mxu0
      %8177 = vdwg.mxu0
      %8178 = vmatpush.bf16.msra.mxu0 %v8136
      %8179 = vmatpush.bf16.msra.mxu0 %v8135
      %8180 = vmatpush.bf16.msra.mxu0 %v8134
      %8181 = vmatpush.bf16.msra.mxu0 %v8133
      %8182 = vmatpush.bf16.msra.mxu0 %v8132
      %8183 = vmatpush.bf16.msra.mxu0 %v8131
      %8184 = vmatpush.bf16.msra.mxu0 %v8130
      %8185 = vmatpush.bf16.msra.mxu0 %v8129
      %8186 = vmatmul.bf16.gmra.mxu0 %v8037
      %v8187 = vpop.f32.mrf.mxu0
      %v8188 = vadd.f32 %v8175, %v8187
      %v8189 = vpop.f32.mrf.mxu0
      %8190 = vdwg.mxu0
      %8191 = vmatpush.bf16.msra.mxu0 0
      %8192 = vmatpush.bf16.msra.mxu0 0
      %8193 = vmatpush.bf16.msra.mxu0 0
      %8194 = vmatpush.bf16.msra.mxu0 0
      %8195 = vmatpush.bf16.msra.mxu0 %v8140
      %8196 = vmatpush.bf16.msra.mxu0 %v8139
      %8197 = vmatpush.bf16.msra.mxu0 %v8138
      %8198 = vmatpush.bf16.msra.mxu0 %v8137
      %8199 = vmatmul.bf16.gmra.mxu0 %v8163
      %v8200 = vpop.f32.mrf.mxu0
      %v8201 = vadd.f32 %v8188, %v8200
      %v8202 = vpop.f32.mrf.mxu0
      %8203 = vdwg.mxu0
      %v8244 = vunpack.c.l.b16 %v7867
      %v8245 = vunpack.c.l.b16 %v7868
      %v8246 = vunpack.c.l.b16 %v7869
      %v8247 = vunpack.c.l.b16 %v7870
      %v8248 = vunpack.c.l.b16 %v7871
      %v8249 = vunpack.c.l.b16 %v7872
      %v8250 = vunpack.c.l.b16 %v7873
      %v8251 = vunpack.c.l.b16 %v7874
      %v8252 = vunpack.c.l.b16 %v7875
      %v8253 = vunpack.c.l.b16 %v7876
      %v8254 = vunpack.c.l.b16 %v7877
      %v8255 = vunpack.c.l.b16 %v7878
      %v8256 = vunpack.c.l.b16 %v7879
      %v8257 = vunpack.c.l.b16 %v7880
      %v8258 = vunpack.c.l.b16 %v7881
      %v8259 = vunpack.c.l.b16 %v7882
      %v8260 = vunpack.c.l.b16 %v7883
      %v8261 = vunpack.c.l.b16 %v7884
      %v8262 = vunpack.c.l.b16 %v7885
      %v8263 = vunpack.c.l.b16 %v7886
      %v8264 = vunpack.c.l.b16 %v7887
      %v8265 = vunpack.c.l.b16 %v7888
      %v8266 = vunpack.c.l.b16 %v7889
      %v8267 = vunpack.c.l.b16 %v7890
      %v8268 = vunpack.c.l.b16 %v7891
      %v8269 = vunpack.c.l.b16 %v7892
      %v8270 = vunpack.c.l.b16 %v7893
      %v8271 = vunpack.c.l.b16 %v7894
      %v8272 = vunpack.c.l.b16 %v7895
      %v8273 = vunpack.c.l.b16 %v7896
      %v8274 = vunpack.c.l.b16 %v7897
      %v8275 = vunpack.c.l.b16 %v7898
      %v8276 = vunpack.c.l.b16 %v7899
      %v8277 = vunpack.c.l.b16 %v7900
      %v8278 = vunpack.c.l.b16 %v7901
      %v8279 = vunpack.c.l.b16 %v7902
      %v8280 = vunpack.c.l.b16 %v7903
      %v8281 = vunpack.c.l.b16 %v7904
      %v8282 = vunpack.c.l.b16 %v7905
      %v8283 = vunpack.c.l.b16 %v7906
      %v8284 = vpack.c.b16 %v8245, %v8244
      %v8285 = vpack.c.b16 %v8247, %v8246
      %v8286 = vpack.c.b16 %v8249, %v8248
      %v8287 = vpack.c.b16 %v8251, %v8250
      %v8288 = vpack.c.b16 %v8253, %v8252
      %v8289 = vpack.c.b16 %v8255, %v8254
      %v8290 = vpack.c.b16 %v8257, %v8256
      %v8291 = vpack.c.b16 %v8259, %v8258
      %v8292 = vpack.c.b16 %v8261, %v8260
      %v8293 = vpack.c.b16 %v8263, %v8262
      %v8294 = vpack.c.b16 %v8265, %v8264
      %v8295 = vpack.c.b16 %v8267, %v8266
      %v8296 = vpack.c.b16 %v8269, %v8268
      %v8297 = vpack.c.b16 %v8271, %v8270
      %v8298 = vpack.c.b16 %v8273, %v8272
      %v8299 = vpack.c.b16 %v8275, %v8274
      %v8300 = vpack.c.b16 %v8277, %v8276
      %v8301 = vpack.c.b16 %v8279, %v8278
      %v8302 = vpack.c.b16 %v8281, %v8280
      %v8303 = vpack.c.b16 %v8283, %v8282
      %v8325 = vsel %vm8161, %v7866, 0
      %8327 = vmatpush.bf16.msra.mxu0 %v8291
      %8328 = vmatpush.bf16.msra.mxu0 %v8290
      %8329 = vmatpush.bf16.msra.mxu0 %v8289
      %8330 = vmatpush.bf16.msra.mxu0 %v8288
      %8331 = vmatpush.bf16.msra.mxu0 %v8287
      %8332 = vmatpush.bf16.msra.mxu0 %v8286
      %8333 = vmatpush.bf16.msra.mxu0 %v8285
      %8334 = vmatpush.bf16.msra.mxu0 %v8284
      %8335 = vmatmul.bf16.gmra.mxu0 %v7864
      %v8336 = vpop.f32.mrf.mxu0
      %v8337 = vadd.f32 %v8201, %v8336
      %v8338 = vpop.f32.mrf.mxu0
      %8339 = vdwg.mxu0
      %8340 = vmatpush.bf16.msra.mxu0 %v8299
      %8341 = vmatpush.bf16.msra.mxu0 %v8298
      %8342 = vmatpush.bf16.msra.mxu0 %v8297
      %8343 = vmatpush.bf16.msra.mxu0 %v8296
      %8344 = vmatpush.bf16.msra.mxu0 %v8295
      %8345 = vmatpush.bf16.msra.mxu0 %v8294
      %8346 = vmatpush.bf16.msra.mxu0 %v8293
      %8347 = vmatpush.bf16.msra.mxu0 %v8292
      %8348 = vmatmul.bf16.gmra.mxu0 %v7865
      %v8349 = vpop.f32.mrf.mxu0
      %v8350 = vadd.f32 %v8337, %v8349
      %v8351 = vpop.f32.mrf.mxu0
      %8352 = vdwg.mxu0
      %8353 = vmatpush.bf16.msra.mxu0 0
      %8354 = vmatpush.bf16.msra.mxu0 0
      %8355 = vmatpush.bf16.msra.mxu0 0
      %8356 = vmatpush.bf16.msra.mxu0 0
      %8357 = vmatpush.bf16.msra.mxu0 %v8303
      %8358 = vmatpush.bf16.msra.mxu0 %v8302
      %8359 = vmatpush.bf16.msra.mxu0 %v8301
      %8360 = vmatpush.bf16.msra.mxu0 %v8300
      %8361 = vmatmul.bf16.gmra.mxu0 %v8325
      %v8362 = vpop.f32.mrf.mxu0
      %v8363 = vadd.f32 %v8350, %v8362
      %v8364 = vpop.f32.mrf.mxu0
      %8365 = vdwg.mxu0
      %v8366 = vpack.c.bf16 %v7855, %v7855
      %v8367 = vpack.c.bf16 %v7856, %v7856
      %v8368 = vpack.c.bf16 %v7857, %v7857
      %s8369 = scalar_lea.vmem %s10, 640
      %v8370 = vld [vmem:[%s8369] sm:$0xf]
      %v8371 = vld [vmem:[%s8369 + $0x4] sm:$0xf]
      %v8372 = vld [vmem:[%s8369 + $0x8] sm:$0xf]
      %v8373 = vld [vmem:[%s8369 + $0xc] sm:$0xf]
      %v8374 = vld [vmem:[%s8369 + $0x10] sm:$0xf]
      %v8375 = vld [vmem:[%s8369 + $0x14] sm:$0xf]
      %v8376 = vld [vmem:[%s8369 + $0x18] sm:$0xf]
      %v8377 = vld [vmem:[%s8369 + $0x1c] sm:$0xf]
      %v8378 = vld [vmem:[%s8369 + $0x20] sm:$0xf]
      %v8379 = vld [vmem:[%s8369 + $0x24] sm:$0xf]
      %v8380 = vld [vmem:[%s8369 + $0x28] sm:$0xf]
      %v8381 = vld [vmem:[%s8369 + $0x2c] sm:$0xf]
      %v8382 = vld [vmem:[%s8369 + $0x30] sm:$0xf]
      %v8383 = vld [vmem:[%s8369 + $0x34] sm:$0xf]
      %v8384 = vld [vmem:[%s8369 + $0x38] sm:$0xf]
      %v8385 = vld [vmem:[%s8369 + $0x3c] sm:$0xf]
      %v8386 = vld [vmem:[%s8369 + $0x40] sm:$0xf]
      %v8387 = vld [vmem:[%s8369 + $0x44] sm:$0xf]
      %v8388 = vld [vmem:[%s8369 + $0x48] sm:$0xf]
      %v8389 = vld [vmem:[%s8369 + $0x4c] sm:$0xf]
      %v8390 = vld [vmem:[%s8369 + $0x50] sm:$0xf]
      %v8391 = vld [vmem:[%s8369 + $0x54] sm:$0xf]
      %v8392 = vld [vmem:[%s8369 + $0x58] sm:$0xf]
      %v8393 = vld [vmem:[%s8369 + $0x5c] sm:$0xf]
      %v8394 = vld [vmem:[%s8369 + $0x60] sm:$0xf]
      %v8395 = vld [vmem:[%s8369 + $0x64] sm:$0xf]
      %v8396 = vld [vmem:[%s8369 + $0x68] sm:$0xf]
      %v8397 = vld [vmem:[%s8369 + $0x6c] sm:$0xf]
      %v8398 = vld [vmem:[%s8369 + $0x70] sm:$0xf]
      %v8399 = vld [vmem:[%s8369 + $0x74] sm:$0xf]
      %v8400 = vld [vmem:[%s8369 + $0x78] sm:$0xf]
      %v8401 = vld [vmem:[%s8369 + $0x7c] sm:$0xf]
      %v8402 = vld [vmem:[%s8369 + $0x80] sm:$0xf]
      %v8403 = vld [vmem:[%s8369 + $0x84] sm:$0xf]
      %v8404 = vld [vmem:[%s8369 + $0x88] sm:$0xf]
      %v8405 = vld [vmem:[%s8369 + $0x8c] sm:$0xf]
      %v8406 = vld [vmem:[%s8369 + $0x90] sm:$0xf]
      %v8407 = vld [vmem:[%s8369 + $0x94] sm:$0xf]
      %v8408 = vld [vmem:[%s8369 + $0x98] sm:$0xf]
      %v8409 = vld [vmem:[%s8369 + $0x9c] sm:$0xf]
      %v8450 = vunpack.c.l.b16 %v8370
      %v8451 = vunpack.c.l.b16 %v8371
      %v8452 = vunpack.c.l.b16 %v8372
      %v8453 = vunpack.c.l.b16 %v8373
      %v8454 = vunpack.c.l.b16 %v8374
      %v8455 = vunpack.c.l.b16 %v8375
      %v8456 = vunpack.c.l.b16 %v8376
      %v8457 = vunpack.c.l.b16 %v8377
      %v8458 = vunpack.c.l.b16 %v8378
      %v8459 = vunpack.c.l.b16 %v8379
      %v8460 = vunpack.c.l.b16 %v8380
      %v8461 = vunpack.c.l.b16 %v8381
      %v8462 = vunpack.c.l.b16 %v8382
      %v8463 = vunpack.c.l.b16 %v8383
      %v8464 = vunpack.c.l.b16 %v8384
      %v8465 = vunpack.c.l.b16 %v8385
      %v8466 = vunpack.c.l.b16 %v8386
      %v8467 = vunpack.c.l.b16 %v8387
      %v8468 = vunpack.c.l.b16 %v8388
      %v8469 = vunpack.c.l.b16 %v8389
      %v8470 = vunpack.c.l.b16 %v8390
      %v8471 = vunpack.c.l.b16 %v8391
      %v8472 = vunpack.c.l.b16 %v8392
      %v8473 = vunpack.c.l.b16 %v8393
      %v8474 = vunpack.c.l.b16 %v8394
      %v8475 = vunpack.c.l.b16 %v8395
      %v8476 = vunpack.c.l.b16 %v8396
      %v8477 = vunpack.c.l.b16 %v8397
      %v8478 = vunpack.c.l.b16 %v8398
      %v8479 = vunpack.c.l.b16 %v8399
      %v8480 = vunpack.c.l.b16 %v8400
      %v8481 = vunpack.c.l.b16 %v8401
      %v8482 = vunpack.c.l.b16 %v8402
      %v8483 = vunpack.c.l.b16 %v8403
      %v8484 = vunpack.c.l.b16 %v8404
      %v8485 = vunpack.c.l.b16 %v8405
      %v8486 = vunpack.c.l.b16 %v8406
      %v8487 = vunpack.c.l.b16 %v8407
      %v8488 = vunpack.c.l.b16 %v8408
      %v8489 = vunpack.c.l.b16 %v8409
      %v8490 = vpack.c.b16 %v8451, %v8450
      %v8491 = vpack.c.b16 %v8453, %v8452
      %v8492 = vpack.c.b16 %v8455, %v8454
      %v8493 = vpack.c.b16 %v8457, %v8456
      %v8494 = vpack.c.b16 %v8459, %v8458
      %v8495 = vpack.c.b16 %v8461, %v8460
      %v8496 = vpack.c.b16 %v8463, %v8462
      %v8497 = vpack.c.b16 %v8465, %v8464
      %v8498 = vpack.c.b16 %v8467, %v8466
      %v8499 = vpack.c.b16 %v8469, %v8468
      %v8500 = vpack.c.b16 %v8471, %v8470
      %v8501 = vpack.c.b16 %v8473, %v8472
      %v8502 = vpack.c.b16 %v8475, %v8474
      %v8503 = vpack.c.b16 %v8477, %v8476
      %v8504 = vpack.c.b16 %v8479, %v8478
      %v8505 = vpack.c.b16 %v8481, %v8480
      %v8506 = vpack.c.b16 %v8483, %v8482
      %v8507 = vpack.c.b16 %v8485, %v8484
      %v8508 = vpack.c.b16 %v8487, %v8486
      %v8509 = vpack.c.b16 %v8489, %v8488
      %v8531 = vsel %vm8161, %v8368, 0
      %8533 = vmatpush.bf16.msra.mxu0 %v8497
      %8534 = vmatpush.bf16.msra.mxu0 %v8496
      %8535 = vmatpush.bf16.msra.mxu0 %v8495
      %8536 = vmatpush.bf16.msra.mxu0 %v8494
      %8537 = vmatpush.bf16.msra.mxu0 %v8493
      %8538 = vmatpush.bf16.msra.mxu0 %v8492
      %8539 = vmatpush.bf16.msra.mxu0 %v8491
      %8540 = vmatpush.bf16.msra.mxu0 %v8490
      %8541 = vmatmul.bf16.gmra.mxu0 %v8366
      %v8542 = vpop.f32.mrf.mxu0
      %v8543 = vadd.f32 0.0, %v8542
      %v8544 = vpop.f32.mrf.mxu0
      %8545 = vdwg.mxu0
      %8546 = vmatpush.bf16.msra.mxu0 %v8505
      %8547 = vmatpush.bf16.msra.mxu0 %v8504
      %8548 = vmatpush.bf16.msra.mxu0 %v8503
      %8549 = vmatpush.bf16.msra.mxu0 %v8502
      %8550 = vmatpush.bf16.msra.mxu0 %v8501
      %8551 = vmatpush.bf16.msra.mxu0 %v8500
      %8552 = vmatpush.bf16.msra.mxu0 %v8499
      %8553 = vmatpush.bf16.msra.mxu0 %v8498
      %8554 = vmatmul.bf16.gmra.mxu0 %v8367
      %v8555 = vpop.f32.mrf.mxu0
      %v8556 = vadd.f32 %v8543, %v8555
      %v8557 = vpop.f32.mrf.mxu0
      %8558 = vdwg.mxu0
      %8559 = vmatpush.bf16.msra.mxu0 0
      %8560 = vmatpush.bf16.msra.mxu0 0
      %8561 = vmatpush.bf16.msra.mxu0 0
      %8562 = vmatpush.bf16.msra.mxu0 0
      %8563 = vmatpush.bf16.msra.mxu0 %v8509
      %8564 = vmatpush.bf16.msra.mxu0 %v8508
      %8565 = vmatpush.bf16.msra.mxu0 %v8507
      %8566 = vmatpush.bf16.msra.mxu0 %v8506
      %8567 = vmatmul.bf16.gmra.mxu0 %v8531
      %v8568 = vpop.f32.mrf.mxu0
      %v8569 = vadd.f32 %v8556, %v8568
      %v8570 = vpop.f32.mrf.mxu0
      %8571 = vdwg.mxu0
      %v8575 = vrot.slane %v7864, 2
      %v8576 = vrot.slane %v7865, 2
      %v8577 = vrot.slane %v7866, 2
      %v8620 = vunpack.c.l.b16 %v7908
      %v8621 = vunpack.c.l.b16 %v7909
      %v8622 = vunpack.c.l.b16 %v7910
      %v8623 = vunpack.c.l.b16 %v7911
      %v8624 = vunpack.c.l.b16 %v7912
      %v8625 = vunpack.c.l.b16 %v7913
      %v8626 = vunpack.c.l.b16 %v7914
      %v8627 = vunpack.c.l.b16 %v7915
      %v8628 = vunpack.c.l.b16 %v7916
      %v8629 = vunpack.c.l.b16 %v7917
      %v8630 = vunpack.c.l.b16 %v7918
      %v8631 = vunpack.c.l.b16 %v7919
      %v8632 = vunpack.c.l.b16 %v7920
      %v8633 = vunpack.c.l.b16 %v7921
      %v8634 = vunpack.c.l.b16 %v7922
      %v8635 = vunpack.c.l.b16 %v7923
      %v8636 = vunpack.c.l.b16 %v7924
      %v8637 = vunpack.c.l.b16 %v7925
      %v8638 = vunpack.c.l.b16 %v7926
      %v8639 = vunpack.c.l.b16 %v7927
      %v8640 = vunpack.c.l.b16 %v7928
      %v8641 = vunpack.c.l.b16 %v7929
      %v8642 = vunpack.c.l.b16 %v7930
      %v8643 = vunpack.c.l.b16 %v7931
      %v8644 = vunpack.c.l.b16 %v7932
      %v8645 = vunpack.c.l.b16 %v7933
      %v8646 = vunpack.c.l.b16 %v7934
      %v8647 = vunpack.c.l.b16 %v7935
      %v8648 = vunpack.c.l.b16 %v7936
      %v8649 = vunpack.c.l.b16 %v7937
      %v8650 = vunpack.c.l.b16 %v7938
      %v8651 = vunpack.c.l.b16 %v7939
      %v8652 = vunpack.c.l.b16 %v7940
      %v8653 = vunpack.c.l.b16 %v7941
      %v8654 = vunpack.c.l.b16 %v7942
      %v8655 = vunpack.c.l.b16 %v7943
      %v8656 = vunpack.c.l.b16 %v7944
      %v8657 = vunpack.c.l.b16 %v7945
      %v8658 = vunpack.c.l.b16 %v7946
      %v8659 = vunpack.c.l.b16 %v7947
      %v8660 = vpack.c.b16 %v8621, %v8620
      %v8661 = vpack.c.b16 %v8623, %v8622
      %v8662 = vpack.c.b16 %v8625, %v8624
      %v8663 = vpack.c.b16 %v8627, %v8626
      %v8664 = vpack.c.b16 %v8629, %v8628
      %v8665 = vpack.c.b16 %v8631, %v8630
      %v8666 = vpack.c.b16 %v8633, %v8632
      %v8667 = vpack.c.b16 %v8635, %v8634
      %v8668 = vpack.c.b16 %v8637, %v8636
      %v8669 = vpack.c.b16 %v8639, %v8638
      %v8670 = vpack.c.b16 %v8641, %v8640
      %v8671 = vpack.c.b16 %v8643, %v8642
      %v8672 = vpack.c.b16 %v8645, %v8644
      %v8673 = vpack.c.b16 %v8647, %v8646
      %v8674 = vpack.c.b16 %v8649, %v8648
      %v8675 = vpack.c.b16 %v8651, %v8650
      %v8676 = vpack.c.b16 %v8653, %v8652
      %v8677 = vpack.c.b16 %v8655, %v8654
      %v8678 = vpack.c.b16 %v8657, %v8656
      %v8679 = vpack.c.b16 %v8659, %v8658
      %v8701 = vsel %vm8161, %v8577, 0
      %8703 = vmatpush.bf16.msra.mxu0 %v8667
      %8704 = vmatpush.bf16.msra.mxu0 %v8666
      %8705 = vmatpush.bf16.msra.mxu0 %v8665
      %8706 = vmatpush.bf16.msra.mxu0 %v8664
      %8707 = vmatpush.bf16.msra.mxu0 %v8663
      %8708 = vmatpush.bf16.msra.mxu0 %v8662
      %8709 = vmatpush.bf16.msra.mxu0 %v8661
      %8710 = vmatpush.bf16.msra.mxu0 %v8660
      %8711 = vmatmul.bf16.gmra.mxu0 %v8575
      %v8712 = vpop.f32.mrf.mxu0
      %v8713 = vadd.f32 %v8569, %v8712
      %v8714 = vpop.f32.mrf.mxu0
      %8715 = vdwg.mxu0
      %8716 = vmatpush.bf16.msra.mxu0 %v8675
      %8717 = vmatpush.bf16.msra.mxu0 %v8674
      %8718 = vmatpush.bf16.msra.mxu0 %v8673
      %8719 = vmatpush.bf16.msra.mxu0 %v8672
      %8720 = vmatpush.bf16.msra.mxu0 %v8671
      %8721 = vmatpush.bf16.msra.mxu0 %v8670
      %8722 = vmatpush.bf16.msra.mxu0 %v8669
      %8723 = vmatpush.bf16.msra.mxu0 %v8668
      %8724 = vmatmul.bf16.gmra.mxu0 %v8576
      %v8725 = vpop.f32.mrf.mxu0
      %v8726 = vadd.f32 %v8713, %v8725
      %v8727 = vpop.f32.mrf.mxu0
      %8728 = vdwg.mxu0
      %8729 = vmatpush.bf16.msra.mxu0 0
      %8730 = vmatpush.bf16.msra.mxu0 0
      %8731 = vmatpush.bf16.msra.mxu0 0
      %8732 = vmatpush.bf16.msra.mxu0 0
      %8733 = vmatpush.bf16.msra.mxu0 %v8679
      %8734 = vmatpush.bf16.msra.mxu0 %v8678
      %8735 = vmatpush.bf16.msra.mxu0 %v8677
      %8736 = vmatpush.bf16.msra.mxu0 %v8676
      %8737 = vmatmul.bf16.gmra.mxu0 %v8701
      %v8738 = vpop.f32.mrf.mxu0
      %v8739 = vadd.f32 %v8726, %v8738
      %v8740 = vpop.f32.mrf.mxu0
      %8741 = vdwg.mxu0
      %s8742 = scalar_lea.vmem %s10, 800
      %v8743 = vld [vmem:[%s8742] sm:$0xf]
      %v8744 = vld [vmem:[%s8742 + $0x4] sm:$0xf]
      %v8745 = vld [vmem:[%s8742 + $0x8] sm:$0xf]
      %v8746 = vld [vmem:[%s8742 + $0xc] sm:$0xf]
      %v8747 = vld [vmem:[%s8742 + $0x10] sm:$0xf]
      %v8748 = vld [vmem:[%s8742 + $0x14] sm:$0xf]
      %v8749 = vld [vmem:[%s8742 + $0x18] sm:$0xf]
      %v8750 = vld [vmem:[%s8742 + $0x1c] sm:$0xf]
      %v8751 = vld [vmem:[%s8742 + $0x20] sm:$0xf]
      %v8752 = vld [vmem:[%s8742 + $0x24] sm:$0xf]
      %v8753 = vld [vmem:[%s8742 + $0x28] sm:$0xf]
      %v8754 = vld [vmem:[%s8742 + $0x2c] sm:$0xf]
      %v8755 = vld [vmem:[%s8742 + $0x30] sm:$0xf]
      %v8756 = vld [vmem:[%s8742 + $0x34] sm:$0xf]
      %v8757 = vld [vmem:[%s8742 + $0x38] sm:$0xf]
      %v8758 = vld [vmem:[%s8742 + $0x3c] sm:$0xf]
      %v8759 = vld [vmem:[%s8742 + $0x40] sm:$0xf]
      %v8760 = vld [vmem:[%s8742 + $0x44] sm:$0xf]
      %v8761 = vld [vmem:[%s8742 + $0x48] sm:$0xf]
      %v8762 = vld [vmem:[%s8742 + $0x4c] sm:$0xf]
      %v8763 = vld [vmem:[%s8742 + $0x50] sm:$0xf]
      %v8764 = vld [vmem:[%s8742 + $0x54] sm:$0xf]
      %v8765 = vld [vmem:[%s8742 + $0x58] sm:$0xf]
      %v8766 = vld [vmem:[%s8742 + $0x5c] sm:$0xf]
      %v8767 = vld [vmem:[%s8742 + $0x60] sm:$0xf]
      %v8768 = vld [vmem:[%s8742 + $0x64] sm:$0xf]
      %v8769 = vld [vmem:[%s8742 + $0x68] sm:$0xf]
      %v8770 = vld [vmem:[%s8742 + $0x6c] sm:$0xf]
      %v8771 = vld [vmem:[%s8742 + $0x70] sm:$0xf]
      %v8772 = vld [vmem:[%s8742 + $0x74] sm:$0xf]
      %v8773 = vld [vmem:[%s8742 + $0x78] sm:$0xf]
      %v8774 = vld [vmem:[%s8742 + $0x7c] sm:$0xf]
      %v8775 = vld [vmem:[%s8742 + $0x80] sm:$0xf]
      %v8776 = vld [vmem:[%s8742 + $0x84] sm:$0xf]
      %v8777 = vld [vmem:[%s8742 + $0x88] sm:$0xf]
      %v8778 = vld [vmem:[%s8742 + $0x8c] sm:$0xf]
      %v8779 = vld [vmem:[%s8742 + $0x90] sm:$0xf]
      %v8780 = vld [vmem:[%s8742 + $0x94] sm:$0xf]
      %v8781 = vld [vmem:[%s8742 + $0x98] sm:$0xf]
      %v8782 = vld [vmem:[%s8742 + $0x9c] sm:$0xf]
      %v8786 = vrot.slane %v8366, 2
      %v8787 = vrot.slane %v8367, 2
      %v8788 = vrot.slane %v8368, 2
      %v8831 = vunpack.c.l.b16 %v8743
      %v8832 = vunpack.c.l.b16 %v8744
      %v8833 = vunpack.c.l.b16 %v8745
      %v8834 = vunpack.c.l.b16 %v8746
      %v8835 = vunpack.c.l.b16 %v8747
      %v8836 = vunpack.c.l.b16 %v8748
      %v8837 = vunpack.c.l.b16 %v8749
      %v8838 = vunpack.c.l.b16 %v8750
      %v8839 = vunpack.c.l.b16 %v8751
      %v8840 = vunpack.c.l.b16 %v8752
      %v8841 = vunpack.c.l.b16 %v8753
      %v8842 = vunpack.c.l.b16 %v8754
      %v8843 = vunpack.c.l.b16 %v8755
      %v8844 = vunpack.c.l.b16 %v8756
      %v8845 = vunpack.c.l.b16 %v8757
      %v8846 = vunpack.c.l.b16 %v8758
      %v8847 = vunpack.c.l.b16 %v8759
      %v8848 = vunpack.c.l.b16 %v8760
      %v8849 = vunpack.c.l.b16 %v8761
      %v8850 = vunpack.c.l.b16 %v8762
      %v8851 = vunpack.c.l.b16 %v8763
      %v8852 = vunpack.c.l.b16 %v8764
      %v8853 = vunpack.c.l.b16 %v8765
      %v8854 = vunpack.c.l.b16 %v8766
      %v8855 = vunpack.c.l.b16 %v8767
      %v8856 = vunpack.c.l.b16 %v8768
      %v8857 = vunpack.c.l.b16 %v8769
      %v8858 = vunpack.c.l.b16 %v8770
      %v8859 = vunpack.c.l.b16 %v8771
      %v8860 = vunpack.c.l.b16 %v8772
      %v8861 = vunpack.c.l.b16 %v8773
      %v8862 = vunpack.c.l.b16 %v8774
      %v8863 = vunpack.c.l.b16 %v8775
      %v8864 = vunpack.c.l.b16 %v8776
      %v8865 = vunpack.c.l.b16 %v8777
      %v8866 = vunpack.c.l.b16 %v8778
      %v8867 = vunpack.c.l.b16 %v8779
      %v8868 = vunpack.c.l.b16 %v8780
      %v8869 = vunpack.c.l.b16 %v8781
      %v8870 = vunpack.c.l.b16 %v8782
      %v8871 = vpack.c.b16 %v8832, %v8831
      %v8872 = vpack.c.b16 %v8834, %v8833
      %v8873 = vpack.c.b16 %v8836, %v8835
      %v8874 = vpack.c.b16 %v8838, %v8837
      %v8875 = vpack.c.b16 %v8840, %v8839
      %v8876 = vpack.c.b16 %v8842, %v8841
      %v8877 = vpack.c.b16 %v8844, %v8843
      %v8878 = vpack.c.b16 %v8846, %v8845
      %v8879 = vpack.c.b16 %v8848, %v8847
      %v8880 = vpack.c.b16 %v8850, %v8849
      %v8881 = vpack.c.b16 %v8852, %v8851
      %v8882 = vpack.c.b16 %v8854, %v8853
      %v8883 = vpack.c.b16 %v8856, %v8855
      %v8884 = vpack.c.b16 %v8858, %v8857
      %v8885 = vpack.c.b16 %v8860, %v8859
      %v8886 = vpack.c.b16 %v8862, %v8861
      %v8887 = vpack.c.b16 %v8864, %v8863
      %v8888 = vpack.c.b16 %v8866, %v8865
      %v8889 = vpack.c.b16 %v8868, %v8867
      %v8890 = vpack.c.b16 %v8870, %v8869
      %v8912 = vsel %vm8161, %v8788, 0
      %8914 = vmatpush.bf16.msra.mxu0 %v8878
      %8915 = vmatpush.bf16.msra.mxu0 %v8877
      %8916 = vmatpush.bf16.msra.mxu0 %v8876
      %8917 = vmatpush.bf16.msra.mxu0 %v8875
      %8918 = vmatpush.bf16.msra.mxu0 %v8874
      %8919 = vmatpush.bf16.msra.mxu0 %v8873
      %8920 = vmatpush.bf16.msra.mxu0 %v8872
      %8921 = vmatpush.bf16.msra.mxu0 %v8871
      %8922 = vmatmul.bf16.gmra.mxu0 %v8786
      %v8923 = vpop.f32.mrf.mxu0
      %v8924 = vadd.f32 0.0, %v8923
      %v8925 = vpop.f32.mrf.mxu0
      %8926 = vdwg.mxu0
      %8927 = vmatpush.bf16.msra.mxu0 %v8886
      %8928 = vmatpush.bf16.msra.mxu0 %v8885
      %8929 = vmatpush.bf16.msra.mxu0 %v8884
      %8930 = vmatpush.bf16.msra.mxu0 %v8883
      %8931 = vmatpush.bf16.msra.mxu0 %v8882
      %8932 = vmatpush.bf16.msra.mxu0 %v8881
      %8933 = vmatpush.bf16.msra.mxu0 %v8880
      %8934 = vmatpush.bf16.msra.mxu0 %v8879
      %8935 = vmatmul.bf16.gmra.mxu0 %v8787
      %v8936 = vpop.f32.mrf.mxu0
      %v8937 = vadd.f32 %v8924, %v8936
      %v8938 = vpop.f32.mrf.mxu0
      %8939 = vdwg.mxu0
      %8940 = vmatpush.bf16.msra.mxu0 0
      %8941 = vmatpush.bf16.msra.mxu0 0
      %8942 = vmatpush.bf16.msra.mxu0 0
      %8943 = vmatpush.bf16.msra.mxu0 0
      %8944 = vmatpush.bf16.msra.mxu0 %v8890
      %8945 = vmatpush.bf16.msra.mxu0 %v8889
      %8946 = vmatpush.bf16.msra.mxu0 %v8888
      %8947 = vmatpush.bf16.msra.mxu0 %v8887
      %8948 = vmatmul.bf16.gmra.mxu0 %v8912
      %v8949 = vpop.f32.mrf.mxu0
      %v8950 = vadd.f32 %v8937, %v8949
      %v8951 = vpop.f32.mrf.mxu0
      %8952 = vdwg.mxu0
      %v8993 = vunpack.c.l.b16 %v7952
      %v8994 = vunpack.c.l.b16 %v7953
      %v8995 = vunpack.c.l.b16 %v7954
      %v8996 = vunpack.c.l.b16 %v7955
      %v8997 = vunpack.c.l.b16 %v7956
      %v8998 = vunpack.c.l.b16 %v7957
      %v8999 = vunpack.c.l.b16 %v7958
      %v9000 = vunpack.c.l.b16 %v7959
      %v9001 = vunpack.c.l.b16 %v7960
      %v9002 = vunpack.c.l.b16 %v7961
      %v9003 = vunpack.c.l.b16 %v7962
      %v9004 = vunpack.c.l.b16 %v7963
      %v9005 = vunpack.c.l.b16 %v7964
      %v9006 = vunpack.c.l.b16 %v7965
      %v9007 = vunpack.c.l.b16 %v7966
      %v9008 = vunpack.c.l.b16 %v7967
      %v9009 = vunpack.c.l.b16 %v7968
      %v9010 = vunpack.c.l.b16 %v7969
      %v9011 = vunpack.c.l.b16 %v7970
      %v9012 = vunpack.c.l.b16 %v7971
      %v9013 = vunpack.c.l.b16 %v7972
      %v9014 = vunpack.c.l.b16 %v7973
      %v9015 = vunpack.c.l.b16 %v7974
      %v9016 = vunpack.c.l.b16 %v7975
      %v9017 = vunpack.c.l.b16 %v7976
      %v9018 = vunpack.c.l.b16 %v7977
      %v9019 = vunpack.c.l.b16 %v7978
      %v9020 = vunpack.c.l.b16 %v7979
      %v9021 = vunpack.c.l.b16 %v7980
      %v9022 = vunpack.c.l.b16 %v7981
      %v9023 = vunpack.c.l.b16 %v7982
      %v9024 = vunpack.c.l.b16 %v7983
      %v9025 = vunpack.c.l.b16 %v7984
      %v9026 = vunpack.c.l.b16 %v7985
      %v9027 = vunpack.c.l.b16 %v7986
      %v9028 = vunpack.c.l.b16 %v7987
      %v9029 = vunpack.c.l.b16 %v7988
      %v9030 = vunpack.c.l.b16 %v7989
      %v9031 = vunpack.c.l.b16 %v7990
      %v9032 = vunpack.c.l.b16 %v7991
      %v9033 = vpack.c.b16 %v8994, %v8993
      %v9034 = vpack.c.b16 %v8996, %v8995
      %v9035 = vpack.c.b16 %v8998, %v8997
      %v9036 = vpack.c.b16 %v9000, %v8999
      %v9037 = vpack.c.b16 %v9002, %v9001
      %v9038 = vpack.c.b16 %v9004, %v9003
      %v9039 = vpack.c.b16 %v9006, %v9005
      %v9040 = vpack.c.b16 %v9008, %v9007
      %v9041 = vpack.c.b16 %v9010, %v9009
      %v9042 = vpack.c.b16 %v9012, %v9011
      %v9043 = vpack.c.b16 %v9014, %v9013
      %v9044 = vpack.c.b16 %v9016, %v9015
      %v9045 = vpack.c.b16 %v9018, %v9017
      %v9046 = vpack.c.b16 %v9020, %v9019
      %v9047 = vpack.c.b16 %v9022, %v9021
      %v9048 = vpack.c.b16 %v9024, %v9023
      %v9049 = vpack.c.b16 %v9026, %v9025
      %v9050 = vpack.c.b16 %v9028, %v9027
      %v9051 = vpack.c.b16 %v9030, %v9029
      %v9052 = vpack.c.b16 %v9032, %v9031
      %v9074 = vsel %vm8161, %v7950, 0
      %9076 = vmatpush.bf16.msra.mxu0 %v9040
      %9077 = vmatpush.bf16.msra.mxu0 %v9039
      %9078 = vmatpush.bf16.msra.mxu0 %v9038
      %9079 = vmatpush.bf16.msra.mxu0 %v9037
      %9080 = vmatpush.bf16.msra.mxu0 %v9036
      %9081 = vmatpush.bf16.msra.mxu0 %v9035
      %9082 = vmatpush.bf16.msra.mxu0 %v9034
      %9083 = vmatpush.bf16.msra.mxu0 %v9033
      %9084 = vmatmul.bf16.gmra.mxu0 %v7948
      %v9085 = vpop.f32.mrf.mxu0
      %v9086 = vadd.f32 %v8950, %v9085
      %v9087 = vpop.f32.mrf.mxu0
      %9088 = vdwg.mxu0
      %9089 = vmatpush.bf16.msra.mxu0 %v9048
      %9090 = vmatpush.bf16.msra.mxu0 %v9047
      %9091 = vmatpush.bf16.msra.mxu0 %v9046
      %9092 = vmatpush.bf16.msra.mxu0 %v9045
      %9093 = vmatpush.bf16.msra.mxu0 %v9044
      %9094 = vmatpush.bf16.msra.mxu0 %v9043
      %9095 = vmatpush.bf16.msra.mxu0 %v9042
      %9096 = vmatpush.bf16.msra.mxu0 %v9041
      %9097 = vmatmul.bf16.gmra.mxu0 %v7949
      %v9098 = vpop.f32.mrf.mxu0
      %v9099 = vadd.f32 %v9086, %v9098
      %v9100 = vpop.f32.mrf.mxu0
      %9101 = vdwg.mxu0
      %9102 = vmatpush.bf16.msra.mxu0 0
      %9103 = vmatpush.bf16.msra.mxu0 0
      %9104 = vmatpush.bf16.msra.mxu0 0
      %9105 = vmatpush.bf16.msra.mxu0 0
      %9106 = vmatpush.bf16.msra.mxu0 %v9052
      %9107 = vmatpush.bf16.msra.mxu0 %v9051
      %9108 = vmatpush.bf16.msra.mxu0 %v9050
      %9109 = vmatpush.bf16.msra.mxu0 %v9049
      %9110 = vmatmul.bf16.gmra.mxu0 %v9074
      %v9111 = vpop.f32.mrf.mxu0
      %v9112 = vadd.f32 %v9099, %v9111
      %v9113 = vpop.f32.mrf.mxu0
      %9114 = vdwg.mxu0
      %v9115 = vpack.c.bf16 %v7858, %v7858
      %v9116 = vpack.c.bf16 %v7859, %v7859
      %v9117 = vpack.c.bf16 %v7860, %v7860
      %s9118 = scalar_lea.vmem %s10, 960
      %v9119 = vld [vmem:[%s9118] sm:$0xf]
      %v9120 = vld [vmem:[%s9118 + $0x4] sm:$0xf]
      %v9121 = vld [vmem:[%s9118 + $0x8] sm:$0xf]
      %v9122 = vld [vmem:[%s9118 + $0xc] sm:$0xf]
      %v9123 = vld [vmem:[%s9118 + $0x10] sm:$0xf]
      %v9124 = vld [vmem:[%s9118 + $0x14] sm:$0xf]
      %v9125 = vld [vmem:[%s9118 + $0x18] sm:$0xf]
      %v9126 = vld [vmem:[%s9118 + $0x1c] sm:$0xf]
      %v9127 = vld [vmem:[%s9118 + $0x20] sm:$0xf]
      %v9128 = vld [vmem:[%s9118 + $0x24] sm:$0xf]
      %v9129 = vld [vmem:[%s9118 + $0x28] sm:$0xf]
      %v9130 = vld [vmem:[%s9118 + $0x2c] sm:$0xf]
      %v9131 = vld [vmem:[%s9118 + $0x30] sm:$0xf]
      %v9132 = vld [vmem:[%s9118 + $0x34] sm:$0xf]
      %v9133 = vld [vmem:[%s9118 + $0x38] sm:$0xf]
      %v9134 = vld [vmem:[%s9118 + $0x3c] sm:$0xf]
      %v9135 = vld [vmem:[%s9118 + $0x40] sm:$0xf]
      %v9136 = vld [vmem:[%s9118 + $0x44] sm:$0xf]
      %v9137 = vld [vmem:[%s9118 + $0x48] sm:$0xf]
      %v9138 = vld [vmem:[%s9118 + $0x4c] sm:$0xf]
      %v9139 = vld [vmem:[%s9118 + $0x50] sm:$0xf]
      %v9140 = vld [vmem:[%s9118 + $0x54] sm:$0xf]
      %v9141 = vld [vmem:[%s9118 + $0x58] sm:$0xf]
      %v9142 = vld [vmem:[%s9118 + $0x5c] sm:$0xf]
      %v9143 = vld [vmem:[%s9118 + $0x60] sm:$0xf]
      %v9144 = vld [vmem:[%s9118 + $0x64] sm:$0xf]
      %v9145 = vld [vmem:[%s9118 + $0x68] sm:$0xf]
      %v9146 = vld [vmem:[%s9118 + $0x6c] sm:$0xf]
      %v9147 = vld [vmem:[%s9118 + $0x70] sm:$0xf]
      %v9148 = vld [vmem:[%s9118 + $0x74] sm:$0xf]
      %v9149 = vld [vmem:[%s9118 + $0x78] sm:$0xf]
      %v9150 = vld [vmem:[%s9118 + $0x7c] sm:$0xf]
      %v9151 = vld [vmem:[%s9118 + $0x80] sm:$0xf]
      %v9152 = vld [vmem:[%s9118 + $0x84] sm:$0xf]
      %v9153 = vld [vmem:[%s9118 + $0x88] sm:$0xf]
      %v9154 = vld [vmem:[%s9118 + $0x8c] sm:$0xf]
      %v9155 = vld [vmem:[%s9118 + $0x90] sm:$0xf]
      %v9156 = vld [vmem:[%s9118 + $0x94] sm:$0xf]
      %v9157 = vld [vmem:[%s9118 + $0x98] sm:$0xf]
      %v9158 = vld [vmem:[%s9118 + $0x9c] sm:$0xf]
      %v9199 = vunpack.c.l.b16 %v9119
      %v9200 = vunpack.c.l.b16 %v9120
      %v9201 = vunpack.c.l.b16 %v9121
      %v9202 = vunpack.c.l.b16 %v9122
      %v9203 = vunpack.c.l.b16 %v9123
      %v9204 = vunpack.c.l.b16 %v9124
      %v9205 = vunpack.c.l.b16 %v9125
      %v9206 = vunpack.c.l.b16 %v9126
      %v9207 = vunpack.c.l.b16 %v9127
      %v9208 = vunpack.c.l.b16 %v9128
      %v9209 = vunpack.c.l.b16 %v9129
      %v9210 = vunpack.c.l.b16 %v9130
      %v9211 = vunpack.c.l.b16 %v9131
      %v9212 = vunpack.c.l.b16 %v9132
      %v9213 = vunpack.c.l.b16 %v9133
      %v9214 = vunpack.c.l.b16 %v9134
      %v9215 = vunpack.c.l.b16 %v9135
      %v9216 = vunpack.c.l.b16 %v9136
      %v9217 = vunpack.c.l.b16 %v9137
      %v9218 = vunpack.c.l.b16 %v9138
      %v9219 = vunpack.c.l.b16 %v9139
      %v9220 = vunpack.c.l.b16 %v9140
      %v9221 = vunpack.c.l.b16 %v9141
      %v9222 = vunpack.c.l.b16 %v9142
      %v9223 = vunpack.c.l.b16 %v9143
      %v9224 = vunpack.c.l.b16 %v9144
      %v9225 = vunpack.c.l.b16 %v9145
      %v9226 = vunpack.c.l.b16 %v9146
      %v9227 = vunpack.c.l.b16 %v9147
      %v9228 = vunpack.c.l.b16 %v9148
      %v9229 = vunpack.c.l.b16 %v9149
      %v9230 = vunpack.c.l.b16 %v9150
      %v9231 = vunpack.c.l.b16 %v9151
      %v9232 = vunpack.c.l.b16 %v9152
      %v9233 = vunpack.c.l.b16 %v9153
      %v9234 = vunpack.c.l.b16 %v9154
      %v9235 = vunpack.c.l.b16 %v9155
      %v9236 = vunpack.c.l.b16 %v9156
      %v9237 = vunpack.c.l.b16 %v9157
      %v9238 = vunpack.c.l.b16 %v9158
      %v9239 = vpack.c.b16 %v9200, %v9199
      %v9240 = vpack.c.b16 %v9202, %v9201
      %v9241 = vpack.c.b16 %v9204, %v9203
      %v9242 = vpack.c.b16 %v9206, %v9205
      %v9243 = vpack.c.b16 %v9208, %v9207
      %v9244 = vpack.c.b16 %v9210, %v9209
      %v9245 = vpack.c.b16 %v9212, %v9211
      %v9246 = vpack.c.b16 %v9214, %v9213
      %v9247 = vpack.c.b16 %v9216, %v9215
      %v9248 = vpack.c.b16 %v9218, %v9217
      %v9249 = vpack.c.b16 %v9220, %v9219
      %v9250 = vpack.c.b16 %v9222, %v9221
      %v9251 = vpack.c.b16 %v9224, %v9223
      %v9252 = vpack.c.b16 %v9226, %v9225
      %v9253 = vpack.c.b16 %v9228, %v9227
      %v9254 = vpack.c.b16 %v9230, %v9229
      %v9255 = vpack.c.b16 %v9232, %v9231
      %v9256 = vpack.c.b16 %v9234, %v9233
      %v9257 = vpack.c.b16 %v9236, %v9235
      %v9258 = vpack.c.b16 %v9238, %v9237
      %v9280 = vsel %vm8161, %v9117, 0
      %9282 = vmatpush.bf16.msra.mxu0 %v9246
      %9283 = vmatpush.bf16.msra.mxu0 %v9245
      %9284 = vmatpush.bf16.msra.mxu0 %v9244
      %9285 = vmatpush.bf16.msra.mxu0 %v9243
      %9286 = vmatpush.bf16.msra.mxu0 %v9242
      %9287 = vmatpush.bf16.msra.mxu0 %v9241
      %9288 = vmatpush.bf16.msra.mxu0 %v9240
      %9289 = vmatpush.bf16.msra.mxu0 %v9239
      %9290 = vmatmul.bf16.gmra.mxu0 %v9115
      %v9291 = vpop.f32.mrf.mxu0
      %v9292 = vadd.f32 0.0, %v9291
      %v9293 = vpop.f32.mrf.mxu0
      %9294 = vdwg.mxu0
      %9295 = vmatpush.bf16.msra.mxu0 %v9254
      %9296 = vmatpush.bf16.msra.mxu0 %v9253
      %9297 = vmatpush.bf16.msra.mxu0 %v9252
      %9298 = vmatpush.bf16.msra.mxu0 %v9251
      %9299 = vmatpush.bf16.msra.mxu0 %v9250
      %9300 = vmatpush.bf16.msra.mxu0 %v9249
      %9301 = vmatpush.bf16.msra.mxu0 %v9248
      %9302 = vmatpush.bf16.msra.mxu0 %v9247
      %9303 = vmatmul.bf16.gmra.mxu0 %v9116
      %v9304 = vpop.f32.mrf.mxu0
      %v9305 = vadd.f32 %v9292, %v9304
      %v9306 = vpop.f32.mrf.mxu0
      %9307 = vdwg.mxu0
      %9308 = vmatpush.bf16.msra.mxu0 0
      %9309 = vmatpush.bf16.msra.mxu0 0
      %9310 = vmatpush.bf16.msra.mxu0 0
      %9311 = vmatpush.bf16.msra.mxu0 0
      %9312 = vmatpush.bf16.msra.mxu0 %v9258
      %9313 = vmatpush.bf16.msra.mxu0 %v9257
      %9314 = vmatpush.bf16.msra.mxu0 %v9256
      %9315 = vmatpush.bf16.msra.mxu0 %v9255
      %9316 = vmatmul.bf16.gmra.mxu0 %v9280
      %v9317 = vpop.f32.mrf.mxu0
      %v9318 = vadd.f32 %v9305, %v9317
      %v9319 = vpop.f32.mrf.mxu0
      %9320 = vdwg.mxu0
      %v9321 = vadd.f32 %v8363, %v9318
      %s9322 = scalar_lea.vmem %s10, 1120
      %v9323 = vld [vmem:[%s9322] sm:$0xf]
      %v9324 = vld [vmem:[%s9322 + $0x4] sm:$0xf]
      %v9325 = vld [vmem:[%s9322 + $0x8] sm:$0xf]
      %v9326 = vld [vmem:[%s9322 + $0xc] sm:$0xf]
      %v9327 = vld [vmem:[%s9322 + $0x10] sm:$0xf]
      %v9328 = vld [vmem:[%s9322 + $0x14] sm:$0xf]
      %v9329 = vld [vmem:[%s9322 + $0x18] sm:$0xf]
      %v9330 = vld [vmem:[%s9322 + $0x1c] sm:$0xf]
      %v9331 = vld [vmem:[%s9322 + $0x20] sm:$0xf]
      %v9332 = vld [vmem:[%s9322 + $0x24] sm:$0xf]
      %v9333 = vld [vmem:[%s9322 + $0x28] sm:$0xf]
      %v9334 = vld [vmem:[%s9322 + $0x2c] sm:$0xf]
      %v9335 = vld [vmem:[%s9322 + $0x30] sm:$0xf]
      %v9336 = vld [vmem:[%s9322 + $0x34] sm:$0xf]
      %v9337 = vld [vmem:[%s9322 + $0x38] sm:$0xf]
      %v9338 = vld [vmem:[%s9322 + $0x3c] sm:$0xf]
      %v9339 = vld [vmem:[%s9322 + $0x40] sm:$0xf]
      %v9340 = vld [vmem:[%s9322 + $0x44] sm:$0xf]
      %v9341 = vld [vmem:[%s9322 + $0x48] sm:$0xf]
      %v9342 = vld [vmem:[%s9322 + $0x4c] sm:$0xf]
      %v9343 = vld [vmem:[%s9322 + $0x50] sm:$0xf]
      %v9344 = vld [vmem:[%s9322 + $0x54] sm:$0xf]
      %v9345 = vld [vmem:[%s9322 + $0x58] sm:$0xf]
      %v9346 = vld [vmem:[%s9322 + $0x5c] sm:$0xf]
      %v9347 = vld [vmem:[%s9322 + $0x60] sm:$0xf]
      %v9348 = vld [vmem:[%s9322 + $0x64] sm:$0xf]
      %v9349 = vld [vmem:[%s9322 + $0x68] sm:$0xf]
      %v9350 = vld [vmem:[%s9322 + $0x6c] sm:$0xf]
      %v9351 = vld [vmem:[%s9322 + $0x70] sm:$0xf]
      %v9352 = vld [vmem:[%s9322 + $0x74] sm:$0xf]
      %v9353 = vld [vmem:[%s9322 + $0x78] sm:$0xf]
      %v9354 = vld [vmem:[%s9322 + $0x7c] sm:$0xf]
      %v9355 = vld [vmem:[%s9322 + $0x80] sm:$0xf]
      %v9356 = vld [vmem:[%s9322 + $0x84] sm:$0xf]
      %v9357 = vld [vmem:[%s9322 + $0x88] sm:$0xf]
      %v9358 = vld [vmem:[%s9322 + $0x8c] sm:$0xf]
      %v9359 = vld [vmem:[%s9322 + $0x90] sm:$0xf]
      %v9360 = vld [vmem:[%s9322 + $0x94] sm:$0xf]
      %v9361 = vld [vmem:[%s9322 + $0x98] sm:$0xf]
      %v9362 = vld [vmem:[%s9322 + $0x9c] sm:$0xf]
      %v9366 = vrot.slane %v9115, 2
      %v9367 = vrot.slane %v9116, 2
      %v9368 = vrot.slane %v9117, 2
      %v9411 = vunpack.c.l.b16 %v9323
      %v9412 = vunpack.c.l.b16 %v9324
      %v9413 = vunpack.c.l.b16 %v9325
      %v9414 = vunpack.c.l.b16 %v9326
      %v9415 = vunpack.c.l.b16 %v9327
      %v9416 = vunpack.c.l.b16 %v9328
      %v9417 = vunpack.c.l.b16 %v9329
      %v9418 = vunpack.c.l.b16 %v9330
      %v9419 = vunpack.c.l.b16 %v9331
      %v9420 = vunpack.c.l.b16 %v9332
      %v9421 = vunpack.c.l.b16 %v9333
      %v9422 = vunpack.c.l.b16 %v9334
      %v9423 = vunpack.c.l.b16 %v9335
      %v9424 = vunpack.c.l.b16 %v9336
      %v9425 = vunpack.c.l.b16 %v9337
      %v9426 = vunpack.c.l.b16 %v9338
      %v9427 = vunpack.c.l.b16 %v9339
      %v9428 = vunpack.c.l.b16 %v9340
      %v9429 = vunpack.c.l.b16 %v9341
      %v9430 = vunpack.c.l.b16 %v9342
      %v9431 = vunpack.c.l.b16 %v9343
      %v9432 = vunpack.c.l.b16 %v9344
      %v9433 = vunpack.c.l.b16 %v9345
      %v9434 = vunpack.c.l.b16 %v9346
      %v9435 = vunpack.c.l.b16 %v9347
      %v9436 = vunpack.c.l.b16 %v9348
      %v9437 = vunpack.c.l.b16 %v9349
      %v9438 = vunpack.c.l.b16 %v9350
      %v9439 = vunpack.c.l.b16 %v9351
      %v9440 = vunpack.c.l.b16 %v9352
      %v9441 = vunpack.c.l.b16 %v9353
      %v9442 = vunpack.c.l.b16 %v9354
      %v9443 = vunpack.c.l.b16 %v9355
      %v9444 = vunpack.c.l.b16 %v9356
      %v9445 = vunpack.c.l.b16 %v9357
      %v9446 = vunpack.c.l.b16 %v9358
      %v9447 = vunpack.c.l.b16 %v9359
      %v9448 = vunpack.c.l.b16 %v9360
      %v9449 = vunpack.c.l.b16 %v9361
      %v9450 = vunpack.c.l.b16 %v9362
      %v9451 = vpack.c.b16 %v9412, %v9411
      %v9452 = vpack.c.b16 %v9414, %v9413
      %v9453 = vpack.c.b16 %v9416, %v9415
      %v9454 = vpack.c.b16 %v9418, %v9417
      %v9455 = vpack.c.b16 %v9420, %v9419
      %v9456 = vpack.c.b16 %v9422, %v9421
      %v9457 = vpack.c.b16 %v9424, %v9423
      %v9458 = vpack.c.b16 %v9426, %v9425
      %v9459 = vpack.c.b16 %v9428, %v9427
      %v9460 = vpack.c.b16 %v9430, %v9429
      %v9461 = vpack.c.b16 %v9432, %v9431
      %v9462 = vpack.c.b16 %v9434, %v9433
      %v9463 = vpack.c.b16 %v9436, %v9435
      %v9464 = vpack.c.b16 %v9438, %v9437
      %v9465 = vpack.c.b16 %v9440, %v9439
      %v9466 = vpack.c.b16 %v9442, %v9441
      %v9467 = vpack.c.b16 %v9444, %v9443
      %v9468 = vpack.c.b16 %v9446, %v9445
      %v9469 = vpack.c.b16 %v9448, %v9447
      %v9470 = vpack.c.b16 %v9450, %v9449
      %v9492 = vsel %vm8161, %v9368, 0
      %9494 = vmatpush.bf16.msra.mxu0 %v9458
      %9495 = vmatpush.bf16.msra.mxu0 %v9457
      %9496 = vmatpush.bf16.msra.mxu0 %v9456
      %9497 = vmatpush.bf16.msra.mxu0 %v9455
      %9498 = vmatpush.bf16.msra.mxu0 %v9454
      %9499 = vmatpush.bf16.msra.mxu0 %v9453
      %9500 = vmatpush.bf16.msra.mxu0 %v9452
      %9501 = vmatpush.bf16.msra.mxu0 %v9451
      %9502 = vmatmul.bf16.gmra.mxu0 %v9366
      %v9503 = vpop.f32.mrf.mxu0
      %v9504 = vadd.f32 0.0, %v9503
      %v9505 = vpop.f32.mrf.mxu0
      %9506 = vdwg.mxu0
      %9507 = vmatpush.bf16.msra.mxu0 %v9466
      %9508 = vmatpush.bf16.msra.mxu0 %v9465
      %9509 = vmatpush.bf16.msra.mxu0 %v9464
      %9510 = vmatpush.bf16.msra.mxu0 %v9463
      %9511 = vmatpush.bf16.msra.mxu0 %v9462
      %9512 = vmatpush.bf16.msra.mxu0 %v9461
      %9513 = vmatpush.bf16.msra.mxu0 %v9460
      %9514 = vmatpush.bf16.msra.mxu0 %v9459
      %9515 = vmatmul.bf16.gmra.mxu0 %v9367
      %v9516 = vpop.f32.mrf.mxu0
      %v9517 = vadd.f32 %v9504, %v9516
      %v9518 = vpop.f32.mrf.mxu0
      %9519 = vdwg.mxu0
      %9520 = vmatpush.bf16.msra.mxu0 0
      %9521 = vmatpush.bf16.msra.mxu0 0
      %9522 = vmatpush.bf16.msra.mxu0 0
      %9523 = vmatpush.bf16.msra.mxu0 0
      %9524 = vmatpush.bf16.msra.mxu0 %v9470
      %9525 = vmatpush.bf16.msra.mxu0 %v9469
      %9526 = vmatpush.bf16.msra.mxu0 %v9468
      %9527 = vmatpush.bf16.msra.mxu0 %v9467
      %9528 = vmatmul.bf16.gmra.mxu0 %v9492
      %v9529 = vpop.f32.mrf.mxu0
      %v9530 = vadd.f32 %v9517, %v9529
      %v9531 = vpop.f32.mrf.mxu0
      %9532 = vdwg.mxu0
      %v9533 = vadd.f32 %v8739, %v9530
      %v9534 = vpack.c.bf16 %v7861, %v7861
      %v9535 = vpack.c.bf16 %v7862, %v7862
      %v9536 = vpack.c.bf16 %v7863, %v7863
      %s9537 = scalar_lea.vmem %s10, 1280
      %v9538 = vld [vmem:[%s9537] sm:$0xf]
      %v9539 = vld [vmem:[%s9537 + $0x4] sm:$0xf]
      %v9540 = vld [vmem:[%s9537 + $0x8] sm:$0xf]
      %v9541 = vld [vmem:[%s9537 + $0xc] sm:$0xf]
      %v9542 = vld [vmem:[%s9537 + $0x10] sm:$0xf]
      %v9543 = vld [vmem:[%s9537 + $0x14] sm:$0xf]
      %v9544 = vld [vmem:[%s9537 + $0x18] sm:$0xf]
      %v9545 = vld [vmem:[%s9537 + $0x1c] sm:$0xf]
      %v9546 = vld [vmem:[%s9537 + $0x20] sm:$0xf]
      %v9547 = vld [vmem:[%s9537 + $0x24] sm:$0xf]
      %v9548 = vld [vmem:[%s9537 + $0x28] sm:$0xf]
      %v9549 = vld [vmem:[%s9537 + $0x2c] sm:$0xf]
      %v9550 = vld [vmem:[%s9537 + $0x30] sm:$0xf]
      %v9551 = vld [vmem:[%s9537 + $0x34] sm:$0xf]
      %v9552 = vld [vmem:[%s9537 + $0x38] sm:$0xf]
      %v9553 = vld [vmem:[%s9537 + $0x3c] sm:$0xf]
      %v9554 = vld [vmem:[%s9537 + $0x40] sm:$0xf]
      %v9555 = vld [vmem:[%s9537 + $0x44] sm:$0xf]
      %v9556 = vld [vmem:[%s9537 + $0x48] sm:$0xf]
      %v9557 = vld [vmem:[%s9537 + $0x4c] sm:$0xf]
      %v9558 = vld [vmem:[%s9537 + $0x50] sm:$0xf]
      %v9559 = vld [vmem:[%s9537 + $0x54] sm:$0xf]
      %v9560 = vld [vmem:[%s9537 + $0x58] sm:$0xf]
      %v9561 = vld [vmem:[%s9537 + $0x5c] sm:$0xf]
      %v9562 = vld [vmem:[%s9537 + $0x60] sm:$0xf]
      %v9563 = vld [vmem:[%s9537 + $0x64] sm:$0xf]
      %v9564 = vld [vmem:[%s9537 + $0x68] sm:$0xf]
      %v9565 = vld [vmem:[%s9537 + $0x6c] sm:$0xf]
      %v9566 = vld [vmem:[%s9537 + $0x70] sm:$0xf]
      %v9567 = vld [vmem:[%s9537 + $0x74] sm:$0xf]
      %v9568 = vld [vmem:[%s9537 + $0x78] sm:$0xf]
      %v9569 = vld [vmem:[%s9537 + $0x7c] sm:$0xf]
      %v9570 = vld [vmem:[%s9537 + $0x80] sm:$0xf]
      %v9571 = vld [vmem:[%s9537 + $0x84] sm:$0xf]
      %v9572 = vld [vmem:[%s9537 + $0x88] sm:$0xf]
      %v9573 = vld [vmem:[%s9537 + $0x8c] sm:$0xf]
      %v9574 = vld [vmem:[%s9537 + $0x90] sm:$0xf]
      %v9575 = vld [vmem:[%s9537 + $0x94] sm:$0xf]
      %v9576 = vld [vmem:[%s9537 + $0x98] sm:$0xf]
      %v9577 = vld [vmem:[%s9537 + $0x9c] sm:$0xf]
      %v9618 = vunpack.c.l.b16 %v9538
      %v9619 = vunpack.c.l.b16 %v9539
      %v9620 = vunpack.c.l.b16 %v9540
      %v9621 = vunpack.c.l.b16 %v9541
      %v9622 = vunpack.c.l.b16 %v9542
      %v9623 = vunpack.c.l.b16 %v9543
      %v9624 = vunpack.c.l.b16 %v9544
      %v9625 = vunpack.c.l.b16 %v9545
      %v9626 = vunpack.c.l.b16 %v9546
      %v9627 = vunpack.c.l.b16 %v9547
      %v9628 = vunpack.c.l.b16 %v9548
      %v9629 = vunpack.c.l.b16 %v9549
      %v9630 = vunpack.c.l.b16 %v9550
      %v9631 = vunpack.c.l.b16 %v9551
      %v9632 = vunpack.c.l.b16 %v9552
      %v9633 = vunpack.c.l.b16 %v9553
      %v9634 = vunpack.c.l.b16 %v9554
      %v9635 = vunpack.c.l.b16 %v9555
      %v9636 = vunpack.c.l.b16 %v9556
      %v9637 = vunpack.c.l.b16 %v9557
      %v9638 = vunpack.c.l.b16 %v9558
      %v9639 = vunpack.c.l.b16 %v9559
      %v9640 = vunpack.c.l.b16 %v9560
      %v9641 = vunpack.c.l.b16 %v9561
      %v9642 = vunpack.c.l.b16 %v9562
      %v9643 = vunpack.c.l.b16 %v9563
      %v9644 = vunpack.c.l.b16 %v9564
      %v9645 = vunpack.c.l.b16 %v9565
      %v9646 = vunpack.c.l.b16 %v9566
      %v9647 = vunpack.c.l.b16 %v9567
      %v9648 = vunpack.c.l.b16 %v9568
      %v9649 = vunpack.c.l.b16 %v9569
      %v9650 = vunpack.c.l.b16 %v9570
      %v9651 = vunpack.c.l.b16 %v9571
      %v9652 = vunpack.c.l.b16 %v9572
      %v9653 = vunpack.c.l.b16 %v9573
      %v9654 = vunpack.c.l.b16 %v9574
      %v9655 = vunpack.c.l.b16 %v9575
      %v9656 = vunpack.c.l.b16 %v9576
      %v9657 = vunpack.c.l.b16 %v9577
      %v9658 = vpack.c.b16 %v9619, %v9618
      %v9659 = vpack.c.b16 %v9621, %v9620
      %v9660 = vpack.c.b16 %v9623, %v9622
      %v9661 = vpack.c.b16 %v9625, %v9624
      %v9662 = vpack.c.b16 %v9627, %v9626
      %v9663 = vpack.c.b16 %v9629, %v9628
      %v9664 = vpack.c.b16 %v9631, %v9630
      %v9665 = vpack.c.b16 %v9633, %v9632
      %v9666 = vpack.c.b16 %v9635, %v9634
      %v9667 = vpack.c.b16 %v9637, %v9636
      %v9668 = vpack.c.b16 %v9639, %v9638
      %v9669 = vpack.c.b16 %v9641, %v9640
      %v9670 = vpack.c.b16 %v9643, %v9642
      %v9671 = vpack.c.b16 %v9645, %v9644
      %v9672 = vpack.c.b16 %v9647, %v9646
      %v9673 = vpack.c.b16 %v9649, %v9648
      %v9674 = vpack.c.b16 %v9651, %v9650
      %v9675 = vpack.c.b16 %v9653, %v9652
      %v9676 = vpack.c.b16 %v9655, %v9654
      %v9677 = vpack.c.b16 %v9657, %v9656
      %v9699 = vsel %vm8161, %v9536, 0
      %9701 = vmatpush.bf16.msra.mxu0 %v9665
      %9702 = vmatpush.bf16.msra.mxu0 %v9664
      %9703 = vmatpush.bf16.msra.mxu0 %v9663
      %9704 = vmatpush.bf16.msra.mxu0 %v9662
      %9705 = vmatpush.bf16.msra.mxu0 %v9661
      %9706 = vmatpush.bf16.msra.mxu0 %v9660
      %9707 = vmatpush.bf16.msra.mxu0 %v9659
      %9708 = vmatpush.bf16.msra.mxu0 %v9658
      %9709 = vmatmul.bf16.gmra.mxu0 %v9534
      %v9710 = vpop.f32.mrf.mxu0
      %v9711 = vadd.f32 0.0, %v9710
      %v9712 = vpop.f32.mrf.mxu0
      %9713 = vdwg.mxu0
      %9714 = vmatpush.bf16.msra.mxu0 %v9673
      %9715 = vmatpush.bf16.msra.mxu0 %v9672
      %9716 = vmatpush.bf16.msra.mxu0 %v9671
      %9717 = vmatpush.bf16.msra.mxu0 %v9670
      %9718 = vmatpush.bf16.msra.mxu0 %v9669
      %9719 = vmatpush.bf16.msra.mxu0 %v9668
      %9720 = vmatpush.bf16.msra.mxu0 %v9667
      %9721 = vmatpush.bf16.msra.mxu0 %v9666
      %9722 = vmatmul.bf16.gmra.mxu0 %v9535
      %v9723 = vpop.f32.mrf.mxu0
      %v9724 = vadd.f32 %v9711, %v9723
      %v9725 = vpop.f32.mrf.mxu0
      %9726 = vdwg.mxu0
      %9727 = vmatpush.bf16.msra.mxu0 0
      %9728 = vmatpush.bf16.msra.mxu0 0
      %9729 = vmatpush.bf16.msra.mxu0 0
      %9730 = vmatpush.bf16.msra.mxu0 0
      %9731 = vmatpush.bf16.msra.mxu0 %v9677
      %9732 = vmatpush.bf16.msra.mxu0 %v9676
      %9733 = vmatpush.bf16.msra.mxu0 %v9675
      %9734 = vmatpush.bf16.msra.mxu0 %v9674
      %9735 = vmatmul.bf16.gmra.mxu0 %v9699
      %v9736 = vpop.f32.mrf.mxu0
      %v9737 = vadd.f32 %v9724, %v9736
      %v9738 = vpop.f32.mrf.mxu0
      %9739 = vdwg.mxu0
      %v9740 = vadd.f32 %v9112, %v9737
      %v9741 = vadd.f32 %v9321, %v9533
      %v9742 = vadd.f32 %v9741, %v9740
      %v9743 = vld [vmem:[%s11] sm:$0x1]
      %v9745 = vperm.slane %v9743, 0
      %v9747 = vadd.f32 %v9742, %v9745
      %v9748 = vmax.f32 %v9747, 0.0
      %v9749 = vld [vmem:[%s12] sm:$0xff]
      %v9750 = vld [vmem:[%s12 + $0x8] sm:$0xff]
      %v9751 = vld [vmem:[%s12 + $0x10] sm:$0xff]
      %v9752 = vld [vmem:[%s12 + $0x18] sm:$0xff]
      %v9753 = vld [vmem:[%s12 + $0x20] sm:$0xff]
      %v9754 = vld [vmem:[%s12 + $0x28] sm:$0xff]
      %v9755 = vld [vmem:[%s12 + $0x30] sm:$0xff]
      %v9756 = vld [vmem:[%s12 + $0x38] sm:$0xff]
      %v9757 = vld [vmem:[%s12 + $0x40] sm:$0xff]
      %v9758 = vld [vmem:[%s12 + $0x48] sm:$0xff]
      %v9759 = vld [vmem:[%s12 + $0x50] sm:$0xff]
      %v9760 = vld [vmem:[%s12 + $0x58] sm:$0xff]
      %v9761 = vld [vmem:[%s12 + $0x60] sm:$0xff]
      %v9762 = vld [vmem:[%s12 + $0x68] sm:$0xff]
      %v9763 = vld [vmem:[%s12 + $0x70] sm:$0xff]
      %v9764 = vld [vmem:[%s12 + $0x78] sm:$0xff]
      %v9765 = vld [vmem:[%s13] sm:$0x1]
      %v9767 = vperm.slane %v9765, 0
      %9769 = vmatpush.msra.mxu0 %v9764
      %9770 = vmatpush.msra.mxu0 %v9763
      %9771 = vmatpush.msra.mxu0 %v9762
      %9772 = vmatpush.msra.mxu0 %v9761
      %9773 = vmatpush.msra.mxu0 %v9760
      %9774 = vmatpush.msra.mxu0 %v9759
      %9775 = vmatpush.msra.mxu0 %v9758
      %9776 = vmatpush.msra.mxu0 %v9757
      %9777 = vmatpush.msra.mxu0 %v9756
      %9778 = vmatpush.msra.mxu0 %v9755
      %9779 = vmatpush.msra.mxu0 %v9754
      %9780 = vmatpush.msra.mxu0 %v9753
      %9781 = vmatpush.msra.mxu0 %v9752
      %9782 = vmatpush.msra.mxu0 %v9751
      %9783 = vmatpush.msra.mxu0 %v9750
      %9784 = vmatpush.msra.mxu0 %v9749
      %9785 = vmatmul.f32.gmra.mxu0 %v9748
      %v9786 = vpop.f32.mrf.mxu0
      %v9787 = vadd.f32 %v9767, %v9786
      %9788 = vdwg.mxu0
      %9789 = vst [vmem:[%s485] sm:$0xf] %v9787
      %p9790 = scmp.lt.s32.totalorder %s25, 1
      %s9791 = scalar_select %p9790, %s25, 1
      %s9792 = smul.addr %s9791, 4
      %s9793 = scalar_lea.vmem %s14, %s9792
      // Predicated region
      $region77: #{cnn_forward.1} parent=75 // pred_check
        %p9794 = pneg %p347
      $region78: #{cnn_forward.1} parent=75 // pred_check_branch
        %9796 = sbr.rel (%p9794) target = $region80
      $region79: #{cnn_forward.1} parent=75 // pred_region
        _
      $region80: #{cnn_forward.1} parent=75 // pred_fallthru
        _
    $region76: #{cnn_forward.1} parent=5 // pred_fallthru
      _
    %p9797 = scmp.le.s32.totalorder 2, %s20
    // Predicated region
    $region81: #{cnn_forward.1} parent=5 // pred_check
      %p9798 = pneg %p9797
    $region82: #{cnn_forward.1} parent=5 // pred_check_branch
      %9800 = sbr.rel (%p9798) target = $region84
    $region83: #{cnn_forward.1} parent=5 // pred_region
      %s9801 = ssub.s32 %s20, 2
      // Predicated region
      $region85: #{cnn_forward.1} parent=83 // pred_check
        %p9802 = pneg %p353
      $region86: #{cnn_forward.1} parent=83 // pred_check_branch
        %9804 = sbr.rel (%p9802) target = $region88
      $region87: #{cnn_forward.1} parent=83 // pred_region
        %p9805 = scmp.lt.s32.totalorder %s26, 1
        %s9806 = scalar_select %p9805, %s26, 1
        %s9807 = smul.addr %s9806, 4
        %s9808 = scalar_lea.vmem %s14, %s9807
      $region88: #{cnn_forward.1} parent=83 // pred_fallthru
        _
    $region84: #{cnn_forward.1} parent=5 // pred_fallthru
      _
  $region6: #{cnn_forward.1} parent=0 // loop_footer
    %s24 = sadd.s32 1, %s20
  $region7: #{cnn_forward.1} parent=0 // loop_footer_branch
    %19 = sbr.rel target = $region3
  $region8: #{cnn_forward.1} parent=0 // loop_exit
    _

</llo_original>
